<compile_context>
chip_gen: v7x
topology: tpu7x:2x2x1
jax: 0.10.0
libtpu: 0.0.40
codegen_flags: <defaults>
</compile_context>

<pallas_src>
import functools

import jax
import jax.numpy as jnp
from jax import lax
from jax.experimental import pallas as pl
from jax.experimental.pallas import tpu as pltpu

EPS = 1e-5   # PyTorch BatchNorm2d default eps


# ---------------------------------------------------------------------------
# VMEM-aware tile / limit selection
# ---------------------------------------------------------------------------

def _vmem_limit():
    """Generation-aware scoped-VMEM limit."""
    try:
        cap = int(pltpu.get_tpu_info().vmem_capacity_bytes)
        return max(32 * 1024 * 1024, min(cap * 3 // 4, 96 * 1024 * 1024))
    except Exception:
        return 32 * 1024 * 1024      # conservative fallback, safe everywhere


def _cnn_tile_bytes(H, W, c1, c2, th):
    """Rough per-grid-step VMEM footprint of the fused CNN kernel."""
    W2, W4 = W // 2, W // 4
    th4, th2 = th + 4, th + 2
    hp = ((H + th - 1) // th) * th + 6
    b = 0
    b += 2 * hp * (W + 2) * 2               # resident bf16 input block (x2 bufs)
    b += 2 * th4 * W * c1 * 4               # conv1 f32 accumulator + temporaries
    b += th4 * (W + 2) * c1 * 2             # a1 scratch (bf16)
    b += th2 * (W2 + 2) * c1 * 2            # a2 scratch (bf16)
    b += 2 * th2 * W * 3 * c1 * 2           # conv2 lhs (+ slice transients)
    b += th2 * W * c1 * 4                   # conv2 f32 result
    b += 2 * th * W2 * 3 * c1 * 2           # conv3 lhs (+ slice transients)
    b += th * W2 * c2 * 4                   # conv3 f32 result
    b += 2 * th * c2 * W4 * 2               # output block (x2 bufs)
    return int(b * 1.5)                     # headroom for relayout copies


def _choose_th(H, W, c1, c2, budget, row_tile=None):
    """Row tile for the fused CNN kernel: multiple of 8, VMEM-budget capped."""
    h8 = max(8, ((H + 7) // 8) * 8)
    if row_tile is not None:
        return max(8, min(((row_tile + 7) // 8) * 8, h8))
    best = 8
    for th in range(8, 129, 8):
        if th > h8:
            break
        if _cnn_tile_bytes(H, W, c1, c2, th) <= budget:
            best = th
    return best


def _fc_col_tile(k, n_out, budget):
    # Keep the whole (K, n_out) weight resident when it fits comfortably so it
    # is DMA'd exactly once; otherwise tile the output columns.
    if 2 * k * n_out * 2 <= budget // 2:
        return n_out
    for tn in (1024, 512, 256, 128):
        if n_out % tn == 0:
            return tn
    return n_out


def _fc_row_tile(m, k, tn, budget):
    best = 8 if m % 8 == 0 else m
    for tm in range(8, min(1024, m) + 1, 8):
        if m % tm:
            continue
        est = 2 * tm * k * 2 + 2 * k * tn * 2 + 2 * tm * tn * 4
        if est <= budget and m // tm >= 2:   # >=2 steps keeps both v7x TCs busy
            best = tm
    return best


# ---------------------------------------------------------------------------
# Fused CNN-stack kernel
# ---------------------------------------------------------------------------

def _cnn_stack_kernel(x_ref, w1_ref, b1_ref, w2_ref, b2_ref, w3_ref, b3_ref,
                      o_ref, a1_ref, a2_ref, *, th, H, W, c1, c2):
    """conv1(VPU)+BN+ReLU -> conv2+BN+ReLU+pool -> conv3+BN+ReLU+pool
    -> c-major (C, W//4) feature layout, for one (batch, row-tile) grid step.

    x_ref : (Hp, W+2)          bf16  zero-padded input, resident per batch elem
    w1_ref: (9, c1)            f32   BN-folded conv1 weights (VPU path)
    b1_ref: (1, 1, c1)         f32
    w2_ref: (3, 3*c1, c1)      bf16  BN-folded conv2 weights, [dy][(dx,ci), co]
    b2_ref: (1, c1)            f32
    w3_ref: (3, 3*c1, c2)      bf16
    b3_ref: (1, c2)            f32
    o_ref : (th, c2 * W//4)    bf16  FC-ready (c-major) output rows
    a1_ref: (th+4, W+2, c1)    bf16  scratch: conv1 out, zero W-border columns
    a2_ref: (th+2, W//2+2, c1) bf16  scratch: pooled conv2 out, zero W borders
    """
    t = pl.program_id(1)
    th4, th2 = th + 4, th + 2
    W2, W4 = W // 2, W // 4
    row0 = pl.multiple_of(t * th, 8)

    # ---- conv1: 1 -> c1 channels on the VPU (9 shifted multiply-adds) -----
    xt = x_ref[pl.ds(row0, th + 6), :]                  # (th+6, W+2) bf16
    w1 = w1_ref[...]                                    # (9, c1) f32
    acc = jnp.zeros((th4, W, c1), jnp.float32)
    for dy in range(3):
        for dx in range(3):
            s = xt[dy:dy + th4, dx:dx + W]              # (th4, W)
            acc = acc + s[:, :, None] * w1[dy * 3 + dx][None, None, :]
    a1 = jnp.maximum(acc + b1_ref[...], 0.0)

    # Rows outside [0, H) are conv2's zero padding -> force them to 0.
    g1 = lax.broadcasted_iota(jnp.int32, (th4, 1), 0) + (t * th - 2)
    a1 = jnp.where(((g1 >= 0) & (g1 < H))[:, :, None], a1, 0.0)

    zc1 = jnp.zeros((th4, 1, c1), a1_ref.dtype)
    a1_ref[:, 0:1, :] = zc1                             # zero W-padding columns
    a1_ref[:, W + 1:W + 2, :] = zc1
    a1_ref[:, 1:W + 1, :] = a1.astype(a1_ref.dtype)

    # ---- conv2: c1 -> c1 on the MXU (3 dy-accumulated dots, K = 3*c1) -----
    y2 = None
    for dy in range(3):
        lhs = jnp.concatenate(
            [a1_ref[dy:dy + th2, dx:dx + W, :].reshape(th2 * W, c1)
             for dx in range(3)], axis=-1)              # (th2*W, 3*c1) bf16
        part = jnp.dot(lhs, w2_ref[dy], preferred_element_type=jnp.float32)
        y2 = part if y2 is None else y2 + part
    y2 = jnp.maximum(y2 + b2_ref[...], 0.0).reshape(th2, W, c1)

    # Fused MaxPool2d((1, 2)) over W (floor for odd W), then row mask.
    p2 = y2[:, :2 * W2, :].reshape(th2 * W2, 2, c1)
    p2 = jnp.maximum(p2[:, 0, :], p2[:, 1, :]).reshape(th2, W2, c1)
    g2 = lax.broadcasted_iota(jnp.int32, (th2, 1), 0) + (t * th - 1)
    p2 = jnp.where(((g2 >= 0) & (g2 < H))[:, :, None], p2, 0.0)

    zc2 = jnp.zeros((th2, 1, c1), a2_ref.dtype)
    a2_ref[:, 0:1, :] = zc2
    a2_ref[:, W2 + 1:W2 + 2, :] = zc2
    a2_ref[:, 1:W2 + 1, :] = p2.astype(a2_ref.dtype)

    # ---- conv3: c1 -> c2 on the MXU, pool, emit c-major FC layout ---------
    y3 = None
    for dy in range(3):
        lhs = jnp.concatenate(
            [a2_ref[dy:dy + th, dx:dx + W2, :].reshape(th * W2, c1)
             for dx in range(3)], axis=-1)              # (th*W2, 3*c1) bf16
        part = jnp.dot(lhs, w3_ref[dy], preferred_element_type=jnp.float32)
        y3 = part if y3 is None else y3 + part
    y3 = jnp.maximum(y3 + b3_ref[...], 0.0).reshape(th, W2, c2)

    p3 = y3[:, :2 * W4, :].reshape(th * W4, 2, c2)
    p3 = jnp.maximum(p3[:, 0, :], p3[:, 1, :]).reshape(th, W4, c2)

    # feature index = c * W4 + w   (== x.transpose(1, 2).flatten(-2) + Linear)
    o_ref[...] = jnp.transpose(p3, (0, 2, 1)).reshape(th, c2 * W4).astype(o_ref.dtype)


def _cnn_stack(mel, prepped, row_tile, vmem_limit):
    """Runs the fused CNN kernel; returns (N, nh*th, c2*W//4) bf16 rows."""
    n, H, W = mel.shape
    c1 = prepped['w1'].shape[-1]
    c2 = prepped['w3'].shape[-1]
    W2, W4 = W // 2, W // 4
    ncols = c2 * W4

    th = _choose_th(H, W, c1, c2, budget=int(vmem_limit * 0.6), row_tile=row_tile)
    nh = (H + th - 1) // th
    Hp = nh * th + 6

    # One cheap zero-pad of the (tiny, cin=1) raw input; no per-layer halo
    # stacks and no intermediate activations ever hit HBM.
    xpad = jnp.pad(mel.astype(jnp.bfloat16), ((0, 0), (3, Hp - 3 - H), (1, 1)))

    kern = functools.partial(_cnn_stack_kernel, th=th, H=H, W=W, c1=c1, c2=c2)
    return pl.pallas_call(
        kern,
        out_shape=jax.ShapeDtypeStruct((n, nh * th, ncols), jnp.bfloat16),
        grid=(n, nh),
        in_specs=[
            pl.BlockSpec((None, Hp, W + 2), lambda b, t: (b, 0, 0)),  # resident per b
            pl.BlockSpec((9, c1), lambda b, t: (0, 0)),
            pl.BlockSpec((1, 1, c1), lambda b, t: (0, 0, 0)),
            pl.BlockSpec((3, 3 * c1, c1), lambda b, t: (0, 0, 0)),
            pl.BlockSpec((1, c1), lambda b, t: (0, 0)),
            pl.BlockSpec((3, 3 * c1, c2), lambda b, t: (0, 0, 0)),
            pl.BlockSpec((1, c2), lambda b, t: (0, 0)),
        ],
        out_specs=pl.BlockSpec((None, th, ncols), lambda b, t: (b, t, 0)),
        scratch_shapes=[
            pltpu.VMEM((th + 4, W + 2, c1), jnp.bfloat16),
            pltpu.VMEM((th + 2, W2 + 2, c1), jnp.bfloat16),
        ],
        compiler_params=pltpu.CompilerParams(
            dimension_semantics=("parallel", "parallel"),
            vmem_limit_bytes=vmem_limit),
    )(xpad, prepped['w1'], prepped['b1'], prepped['w2'], prepped['b2'],
      prepped['w3'], prepped['b3'])


# ---------------------------------------------------------------------------
# FC layer
# ---------------------------------------------------------------------------

def _linear_kernel(x_ref, w_ref, b_ref, o_ref):
    o_ref[...] = (jnp.dot(x_ref[...], w_ref[...],
                          preferred_element_type=jnp.float32)
                  + b_ref[...]).astype(o_ref.dtype)


def _linear(x2d, w, b, vmem_limit, out_dtype=jnp.float32):
    # out_dtype=jnp.bfloat16 halves the final HBM write if downstream tolerates.
    m, k = x2d.shape
    n_out = w.shape[-1]
    budget = int(vmem_limit * 0.6)
    tn = _fc_col_tile(k, n_out, budget)
    tm = _fc_row_tile(m, k, tn, budget)
    # Column tiles on the *outer* grid axis, row tiles on the inner axis: the
    # (k, tn) weight block index is constant along the inner axis, so each
    # weight tile is DMA'd exactly once (no per-row-tile re-streaming).
    return pl.pallas_call(
        _linear_kernel,
        out_shape=jax.ShapeDtypeStruct((m, n_out), out_dtype),
        grid=(n_out // tn, m // tm),
        in_specs=[
            pl.BlockSpec((tm, k), lambda j, i: (i, 0)),
            pl.BlockSpec((k, tn), lambda j, i: (0, j)),
            pl.BlockSpec((1, tn), lambda j, i: (0, j)),
        ],
        out_specs=pl.BlockSpec((tm, tn), lambda j, i: (i, j)),
        compiler_params=pltpu.CompilerParams(
            dimension_semantics=("parallel", "parallel"),
            vmem_limit_bytes=vmem_limit),
    )(x2d, w, b)


# ---------------------------------------------------------------------------
# Parameters (raw + one-time prepared) and forward
# ---------------------------------------------------------------------------

def init_params(key, in_features, out_features):
    c1 = out_features // 16
    c2 = out_features // 8
    lin_in = c2 * (in_features // 4)
    ks = jax.random.split(key, 5)

    def conv_p(k, cin, cout):
        kw, kb, kg, kbt, km, kv = jax.random.split(k, 6)
        return dict(
            w=jax.random.normal(kw, (3, 3, cin, cout), jnp.float32) * 0.1,  # HWIO
            b=jax.random.normal(kb, (cout,), jnp.float32) * 0.1,
            gamma=1.0 + 0.1 * jax.random.normal(kg, (cout,), jnp.float32),
            beta=0.1 * jax.random.normal(kbt, (cout,), jnp.float32),
            rmean=0.1 * jax.random.normal(km, (cout,), jnp.float32),
            rvar=1.0 + 0.1 * jax.random.uniform(kv, (cout,), jnp.float32),
        )

    return dict(
        conv1=conv_p(ks[0], 1, c1),
        conv2=conv_p(ks[1], c1, c1),
        conv3=conv_p(ks[2], c1, c2),
        fnn_w=jax.random.normal(ks[3], (lin_in, out_features), jnp.float32) * 0.1,
        fnn_b=jax.random.normal(ks[4], (out_features,), jnp.float32) * 0.1,
    )


def prepare_params(params):
    """One-time prep (hoisted out of the forward path): fold conv bias +
    BatchNorm(eval) into weights in f32 (cast last) and pre-cast MXU operands
    to bf16."""
    def fold(p):
        scale = p['gamma'] * lax.rsqrt(p['rvar'] + EPS)
        return p['w'] * scale, (p['b'] - p['rmean']) * scale + p['beta']

    w1, b1 = fold(params['conv1'])          # (3, 3, 1,  c1)
    w2, b2 = fold(params['conv2'])          # (3, 3, c1, c1)
    w3, b3 = fold(params['conv3'])          # (3, 3, c1, c2)
    c1, c2 = w1.shape[-1], w3.shape[-1]
    return dict(
        w1=w1.reshape(9, c1).astype(jnp.float32),        # VPU path stays f32
        b1=b1.reshape(1, 1, c1).astype(jnp.float32),
        w2=w2.reshape(3, 3 * c1, c1).astype(jnp.bfloat16),
        b2=b2.reshape(1, c1).astype(jnp.float32),
        w3=w3.reshape(3, 3 * c1, c2).astype(jnp.bfloat16),
        b3=b3.reshape(1, c2).astype(jnp.float32),
        fc_w=params['fnn_w'].astype(jnp.bfloat16),
        fc_b=params['fnn_b'].reshape(1, -1).astype(jnp.float32),
    )


def kelz_cnn_forward(mel, prepped, row_tile=None):
    """mel: (N, H, W=in_features) -> (N, H, out_features).  Eval mode."""
    n, H, _ = mel.shape
    out_f = prepped['fc_b'].shape[-1]
    vmem_limit = _vmem_limit()

    feats = _cnn_stack(mel, prepped, row_tile, vmem_limit)   # (n, nh*th, c2*W4)
    rows = feats.shape[1]
    # Dropout(0.25), Dropout(0.25), Dropout(0.5): identity in eval mode.
    y = _linear(feats.reshape(n * rows, feats.shape[-1]),
                prepped['fc_w'], prepped['fc_b'], vmem_limit)
    return y.reshape(n, rows, out_f)[:, :H, :]


# ---------------------------------------------------------------------------
# Pure-JAX reference (mirrors PyTorch eval-mode semantics, full f32)
# ---------------------------------------------------------------------------

def ref_forward(mel, params):
    x = mel[..., None].astype(jnp.float32)          # NHWC with C = 1

    def conv_bn_relu(x, w, b, gamma, beta, rmean, rvar):
        y = lax.conv_general_dilated(
            x, w, window_strides=(1, 1), padding=((1, 1), (1, 1)),
            dimension_numbers=('NHWC', 'HWIO', 'NHWC'))
        y = y + b
        y = (y - rmean) / jnp.sqrt(rvar + EPS) * gamma + beta
        return jnp.maximum(y, 0.0)

    def pool_w(y):                                  # MaxPool2d((1, 2)), floor
        we = (y.shape[2] // 2) * 2
        return jnp.maximum(y[:, :, 0:we:2, :], y[:, :, 1:we:2, :])

    p = params
    x = conv_bn_relu(x, **p['conv1'])
    x = conv_bn_relu(x, **p['conv2'])
    x = pool_w(x)
    x = conv_bn_relu(x, **p['conv3'])
    x = pool_w(x)
    n, h, w4, c2 = x.shape
    x = jnp.transpose(x, (0, 1, 3, 2)).reshape(n, h, c2 * w4)
    return x @ p['fnn_w'] + p['fnn_b']


if __name__ == "__main__":
    N, H = 2, 40             # H deliberately not a multiple of the 16-row tile:
                             # exercises multi-tile halos, padding masks + crop
    in_features = 16         # mel bins (W axis)
    out_features = 32        # -> C1 = 2, C2 = 4, linear-in = 4 * (16 // 4) = 16

    key = jax.random.PRNGKey(0)
    kp, kx = jax.random.split(key)
    params = init_params(kp, in_features, out_features)
    mel = jax.random.normal(kx, (N, H, in_features), jnp.float32)

    prepped = prepare_params(params)          # one-time, hoisted out of forward
    fwd = jax.jit(functools.partial(kelz_cnn_forward, row_tile=16))
    out = jax.block_until_ready(fwd(mel, prepped))

    ref = ref_forward(mel, params)
    assert out.shape == (N, H, out_features), out.shape
    err = float(jnp.max(jnp.abs(out - ref)))
    # bf16 matmul operands / bf16 inter-layer activations vs. the f32 reference.
    assert jnp.allclose(out, ref, atol=2e-2, rtol=2e-2), f"max abs err {err}"
    print("KERNEL_OK")
</pallas_src>

<mosaic_0001>
module attributes {stable_mosaic.version = 11 : i64} {
  func.func @_linear_kernel(%arg0: i32, %arg1: i32, %arg2: memref<48x16xbf16, #tpu.memory_space<vmem>>, %arg3: memref<16x32xbf16, #tpu.memory_space<vmem>>, %arg4: memref<1x32xf32, #tpu.memory_space<vmem>>, %arg5: memref<48x32xf32, #tpu.memory_space<vmem>>) attributes {dimension_semantics = [#tpu.dimension_semantics<parallel>, #tpu.dimension_semantics<parallel>], iteration_bounds = array<i64: 1, 2>, scalar_prefetch = 0 : i64, scratch_operands = 0 : i64, tpu.core_type = #tpu.core_type<tc>, window_params = [{transform_indices = @transform_0, window_bounds = array<i64: 48, 16>}, {transform_indices = @transform_1, window_bounds = array<i64: 16, 32>}, {transform_indices = @transform_2, window_bounds = array<i64: 1, 32>}, {transform_indices = @transform_3, window_bounds = array<i64: 48, 32>}]} {
    %c0 = arith.constant 0 : index
    %c0_0 = arith.constant 0 : index
    %0 = vector.load %arg2[%c0, %c0_0] : memref<48x16xbf16, #tpu.memory_space<vmem>>, vector<48x16xbf16>
    %c0_1 = arith.constant 0 : index
    %c0_2 = arith.constant 0 : index
    %1 = vector.load %arg3[%c0_1, %c0_2] : memref<16x32xbf16, #tpu.memory_space<vmem>>, vector<16x32xbf16>
    %cst = arith.constant dense<0.000000e+00> : vector<48x32xf32>
    %2 = tpu.matmul %0, %1, %cst {dimension_numbers = #tpu.dot_dimension_numbers<[1], [0], [0], [1], [0, 0, 1, 1], [], []>} : vector<48x16xbf16>, vector<16x32xbf16>, vector<48x32xf32> -> vector<48x32xf32>
    %c0_3 = arith.constant 0 : index
    %c0_4 = arith.constant 0 : index
    %3 = vector.load %arg4[%c0_3, %c0_4] : memref<1x32xf32, #tpu.memory_space<vmem>>, vector<1x32xf32>
    %4 = vector.broadcast %3 : vector<1x32xf32> to vector<48x32xf32>
    %5 = arith.addf %2, %4 : vector<48x32xf32>
    %c0_5 = arith.constant 0 : index
    %c0_6 = arith.constant 0 : index
    %6 = vector.load %arg5[%c0_5, %c0_6] : memref<48x32xf32, #tpu.memory_space<vmem>>, vector<48x32xf32>
    tpu.vector_store %arg5[%c0_5, %c0_6], %5 {strides = array<i32>} : memref<48x32xf32, #tpu.memory_space<vmem>>, vector<48x32xf32>,
    return
  }
  func.func @transform_0(%arg0: i32, %arg1: i32) -> (i32, i32) {
    %c0_i32 = arith.constant 0 : i32
    %c0_i32_0 = arith.constant 0 : i32
    return %arg1, %c0_i32 : i32, i32
  }
  func.func @transform_1(%arg0: i32, %arg1: i32) -> (i32, i32) {
    %c0_i32 = arith.constant 0 : i32
    %c0_i32_0 = arith.constant 0 : i32
    return %c0_i32, %arg0 : i32, i32
  }
  func.func @transform_2(%arg0: i32, %arg1: i32) -> (i32, i32) {
    %c0_i32 = arith.constant 0 : i32
    %c0_i32_0 = arith.constant 0 : i32
    return %c0_i32, %arg0 : i32, i32
  }
  func.func @transform_3(%arg0: i32, %arg1: i32) -> (i32, i32) {
    %c0_i32 = arith.constant 0 : i32
    return %arg1, %arg0 : i32, i32
  }
}

module attributes {stable_mosaic.version = 11 : i64} {
  func.func @_cnn_stack_kernel(%arg0: i32, %arg1: i32, %arg2: memref<1x54x18xbf16, #tpu.memory_space<vmem>>, %arg3: memref<9x2xf32, #tpu.memory_space<vmem>>, %arg4: memref<1x1x2xf32, #tpu.memory_space<vmem>>, %arg5: memref<3x6x2xbf16, #tpu.memory_space<vmem>>, %arg6: memref<1x2xf32, #tpu.memory_space<vmem>>, %arg7: memref<3x6x4xbf16, #tpu.memory_space<vmem>>, %arg8: memref<1x4xf32, #tpu.memory_space<vmem>>, %arg9: memref<1x16x16xbf16, #tpu.memory_space<vmem>>, %arg10: memref<20x18x2xbf16, #tpu.memory_space<vmem>>, %arg11: memref<18x10x2xbf16, #tpu.memory_space<vmem>>) attributes {dimension_semantics = [#tpu.dimension_semantics<parallel>, #tpu.dimension_semantics<parallel>], iteration_bounds = array<i64: 2, 3>, scalar_prefetch = 0 : i64, scratch_operands = 2 : i64, tpu.core_type = #tpu.core_type<tc>, window_params = [{transform_indices = @transform_0, window_bounds = array<i64: 1, 54, 18>}, {pipeline_mode = #tpu.pipeline_mode<synchronous>, transform_indices = @transform_1, window_bounds = array<i64: 9, 2>}, {pipeline_mode = #tpu.pipeline_mode<synchronous>, transform_indices = @transform_2, window_bounds = array<i64: 1, 1, 2>}, {pipeline_mode = #tpu.pipeline_mode<synchronous>, transform_indices = @transform_3, window_bounds = array<i64: 3, 6, 2>}, {pipeline_mode = #tpu.pipeline_mode<synchronous>, transform_indices = @transform_4, window_bounds = array<i64: 1, 2>}, {pipeline_mode = #tpu.pipeline_mode<synchronous>, transform_indices = @transform_5, window_bounds = array<i64: 3, 6, 4>}, {pipeline_mode = #tpu.pipeline_mode<synchronous>, transform_indices = @transform_6, window_bounds = array<i64: 1, 4>}, {transform_indices = @transform_7, window_bounds = array<i64: 1, 16, 16>}]} {
    %c16_i32 = arith.constant 16 : i32
    %0 = arith.muli %arg1, %c16_i32 : i32
    %1 = tpu.assume_multiple %0, 8 : i32
    %c0 = arith.constant 0 : index
    %2 = arith.index_cast %1 : i32 to index
    %c0_0 = arith.constant 0 : index
    %3 = vector.load %arg2[%c0, %2, %c0_0] : memref<1x54x18xbf16, #tpu.memory_space<vmem>>, vector<1x22x18xbf16>
    %4 = vector.shape_cast %3 : vector<1x22x18xbf16> to vector<22x18xbf16>
    %c0_1 = arith.constant 0 : index
    %c0_2 = arith.constant 0 : index
    %5 = vector.load %arg3[%c0_1, %c0_2] : memref<9x2xf32, #tpu.memory_space<vmem>>, vector<9x2xf32>
    %cst = arith.constant 0.000000e+00 : f32
    %6 = vector.broadcast %cst : f32 to vector<20x16x2xf32>
    %7 = vector.extract_strided_slice %4 {offsets = [0, 0], sizes = [20, 16], strides = [1, 1]} : vector<22x18xbf16> to vector<20x16xbf16>
    %8 = vector.shape_cast %7 : vector<20x16xbf16> to vector<20x16x1xbf16>
    %9 = vector.extract_strided_slice %5 {offsets = [0, 0], sizes = [1, 2], strides = [1, 1]} : vector<9x2xf32> to vector<1x2xf32>
    %10 = vector.shape_cast %9 : vector<1x2xf32> to vector<2xf32>
    %11 = vector.shape_cast %10 : vector<2xf32> to vector<1x1x2xf32>
    %12 = arith.extf %8 : vector<20x16x1xbf16> to vector<20x16x1xf32>
    %13 = vector.broadcast %12 : vector<20x16x1xf32> to vector<20x16x2xf32>
    %14 = vector.broadcast %11 : vector<1x1x2xf32> to vector<20x16x2xf32>
    %15 = arith.mulf %13, %14 : vector<20x16x2xf32>
    %16 = arith.addf %6, %15 : vector<20x16x2xf32>
    %17 = vector.extract_strided_slice %4 {offsets = [0, 1], sizes = [20, 16], strides = [1, 1]} : vector<22x18xbf16> to vector<20x16xbf16>
    %18 = vector.shape_cast %17 : vector<20x16xbf16> to vector<20x16x1xbf16>
    %19 = vector.extract_strided_slice %5 {offsets = [1, 0], sizes = [1, 2], strides = [1, 1]} : vector<9x2xf32> to vector<1x2xf32>
    %20 = vector.shape_cast %19 : vector<1x2xf32> to vector<2xf32>
    %21 = vector.shape_cast %20 : vector<2xf32> to vector<1x1x2xf32>
    %22 = arith.extf %18 : vector<20x16x1xbf16> to vector<20x16x1xf32>
    %23 = vector.broadcast %22 : vector<20x16x1xf32> to vector<20x16x2xf32>
    %24 = vector.broadcast %21 : vector<1x1x2xf32> to vector<20x16x2xf32>
    %25 = arith.mulf %23, %24 : vector<20x16x2xf32>
    %26 = arith.addf %16, %25 : vector<20x16x2xf32>
    %27 = vector.extract_strided_slice %4 {offsets = [0, 2], sizes = [20, 16], strides = [1, 1]} : vector<22x18xbf16> to vector<20x16xbf16>
    %28 = vector.shape_cast %27 : vector<20x16xbf16> to vector<20x16x1xbf16>
    %29 = vector.extract_strided_slice %5 {offsets = [2, 0], sizes = [1, 2], strides = [1, 1]} : vector<9x2xf32> to vector<1x2xf32>
    %30 = vector.shape_cast %29 : vector<1x2xf32> to vector<2xf32>
    %31 = vector.shape_cast %30 : vector<2xf32> to vector<1x1x2xf32>
    %32 = arith.extf %28 : vector<20x16x1xbf16> to vector<20x16x1xf32>
    %33 = vector.broadcast %32 : vector<20x16x1xf32> to vector<20x16x2xf32>
    %34 = vector.broadcast %31 : vector<1x1x2xf32> to vector<20x16x2xf32>
    %35 = arith.mulf %33, %34 : vector<20x16x2xf32>
    %36 = arith.addf %26, %35 : vector<20x16x2xf32>
    %37 = vector.extract_strided_slice %4 {offsets = [1, 0], sizes = [20, 16], strides = [1, 1]} : vector<22x18xbf16> to vector<20x16xbf16>
    %38 = vector.shape_cast %37 : vector<20x16xbf16> to vector<20x16x1xbf16>
    %39 = vector.extract_strided_slice %5 {offsets = [3, 0], sizes = [1, 2], strides = [1, 1]} : vector<9x2xf32> to vector<1x2xf32>
    %40 = vector.shape_cast %39 : vector<1x2xf32> to vector<2xf32>
    %41 = vector.shape_cast %40 : vector<2xf32> to vector<1x1x2xf32>
    %42 = arith.extf %38 : vector<20x16x1xbf16> to vector<20x16x1xf32>
    %43 = vector.broadcast %42 : vector<20x16x1xf32> to vector<20x16x2xf32>
    %44 = vector.broadcast %41 : vector<1x1x2xf32> to vector<20x16x2xf32>
    %45 = arith.mulf %43, %44 : vector<20x16x2xf32>
    %46 = arith.addf %36, %45 : vector<20x16x2xf32>
    %47 = vector.extract_strided_slice %4 {offsets = [1, 1], sizes = [20, 16], strides = [1, 1]} : vector<22x18xbf16> to vector<20x16xbf16>
    %48 = vector.shape_cast %47 : vector<20x16xbf16> to vector<20x16x1xbf16>
    %49 = vector.extract_strided_slice %5 {offsets = [4, 0], sizes = [1, 2], strides = [1, 1]} : vector<9x2xf32> to vector<1x2xf32>
    %50 = vector.shape_cast %49 : vector<1x2xf32> to vector<2xf32>
    %51 = vector.shape_cast %50 : vector<2xf32> to vector<1x1x2xf32>
    %52 = arith.extf %48 : vector<20x16x1xbf16> to vector<20x16x1xf32>
    %53 = vector.broadcast %52 : vector<20x16x1xf32> to vector<20x16x2xf32>
    %54 = vector.broadcast %51 : vector<1x1x2xf32> to vector<20x16x2xf32>
    %55 = arith.mulf %53, %54 : vector<20x16x2xf32>
    %56 = arith.addf %46, %55 : vector<20x16x2xf32>
    %57 = vector.extract_strided_slice %4 {offsets = [1, 2], sizes = [20, 16], strides = [1, 1]} : vector<22x18xbf16> to vector<20x16xbf16>
    %58 = vector.shape_cast %57 : vector<20x16xbf16> to vector<20x16x1xbf16>
    %59 = vector.extract_strided_slice %5 {offsets = [5, 0], sizes = [1, 2], strides = [1, 1]} : vector<9x2xf32> to vector<1x2xf32>
    %60 = vector.shape_cast %59 : vector<1x2xf32> to vector<2xf32>
    %61 = vector.shape_cast %60 : vector<2xf32> to vector<1x1x2xf32>
    %62 = arith.extf %58 : vector<20x16x1xbf16> to vector<20x16x1xf32>
    %63 = vector.broadcast %62 : vector<20x16x1xf32> to vector<20x16x2xf32>
    %64 = vector.broadcast %61 : vector<1x1x2xf32> to vector<20x16x2xf32>
    %65 = arith.mulf %63, %64 : vector<20x16x2xf32>
    %66 = arith.addf %56, %65 : vector<20x16x2xf32>
    %67 = vector.extract_strided_slice %4 {offsets = [2, 0], sizes = [20, 16], strides = [1, 1]} : vector<22x18xbf16> to vector<20x16xbf16>
    %68 = vector.shape_cast %67 : vector<20x16xbf16> to vector<20x16x1xbf16>
    %69 = vector.extract_strided_slice %5 {offsets = [6, 0], sizes = [1, 2], strides = [1, 1]} : vector<9x2xf32> to vector<1x2xf32>
    %70 = vector.shape_cast %69 : vector<1x2xf32> to vector<2xf32>
    %71 = vector.shape_cast %70 : vector<2xf32> to vector<1x1x2xf32>
    %72 = arith.extf %68 : vector<20x16x1xbf16> to vector<20x16x1xf32>
    %73 = vector.broadcast %72 : vector<20x16x1xf32> to vector<20x16x2xf32>
    %74 = vector.broadcast %71 : vector<1x1x2xf32> to vector<20x16x2xf32>
    %75 = arith.mulf %73, %74 : vector<20x16x2xf32>
    %76 = arith.addf %66, %75 : vector<20x16x2xf32>
    %77 = vector.extract_strided_slice %4 {offsets = [2, 1], sizes = [20, 16], strides = [1, 1]} : vector<22x18xbf16> to vector<20x16xbf16>
    %78 = vector.shape_cast %77 : vector<20x16xbf16> to vector<20x16x1xbf16>
    %79 = vector.extract_strided_slice %5 {offsets = [7, 0], sizes = [1, 2], strides = [1, 1]} : vector<9x2xf32> to vector<1x2xf32>
    %80 = vector.shape_cast %79 : vector<1x2xf32> to vector<2xf32>
    %81 = vector.shape_cast %80 : vector<2xf32> to vector<1x1x2xf32>
    %82 = arith.extf %78 : vector<20x16x1xbf16> to vector<20x16x1xf32>
    %83 = vector.broadcast %82 : vector<20x16x1xf32> to vector<20x16x2xf32>
    %84 = vector.broadcast %81 : vector<1x1x2xf32> to vector<20x16x2xf32>
    %85 = arith.mulf %83, %84 : vector<20x16x2xf32>
    %86 = arith.addf %76, %85 : vector<20x16x2xf32>
    %87 = vector.extract_strided_slice %4 {offsets = [2, 2], sizes = [20, 16], strides = [1, 1]} : vector<22x18xbf16> to vector<20x16xbf16>
    %88 = vector.shape_cast %87 : vector<20x16xbf16> to vector<20x16x1xbf16>
    %89 = vector.extract_strided_slice %5 {offsets = [8, 0], sizes = [1, 2], strides = [1, 1]} : vector<9x2xf32> to vector<1x2xf32>
    %90 = vector.shape_cast %89 : vector<1x2xf32> to vector<2xf32>
    %91 = vector.shape_cast %90 : vector<2xf32> to vector<1x1x2xf32>
    %92 = arith.extf %88 : vector<20x16x1xbf16> to vector<20x16x1xf32>
    %93 = vector.broadcast %92 : vector<20x16x1xf32> to vector<20x16x2xf32>
    %94 = vector.broadcast %91 : vector<1x1x2xf32> to vector<20x16x2xf32>
    %95 = arith.mulf %93, %94 : vector<20x16x2xf32>
    %96 = arith.addf %86, %95 : vector<20x16x2xf32>
    %c0_3 = arith.constant 0 : index
    %c0_4 = arith.constant 0 : index
    %c0_5 = arith.constant 0 : index
    %97 = vector.load %arg4[%c0_3, %c0_4, %c0_5] : memref<1x1x2xf32, #tpu.memory_space<vmem>>, vector<1x1x2xf32>
    %98 = vector.broadcast %97 : vector<1x1x2xf32> to vector<20x16x2xf32>
    %99 = arith.addf %96, %98 : vector<20x16x2xf32>
    %cst_6 = arith.constant 0.000000e+00 : f32
    %100 = vector.broadcast %cst_6 : f32 to vector<20x16x2xf32>
    %101 = arith.maximumf %99, %100 : vector<20x16x2xf32>
    %102 = tpu.iota {dimensions = array<i32: 0>} : vector<20x1xi32>
    %c16_i32_7 = arith.constant 16 : i32
    %103 = arith.muli %arg1, %c16_i32_7 : i32
    %c2_i32 = arith.constant 2 : i32
    %104 = arith.subi %103, %c2_i32 : i32
    %105 = vector.broadcast %104 : i32 to vector<20x1xi32>
    %106 = arith.addi %102, %105 : vector<20x1xi32>
    %c0_i32 = arith.constant 0 : i32
    %107 = vector.broadcast %c0_i32 : i32 to vector<20x1xi32>
    %108 = arith.cmpi sge, %106, %107 : vector<20x1xi32>
    %c40_i32 = arith.constant 40 : i32
    %109 = vector.broadcast %c40_i32 : i32 to vector<20x1xi32>
    %110 = arith.cmpi slt, %106, %109 : vector<20x1xi32>
    %111 = arith.andi %108, %110 : vector<20x1xi1>
    %112 = vector.shape_cast %111 : vector<20x1xi1> to vector<20x1x1xi1>
    %cst_8 = arith.constant 0.000000e+00 : f32
    %113 = vector.shape_cast %112 : vector<20x1x1xi1> to vector<20x1x1xi1>
    %114 = vector.broadcast %113 : vector<20x1x1xi1> to vector<20x16x2xi1>
    %115 = vector.broadcast %cst_8 : f32 to vector<20x16x2xf32>
    %116 = arith.select %114, %101, %115 : vector<20x16x2xi1>, vector<20x16x2xf32>
    %cst_9 = arith.constant 0.000000e+00 : bf16
    %117 = vector.broadcast %cst_9 : bf16 to vector<20x1x2xbf16>
    %c0_10 = arith.constant 0 : index
    %c0_11 = arith.constant 0 : index
    %c0_12 = arith.constant 0 : index
    %118 = vector.load %arg10[%c0_10, %c0_11, %c0_12] : memref<20x18x2xbf16, #tpu.memory_space<vmem>>, vector<20x1x2xbf16>
    tpu.vector_store %arg10[%c0_10, %c0_11, %c0_12], %117 {strides = array<i32>} : memref<20x18x2xbf16, #tpu.memory_space<vmem>>, vector<20x1x2xbf16>,
    %c0_13 = arith.constant 0 : index
    %c17 = arith.constant 17 : index
    %c0_14 = arith.constant 0 : index
    %119 = vector.load %arg10[%c0_13, %c17, %c0_14] : memref<20x18x2xbf16, #tpu.memory_space<vmem>>, vector<20x1x2xbf16>
    tpu.vector_store %arg10[%c0_13, %c17, %c0_14], %117 {strides = array<i32>} : memref<20x18x2xbf16, #tpu.memory_space<vmem>>, vector<20x1x2xbf16>,
    %120 = arith.truncf %116 : vector<20x16x2xf32> to vector<20x16x2xbf16>
    %c0_15 = arith.constant 0 : index
    %c1 = arith.constant 1 : index
    %c0_16 = arith.constant 0 : index
    %121 = vector.load %arg10[%c0_15, %c1, %c0_16] : memref<20x18x2xbf16, #tpu.memory_space<vmem>>, vector<20x16x2xbf16>
    tpu.vector_store %arg10[%c0_15, %c1, %c0_16], %120 {strides = array<i32>} : memref<20x18x2xbf16, #tpu.memory_space<vmem>>, vector<20x16x2xbf16>,
    %c0_17 = arith.constant 0 : index
    %c0_18 = arith.constant 0 : index
    %c0_19 = arith.constant 0 : index
    %122 = vector.load %arg10[%c0_17, %c0_18, %c0_19] : memref<20x18x2xbf16, #tpu.memory_space<vmem>>, vector<18x16x2xbf16>
    %123 = vector.shape_cast %122 : vector<18x16x2xbf16> to vector<288x2xbf16>
    %c0_20 = arith.constant 0 : index
    %c1_21 = arith.constant 1 : index
    %c0_22 = arith.constant 0 : index
    %124 = vector.load %arg10[%c0_20, %c1_21, %c0_22] : memref<20x18x2xbf16, #tpu.memory_space<vmem>>, vector<18x16x2xbf16>
    %125 = vector.shape_cast %124 : vector<18x16x2xbf16> to vector<288x2xbf16>
    %c0_23 = arith.constant 0 : index
    %c2 = arith.constant 2 : index
    %c0_24 = arith.constant 0 : index
    %126 = vector.load %arg10[%c0_23, %c2, %c0_24] : memref<20x18x2xbf16, #tpu.memory_space<vmem>>, vector<18x16x2xbf16>
    %127 = vector.shape_cast %126 : vector<18x16x2xbf16> to vector<288x2xbf16>
    %128 = tpu.concatenate %123, %125, %127 in 1 : vector<288x2xbf16>, vector<288x2xbf16>, vector<288x2xbf16> -> vector<288x6xbf16>
    %c0_25 = arith.constant 0 : index
    %c0_26 = arith.constant 0 : index
    %c0_27 = arith.constant 0 : index
    %129 = vector.load %arg5[%c0_25, %c0_26, %c0_27] : memref<3x6x2xbf16, #tpu.memory_space<vmem>>, vector<1x6x2xbf16>
    %130 = vector.shape_cast %129 : vector<1x6x2xbf16> to vector<6x2xbf16>
    %cst_28 = arith.constant dense<0.000000e+00> : vector<288x2xf32>
    %131 = tpu.matmul %128, %130, %cst_28 {dimension_numbers = #tpu.dot_dimension_numbers<[1], [0], [0], [1], [0, 0, 1, 1], [], []>} : vector<288x6xbf16>, vector<6x2xbf16>, vector<288x2xf32> -> vector<288x2xf32>
    %c1_29 = arith.constant 1 : index
    %c0_30 = arith.constant 0 : index
    %c0_31 = arith.constant 0 : index
    %132 = vector.load %arg10[%c1_29, %c0_30, %c0_31] : memref<20x18x2xbf16, #tpu.memory_space<vmem>>, vector<18x16x2xbf16>
    %133 = vector.shape_cast %132 : vector<18x16x2xbf16> to vector<288x2xbf16>
    %c1_32 = arith.constant 1 : index
    %c1_33 = arith.constant 1 : index
    %c0_34 = arith.constant 0 : index
    %134 = vector.load %arg10[%c1_32, %c1_33, %c0_34] : memref<20x18x2xbf16, #tpu.memory_space<vmem>>, vector<18x16x2xbf16>
    %135 = vector.shape_cast %134 : vector<18x16x2xbf16> to vector<288x2xbf16>
    %c1_35 = arith.constant 1 : index
    %c2_36 = arith.constant 2 : index
    %c0_37 = arith.constant 0 : index
    %136 = vector.load %arg10[%c1_35, %c2_36, %c0_37] : memref<20x18x2xbf16, #tpu.memory_space<vmem>>, vector<18x16x2xbf16>
    %137 = vector.shape_cast %136 : vector<18x16x2xbf16> to vector<288x2xbf16>
    %138 = tpu.concatenate %133, %135, %137 in 1 : vector<288x2xbf16>, vector<288x2xbf16>, vector<288x2xbf16> -> vector<288x6xbf16>
    %c1_38 = arith.constant 1 : index
    %c0_39 = arith.constant 0 : index
    %c0_40 = arith.constant 0 : index
    %139 = vector.load %arg5[%c1_38, %c0_39, %c0_40] : memref<3x6x2xbf16, #tpu.memory_space<vmem>>, vector<1x6x2xbf16>
    %140 = vector.shape_cast %139 : vector<1x6x2xbf16> to vector<6x2xbf16>
    %cst_41 = arith.constant dense<0.000000e+00> : vector<288x2xf32>
    %141 = tpu.matmul %138, %140, %cst_41 {dimension_numbers = #tpu.dot_dimension_numbers<[1], [0], [0], [1], [0, 0, 1, 1], [], []>} : vector<288x6xbf16>, vector<6x2xbf16>, vector<288x2xf32> -> vector<288x2xf32>
    %142 = arith.addf %131, %141 : vector<288x2xf32>
    %c2_42 = arith.constant 2 : index
    %c0_43 = arith.constant 0 : index
    %c0_44 = arith.constant 0 : index
    %143 = vector.load %arg10[%c2_42, %c0_43, %c0_44] : memref<20x18x2xbf16, #tpu.memory_space<vmem>>, vector<18x16x2xbf16>
    %144 = vector.shape_cast %143 : vector<18x16x2xbf16> to vector<288x2xbf16>
    %c2_45 = arith.constant 2 : index
    %c1_46 = arith.constant 1 : index
    %c0_47 = arith.constant 0 : index
    %145 = vector.load %arg10[%c2_45, %c1_46, %c0_47] : memref<20x18x2xbf16, #tpu.memory_space<vmem>>, vector<18x16x2xbf16>
    %146 = vector.shape_cast %145 : vector<18x16x2xbf16> to vector<288x2xbf16>
    %c2_48 = arith.constant 2 : index
    %c2_49 = arith.constant 2 : index
    %c0_50 = arith.constant 0 : index
    %147 = vector.load %arg10[%c2_48, %c2_49, %c0_50] : memref<20x18x2xbf16, #tpu.memory_space<vmem>>, vector<18x16x2xbf16>
    %148 = vector.shape_cast %147 : vector<18x16x2xbf16> to vector<288x2xbf16>
    %149 = tpu.concatenate %144, %146, %148 in 1 : vector<288x2xbf16>, vector<288x2xbf16>, vector<288x2xbf16> -> vector<288x6xbf16>
    %c2_51 = arith.constant 2 : index
    %c0_52 = arith.constant 0 : index
    %c0_53 = arith.constant 0 : index
    %150 = vector.load %arg5[%c2_51, %c0_52, %c0_53] : memref<3x6x2xbf16, #tpu.memory_space<vmem>>, vector<1x6x2xbf16>
    %151 = vector.shape_cast %150 : vector<1x6x2xbf16> to vector<6x2xbf16>
    %cst_54 = arith.constant dense<0.000000e+00> : vector<288x2xf32>
    %152 = tpu.matmul %149, %151, %cst_54 {dimension_numbers = #tpu.dot_dimension_numbers<[1], [0], [0], [1], [0, 0, 1, 1], [], []>} : vector<288x6xbf16>, vector<6x2xbf16>, vector<288x2xf32> -> vector<288x2xf32>
    %153 = arith.addf %142, %152 : vector<288x2xf32>
    %c0_55 = arith.constant 0 : index
    %c0_56 = arith.constant 0 : index
    %154 = vector.load %arg6[%c0_55, %c0_56] : memref<1x2xf32, #tpu.memory_space<vmem>>, vector<1x2xf32>
    %155 = vector.broadcast %154 : vector<1x2xf32> to vector<288x2xf32>
    %156 = arith.addf %153, %155 : vector<288x2xf32>
    %cst_57 = arith.constant 0.000000e+00 : f32
    %157 = vector.broadcast %cst_57 : f32 to vector<288x2xf32>
    %158 = arith.maximumf %156, %157 : vector<288x2xf32>
    %159 = vector.shape_cast %158 : vector<288x2xf32> to vector<18x16x2xf32>
    %160 = vector.shape_cast %159 : vector<18x16x2xf32> to vector<144x2x2xf32>
    %161 = vector.extract_strided_slice %160 {offsets = [0, 0, 0], sizes = [144, 1, 2], strides = [1, 1, 1]} : vector<144x2x2xf32> to vector<144x1x2xf32>
    %162 = vector.shape_cast %161 : vector<144x1x2xf32> to vector<144x2xf32>
    %163 = vector.extract_strided_slice %160 {offsets = [0, 1, 0], sizes = [144, 1, 2], strides = [1, 1, 1]} : vector<144x2x2xf32> to vector<144x1x2xf32>
    %164 = vector.shape_cast %163 : vector<144x1x2xf32> to vector<144x2xf32>
    %165 = arith.maximumf %162, %164 : vector<144x2xf32>
    %166 = vector.shape_cast %165 : vector<144x2xf32> to vector<18x8x2xf32>
    %167 = tpu.iota {dimensions = array<i32: 0>} : vector<18x1xi32>
    %c16_i32_58 = arith.constant 16 : i32
    %168 = arith.muli %arg1, %c16_i32_58 : i32
    %c1_i32 = arith.constant 1 : i32
    %169 = arith.subi %168, %c1_i32 : i32
    %170 = vector.broadcast %169 : i32 to vector<18x1xi32>
    %171 = arith.addi %167, %170 : vector<18x1xi32>
    %c0_i32_59 = arith.constant 0 : i32
    %172 = vector.broadcast %c0_i32_59 : i32 to vector<18x1xi32>
    %173 = arith.cmpi sge, %171, %172 : vector<18x1xi32>
    %c40_i32_60 = arith.constant 40 : i32
    %174 = vector.broadcast %c40_i32_60 : i32 to vector<18x1xi32>
    %175 = arith.cmpi slt, %171, %174 : vector<18x1xi32>
    %176 = arith.andi %173, %175 : vector<18x1xi1>
    %177 = vector.shape_cast %176 : vector<18x1xi1> to vector<18x1x1xi1>
    %cst_61 = arith.constant 0.000000e+00 : f32
    %178 = vector.shape_cast %177 : vector<18x1x1xi1> to vector<18x1x1xi1>
    %179 = vector.broadcast %178 : vector<18x1x1xi1> to vector<18x8x2xi1>
    %180 = vector.broadcast %cst_61 : f32 to vector<18x8x2xf32>
    %181 = arith.select %179, %166, %180 : vector<18x8x2xi1>, vector<18x8x2xf32>
    %cst_62 = arith.constant 0.000000e+00 : bf16
    %182 = vector.broadcast %cst_62 : bf16 to vector<18x1x2xbf16>
    %c0_63 = arith.constant 0 : index
    %c0_64 = arith.constant 0 : index
    %c0_65 = arith.constant 0 : index
    %183 = vector.load %arg11[%c0_63, %c0_64, %c0_65] : memref<18x10x2xbf16, #tpu.memory_space<vmem>>, vector<18x1x2xbf16>
    tpu.vector_store %arg11[%c0_63, %c0_64, %c0_65], %182 {strides = array<i32>} : memref<18x10x2xbf16, #tpu.memory_space<vmem>>, vector<18x1x2xbf16>,
    %c0_66 = arith.constant 0 : index
    %c9 = arith.constant 9 : index
    %c0_67 = arith.constant 0 : index
    %184 = vector.load %arg11[%c0_66, %c9, %c0_67] : memref<18x10x2xbf16, #tpu.memory_space<vmem>>, vector<18x1x2xbf16>
    tpu.vector_store %arg11[%c0_66, %c9, %c0_67], %182 {strides = array<i32>} : memref<18x10x2xbf16, #tpu.memory_space<vmem>>, vector<18x1x2xbf16>,
    %185 = arith.truncf %181 : vector<18x8x2xf32> to vector<18x8x2xbf16>
    %c0_68 = arith.constant 0 : index
    %c1_69 = arith.constant 1 : index
    %c0_70 = arith.constant 0 : index
    %186 = vector.load %arg11[%c0_68, %c1_69, %c0_70] : memref<18x10x2xbf16, #tpu.memory_space<vmem>>, vector<18x8x2xbf16>
    tpu.vector_store %arg11[%c0_68, %c1_69, %c0_70], %185 {strides = array<i32>} : memref<18x10x2xbf16, #tpu.memory_space<vmem>>, vector<18x8x2xbf16>,
    %c0_71 = arith.constant 0 : index
    %c0_72 = arith.constant 0 : index
    %c0_73 = arith.constant 0 : index
    %187 = vector.load %arg11[%c0_71, %c0_72, %c0_73] : memref<18x10x2xbf16, #tpu.memory_space<vmem>>, vector<16x8x2xbf16>
    %188 = vector.shape_cast %187 : vector<16x8x2xbf16> to vector<128x2xbf16>
    %c0_74 = arith.constant 0 : index
    %c1_75 = arith.constant 1 : index
    %c0_76 = arith.constant 0 : index
    %189 = vector.load %arg11[%c0_74, %c1_75, %c0_76] : memref<18x10x2xbf16, #tpu.memory_space<vmem>>, vector<16x8x2xbf16>
    %190 = vector.shape_cast %189 : vector<16x8x2xbf16> to vector<128x2xbf16>
    %c0_77 = arith.constant 0 : index
    %c2_78 = arith.constant 2 : index
    %c0_79 = arith.constant 0 : index
    %191 = vector.load %arg11[%c0_77, %c2_78, %c0_79] : memref<18x10x2xbf16, #tpu.memory_space<vmem>>, vector<16x8x2xbf16>
    %192 = vector.shape_cast %191 : vector<16x8x2xbf16> to vector<128x2xbf16>
    %193 = tpu.concatenate %188, %190, %192 in 1 : vector<128x2xbf16>, vector<128x2xbf16>, vector<128x2xbf16> -> vector<128x6xbf16>
    %c0_80 = arith.constant 0 : index
    %c0_81 = arith.constant 0 : index
    %c0_82 = arith.constant 0 : index
    %194 = vector.load %arg7[%c0_80, %c0_81, %c0_82] : memref<3x6x4xbf16, #tpu.memory_space<vmem>>, vector<1x6x4xbf16>
    %195 = vector.shape_cast %194 : vector<1x6x4xbf16> to vector<6x4xbf16>
    %cst_83 = arith.constant dense<0.000000e+00> : vector<128x4xf32>
    %196 = tpu.matmul %193, %195, %cst_83 {dimension_numbers = #tpu.dot_dimension_numbers<[1], [0], [0], [1], [0, 0, 1, 1], [], []>} : vector<128x6xbf16>, vector<6x4xbf16>, vector<128x4xf32> -> vector<128x4xf32>
    %c1_84 = arith.constant 1 : index
    %c0_85 = arith.constant 0 : index
    %c0_86 = arith.constant 0 : index
    %197 = vector.load %arg11[%c1_84, %c0_85, %c0_86] : memref<18x10x2xbf16, #tpu.memory_space<vmem>>, vector<16x8x2xbf16>
    %198 = vector.shape_cast %197 : vector<16x8x2xbf16> to vector<128x2xbf16>
    %c1_87 = arith.constant 1 : index
    %c1_88 = arith.constant 1 : index
    %c0_89 = arith.constant 0 : index
    %199 = vector.load %arg11[%c1_87, %c1_88, %c0_89] : memref<18x10x2xbf16, #tpu.memory_space<vmem>>, vector<16x8x2xbf16>
    %200 = vector.shape_cast %199 : vector<16x8x2xbf16> to vector<128x2xbf16>
    %c1_90 = arith.constant 1 : index
    %c2_91 = arith.constant 2 : index
    %c0_92 = arith.constant 0 : index
    %201 = vector.load %arg11[%c1_90, %c2_91, %c0_92] : memref<18x10x2xbf16, #tpu.memory_space<vmem>>, vector<16x8x2xbf16>
    %202 = vector.shape_cast %201 : vector<16x8x2xbf16> to vector<128x2xbf16>
    %203 = tpu.concatenate %198, %200, %202 in 1 : vector<128x2xbf16>, vector<128x2xbf16>, vector<128x2xbf16> -> vector<128x6xbf16>
    %c1_93 = arith.constant 1 : index
    %c0_94 = arith.constant 0 : index
    %c0_95 = arith.constant 0 : index
    %204 = vector.load %arg7[%c1_93, %c0_94, %c0_95] : memref<3x6x4xbf16, #tpu.memory_space<vmem>>, vector<1x6x4xbf16>
    %205 = vector.shape_cast %204 : vector<1x6x4xbf16> to vector<6x4xbf16>
    %cst_96 = arith.constant dense<0.000000e+00> : vector<128x4xf32>
    %206 = tpu.matmul %203, %205, %cst_96 {dimension_numbers = #tpu.dot_dimension_numbers<[1], [0], [0], [1], [0, 0, 1, 1], [], []>} : vector<128x6xbf16>, vector<6x4xbf16>, vector<128x4xf32> -> vector<128x4xf32>
    %207 = arith.addf %196, %206 : vector<128x4xf32>
    %c2_97 = arith.constant 2 : index
    %c0_98 = arith.constant 0 : index
    %c0_99 = arith.constant 0 : index
    %208 = vector.load %arg11[%c2_97, %c0_98, %c0_99] : memref<18x10x2xbf16, #tpu.memory_space<vmem>>, vector<16x8x2xbf16>
    %209 = vector.shape_cast %208 : vector<16x8x2xbf16> to vector<128x2xbf16>
    %c2_100 = arith.constant 2 : index
    %c1_101 = arith.constant 1 : index
    %c0_102 = arith.constant 0 : index
    %210 = vector.load %arg11[%c2_100, %c1_101, %c0_102] : memref<18x10x2xbf16, #tpu.memory_space<vmem>>, vector<16x8x2xbf16>
    %211 = vector.shape_cast %210 : vector<16x8x2xbf16> to vector<128x2xbf16>
    %c2_103 = arith.constant 2 : index
    %c2_104 = arith.constant 2 : index
    %c0_105 = arith.constant 0 : index
    %212 = vector.load %arg11[%c2_103, %c2_104, %c0_105] : memref<18x10x2xbf16, #tpu.memory_space<vmem>>, vector<16x8x2xbf16>
    %213 = vector.shape_cast %212 : vector<16x8x2xbf16> to vector<128x2xbf16>
    %214 = tpu.concatenate %209, %211, %213 in 1 : vector<128x2xbf16>, vector<128x2xbf16>, vector<128x2xbf16> -> vector<128x6xbf16>
    %c2_106 = arith.constant 2 : index
    %c0_107 = arith.constant 0 : index
    %c0_108 = arith.constant 0 : index
    %215 = vector.load %arg7[%c2_106, %c0_107, %c0_108] : memref<3x6x4xbf16, #tpu.memory_space<vmem>>, vector<1x6x4xbf16>
    %216 = vector.shape_cast %215 : vector<1x6x4xbf16> to vector<6x4xbf16>
    %cst_109 = arith.constant dense<0.000000e+00> : vector<128x4xf32>
    %217 = tpu.matmul %214, %216, %cst_109 {dimension_numbers = #tpu.dot_dimension_numbers<[1], [0], [0], [1], [0, 0, 1, 1], [], []>} : vector<128x6xbf16>, vector<6x4xbf16>, vector<128x4xf32> -> vector<128x4xf32>
    %218 = arith.addf %207, %217 : vector<128x4xf32>
    %c0_110 = arith.constant 0 : index
    %c0_111 = arith.constant 0 : index
    %219 = vector.load %arg8[%c0_110, %c0_111] : memref<1x4xf32, #tpu.memory_space<vmem>>, vector<1x4xf32>
    %220 = vector.broadcast %219 : vector<1x4xf32> to vector<128x4xf32>
    %221 = arith.addf %218, %220 : vector<128x4xf32>
    %cst_112 = arith.constant 0.000000e+00 : f32
    %222 = vector.broadcast %cst_112 : f32 to vector<128x4xf32>
    %223 = arith.maximumf %221, %222 : vector<128x4xf32>
    %224 = vector.shape_cast %223 : vector<128x4xf32> to vector<16x8x4xf32>
    %225 = vector.shape_cast %224 : vector<16x8x4xf32> to vector<64x2x4xf32>
    %226 = vector.extract_strided_slice %225 {offsets = [0, 0, 0], sizes = [64, 1, 4], strides = [1, 1, 1]} : vector<64x2x4xf32> to vector<64x1x4xf32>
    %227 = vector.shape_cast %226 : vector<64x1x4xf32> to vector<64x4xf32>
    %228 = vector.extract_strided_slice %225 {offsets = [0, 1, 0], sizes = [64, 1, 4], strides = [1, 1, 1]} : vector<64x2x4xf32> to vector<64x1x4xf32>
    %229 = vector.shape_cast %228 : vector<64x1x4xf32> to vector<64x4xf32>
    %230 = arith.maximumf %227, %229 : vector<64x4xf32>
    %231 = vector.shape_cast %230 : vector<64x4xf32> to vector<16x4x4xf32>
    %232 = tpu.transpose %231, [0, 2, 1] : vector<16x4x4xf32> -> vector<16x4x4xf32>
    %233 = vector.shape_cast %232 : vector<16x4x4xf32> to vector<16x16xf32>
    %234 = arith.truncf %233 : vector<16x16xf32> to vector<16x16xbf16>
    %c0_113 = arith.constant 0 : index
    %c0_114 = arith.constant 0 : index
    %c0_115 = arith.constant 0 : index
    %235 = vector.load %arg9[%c0_113, %c0_114, %c0_115] : memref<1x16x16xbf16, #tpu.memory_space<vmem>>, vector<1x16x16xbf16>
    %236 = vector.shape_cast %235 : vector<1x16x16xbf16> to vector<16x16xbf16>
    %237 = vector.shape_cast %234 : vector<16x16xbf16> to vector<1x16x16xbf16>
    tpu.vector_store %arg9[%c0_113, %c0_114, %c0_115], %237 {strides = array<i32>} : memref<1x16x16xbf16, #tpu.memory_space<vmem>>, vector<1x16x16xbf16>,
    return
  }
  func.func @transform_0(%arg0: i32, %arg1: i32) -> (i32, i32, i32) {
    %c0_i32 = arith.constant 0 : i32
    %c0_i32_0 = arith.constant 0 : i32
    %c0_i32_1 = arith.constant 0 : i32
    return %arg0, %c0_i32, %c0_i32_0 : i32, i32, i32
  }
  func.func @transform_1(%arg0: i32, %arg1: i32) -> (i32, i32) {
    %c0_i32 = arith.constant 0 : i32
    %c0_i32_0 = arith.constant 0 : i32
    %c0_i32_1 = arith.constant 0 : i32
    return %c0_i32, %c0_i32_0 : i32, i32
  }
  func.func @transform_2(%arg0: i32, %arg1: i32) -> (i32, i32, i32) {
    %c0_i32 = arith.constant 0 : i32
    %c0_i32_0 = arith.constant 0 : i32
    %c0_i32_1 = arith.constant 0 : i32
    %c0_i32_2 = arith.constant 0 : i32
    return %c0_i32, %c0_i32_0, %c0_i32_1 : i32, i32, i32
  }
  func.func @transform_3(%arg0: i32, %arg1: i32) -> (i32, i32, i32) {
    %c0_i32 = arith.constant 0 : i32
    %c0_i32_0 = arith.constant 0 : i32
    %c0_i32_1 = arith.constant 0 : i32
    %c0_i32_2 = arith.constant 0 : i32
    return %c0_i32, %c0_i32_0, %c0_i32_1 : i32, i32, i32
  }
  func.func @transform_4(%arg0: i32, %arg1: i32) -> (i32, i32) {
    %c0_i32 = arith.constant 0 : i32
    %c0_i32_0 = arith.constant 0 : i32
    %c0_i32_1 = arith.constant 0 : i32
    return %c0_i32, %c0_i32_0 : i32, i32
  }
  func.func @transform_5(%arg0: i32, %arg1: i32) -> (i32, i32, i32) {
    %c0_i32 = arith.constant 0 : i32
    %c0_i32_0 = arith.constant 0 : i32
    %c0_i32_1 = arith.constant 0 : i32
    %c0_i32_2 = arith.constant 0 : i32
    return %c0_i32, %c0_i32_0, %c0_i32_1 : i32, i32, i32
  }
  func.func @transform_6(%arg0: i32, %arg1: i32) -> (i32, i32) {
    %c0_i32 = arith.constant 0 : i32
    %c0_i32_0 = arith.constant 0 : i32
    %c0_i32_1 = arith.constant 0 : i32
    return %c0_i32, %c0_i32_0 : i32, i32
  }
  func.func @transform_7(%arg0: i32, %arg1: i32) -> (i32, i32, i32) {
    %c0_i32 = arith.constant 0 : i32
    %c0_i32_0 = arith.constant 0 : i32
    return %arg0, %arg1, %c0_i32 : i32, i32, i32
  }
}

</mosaic_0001>

<llo_original>
// kernel: kelz_cnn_forward.3
$region0: #{kelz_cnn_forward.3}
  #allocation0 [shape = 'u32[]', space=smem, size = 0x4, offset = 0x4, fixed_abs, tag = 'smem constant byte address 0x4 - core index']
  #allocation1 [shape = 'u32[144,128]{1,0:T(1,128)}', space=vmem, size = 0x12000, scoped, tag = 'internal scratch']
  %s0 = inlined_call_operand.vmem [shape: bf16[96,16], index: 0, kind: input, shape index: {}]
  %s1 = inlined_call_operand.vmem [shape: bf16[16,32], index: 1, kind: input, shape index: {}]
  %s2 = inlined_call_operand.vmem [shape: f32[1,32], index: 2, kind: input, shape index: {}]
  %s3 = inlined_call_operand.vmem [shape: f32[96,32], index: 3, kind: output, shape index: {}]
  %s4 = sld [smem:[#allocation0]]
  $region45: #{kelz_cnn_forward.3} parent=0
    _
  %s6 = ssub.s32 1, %s4
  %s7 = scalar_select 0, %s6, %s4
  loop: start=0, step=1, limit=4
  $region2: #{kelz_cnn_forward.3} parent=0 // loop_pre_header
    _
  $region3: #{kelz_cnn_forward.3} parent=0 // loop_header
    %s9 = sphi 0, %s13
    %p10 = scmp.ge.s32.totalorder %s9, 4
    %s16 = sphi 0, %s28
    %s17 = sphi 0, %s24
    %s18 = sphi 0, %s16
    %s19 = sphi 0, %s17
    %s20 = sphi 0, %s18
    %s21 = sphi 0, %s19
    %s31 = sphi 0, %s33
    %s34 = sphi 0, %s31
    %s35 = sphi 0, %s34
    %s51 = sphi 0, %s35
    %s57 = sphi 0, %s59
    %s60 = sphi 0, %s57
    %s61 = sphi 0, %s60
    %s77 = sphi 0, %s61
    %s83 = sphi 0, %s85
    %s86 = sphi 0, %s83
    %s87 = sphi 0, %s86
    %s103 = sphi 0, %s87
    %s111 = sphi 0, %s113
    %s114 = sphi 0, %s111
    %s115 = sphi 0, %s114
    %s131 = sphi 0, %s115
  $region4: #{kelz_cnn_forward.3} parent=0 // loop_header_branch
    %12 = sbr.rel (%p10) target = $region8
  $region5: #{kelz_cnn_forward.3} parent=0 // loop_body
    %s14 = ssub.s32 %s9, 1
    %s15 = ssub.s32 %s9, 2
    %s22 = sadd.s32 1, %s17
    %p23 = scmp.ge.s32.totalorder %s22, 2
    %s24 = scalar_select %p23, 0, %s22
    %s25 = sadd.s32 1, %s16
    %s26 = scalar_select %p23, %s25, %s16
    %p27 = scmp.ge.s32.totalorder %s26, 1
    %s28 = scalar_select %p27, 0, %s26
    %s29 = ssub.s32 %s17, %s24
    %p30 = scmp.eq.s32.totalorder %s29, 0
    %s32 = sadd.s32 %s31, 1
    %s33 = scalar_select %p30, %s31, %s32
    %p36 = pneg %p30
    %p37 = scmp.eq.s32.totalorder %s9, 1
    %p38 = por %p36, %p37
    %p39 = scmp.ne.s32.totalorder %s31, %s34
    %p40 = scmp.eq.s32.totalorder %s9, 0
    %p41 = por %p39, %p40
    %p42 = scmp.ne.s32.totalorder %s31, %s34
    %p43 = scmp.eq.s32.totalorder %s14, 1
    %p44 = por %p42, %p43
    %p45 = scmp.ne.s32.totalorder %s34, %s35
    %p46 = scmp.eq.s32.totalorder %s14, 0
    %p47 = por %p45, %p46
    %p48 = scmp.ne.s32.totalorder %s34, %s35
    %p49 = scmp.eq.s32.totalorder %s15, 1
    %p50 = por %p48, %p49
    %p52 = scmp.ne.s32.totalorder %s35, %s51
    %p53 = scmp.eq.s32.totalorder %s15, 0
    %p54 = por %p52, %p53
    %s55 = ssub.s32 %s16, %s28
    %p56 = scmp.eq.s32.totalorder %s55, 0
    %s58 = sadd.s32 %s57, 1
    %s59 = scalar_select %p56, %s57, %s58
    %p62 = pneg %p56
    %p63 = scmp.eq.s32.totalorder %s9, 1
    %p64 = por %p62, %p63
    %p65 = scmp.ne.s32.totalorder %s57, %s60
    %p66 = scmp.eq.s32.totalorder %s9, 0
    %p67 = por %p65, %p66
    %p68 = scmp.ne.s32.totalorder %s57, %s60
    %p69 = scmp.eq.s32.totalorder %s14, 1
    %p70 = por %p68, %p69
    %p71 = scmp.ne.s32.totalorder %s60, %s61
    %p72 = scmp.eq.s32.totalorder %s14, 0
    %p73 = por %p71, %p72
    %p74 = scmp.ne.s32.totalorder %s60, %s61
    %p75 = scmp.eq.s32.totalorder %s15, 1
    %p76 = por %p74, %p75
    %p78 = scmp.ne.s32.totalorder %s61, %s77
    %p79 = scmp.eq.s32.totalorder %s15, 0
    %p80 = por %p78, %p79
    %s81 = ssub.s32 %s16, %s28
    %p82 = scmp.eq.s32.totalorder %s81, 0
    %s84 = sadd.s32 %s83, 1
    %s85 = scalar_select %p82, %s83, %s84
    %p88 = pneg %p82
    %p89 = scmp.eq.s32.totalorder %s9, 1
    %p90 = por %p88, %p89
    %p91 = scmp.ne.s32.totalorder %s83, %s86
    %p92 = scmp.eq.s32.totalorder %s9, 0
    %p93 = por %p91, %p92
    %p94 = scmp.ne.s32.totalorder %s83, %s86
    %p95 = scmp.eq.s32.totalorder %s14, 1
    %p96 = por %p94, %p95
    %p97 = scmp.ne.s32.totalorder %s86, %s87
    %p98 = scmp.eq.s32.totalorder %s14, 0
    %p99 = por %p97, %p98
    %p100 = scmp.ne.s32.totalorder %s86, %s87
    %p101 = scmp.eq.s32.totalorder %s15, 1
    %p102 = por %p100, %p101
    %p104 = scmp.ne.s32.totalorder %s87, %s103
    %p105 = scmp.eq.s32.totalorder %s15, 0
    %p106 = por %p104, %p105
    %s107 = ssub.s32 %s17, %s24
    %s108 = ssub.s32 %s16, %s28
    %s109 = sor.u32 %s107, %s108
    %p110 = scmp.eq.s32.totalorder %s109, 0
    %s112 = sadd.s32 %s111, 1
    %s113 = scalar_select %p110, %s111, %s112
    %p116 = pneg %p110
    %p117 = scmp.eq.s32.totalorder %s9, 1
    %p118 = por %p116, %p117
    %p119 = scmp.ne.s32.totalorder %s111, %s114
    %p120 = scmp.eq.s32.totalorder %s9, 0
    %p121 = por %p119, %p120
    %p122 = scmp.ne.s32.totalorder %s111, %s114
    %p123 = scmp.eq.s32.totalorder %s14, 1
    %p124 = por %p122, %p123
    %p125 = scmp.ne.s32.totalorder %s114, %s115
    %p126 = scmp.eq.s32.totalorder %s14, 0
    %p127 = por %p125, %p126
    %p128 = scmp.ne.s32.totalorder %s114, %s115
    %p129 = scmp.eq.s32.totalorder %s15, 1
    %p130 = por %p128, %p129
    %p132 = scmp.ne.s32.totalorder %s115, %s131
    %p133 = scmp.eq.s32.totalorder %s15, 0
    %p134 = por %p132, %p133
    %p135 = scmp.le.s32.totalorder 1, %s9
    %p136 = scmp.lt.s32.totalorder %s9, 3
    %p137 = pnand %p135, %p136
    %p138 = pneg %p137
    // Predicated region
    $region9: #{kelz_cnn_forward.3} parent=5 // pred_check
      _
    $region10: #{kelz_cnn_forward.3} parent=5 // pred_check_branch
      %140 = sbr.rel (%p137) target = $region12
    $region11: #{kelz_cnn_forward.3} parent=5 // pred_region
      %s141 = ssub.s32 %s9, 1
      // Predicated region
      $region13: #{kelz_cnn_forward.3} parent=11 // pred_check
        %p142 = pneg %p73
      $region14: #{kelz_cnn_forward.3} parent=11 // pred_check_branch
        %144 = sbr.rel (%p142) target = $region16
      $region15: #{kelz_cnn_forward.3} parent=11 // pred_region
        %p145 = scmp.lt.s32.totalorder %s18, 0
        %s146 = scalar_select %p145, %s18, 0
        %s147 = smul.addr %s146, 4
        %s148 = scalar_lea.vmem %s1, %s147
      $region16: #{kelz_cnn_forward.3} parent=11 // pred_fallthru
        _
      // Predicated region
      $region17: #{kelz_cnn_forward.3} parent=11 // pred_check
        %p149 = pneg %p99
      $region18: #{kelz_cnn_forward.3} parent=11 // pred_check_branch
        %151 = sbr.rel (%p149) target = $region20
      $region19: #{kelz_cnn_forward.3} parent=11 // pred_region
        %p152 = scmp.lt.s32.totalorder %s18, 0
        %s153 = scalar_select %p152, %s18, 0
        %s154 = scalar_lea.vmem %s2, %s153
      $region20: #{kelz_cnn_forward.3} parent=11 // pred_fallthru
        _
    $region12: #{kelz_cnn_forward.3} parent=5 // pred_fallthru
      _
    %p155 = scmp.lt.s32.totalorder %s9, 2
    // Predicated region
    $region21: #{kelz_cnn_forward.3} parent=5 // pred_check
      %p156 = pneg %p155
    $region22: #{kelz_cnn_forward.3} parent=5 // pred_check_branch
      %158 = sbr.rel (%p156) target = $region24
    $region23: #{kelz_cnn_forward.3} parent=5 // pred_region
      // Predicated region
      $region25: #{kelz_cnn_forward.3} parent=23 // pred_check
        %p159 = pneg %p41
      $region26: #{kelz_cnn_forward.3} parent=23 // pred_check_branch
        %161 = sbr.rel (%p159) target = $region28
      $region27: #{kelz_cnn_forward.3} parent=23 // pred_region
        %s162 = smul.u32 6, %s17
        %p163 = scmp.lt.s32.totalorder %s162, 11
        %s164 = scalar_select %p163, %s162, 11
        %s165 = smul.addr %s164, 4
        %s166 = scalar_lea.vmem %s0, %s165
        %s167 = smul.u32 6, %s17
      $region28: #{kelz_cnn_forward.3} parent=23 // pred_fallthru
        _
    $region24: #{kelz_cnn_forward.3} parent=5 // pred_fallthru
      _
    %p168 = scmp.le.s32.totalorder 1, %s9
    %p169 = scmp.lt.s32.totalorder %s9, 3
    %p170 = pnand %p168, %p169
    %p171 = pneg %p170
    // Predicated region
    $region29: #{kelz_cnn_forward.3} parent=5 // pred_check
      _
    $region30: #{kelz_cnn_forward.3} parent=5 // pred_check_branch
      %173 = sbr.rel (%p170) target = $region32
    $region31: #{kelz_cnn_forward.3} parent=5 // pred_region
      %s174 = ssub.s32 %s9, 1
      %s175 = smul.u32 6, %s19
      %p176 = scmp.lt.s32.totalorder %s175, 11
      %s177 = scalar_select %p176, %s175, 11
      %s178 = smul.addr %s177, 4
      %s179 = scalar_lea.vmem %s0, %s178
      %p180 = pneg %p47
      %p181 = pneg %p44
      %p182 = scmp.lt.s32.totalorder %s18, 0
      %s183 = scalar_select %p182, %s18, 0
      %s184 = smul.addr %s183, 4
      %s185 = scalar_lea.vmem %s1, %s184
      %p186 = pneg %p73
      %p187 = pneg %p70
      %p188 = scmp.lt.s32.totalorder %s18, 0
      %s189 = scalar_select %p188, %s18, 0
      %s190 = scalar_lea.vmem %s2, %s189
      %p191 = pneg %p99
      %p192 = pneg %p96
      %p193 = pneg %p127
      %p194 = pneg %p124
      %s195 = smul.u32 6, %s19
      %p196 = scmp.lt.s32.totalorder %s195, 11
      %s197 = scalar_select %p196, %s195, 11
      %p198 = scmp.lt.s32.totalorder %s18, 0
      %s199 = scalar_select %p198, %s18, 0
      %s200 = sadd.s32 %s199, %s197
      %s201 = smul.addr %s200, 8
      %s202 = scalar_lea.vmem %s3, %s201
      %s203 = smul.u32 6, %s19
      %p204 = scmp.lt.s32.totalorder %s203, 11
      %s205 = scalar_select %p204, %s203, 11
      %s206 = smul.addr %s205, 4
      %s207 = scalar_lea.vmem %s0, %s206
      %s208 = smul.u32 6, %s19
      %p209 = scmp.lt.s32.totalorder %s18, 0
      %s210 = scalar_select %p209, %s18, 0
      %s211 = smul.addr %s210, 4
      %s212 = scalar_lea.vmem %s1, %s211
      %p213 = scmp.lt.s32.totalorder %s18, 0
      %s214 = scalar_select %p213, %s18, 0
      %s215 = scalar_lea.vmem %s2, %s214
      %s216 = smul.u32 6, %s19
      %p217 = scmp.lt.s32.totalorder %s216, 11
      %s218 = scalar_select %p217, %s216, 11
      %p219 = scmp.lt.s32.totalorder %s18, 0
      %s220 = scalar_select %p219, %s18, 0
      %s221 = sadd.s32 %s220, %s218
      %s222 = smul.addr %s221, 8
      %s223 = scalar_lea.vmem %s3, %s222
      %s224 = smul.u32 6, %s19
      %v226 = vld [vmem:[%s207] sm:$0xf]
      %v227 = vld [vmem:[%s207 + $0x4] sm:$0xf]
      %v228 = vld [vmem:[%s207 + $0x8] sm:$0xf]
      %v229 = vld [vmem:[%s207 + $0xc] sm:$0xf]
      %v230 = vld [vmem:[%s207 + $0x10] sm:$0xf]
      %v231 = vld [vmem:[%s207 + $0x14] sm:$0xf]
      %v232 = vld [vmem:[%s212] sm:$0xf]
      %v233 = vld [vmem:[%s212 + $0x4] sm:$0xf]
      %v234 = vld [vmem:[%s215] sm:$0x1]
      %v236 = vlaneseq
      %v237 = vshrl.u32 %v236, 7
      %v238 = vsub.s32 0, %v237
      %v239 = vrot.slane %v234, %v238
      %v247 = vunpack.c.l.b16 %v226
      %v248 = vunpack.c.l.b16 %v227
      %v249 = vunpack.c.l.b16 %v228
      %v250 = vunpack.c.l.b16 %v229
      %v251 = vunpack.c.l.b16 %v230
      %v252 = vunpack.c.l.b16 %v231
      %v253 = vpack.c.b16 %v248, %v247
      %v254 = vpack.c.b16 %v250, %v249
      %v255 = vpack.c.b16 %v252, %v251
      %v258 = vunpack.c.l.b16 %v232
      %v259 = vunpack.c.l.b16 %v233
      %v260 = vpack.c.b16 %v259, %v258
      %vm262 = vcmask 130048
      %v264 = vsel %vm262, %v253, 0
      %v267 = vsel %vm262, %v254, 0
      %v270 = vsel %vm262, %v255, 0
      %272 = vmatprep.subr.bf16.mxu0 0
      %273 = vmatpush1.bf16.msra.mxu0 %v260
      %274 = vmatprep.subr.bf16.mxu0 0
      %275 = vmatpush1.bf16.msra.mxu0 0
      %276 = vmatprep.subr.bf16.mxu0 0
      %277 = vmatpush1.bf16.msra.mxu0 0
      %278 = vmatprep.subr.bf16.mxu0 0
      %279 = vmatpush1.bf16.msra.mxu0 0
      %280 = vmatprep.subr.bf16.mxu0 0
      %281 = vmatpush1.bf16.msra.mxu0 0
      %282 = vmatprep.subr.bf16.mxu0 0
      %283 = vmatpush1.bf16.msra.mxu0 0
      %284 = vmatprep.subr.bf16.mxu0 0
      %285 = vmatpush1.bf16.msra.mxu0 0
      %286 = vmatprep.subr.bf16.mxu0 0
      %287 = vmatpush1.bf16.msra.mxu0 0
      %288 = vmatprep.subr.bf16.mxu0 0
      %289 = vmatpush1.bf16.msra.mxu0 0
      %290 = vmatprep.subr.bf16.mxu0 0
      %291 = vmatpush1.bf16.msra.mxu0 0
      %292 = vmatprep.subr.bf16.mxu0 0
      %293 = vmatpush1.bf16.msra.mxu0 0
      %294 = vmatprep.subr.bf16.mxu0 0
      %295 = vmatpush1.bf16.msra.mxu0 0
      %296 = vmatprep.subr.bf16.mxu0 0
      %297 = vmatpush1.bf16.msra.mxu0 0
      %298 = vmatprep.subr.bf16.mxu0 0
      %299 = vmatpush1.bf16.msra.mxu0 0
      %300 = vmatprep.subr.bf16.mxu0 0
      %301 = vmatpush1.bf16.msra.mxu0 0
      %302 = vmatprep.subr.bf16.mxu0 0
      %303 = vmatpush1.bf16.msra.mxu0 0
      %304 = vmatprep.mubr.bf16.mxu0 0
      %305 = vmatmul.mubr.bf16.gmra.mrb[0].mxu0 %v264
      %v306 = vpop.f32.mrb[0].mxu0
      %v307 = vadd.f32 %v239, %v306
      %v308 = vpop.f32.mrb[0].mxu0
      %v309 = vpop.f32.mrb[0].mxu0
      %v310 = vadd.f32 %v239, %v309
      %v311 = vpop.f32.mrb[0].mxu0
      %312 = vmatprep.mubr.bf16.mxu0 0
      %313 = vmatmul.mubr.bf16.gmra.mrb[0].mxu0 %v267
      %v314 = vpop.f32.mrb[0].mxu0
      %v315 = vadd.f32 %v239, %v314
      %v316 = vpop.f32.mrb[0].mxu0
      %v317 = vpop.f32.mrb[0].mxu0
      %v318 = vadd.f32 %v239, %v317
      %v319 = vpop.f32.mrb[0].mxu0
      %320 = vmatprep.mubr.bf16.mxu0 0
      %321 = vmatmul.mubr.bf16.gmra.mrb[0].mxu0 %v270
      %v322 = vpop.f32.mrb[0].mxu0
      %v323 = vadd.f32 %v239, %v322
      %v324 = vpop.f32.mrb[0].mxu0
      %v325 = vpop.f32.mrb[0].mxu0
      %v326 = vadd.f32 %v239, %v325
      %v327 = vpop.f32.mrb[0].mxu0
      %328 = vdwg.mxu0
      %vm329 = vcmask 261120
      %330 = vst.msk [vmem:[%s223] sm:$0xff] %vm329, %v307
      %331 = vst.msk [vmem:[%s223 + $0x8] sm:$0xff] %vm329, %v310
      %332 = vst.msk [vmem:[%s223 + $0x10] sm:$0xff] %vm329, %v315
      %333 = vst.msk [vmem:[%s223 + $0x18] sm:$0xff] %vm329, %v318
      %334 = vst.msk [vmem:[%s223 + $0x20] sm:$0xff] %vm329, %v323
      %335 = vst.msk [vmem:[%s223 + $0x28] sm:$0xff] %vm329, %v326
      %s336 = smul.u32 6, %s19
      %p337 = scmp.lt.s32.totalorder %s336, 11
      %s338 = scalar_select %p337, %s336, 11
      %p339 = scmp.lt.s32.totalorder %s18, 0
      %s340 = scalar_select %p339, %s18, 0
      %s341 = sadd.s32 %s340, %s338
      %s342 = smul.addr %s341, 8
      %s343 = scalar_lea.vmem %s3, %s342
      // Predicated region
      $region33: #{kelz_cnn_forward.3} parent=31 // pred_check
        %p344 = pneg %p124
      $region34: #{kelz_cnn_forward.3} parent=31 // pred_check_branch
        %346 = sbr.rel (%p344) target = $region36
      $region35: #{kelz_cnn_forward.3} parent=31 // pred_region
        %s347 = smul.u32 6, %s19
      $region36: #{kelz_cnn_forward.3} parent=31 // pred_fallthru
        _
    $region32: #{kelz_cnn_forward.3} parent=5 // pred_fallthru
      _
    %p348 = scmp.le.s32.totalorder 2, %s9
    // Predicated region
    $region37: #{kelz_cnn_forward.3} parent=5 // pred_check
      %p349 = pneg %p348
    $region38: #{kelz_cnn_forward.3} parent=5 // pred_check_branch
      %351 = sbr.rel (%p349) target = $region40
    $region39: #{kelz_cnn_forward.3} parent=5 // pred_region
      %s352 = ssub.s32 %s9, 2
      // Predicated region
      $region41: #{kelz_cnn_forward.3} parent=39 // pred_check
        %p353 = pneg %p130
      $region42: #{kelz_cnn_forward.3} parent=39 // pred_check_branch
        %355 = sbr.rel (%p353) target = $region44
      $region43: #{kelz_cnn_forward.3} parent=39 // pred_region
        %s356 = smul.u32 6, %s21
        %p357 = scmp.lt.s32.totalorder %s356, 11
        %s358 = scalar_select %p357, %s356, 11
        %p359 = scmp.lt.s32.totalorder %s20, 0
        %s360 = scalar_select %p359, %s20, 0
        %s361 = sadd.s32 %s360, %s358
        %s362 = smul.addr %s361, 8
        %s363 = scalar_lea.vmem %s3, %s362
      $region44: #{kelz_cnn_forward.3} parent=39 // pred_fallthru
        _
    $region40: #{kelz_cnn_forward.3} parent=5 // pred_fallthru
      _
  $region6: #{kelz_cnn_forward.3} parent=0 // loop_footer
    %s13 = sadd.s32 1, %s9
  $region7: #{kelz_cnn_forward.3} parent=0 // loop_footer_branch
    %8 = sbr.rel target = $region3
  $region8: #{kelz_cnn_forward.3} parent=0 // loop_exit
    _

// kernel: kelz_cnn_forward.2
$region0: #{kelz_cnn_forward.2}
  #allocation0 [shape = 'u32[]', space=smem, size = 0x4, offset = 0x4, fixed_abs, tag = 'smem constant byte address 0x4 - core index']
  #allocation1 [shape = 'u32[144,128]{1,0:T(1,128)}', space=vmem, size = 0x12000, scoped, tag = 'internal scratch']
  #allocation2 [shape = 'bf16[20,18,2]{2,1,0:T(8,128)(2,1)}', space=vmem, size = 0x1e000, scoped, tag = 'scratch operand']
  #allocation3 [shape = 'bf16[18,10,2]{2,1,0:T(8,128)(2,1)}', space=vmem, size = 0x12000, scoped, tag = 'scratch operand']
  %s0 = inlined_call_operand.vmem [shape: bf16[2,54,18], index: 0, kind: input, shape index: {}]
  %s1 = inlined_call_operand.vmem [shape: f32[9,2], index: 1, kind: input, shape index: {}]
  %s2 = inlined_call_operand.vmem [shape: f32[1,1,2], index: 2, kind: input, shape index: {}]
  %s3 = inlined_call_operand.vmem [shape: bf16[3,6,2], index: 3, kind: input, shape index: {}]
  %s4 = inlined_call_operand.vmem [shape: f32[1,2], index: 4, kind: input, shape index: {}]
  %s5 = inlined_call_operand.vmem [shape: bf16[3,6,4], index: 5, kind: input, shape index: {}]
  %s6 = inlined_call_operand.vmem [shape: f32[1,4], index: 6, kind: input, shape index: {}]
  %s7 = inlined_call_operand.vmem [shape: bf16[2,48,16], index: 7, kind: output, shape index: {}]
  %s8 = sld [smem:[#allocation0]]
  $region61: #{kelz_cnn_forward.2} parent=0
    _
  %s10 = ssub.s32 1, %s8
  %s11 = scalar_select 0, %s10, %s8
  loop: start=0, step=1, limit=8
  $region2: #{kelz_cnn_forward.2} parent=0 // loop_pre_header
    _
  $region3: #{kelz_cnn_forward.2} parent=0 // loop_header
    %s13 = sphi 0, %s17
    %p14 = scmp.ge.s32.totalorder %s13, 8
    %s20 = sphi 0, %s32
    %s21 = sphi 0, %s28
    %s22 = sphi 0, %s20
    %s23 = sphi 0, %s21
    %s24 = sphi 0, %s22
    %s25 = sphi 0, %s23
    %s35 = sphi 0, %s37
    %s38 = sphi 0, %s35
    %s39 = sphi 0, %s38
    %s55 = sphi 0, %s39
    %s59 = sphi 0, %s59
    %s61 = sphi 0, %s59
    %s62 = sphi 0, %s61
    %s76 = sphi 0, %s62
    %s80 = sphi 0, %s80
    %s82 = sphi 0, %s80
    %s83 = sphi 0, %s82
    %s97 = sphi 0, %s83
    %s101 = sphi 0, %s101
    %s103 = sphi 0, %s101
    %s104 = sphi 0, %s103
    %s118 = sphi 0, %s104
    %s122 = sphi 0, %s122
    %s124 = sphi 0, %s122
    %s125 = sphi 0, %s124
    %s139 = sphi 0, %s125
    %s143 = sphi 0, %s143
    %s145 = sphi 0, %s143
    %s146 = sphi 0, %s145
    %s160 = sphi 0, %s146
    %s164 = sphi 0, %s164
    %s166 = sphi 0, %s164
    %s167 = sphi 0, %s166
    %s181 = sphi 0, %s167
    %s189 = sphi 0, %s191
    %s192 = sphi 0, %s189
    %s193 = sphi 0, %s192
    %s209 = sphi 0, %s193
  $region4: #{kelz_cnn_forward.2} parent=0 // loop_header_branch
    %16 = sbr.rel (%p14) target = $region8
  $region5: #{kelz_cnn_forward.2} parent=0 // loop_body
    %s18 = ssub.s32 %s13, 1
    %s19 = ssub.s32 %s13, 2
    %s26 = sadd.s32 1, %s21
    %p27 = scmp.ge.s32.totalorder %s26, 3
    %s28 = scalar_select %p27, 0, %s26
    %s29 = sadd.s32 1, %s20
    %s30 = scalar_select %p27, %s29, %s20
    %p31 = scmp.ge.s32.totalorder %s30, 2
    %s32 = scalar_select %p31, 0, %s30
    %s33 = ssub.s32 %s20, %s32
    %p34 = scmp.eq.s32.totalorder %s33, 0
    %s36 = sadd.s32 %s35, 1
    %s37 = scalar_select %p34, %s35, %s36
    %p40 = pneg %p34
    %p41 = scmp.eq.s32.totalorder %s13, 5
    %p42 = por %p40, %p41
    %p43 = scmp.ne.s32.totalorder %s35, %s38
    %p44 = scmp.eq.s32.totalorder %s13, 0
    %p45 = por %p43, %p44
    %p46 = scmp.ne.s32.totalorder %s35, %s38
    %p47 = scmp.eq.s32.totalorder %s18, 5
    %p48 = por %p46, %p47
    %p49 = scmp.ne.s32.totalorder %s38, %s39
    %p50 = scmp.eq.s32.totalorder %s18, 0
    %p51 = por %p49, %p50
    %p52 = scmp.ne.s32.totalorder %s38, %s39
    %p53 = scmp.eq.s32.totalorder %s19, 5
    %p54 = por %p52, %p53
    %p56 = scmp.ne.s32.totalorder %s39, %s55
    %p57 = scmp.eq.s32.totalorder %s19, 0
    %p58 = por %p56, %p57
    %s60 = sadd.s32 %s59, 1
    %p63 = scmp.eq.s32.totalorder %s13, 5
    %p64 = scmp.ne.s32.totalorder %s59, %s61
    %p65 = scmp.eq.s32.totalorder %s13, 0
    %p66 = por %p64, %p65
    %p67 = scmp.ne.s32.totalorder %s59, %s61
    %p68 = scmp.eq.s32.totalorder %s18, 5
    %p69 = por %p67, %p68
    %p70 = scmp.ne.s32.totalorder %s61, %s62
    %p71 = scmp.eq.s32.totalorder %s18, 0
    %p72 = por %p70, %p71
    %p73 = scmp.ne.s32.totalorder %s61, %s62
    %p74 = scmp.eq.s32.totalorder %s19, 5
    %p75 = por %p73, %p74
    %p77 = scmp.ne.s32.totalorder %s62, %s76
    %p78 = scmp.eq.s32.totalorder %s19, 0
    %p79 = por %p77, %p78
    %s81 = sadd.s32 %s80, 1
    %p84 = scmp.eq.s32.totalorder %s13, 5
    %p85 = scmp.ne.s32.totalorder %s80, %s82
    %p86 = scmp.eq.s32.totalorder %s13, 0
    %p87 = por %p85, %p86
    %p88 = scmp.ne.s32.totalorder %s80, %s82
    %p89 = scmp.eq.s32.totalorder %s18, 5
    %p90 = por %p88, %p89
    %p91 = scmp.ne.s32.totalorder %s82, %s83
    %p92 = scmp.eq.s32.totalorder %s18, 0
    %p93 = por %p91, %p92
    %p94 = scmp.ne.s32.totalorder %s82, %s83
    %p95 = scmp.eq.s32.totalorder %s19, 5
    %p96 = por %p94, %p95
    %p98 = scmp.ne.s32.totalorder %s83, %s97
    %p99 = scmp.eq.s32.totalorder %s19, 0
    %p100 = por %p98, %p99
    %s102 = sadd.s32 %s101, 1
    %p105 = scmp.eq.s32.totalorder %s13, 5
    %p106 = scmp.ne.s32.totalorder %s101, %s103
    %p107 = scmp.eq.s32.totalorder %s13, 0
    %p108 = por %p106, %p107
    %p109 = scmp.ne.s32.totalorder %s101, %s103
    %p110 = scmp.eq.s32.totalorder %s18, 5
    %p111 = por %p109, %p110
    %p112 = scmp.ne.s32.totalorder %s103, %s104
    %p113 = scmp.eq.s32.totalorder %s18, 0
    %p114 = por %p112, %p113
    %p115 = scmp.ne.s32.totalorder %s103, %s104
    %p116 = scmp.eq.s32.totalorder %s19, 5
    %p117 = por %p115, %p116
    %p119 = scmp.ne.s32.totalorder %s104, %s118
    %p120 = scmp.eq.s32.totalorder %s19, 0
    %p121 = por %p119, %p120
    %s123 = sadd.s32 %s122, 1
    %p126 = scmp.eq.s32.totalorder %s13, 5
    %p127 = scmp.ne.s32.totalorder %s122, %s124
    %p128 = scmp.eq.s32.totalorder %s13, 0
    %p129 = por %p127, %p128
    %p130 = scmp.ne.s32.totalorder %s122, %s124
    %p131 = scmp.eq.s32.totalorder %s18, 5
    %p132 = por %p130, %p131
    %p133 = scmp.ne.s32.totalorder %s124, %s125
    %p134 = scmp.eq.s32.totalorder %s18, 0
    %p135 = por %p133, %p134
    %p136 = scmp.ne.s32.totalorder %s124, %s125
    %p137 = scmp.eq.s32.totalorder %s19, 5
    %p138 = por %p136, %p137
    %p140 = scmp.ne.s32.totalorder %s125, %s139
    %p141 = scmp.eq.s32.totalorder %s19, 0
    %p142 = por %p140, %p141
    %s144 = sadd.s32 %s143, 1
    %p147 = scmp.eq.s32.totalorder %s13, 5
    %p148 = scmp.ne.s32.totalorder %s143, %s145
    %p149 = scmp.eq.s32.totalorder %s13, 0
    %p150 = por %p148, %p149
    %p151 = scmp.ne.s32.totalorder %s143, %s145
    %p152 = scmp.eq.s32.totalorder %s18, 5
    %p153 = por %p151, %p152
    %p154 = scmp.ne.s32.totalorder %s145, %s146
    %p155 = scmp.eq.s32.totalorder %s18, 0
    %p156 = por %p154, %p155
    %p157 = scmp.ne.s32.totalorder %s145, %s146
    %p158 = scmp.eq.s32.totalorder %s19, 5
    %p159 = por %p157, %p158
    %p161 = scmp.ne.s32.totalorder %s146, %s160
    %p162 = scmp.eq.s32.totalorder %s19, 0
    %p163 = por %p161, %p162
    %s165 = sadd.s32 %s164, 1
    %p168 = scmp.eq.s32.totalorder %s13, 5
    %p169 = scmp.ne.s32.totalorder %s164, %s166
    %p170 = scmp.eq.s32.totalorder %s13, 0
    %p171 = por %p169, %p170
    %p172 = scmp.ne.s32.totalorder %s164, %s166
    %p173 = scmp.eq.s32.totalorder %s18, 5
    %p174 = por %p172, %p173
    %p175 = scmp.ne.s32.totalorder %s166, %s167
    %p176 = scmp.eq.s32.totalorder %s18, 0
    %p177 = por %p175, %p176
    %p178 = scmp.ne.s32.totalorder %s166, %s167
    %p179 = scmp.eq.s32.totalorder %s19, 5
    %p180 = por %p178, %p179
    %p182 = scmp.ne.s32.totalorder %s167, %s181
    %p183 = scmp.eq.s32.totalorder %s19, 0
    %p184 = por %p182, %p183
    %s185 = ssub.s32 %s20, %s32
    %s186 = ssub.s32 %s21, %s28
    %s187 = sor.u32 %s185, %s186
    %p188 = scmp.eq.s32.totalorder %s187, 0
    %s190 = sadd.s32 %s189, 1
    %s191 = scalar_select %p188, %s189, %s190
    %p194 = pneg %p188
    %p195 = scmp.eq.s32.totalorder %s13, 5
    %p196 = por %p194, %p195
    %p197 = scmp.ne.s32.totalorder %s189, %s192
    %p198 = scmp.eq.s32.totalorder %s13, 0
    %p199 = por %p197, %p198
    %p200 = scmp.ne.s32.totalorder %s189, %s192
    %p201 = scmp.eq.s32.totalorder %s18, 5
    %p202 = por %p200, %p201
    %p203 = scmp.ne.s32.totalorder %s192, %s193
    %p204 = scmp.eq.s32.totalorder %s18, 0
    %p205 = por %p203, %p204
    %p206 = scmp.ne.s32.totalorder %s192, %s193
    %p207 = scmp.eq.s32.totalorder %s19, 5
    %p208 = por %p206, %p207
    %p210 = scmp.ne.s32.totalorder %s193, %s209
    %p211 = scmp.eq.s32.totalorder %s19, 0
    %p212 = por %p210, %p211
    %p213 = scmp.le.s32.totalorder 1, %s13
    %p214 = scmp.lt.s32.totalorder %s13, 7
    %p215 = pnand %p213, %p214
    %p216 = pneg %p215
    // Predicated region
    $region9: #{kelz_cnn_forward.2} parent=5 // pred_check
      _
    $region10: #{kelz_cnn_forward.2} parent=5 // pred_check_branch
      %218 = sbr.rel (%p215) target = $region12
    $region11: #{kelz_cnn_forward.2} parent=5 // pred_region
      %s219 = ssub.s32 %s13, 1
      // Predicated region
      $region13: #{kelz_cnn_forward.2} parent=11 // pred_check
        %p220 = pneg %p72
      $region14: #{kelz_cnn_forward.2} parent=11 // pred_check_branch
        %222 = sbr.rel (%p220) target = $region16
      $region15: #{kelz_cnn_forward.2} parent=11 // pred_region
        _
      $region16: #{kelz_cnn_forward.2} parent=11 // pred_fallthru
        _
      // Predicated region
      $region17: #{kelz_cnn_forward.2} parent=11 // pred_check
        %p223 = pneg %p93
      $region18: #{kelz_cnn_forward.2} parent=11 // pred_check_branch
        %225 = sbr.rel (%p223) target = $region20
      $region19: #{kelz_cnn_forward.2} parent=11 // pred_region
        _
      $region20: #{kelz_cnn_forward.2} parent=11 // pred_fallthru
        _
      // Predicated region
      $region21: #{kelz_cnn_forward.2} parent=11 // pred_check
        %p226 = pneg %p114
      $region22: #{kelz_cnn_forward.2} parent=11 // pred_check_branch
        %228 = sbr.rel (%p226) target = $region24
      $region23: #{kelz_cnn_forward.2} parent=11 // pred_region
        _
      $region24: #{kelz_cnn_forward.2} parent=11 // pred_fallthru
        _
      // Predicated region
      $region25: #{kelz_cnn_forward.2} parent=11 // pred_check
        %p229 = pneg %p135
      $region26: #{kelz_cnn_forward.2} parent=11 // pred_check_branch
        %231 = sbr.rel (%p229) target = $region28
      $region27: #{kelz_cnn_forward.2} parent=11 // pred_region
        _
      $region28: #{kelz_cnn_forward.2} parent=11 // pred_fallthru
        _
      // Predicated region
      $region29: #{kelz_cnn_forward.2} parent=11 // pred_check
        %p232 = pneg %p156
      $region30: #{kelz_cnn_forward.2} parent=11 // pred_check_branch
        %234 = sbr.rel (%p232) target = $region32
      $region31: #{kelz_cnn_forward.2} parent=11 // pred_region
        _
      $region32: #{kelz_cnn_forward.2} parent=11 // pred_fallthru
        _
      // Predicated region
      $region33: #{kelz_cnn_forward.2} parent=11 // pred_check
        %p235 = pneg %p177
      $region34: #{kelz_cnn_forward.2} parent=11 // pred_check_branch
        %237 = sbr.rel (%p235) target = $region36
      $region35: #{kelz_cnn_forward.2} parent=11 // pred_region
        _
      $region36: #{kelz_cnn_forward.2} parent=11 // pred_fallthru
        _
    $region12: #{kelz_cnn_forward.2} parent=5 // pred_fallthru
      _
    %p238 = scmp.lt.s32.totalorder %s13, 6
    // Predicated region
    $region37: #{kelz_cnn_forward.2} parent=5 // pred_check
      %p239 = pneg %p238
    $region38: #{kelz_cnn_forward.2} parent=5 // pred_check_branch
      %241 = sbr.rel (%p239) target = $region40
    $region39: #{kelz_cnn_forward.2} parent=5 // pred_region
      // Predicated region
      $region41: #{kelz_cnn_forward.2} parent=39 // pred_check
        %p242 = pneg %p45
      $region42: #{kelz_cnn_forward.2} parent=39 // pred_check_branch
        %244 = sbr.rel (%p242) target = $region44
      $region43: #{kelz_cnn_forward.2} parent=39 // pred_region
        %p245 = scmp.lt.s32.totalorder %s20, 1
        %s246 = scalar_select %p245, %s20, 1
        %s247 = smul.addr %s246, 7
        %s248 = smul.addr %s247, 4
        %s249 = scalar_lea.vmem %s0, %s248
      $region44: #{kelz_cnn_forward.2} parent=39 // pred_fallthru
        _
    $region40: #{kelz_cnn_forward.2} parent=5 // pred_fallthru
      _
    %p250 = scmp.le.s32.totalorder 1, %s13
    %p251 = scmp.lt.s32.totalorder %s13, 7
    %p252 = pnand %p250, %p251
    %p253 = pneg %p252
    // Predicated region
    $region45: #{kelz_cnn_forward.2} parent=5 // pred_check
      _
    $region46: #{kelz_cnn_forward.2} parent=5 // pred_check_branch
      %255 = sbr.rel (%p252) target = $region48
    $region47: #{kelz_cnn_forward.2} parent=5 // pred_region
      %s256 = ssub.s32 %s13, 1
      %p257 = scmp.lt.s32.totalorder %s22, 1
      %s258 = scalar_select %p257, %s22, 1
      %s259 = smul.addr %s258, 7
      %s260 = smul.addr %s259, 4
      %s261 = scalar_lea.vmem %s0, %s260
      %p262 = pneg %p51
      %p263 = pneg %p48
      %p264 = pneg %p72
      %p265 = pneg %p69
      %p266 = pneg %p93
      %p267 = pneg %p90
      %p268 = pneg %p114
      %p269 = pneg %p111
      %p270 = pneg %p135
      %p271 = pneg %p132
      %p272 = pneg %p156
      %p273 = pneg %p153
      %p274 = pneg %p177
      %p275 = pneg %p174
      %p276 = pneg %p205
      %p277 = pneg %p202
      %s278 = smul.u32 2, %s23
      %p279 = scmp.lt.s32.totalorder %s22, 1
      %s280 = scalar_select %p279, %s22, 1
      %p281 = scmp.lt.s32.totalorder %s278, 5
      %s282 = scalar_select %p281, %s278, 5
      %s283 = smul.addr %s280, 6
      %s284 = sadd.s32 %s282, %s283
      %s285 = smul.addr %s284, 4
      %s286 = scalar_lea.vmem %s7, %s285
      %p287 = scmp.lt.s32.totalorder %s22, 1
      %s288 = scalar_select %p287, %s22, 1
      %s289 = smul.addr %s288, 7
      %s290 = smul.addr %s289, 4
      %s291 = scalar_lea.vmem %s0, %s290
      %s292 = smul.u32 2, %s23
      %p293 = scmp.lt.s32.totalorder %s22, 1
      %s294 = scalar_select %p293, %s22, 1
      %p295 = scmp.lt.s32.totalorder %s292, 5
      %s296 = scalar_select %p295, %s292, 5
      %s297 = smul.addr %s294, 6
      %s298 = sadd.s32 %s296, %s297
      %s299 = smul.addr %s298, 4
      %s300 = scalar_lea.vmem %s7, %s299
      %s301 = smul.u32 2, %s23
      %s303 = smul.u32 %s23, 16
      %s304 = sshra.s32 %s303, 3
      %s305 = sand.u32 %s303, 7
      %s306 = smul.addr %s304, 4
      %s307 = scalar_lea.vmem %s291, %s306
      %v308 = vld [vmem:[%s307] sm:$0xf]
      %v309 = vld [vmem:[%s307 + $0x4] sm:$0xf]
      %v310 = vld [vmem:[%s307 + $0x8] sm:$0x7]
      %v311 = vld [vmem:[%s1] sm:$0xff]
      %v312 = vld [vmem:[%s1 + $0x8] sm:$0x1]
      %v316 = vunpack.c.l.b16 %v308
      %v317 = vunpack.c.l.b16 %v309
      %v318 = vunpack.c.l.b16 %v310
      %v319 = vpack.c.b16 %v317, %v316
      %v320 = vpack.c.b16 %v318, %v318
      %v322 = vpack.i.b16 %v319, %v319
      %v324 = vlaneseq
      %v325 = vshrl.u32 %v324, 7
      %v326 = vsub.s32 0, %v325
      %v327 = vrot.slane %v322, %v326
      %329 = vbcast.lane.c.b16.xlu0 %v327, 256
      %v330 = vpop.permute.xlu0 %329
      %v331 = vshrl.u32 %v319, 16
      %v332 = vpack.i.b16 %v331, %v331
      %v334 = vlaneseq
      %v335 = vshrl.u32 %v334, 7
      %v336 = vsub.s32 0, %v335
      %v337 = vrot.slane %v332, %v336
      %339 = vbcast.lane.c.b16.xlu0 %v337, 256
      %v340 = vpop.permute.xlu0 %339
      %v341 = vlaneseq
      %v342 = vshrl.u32 %v341, 7
      %v343 = vsub.s32 1, %v342
      %v344 = vrot.slane %v322, %v343
      %346 = vbcast.lane.c.b16.xlu0 %v344, 256
      %v347 = vpop.permute.xlu0 %346
      %v348 = vlaneseq
      %v349 = vshrl.u32 %v348, 7
      %v350 = vsub.s32 1, %v349
      %v351 = vrot.slane %v332, %v350
      %353 = vbcast.lane.c.b16.xlu0 %v351, 256
      %v354 = vpop.permute.xlu0 %353
      %v355 = vlaneseq
      %v356 = vshrl.u32 %v355, 7
      %v357 = vsub.s32 2, %v356
      %v358 = vrot.slane %v322, %v357
      %360 = vbcast.lane.c.b16.xlu0 %v358, 256
      %v361 = vpop.permute.xlu0 %360
      %v362 = vlaneseq
      %v363 = vshrl.u32 %v362, 7
      %v364 = vsub.s32 2, %v363
      %v365 = vrot.slane %v332, %v364
      %367 = vbcast.lane.c.b16.xlu0 %v365, 256
      %v368 = vpop.permute.xlu0 %367
      %v369 = vlaneseq
      %v370 = vshrl.u32 %v369, 7
      %v371 = vsub.s32 3, %v370
      %v372 = vrot.slane %v322, %v371
      %374 = vbcast.lane.c.b16.xlu0 %v372, 256
      %v375 = vpop.permute.xlu0 %374
      %v376 = vlaneseq
      %v377 = vshrl.u32 %v376, 7
      %v378 = vsub.s32 3, %v377
      %v379 = vrot.slane %v332, %v378
      %381 = vbcast.lane.c.b16.xlu0 %v379, 256
      %v382 = vpop.permute.xlu0 %381
      %v383 = vlaneseq
      %v384 = vshrl.u32 %v383, 7
      %v385 = vsub.s32 4, %v384
      %v386 = vrot.slane %v322, %v385
      %388 = vbcast.lane.c.b16.xlu0 %v386, 256
      %v389 = vpop.permute.xlu0 %388
      %v390 = vlaneseq
      %v391 = vshrl.u32 %v390, 7
      %v392 = vsub.s32 4, %v391
      %v393 = vrot.slane %v332, %v392
      %395 = vbcast.lane.c.b16.xlu0 %v393, 256
      %v396 = vpop.permute.xlu0 %395
      %v397 = vlaneseq
      %v398 = vshrl.u32 %v397, 7
      %v399 = vsub.s32 5, %v398
      %v400 = vrot.slane %v322, %v399
      %402 = vbcast.lane.c.b16.xlu0 %v400, 256
      %v403 = vpop.permute.xlu0 %402
      %v404 = vlaneseq
      %v405 = vshrl.u32 %v404, 7
      %v406 = vsub.s32 5, %v405
      %v407 = vrot.slane %v332, %v406
      %409 = vbcast.lane.c.b16.xlu0 %v407, 256
      %v410 = vpop.permute.xlu0 %409
      %v411 = vlaneseq
      %v412 = vshrl.u32 %v411, 7
      %v413 = vsub.s32 6, %v412
      %v414 = vrot.slane %v322, %v413
      %416 = vbcast.lane.c.b16.xlu0 %v414, 256
      %v417 = vpop.permute.xlu0 %416
      %v418 = vlaneseq
      %v419 = vshrl.u32 %v418, 7
      %v420 = vsub.s32 6, %v419
      %v421 = vrot.slane %v332, %v420
      %423 = vbcast.lane.c.b16.xlu0 %v421, 256
      %v424 = vpop.permute.xlu0 %423
      %v425 = vlaneseq
      %v426 = vshrl.u32 %v425, 7
      %v427 = vsub.s32 7, %v426
      %v428 = vrot.slane %v322, %v427
      %430 = vbcast.lane.c.b16.xlu0 %v428, 256
      %v431 = vpop.permute.xlu0 %430
      %v432 = vlaneseq
      %v433 = vshrl.u32 %v432, 7
      %v434 = vsub.s32 7, %v433
      %v435 = vrot.slane %v332, %v434
      %437 = vbcast.lane.c.b16.xlu0 %v435, 256
      %v438 = vpop.permute.xlu0 %437
      %v440 = vpack.i.b16 %v320, %v320
      %v442 = vlaneseq
      %v443 = vshrl.u32 %v442, 7
      %v444 = vsub.s32 0, %v443
      %v445 = vrot.slane %v440, %v444
      %447 = vbcast.lane.c.b16.xlu0 %v445, 256
      %v448 = vpop.permute.xlu0 %447
      %v449 = vshrl.u32 %v320, 16
      %v450 = vpack.i.b16 %v449, %v449
      %v452 = vlaneseq
      %v453 = vshrl.u32 %v452, 7
      %v454 = vsub.s32 0, %v453
      %v455 = vrot.slane %v450, %v454
      %457 = vbcast.lane.c.b16.xlu0 %v455, 256
      %v458 = vpop.permute.xlu0 %457
      %v459 = vlaneseq
      %v460 = vshrl.u32 %v459, 7
      %v461 = vsub.s32 1, %v460
      %v462 = vrot.slane %v440, %v461
      %464 = vbcast.lane.c.b16.xlu0 %v462, 256
      %v465 = vpop.permute.xlu0 %464
      %v466 = vlaneseq
      %v467 = vshrl.u32 %v466, 7
      %v468 = vsub.s32 1, %v467
      %v469 = vrot.slane %v450, %v468
      %471 = vbcast.lane.c.b16.xlu0 %v469, 256
      %v472 = vpop.permute.xlu0 %471
      %v473 = vunpack.c.l.bf16 %v330
      %v474 = vunpack.c.h.bf16 %v330
      %v475 = vunpack.c.l.bf16 %v340
      %v476 = vunpack.c.h.bf16 %v340
      %v477 = vunpack.c.l.bf16 %v347
      %v478 = vunpack.c.h.bf16 %v347
      %v479 = vunpack.c.l.bf16 %v354
      %v480 = vunpack.c.h.bf16 %v354
      %v481 = vunpack.c.l.bf16 %v361
      %v482 = vunpack.c.h.bf16 %v361
      %v483 = vunpack.c.l.bf16 %v368
      %v484 = vunpack.c.h.bf16 %v368
      %v485 = vunpack.c.l.bf16 %v375
      %v486 = vunpack.c.h.bf16 %v375
      %v487 = vunpack.c.l.bf16 %v382
      %v488 = vunpack.c.h.bf16 %v382
      %v489 = vunpack.c.l.bf16 %v389
      %v490 = vunpack.c.h.bf16 %v389
      %v491 = vunpack.c.l.bf16 %v396
      %v492 = vunpack.c.h.bf16 %v396
      %v493 = vunpack.c.l.bf16 %v403
      %v494 = vunpack.c.h.bf16 %v403
      %v495 = vunpack.c.l.bf16 %v410
      %v496 = vunpack.c.h.bf16 %v410
      %v497 = vunpack.c.l.bf16 %v417
      %v498 = vunpack.c.h.bf16 %v417
      %v499 = vunpack.c.l.bf16 %v424
      %v500 = vunpack.c.h.bf16 %v424
      %v501 = vunpack.c.l.bf16 %v431
      %v502 = vunpack.c.h.bf16 %v431
      %v503 = vunpack.c.l.bf16 %v438
      %v504 = vunpack.c.h.bf16 %v438
      %v505 = vunpack.c.l.bf16 %v448
      %v506 = vunpack.c.h.bf16 %v448
      %v507 = vunpack.c.l.bf16 %v458
      %v508 = vunpack.c.h.bf16 %v458
      %v509 = vunpack.c.l.bf16 %v465
      %v510 = vunpack.c.h.bf16 %v465
      %v511 = vunpack.c.l.bf16 %v472
      %v512 = vunpack.c.h.bf16 %v472
      %v513 = vlaneseq
      %v514 = vshrl.u32 %v513, 7
      %v515 = vsub.s32 0, %v514
      %v516 = vrot.slane %v311, %v515
      %v517 = vmul.f32 %v473, %v516
      %v518 = vmul.f32 %v474, %v516
      %v519 = vmul.f32 %v475, %v516
      %v520 = vmul.f32 %v476, %v516
      %v521 = vmul.f32 %v477, %v516
      %v522 = vmul.f32 %v478, %v516
      %v523 = vmul.f32 %v479, %v516
      %v524 = vmul.f32 %v480, %v516
      %v525 = vmul.f32 %v481, %v516
      %v526 = vmul.f32 %v482, %v516
      %v527 = vmul.f32 %v483, %v516
      %v528 = vmul.f32 %v484, %v516
      %v529 = vmul.f32 %v485, %v516
      %v530 = vmul.f32 %v486, %v516
      %v531 = vmul.f32 %v487, %v516
      %v532 = vmul.f32 %v488, %v516
      %v533 = vmul.f32 %v489, %v516
      %v534 = vmul.f32 %v490, %v516
      %v535 = vmul.f32 %v491, %v516
      %v536 = vmul.f32 %v492, %v516
      %v537 = vmul.f32 %v493, %v516
      %v538 = vmul.f32 %v494, %v516
      %v539 = vmul.f32 %v495, %v516
      %v540 = vmul.f32 %v496, %v516
      %v541 = vmul.f32 %v497, %v516
      %v542 = vmul.f32 %v498, %v516
      %v543 = vmul.f32 %v499, %v516
      %v544 = vmul.f32 %v500, %v516
      %v545 = vmul.f32 %v501, %v516
      %v546 = vmul.f32 %v502, %v516
      %v547 = vmul.f32 %v503, %v516
      %v548 = vmul.f32 %v504, %v516
      %v549 = vmul.f32 %v505, %v516
      %v550 = vmul.f32 %v506, %v516
      %v551 = vmul.f32 %v507, %v516
      %v552 = vmul.f32 %v508, %v516
      %v553 = vmul.f32 %v509, %v516
      %v554 = vmul.f32 %v510, %v516
      %v555 = vmul.f32 %v511, %v516
      %v556 = vmul.f32 %v512, %v516
      %v557 = vadd.f32 %v517, 0.0
      %v558 = vadd.f32 %v518, 0.0
      %v559 = vadd.f32 %v519, 0.0
      %v560 = vadd.f32 %v520, 0.0
      %v561 = vadd.f32 %v521, 0.0
      %v562 = vadd.f32 %v522, 0.0
      %v563 = vadd.f32 %v523, 0.0
      %v564 = vadd.f32 %v524, 0.0
      %v565 = vadd.f32 %v525, 0.0
      %v566 = vadd.f32 %v526, 0.0
      %v567 = vadd.f32 %v527, 0.0
      %v568 = vadd.f32 %v528, 0.0
      %v569 = vadd.f32 %v529, 0.0
      %v570 = vadd.f32 %v530, 0.0
      %v571 = vadd.f32 %v531, 0.0
      %v572 = vadd.f32 %v532, 0.0
      %v573 = vadd.f32 %v533, 0.0
      %v574 = vadd.f32 %v534, 0.0
      %v575 = vadd.f32 %v535, 0.0
      %v576 = vadd.f32 %v536, 0.0
      %v577 = vadd.f32 %v537, 0.0
      %v578 = vadd.f32 %v538, 0.0
      %v579 = vadd.f32 %v539, 0.0
      %v580 = vadd.f32 %v540, 0.0
      %v581 = vadd.f32 %v541, 0.0
      %v582 = vadd.f32 %v542, 0.0
      %v583 = vadd.f32 %v543, 0.0
      %v584 = vadd.f32 %v544, 0.0
      %v585 = vadd.f32 %v545, 0.0
      %v586 = vadd.f32 %v546, 0.0
      %v587 = vadd.f32 %v547, 0.0
      %v588 = vadd.f32 %v548, 0.0
      %v589 = vadd.f32 %v549, 0.0
      %v590 = vadd.f32 %v550, 0.0
      %v591 = vadd.f32 %v551, 0.0
      %v592 = vadd.f32 %v552, 0.0
      %v593 = vadd.f32 %v553, 0.0
      %v594 = vadd.f32 %v554, 0.0
      %v595 = vadd.f32 %v555, 0.0
      %v596 = vadd.f32 %v556, 0.0
      %s598 = sor.u32 256, 1
      %599 = vbcast.lane.c.b16.xlu0 %v327, %s598
      %v600 = vpop.permute.xlu0 %599
      %s602 = sor.u32 256, 1
      %603 = vbcast.lane.c.b16.xlu0 %v337, %s602
      %v604 = vpop.permute.xlu0 %603
      %s606 = sor.u32 256, 1
      %607 = vbcast.lane.c.b16.xlu0 %v344, %s606
      %v608 = vpop.permute.xlu0 %607
      %s610 = sor.u32 256, 1
      %611 = vbcast.lane.c.b16.xlu0 %v351, %s610
      %v612 = vpop.permute.xlu0 %611
      %s614 = sor.u32 256, 1
      %615 = vbcast.lane.c.b16.xlu0 %v358, %s614
      %v616 = vpop.permute.xlu0 %615
      %s618 = sor.u32 256, 1
      %619 = vbcast.lane.c.b16.xlu0 %v365, %s618
      %v620 = vpop.permute.xlu0 %619
      %s622 = sor.u32 256, 1
      %623 = vbcast.lane.c.b16.xlu0 %v372, %s622
      %v624 = vpop.permute.xlu0 %623
      %s626 = sor.u32 256, 1
      %627 = vbcast.lane.c.b16.xlu0 %v379, %s626
      %v628 = vpop.permute.xlu0 %627
      %s630 = sor.u32 256, 1
      %631 = vbcast.lane.c.b16.xlu0 %v386, %s630
      %v632 = vpop.permute.xlu0 %631
      %s634 = sor.u32 256, 1
      %635 = vbcast.lane.c.b16.xlu0 %v393, %s634
      %v636 = vpop.permute.xlu0 %635
      %s638 = sor.u32 256, 1
      %639 = vbcast.lane.c.b16.xlu0 %v400, %s638
      %v640 = vpop.permute.xlu0 %639
      %s642 = sor.u32 256, 1
      %643 = vbcast.lane.c.b16.xlu0 %v407, %s642
      %v644 = vpop.permute.xlu0 %643
      %s646 = sor.u32 256, 1
      %647 = vbcast.lane.c.b16.xlu0 %v414, %s646
      %v648 = vpop.permute.xlu0 %647
      %s650 = sor.u32 256, 1
      %651 = vbcast.lane.c.b16.xlu0 %v421, %s650
      %v652 = vpop.permute.xlu0 %651
      %s654 = sor.u32 256, 1
      %655 = vbcast.lane.c.b16.xlu0 %v428, %s654
      %v656 = vpop.permute.xlu0 %655
      %s658 = sor.u32 256, 1
      %659 = vbcast.lane.c.b16.xlu0 %v435, %s658
      %v660 = vpop.permute.xlu0 %659
      %s662 = sor.u32 256, 1
      %663 = vbcast.lane.c.b16.xlu0 %v445, %s662
      %v664 = vpop.permute.xlu0 %663
      %s666 = sor.u32 256, 1
      %667 = vbcast.lane.c.b16.xlu0 %v455, %s666
      %v668 = vpop.permute.xlu0 %667
      %s670 = sor.u32 256, 1
      %671 = vbcast.lane.c.b16.xlu0 %v462, %s670
      %v672 = vpop.permute.xlu0 %671
      %s674 = sor.u32 256, 1
      %675 = vbcast.lane.c.b16.xlu0 %v469, %s674
      %v676 = vpop.permute.xlu0 %675
      %v677 = vunpack.c.l.bf16 %v600
      %v678 = vunpack.c.h.bf16 %v600
      %v679 = vunpack.c.l.bf16 %v604
      %v680 = vunpack.c.h.bf16 %v604
      %v681 = vunpack.c.l.bf16 %v608
      %v682 = vunpack.c.h.bf16 %v608
      %v683 = vunpack.c.l.bf16 %v612
      %v684 = vunpack.c.h.bf16 %v612
      %v685 = vunpack.c.l.bf16 %v616
      %v686 = vunpack.c.h.bf16 %v616
      %v687 = vunpack.c.l.bf16 %v620
      %v688 = vunpack.c.h.bf16 %v620
      %v689 = vunpack.c.l.bf16 %v624
      %v690 = vunpack.c.h.bf16 %v624
      %v691 = vunpack.c.l.bf16 %v628
      %v692 = vunpack.c.h.bf16 %v628
      %v693 = vunpack.c.l.bf16 %v632
      %v694 = vunpack.c.h.bf16 %v632
      %v695 = vunpack.c.l.bf16 %v636
      %v696 = vunpack.c.h.bf16 %v636
      %v697 = vunpack.c.l.bf16 %v640
      %v698 = vunpack.c.h.bf16 %v640
      %v699 = vunpack.c.l.bf16 %v644
      %v700 = vunpack.c.h.bf16 %v644
      %v701 = vunpack.c.l.bf16 %v648
      %v702 = vunpack.c.h.bf16 %v648
      %v703 = vunpack.c.l.bf16 %v652
      %v704 = vunpack.c.h.bf16 %v652
      %v705 = vunpack.c.l.bf16 %v656
      %v706 = vunpack.c.h.bf16 %v656
      %v707 = vunpack.c.l.bf16 %v660
      %v708 = vunpack.c.h.bf16 %v660
      %v709 = vunpack.c.l.bf16 %v664
      %v710 = vunpack.c.h.bf16 %v664
      %v711 = vunpack.c.l.bf16 %v668
      %v712 = vunpack.c.h.bf16 %v668
      %v713 = vunpack.c.l.bf16 %v672
      %v714 = vunpack.c.h.bf16 %v672
      %v715 = vunpack.c.l.bf16 %v676
      %v716 = vunpack.c.h.bf16 %v676
      %v717 = vlaneseq
      %v718 = vshrl.u32 %v717, 7
      %v719 = vsub.s32 1, %v718
      %v720 = vrot.slane %v311, %v719
      %v721 = vmul.f32 %v677, %v720
      %v722 = vmul.f32 %v678, %v720
      %v723 = vmul.f32 %v679, %v720
      %v724 = vmul.f32 %v680, %v720
      %v725 = vmul.f32 %v681, %v720
      %v726 = vmul.f32 %v682, %v720
      %v727 = vmul.f32 %v683, %v720
      %v728 = vmul.f32 %v684, %v720
      %v729 = vmul.f32 %v685, %v720
      %v730 = vmul.f32 %v686, %v720
      %v731 = vmul.f32 %v687, %v720
      %v732 = vmul.f32 %v688, %v720
      %v733 = vmul.f32 %v689, %v720
      %v734 = vmul.f32 %v690, %v720
      %v735 = vmul.f32 %v691, %v720
      %v736 = vmul.f32 %v692, %v720
      %v737 = vmul.f32 %v693, %v720
      %v738 = vmul.f32 %v694, %v720
      %v739 = vmul.f32 %v695, %v720
      %v740 = vmul.f32 %v696, %v720
      %v741 = vmul.f32 %v697, %v720
      %v742 = vmul.f32 %v698, %v720
      %v743 = vmul.f32 %v699, %v720
      %v744 = vmul.f32 %v700, %v720
      %v745 = vmul.f32 %v701, %v720
      %v746 = vmul.f32 %v702, %v720
      %v747 = vmul.f32 %v703, %v720
      %v748 = vmul.f32 %v704, %v720
      %v749 = vmul.f32 %v705, %v720
      %v750 = vmul.f32 %v706, %v720
      %v751 = vmul.f32 %v707, %v720
      %v752 = vmul.f32 %v708, %v720
      %v753 = vmul.f32 %v709, %v720
      %v754 = vmul.f32 %v710, %v720
      %v755 = vmul.f32 %v711, %v720
      %v756 = vmul.f32 %v712, %v720
      %v757 = vmul.f32 %v713, %v720
      %v758 = vmul.f32 %v714, %v720
      %v759 = vmul.f32 %v715, %v720
      %v760 = vmul.f32 %v716, %v720
      %v761 = vadd.f32 %v557, %v721
      %v762 = vadd.f32 %v558, %v722
      %v763 = vadd.f32 %v559, %v723
      %v764 = vadd.f32 %v560, %v724
      %v765 = vadd.f32 %v561, %v725
      %v766 = vadd.f32 %v562, %v726
      %v767 = vadd.f32 %v563, %v727
      %v768 = vadd.f32 %v564, %v728
      %v769 = vadd.f32 %v565, %v729
      %v770 = vadd.f32 %v566, %v730
      %v771 = vadd.f32 %v567, %v731
      %v772 = vadd.f32 %v568, %v732
      %v773 = vadd.f32 %v569, %v733
      %v774 = vadd.f32 %v570, %v734
      %v775 = vadd.f32 %v571, %v735
      %v776 = vadd.f32 %v572, %v736
      %v777 = vadd.f32 %v573, %v737
      %v778 = vadd.f32 %v574, %v738
      %v779 = vadd.f32 %v575, %v739
      %v780 = vadd.f32 %v576, %v740
      %v781 = vadd.f32 %v577, %v741
      %v782 = vadd.f32 %v578, %v742
      %v783 = vadd.f32 %v579, %v743
      %v784 = vadd.f32 %v580, %v744
      %v785 = vadd.f32 %v581, %v745
      %v786 = vadd.f32 %v582, %v746
      %v787 = vadd.f32 %v583, %v747
      %v788 = vadd.f32 %v584, %v748
      %v789 = vadd.f32 %v585, %v749
      %v790 = vadd.f32 %v586, %v750
      %v791 = vadd.f32 %v587, %v751
      %v792 = vadd.f32 %v588, %v752
      %v793 = vadd.f32 %v589, %v753
      %v794 = vadd.f32 %v590, %v754
      %v795 = vadd.f32 %v591, %v755
      %v796 = vadd.f32 %v592, %v756
      %v797 = vadd.f32 %v593, %v757
      %v798 = vadd.f32 %v594, %v758
      %v799 = vadd.f32 %v595, %v759
      %v800 = vadd.f32 %v596, %v760
      %s802 = sor.u32 256, 2
      %803 = vbcast.lane.c.b16.xlu0 %v327, %s802
      %v804 = vpop.permute.xlu0 %803
      %s806 = sor.u32 256, 2
      %807 = vbcast.lane.c.b16.xlu0 %v337, %s806
      %v808 = vpop.permute.xlu0 %807
      %s810 = sor.u32 256, 2
      %811 = vbcast.lane.c.b16.xlu0 %v344, %s810
      %v812 = vpop.permute.xlu0 %811
      %s814 = sor.u32 256, 2
      %815 = vbcast.lane.c.b16.xlu0 %v351, %s814
      %v816 = vpop.permute.xlu0 %815
      %s818 = sor.u32 256, 2
      %819 = vbcast.lane.c.b16.xlu0 %v358, %s818
      %v820 = vpop.permute.xlu0 %819
      %s822 = sor.u32 256, 2
      %823 = vbcast.lane.c.b16.xlu0 %v365, %s822
      %v824 = vpop.permute.xlu0 %823
      %s826 = sor.u32 256, 2
      %827 = vbcast.lane.c.b16.xlu0 %v372, %s826
      %v828 = vpop.permute.xlu0 %827
      %s830 = sor.u32 256, 2
      %831 = vbcast.lane.c.b16.xlu0 %v379, %s830
      %v832 = vpop.permute.xlu0 %831
      %s834 = sor.u32 256, 2
      %835 = vbcast.lane.c.b16.xlu0 %v386, %s834
      %v836 = vpop.permute.xlu0 %835
      %s838 = sor.u32 256, 2
      %839 = vbcast.lane.c.b16.xlu0 %v393, %s838
      %v840 = vpop.permute.xlu0 %839
      %s842 = sor.u32 256, 2
      %843 = vbcast.lane.c.b16.xlu0 %v400, %s842
      %v844 = vpop.permute.xlu0 %843
      %s846 = sor.u32 256, 2
      %847 = vbcast.lane.c.b16.xlu0 %v407, %s846
      %v848 = vpop.permute.xlu0 %847
      %s850 = sor.u32 256, 2
      %851 = vbcast.lane.c.b16.xlu0 %v414, %s850
      %v852 = vpop.permute.xlu0 %851
      %s854 = sor.u32 256, 2
      %855 = vbcast.lane.c.b16.xlu0 %v421, %s854
      %v856 = vpop.permute.xlu0 %855
      %s858 = sor.u32 256, 2
      %859 = vbcast.lane.c.b16.xlu0 %v428, %s858
      %v860 = vpop.permute.xlu0 %859
      %s862 = sor.u32 256, 2
      %863 = vbcast.lane.c.b16.xlu0 %v435, %s862
      %v864 = vpop.permute.xlu0 %863
      %s866 = sor.u32 256, 2
      %867 = vbcast.lane.c.b16.xlu0 %v445, %s866
      %v868 = vpop.permute.xlu0 %867
      %s870 = sor.u32 256, 2
      %871 = vbcast.lane.c.b16.xlu0 %v455, %s870
      %v872 = vpop.permute.xlu0 %871
      %s874 = sor.u32 256, 2
      %875 = vbcast.lane.c.b16.xlu0 %v462, %s874
      %v876 = vpop.permute.xlu0 %875
      %s878 = sor.u32 256, 2
      %879 = vbcast.lane.c.b16.xlu0 %v469, %s878
      %v880 = vpop.permute.xlu0 %879
      %v881 = vunpack.c.l.bf16 %v804
      %v882 = vunpack.c.h.bf16 %v804
      %v883 = vunpack.c.l.bf16 %v808
      %v884 = vunpack.c.h.bf16 %v808
      %v885 = vunpack.c.l.bf16 %v812
      %v886 = vunpack.c.h.bf16 %v812
      %v887 = vunpack.c.l.bf16 %v816
      %v888 = vunpack.c.h.bf16 %v816
      %v889 = vunpack.c.l.bf16 %v820
      %v890 = vunpack.c.h.bf16 %v820
      %v891 = vunpack.c.l.bf16 %v824
      %v892 = vunpack.c.h.bf16 %v824
      %v893 = vunpack.c.l.bf16 %v828
      %v894 = vunpack.c.h.bf16 %v828
      %v895 = vunpack.c.l.bf16 %v832
      %v896 = vunpack.c.h.bf16 %v832
      %v897 = vunpack.c.l.bf16 %v836
      %v898 = vunpack.c.h.bf16 %v836
      %v899 = vunpack.c.l.bf16 %v840
      %v900 = vunpack.c.h.bf16 %v840
      %v901 = vunpack.c.l.bf16 %v844
      %v902 = vunpack.c.h.bf16 %v844
      %v903 = vunpack.c.l.bf16 %v848
      %v904 = vunpack.c.h.bf16 %v848
      %v905 = vunpack.c.l.bf16 %v852
      %v906 = vunpack.c.h.bf16 %v852
      %v907 = vunpack.c.l.bf16 %v856
      %v908 = vunpack.c.h.bf16 %v856
      %v909 = vunpack.c.l.bf16 %v860
      %v910 = vunpack.c.h.bf16 %v860
      %v911 = vunpack.c.l.bf16 %v864
      %v912 = vunpack.c.h.bf16 %v864
      %v913 = vunpack.c.l.bf16 %v868
      %v914 = vunpack.c.h.bf16 %v868
      %v915 = vunpack.c.l.bf16 %v872
      %v916 = vunpack.c.h.bf16 %v872
      %v917 = vunpack.c.l.bf16 %v876
      %v918 = vunpack.c.h.bf16 %v876
      %v919 = vunpack.c.l.bf16 %v880
      %v920 = vunpack.c.h.bf16 %v880
      %v921 = vlaneseq
      %v922 = vshrl.u32 %v921, 7
      %v923 = vsub.s32 2, %v922
      %v924 = vrot.slane %v311, %v923
      %v925 = vmul.f32 %v881, %v924
      %v926 = vmul.f32 %v882, %v924
      %v927 = vmul.f32 %v883, %v924
      %v928 = vmul.f32 %v884, %v924
      %v929 = vmul.f32 %v885, %v924
      %v930 = vmul.f32 %v886, %v924
      %v931 = vmul.f32 %v887, %v924
      %v932 = vmul.f32 %v888, %v924
      %v933 = vmul.f32 %v889, %v924
      %v934 = vmul.f32 %v890, %v924
      %v935 = vmul.f32 %v891, %v924
      %v936 = vmul.f32 %v892, %v924
      %v937 = vmul.f32 %v893, %v924
      %v938 = vmul.f32 %v894, %v924
      %v939 = vmul.f32 %v895, %v924
      %v940 = vmul.f32 %v896, %v924
      %v941 = vmul.f32 %v897, %v924
      %v942 = vmul.f32 %v898, %v924
      %v943 = vmul.f32 %v899, %v924
      %v944 = vmul.f32 %v900, %v924
      %v945 = vmul.f32 %v901, %v924
      %v946 = vmul.f32 %v902, %v924
      %v947 = vmul.f32 %v903, %v924
      %v948 = vmul.f32 %v904, %v924
      %v949 = vmul.f32 %v905, %v924
      %v950 = vmul.f32 %v906, %v924
      %v951 = vmul.f32 %v907, %v924
      %v952 = vmul.f32 %v908, %v924
      %v953 = vmul.f32 %v909, %v924
      %v954 = vmul.f32 %v910, %v924
      %v955 = vmul.f32 %v911, %v924
      %v956 = vmul.f32 %v912, %v924
      %v957 = vmul.f32 %v913, %v924
      %v958 = vmul.f32 %v914, %v924
      %v959 = vmul.f32 %v915, %v924
      %v960 = vmul.f32 %v916, %v924
      %v961 = vmul.f32 %v917, %v924
      %v962 = vmul.f32 %v918, %v924
      %v963 = vmul.f32 %v919, %v924
      %v964 = vmul.f32 %v920, %v924
      %v965 = vadd.f32 %v761, %v925
      %v966 = vadd.f32 %v762, %v926
      %v967 = vadd.f32 %v763, %v927
      %v968 = vadd.f32 %v764, %v928
      %v969 = vadd.f32 %v765, %v929
      %v970 = vadd.f32 %v766, %v930
      %v971 = vadd.f32 %v767, %v931
      %v972 = vadd.f32 %v768, %v932
      %v973 = vadd.f32 %v769, %v933
      %v974 = vadd.f32 %v770, %v934
      %v975 = vadd.f32 %v771, %v935
      %v976 = vadd.f32 %v772, %v936
      %v977 = vadd.f32 %v773, %v937
      %v978 = vadd.f32 %v774, %v938
      %v979 = vadd.f32 %v775, %v939
      %v980 = vadd.f32 %v776, %v940
      %v981 = vadd.f32 %v777, %v941
      %v982 = vadd.f32 %v778, %v942
      %v983 = vadd.f32 %v779, %v943
      %v984 = vadd.f32 %v780, %v944
      %v985 = vadd.f32 %v781, %v945
      %v986 = vadd.f32 %v782, %v946
      %v987 = vadd.f32 %v783, %v947
      %v988 = vadd.f32 %v784, %v948
      %v989 = vadd.f32 %v785, %v949
      %v990 = vadd.f32 %v786, %v950
      %v991 = vadd.f32 %v787, %v951
      %v992 = vadd.f32 %v788, %v952
      %v993 = vadd.f32 %v789, %v953
      %v994 = vadd.f32 %v790, %v954
      %v995 = vadd.f32 %v791, %v955
      %v996 = vadd.f32 %v792, %v956
      %v997 = vadd.f32 %v793, %v957
      %v998 = vadd.f32 %v794, %v958
      %v999 = vadd.f32 %v795, %v959
      %v1000 = vadd.f32 %v796, %v960
      %v1001 = vadd.f32 %v797, %v961
      %v1002 = vadd.f32 %v798, %v962
      %v1003 = vadd.f32 %v799, %v963
      %v1004 = vadd.f32 %v800, %v964
      %v1005 = vlaneseq
      %v1006 = vshrl.u32 %v1005, 7
      %v1007 = vsub.s32 2, %v1006
      %v1008 = vrot.slane %v440, %v1007
      %1010 = vbcast.lane.c.b16.xlu0 %v1008, 256
      %v1011 = vpop.permute.xlu0 %1010
      %v1012 = vunpack.c.l.bf16 %v1011
      %v1013 = vunpack.c.h.bf16 %v1011
      %v1014 = vlaneseq
      %v1015 = vshrl.u32 %v1014, 7
      %v1016 = vsub.s32 3, %v1015
      %v1017 = vrot.slane %v311, %v1016
      %v1018 = vmul.f32 %v475, %v1017
      %v1019 = vmul.f32 %v476, %v1017
      %v1020 = vmul.f32 %v477, %v1017
      %v1021 = vmul.f32 %v478, %v1017
      %v1022 = vmul.f32 %v479, %v1017
      %v1023 = vmul.f32 %v480, %v1017
      %v1024 = vmul.f32 %v481, %v1017
      %v1025 = vmul.f32 %v482, %v1017
      %v1026 = vmul.f32 %v483, %v1017
      %v1027 = vmul.f32 %v484, %v1017
      %v1028 = vmul.f32 %v485, %v1017
      %v1029 = vmul.f32 %v486, %v1017
      %v1030 = vmul.f32 %v487, %v1017
      %v1031 = vmul.f32 %v488, %v1017
      %v1032 = vmul.f32 %v489, %v1017
      %v1033 = vmul.f32 %v490, %v1017
      %v1034 = vmul.f32 %v491, %v1017
      %v1035 = vmul.f32 %v492, %v1017
      %v1036 = vmul.f32 %v493, %v1017
      %v1037 = vmul.f32 %v494, %v1017
      %v1038 = vmul.f32 %v495, %v1017
      %v1039 = vmul.f32 %v496, %v1017
      %v1040 = vmul.f32 %v497, %v1017
      %v1041 = vmul.f32 %v498, %v1017
      %v1042 = vmul.f32 %v499, %v1017
      %v1043 = vmul.f32 %v500, %v1017
      %v1044 = vmul.f32 %v501, %v1017
      %v1045 = vmul.f32 %v502, %v1017
      %v1046 = vmul.f32 %v503, %v1017
      %v1047 = vmul.f32 %v504, %v1017
      %v1048 = vmul.f32 %v505, %v1017
      %v1049 = vmul.f32 %v506, %v1017
      %v1050 = vmul.f32 %v507, %v1017
      %v1051 = vmul.f32 %v508, %v1017
      %v1052 = vmul.f32 %v509, %v1017
      %v1053 = vmul.f32 %v510, %v1017
      %v1054 = vmul.f32 %v511, %v1017
      %v1055 = vmul.f32 %v512, %v1017
      %v1056 = vmul.f32 %v1012, %v1017
      %v1057 = vmul.f32 %v1013, %v1017
      %v1058 = vadd.f32 %v965, %v1018
      %v1059 = vadd.f32 %v966, %v1019
      %v1060 = vadd.f32 %v967, %v1020
      %v1061 = vadd.f32 %v968, %v1021
      %v1062 = vadd.f32 %v969, %v1022
      %v1063 = vadd.f32 %v970, %v1023
      %v1064 = vadd.f32 %v971, %v1024
      %v1065 = vadd.f32 %v972, %v1025
      %v1066 = vadd.f32 %v973, %v1026
      %v1067 = vadd.f32 %v974, %v1027
      %v1068 = vadd.f32 %v975, %v1028
      %v1069 = vadd.f32 %v976, %v1029
      %v1070 = vadd.f32 %v977, %v1030
      %v1071 = vadd.f32 %v978, %v1031
      %v1072 = vadd.f32 %v979, %v1032
      %v1073 = vadd.f32 %v980, %v1033
      %v1074 = vadd.f32 %v981, %v1034
      %v1075 = vadd.f32 %v982, %v1035
      %v1076 = vadd.f32 %v983, %v1036
      %v1077 = vadd.f32 %v984, %v1037
      %v1078 = vadd.f32 %v985, %v1038
      %v1079 = vadd.f32 %v986, %v1039
      %v1080 = vadd.f32 %v987, %v1040
      %v1081 = vadd.f32 %v988, %v1041
      %v1082 = vadd.f32 %v989, %v1042
      %v1083 = vadd.f32 %v990, %v1043
      %v1084 = vadd.f32 %v991, %v1044
      %v1085 = vadd.f32 %v992, %v1045
      %v1086 = vadd.f32 %v993, %v1046
      %v1087 = vadd.f32 %v994, %v1047
      %v1088 = vadd.f32 %v995, %v1048
      %v1089 = vadd.f32 %v996, %v1049
      %v1090 = vadd.f32 %v997, %v1050
      %v1091 = vadd.f32 %v998, %v1051
      %v1092 = vadd.f32 %v999, %v1052
      %v1093 = vadd.f32 %v1000, %v1053
      %v1094 = vadd.f32 %v1001, %v1054
      %v1095 = vadd.f32 %v1002, %v1055
      %v1096 = vadd.f32 %v1003, %v1056
      %v1097 = vadd.f32 %v1004, %v1057
      %s1099 = sor.u32 256, 1
      %1100 = vbcast.lane.c.b16.xlu0 %v1008, %s1099
      %v1101 = vpop.permute.xlu0 %1100
      %v1102 = vunpack.c.l.bf16 %v1101
      %v1103 = vunpack.c.h.bf16 %v1101
      %v1104 = vlaneseq
      %v1105 = vshrl.u32 %v1104, 7
      %v1106 = vsub.s32 4, %v1105
      %v1107 = vrot.slane %v311, %v1106
      %v1108 = vmul.f32 %v679, %v1107
      %v1109 = vmul.f32 %v680, %v1107
      %v1110 = vmul.f32 %v681, %v1107
      %v1111 = vmul.f32 %v682, %v1107
      %v1112 = vmul.f32 %v683, %v1107
      %v1113 = vmul.f32 %v684, %v1107
      %v1114 = vmul.f32 %v685, %v1107
      %v1115 = vmul.f32 %v686, %v1107
      %v1116 = vmul.f32 %v687, %v1107
      %v1117 = vmul.f32 %v688, %v1107
      %v1118 = vmul.f32 %v689, %v1107
      %v1119 = vmul.f32 %v690, %v1107
      %v1120 = vmul.f32 %v691, %v1107
      %v1121 = vmul.f32 %v692, %v1107
      %v1122 = vmul.f32 %v693, %v1107
      %v1123 = vmul.f32 %v694, %v1107
      %v1124 = vmul.f32 %v695, %v1107
      %v1125 = vmul.f32 %v696, %v1107
      %v1126 = vmul.f32 %v697, %v1107
      %v1127 = vmul.f32 %v698, %v1107
      %v1128 = vmul.f32 %v699, %v1107
      %v1129 = vmul.f32 %v700, %v1107
      %v1130 = vmul.f32 %v701, %v1107
      %v1131 = vmul.f32 %v702, %v1107
      %v1132 = vmul.f32 %v703, %v1107
      %v1133 = vmul.f32 %v704, %v1107
      %v1134 = vmul.f32 %v705, %v1107
      %v1135 = vmul.f32 %v706, %v1107
      %v1136 = vmul.f32 %v707, %v1107
      %v1137 = vmul.f32 %v708, %v1107
      %v1138 = vmul.f32 %v709, %v1107
      %v1139 = vmul.f32 %v710, %v1107
      %v1140 = vmul.f32 %v711, %v1107
      %v1141 = vmul.f32 %v712, %v1107
      %v1142 = vmul.f32 %v713, %v1107
      %v1143 = vmul.f32 %v714, %v1107
      %v1144 = vmul.f32 %v715, %v1107
      %v1145 = vmul.f32 %v716, %v1107
      %v1146 = vmul.f32 %v1102, %v1107
      %v1147 = vmul.f32 %v1103, %v1107
      %v1148 = vadd.f32 %v1058, %v1108
      %v1149 = vadd.f32 %v1059, %v1109
      %v1150 = vadd.f32 %v1060, %v1110
      %v1151 = vadd.f32 %v1061, %v1111
      %v1152 = vadd.f32 %v1062, %v1112
      %v1153 = vadd.f32 %v1063, %v1113
      %v1154 = vadd.f32 %v1064, %v1114
      %v1155 = vadd.f32 %v1065, %v1115
      %v1156 = vadd.f32 %v1066, %v1116
      %v1157 = vadd.f32 %v1067, %v1117
      %v1158 = vadd.f32 %v1068, %v1118
      %v1159 = vadd.f32 %v1069, %v1119
      %v1160 = vadd.f32 %v1070, %v1120
      %v1161 = vadd.f32 %v1071, %v1121
      %v1162 = vadd.f32 %v1072, %v1122
      %v1163 = vadd.f32 %v1073, %v1123
      %v1164 = vadd.f32 %v1074, %v1124
      %v1165 = vadd.f32 %v1075, %v1125
      %v1166 = vadd.f32 %v1076, %v1126
      %v1167 = vadd.f32 %v1077, %v1127
      %v1168 = vadd.f32 %v1078, %v1128
      %v1169 = vadd.f32 %v1079, %v1129
      %v1170 = vadd.f32 %v1080, %v1130
      %v1171 = vadd.f32 %v1081, %v1131
      %v1172 = vadd.f32 %v1082, %v1132
      %v1173 = vadd.f32 %v1083, %v1133
      %v1174 = vadd.f32 %v1084, %v1134
      %v1175 = vadd.f32 %v1085, %v1135
      %v1176 = vadd.f32 %v1086, %v1136
      %v1177 = vadd.f32 %v1087, %v1137
      %v1178 = vadd.f32 %v1088, %v1138
      %v1179 = vadd.f32 %v1089, %v1139
      %v1180 = vadd.f32 %v1090, %v1140
      %v1181 = vadd.f32 %v1091, %v1141
      %v1182 = vadd.f32 %v1092, %v1142
      %v1183 = vadd.f32 %v1093, %v1143
      %v1184 = vadd.f32 %v1094, %v1144
      %v1185 = vadd.f32 %v1095, %v1145
      %v1186 = vadd.f32 %v1096, %v1146
      %v1187 = vadd.f32 %v1097, %v1147
      %s1189 = sor.u32 256, 2
      %1190 = vbcast.lane.c.b16.xlu0 %v1008, %s1189
      %v1191 = vpop.permute.xlu0 %1190
      %v1192 = vunpack.c.l.bf16 %v1191
      %v1193 = vunpack.c.h.bf16 %v1191
      %v1194 = vlaneseq
      %v1195 = vshrl.u32 %v1194, 7
      %v1196 = vsub.s32 5, %v1195
      %v1197 = vrot.slane %v311, %v1196
      %v1198 = vmul.f32 %v883, %v1197
      %v1199 = vmul.f32 %v884, %v1197
      %v1200 = vmul.f32 %v885, %v1197
      %v1201 = vmul.f32 %v886, %v1197
      %v1202 = vmul.f32 %v887, %v1197
      %v1203 = vmul.f32 %v888, %v1197
      %v1204 = vmul.f32 %v889, %v1197
      %v1205 = vmul.f32 %v890, %v1197
      %v1206 = vmul.f32 %v891, %v1197
      %v1207 = vmul.f32 %v892, %v1197
      %v1208 = vmul.f32 %v893, %v1197
      %v1209 = vmul.f32 %v894, %v1197
      %v1210 = vmul.f32 %v895, %v1197
      %v1211 = vmul.f32 %v896, %v1197
      %v1212 = vmul.f32 %v897, %v1197
      %v1213 = vmul.f32 %v898, %v1197
      %v1214 = vmul.f32 %v899, %v1197
      %v1215 = vmul.f32 %v900, %v1197
      %v1216 = vmul.f32 %v901, %v1197
      %v1217 = vmul.f32 %v902, %v1197
      %v1218 = vmul.f32 %v903, %v1197
      %v1219 = vmul.f32 %v904, %v1197
      %v1220 = vmul.f32 %v905, %v1197
      %v1221 = vmul.f32 %v906, %v1197
      %v1222 = vmul.f32 %v907, %v1197
      %v1223 = vmul.f32 %v908, %v1197
      %v1224 = vmul.f32 %v909, %v1197
      %v1225 = vmul.f32 %v910, %v1197
      %v1226 = vmul.f32 %v911, %v1197
      %v1227 = vmul.f32 %v912, %v1197
      %v1228 = vmul.f32 %v913, %v1197
      %v1229 = vmul.f32 %v914, %v1197
      %v1230 = vmul.f32 %v915, %v1197
      %v1231 = vmul.f32 %v916, %v1197
      %v1232 = vmul.f32 %v917, %v1197
      %v1233 = vmul.f32 %v918, %v1197
      %v1234 = vmul.f32 %v919, %v1197
      %v1235 = vmul.f32 %v920, %v1197
      %v1236 = vmul.f32 %v1192, %v1197
      %v1237 = vmul.f32 %v1193, %v1197
      %v1238 = vadd.f32 %v1148, %v1198
      %v1239 = vadd.f32 %v1149, %v1199
      %v1240 = vadd.f32 %v1150, %v1200
      %v1241 = vadd.f32 %v1151, %v1201
      %v1242 = vadd.f32 %v1152, %v1202
      %v1243 = vadd.f32 %v1153, %v1203
      %v1244 = vadd.f32 %v1154, %v1204
      %v1245 = vadd.f32 %v1155, %v1205
      %v1246 = vadd.f32 %v1156, %v1206
      %v1247 = vadd.f32 %v1157, %v1207
      %v1248 = vadd.f32 %v1158, %v1208
      %v1249 = vadd.f32 %v1159, %v1209
      %v1250 = vadd.f32 %v1160, %v1210
      %v1251 = vadd.f32 %v1161, %v1211
      %v1252 = vadd.f32 %v1162, %v1212
      %v1253 = vadd.f32 %v1163, %v1213
      %v1254 = vadd.f32 %v1164, %v1214
      %v1255 = vadd.f32 %v1165, %v1215
      %v1256 = vadd.f32 %v1166, %v1216
      %v1257 = vadd.f32 %v1167, %v1217
      %v1258 = vadd.f32 %v1168, %v1218
      %v1259 = vadd.f32 %v1169, %v1219
      %v1260 = vadd.f32 %v1170, %v1220
      %v1261 = vadd.f32 %v1171, %v1221
      %v1262 = vadd.f32 %v1172, %v1222
      %v1263 = vadd.f32 %v1173, %v1223
      %v1264 = vadd.f32 %v1174, %v1224
      %v1265 = vadd.f32 %v1175, %v1225
      %v1266 = vadd.f32 %v1176, %v1226
      %v1267 = vadd.f32 %v1177, %v1227
      %v1268 = vadd.f32 %v1178, %v1228
      %v1269 = vadd.f32 %v1179, %v1229
      %v1270 = vadd.f32 %v1180, %v1230
      %v1271 = vadd.f32 %v1181, %v1231
      %v1272 = vadd.f32 %v1182, %v1232
      %v1273 = vadd.f32 %v1183, %v1233
      %v1274 = vadd.f32 %v1184, %v1234
      %v1275 = vadd.f32 %v1185, %v1235
      %v1276 = vadd.f32 %v1186, %v1236
      %v1277 = vadd.f32 %v1187, %v1237
      %v1278 = vlaneseq
      %v1279 = vshrl.u32 %v1278, 7
      %v1280 = vsub.s32 2, %v1279
      %v1281 = vrot.slane %v450, %v1280
      %1283 = vbcast.lane.c.b16.xlu0 %v1281, 256
      %v1284 = vpop.permute.xlu0 %1283
      %v1285 = vunpack.c.l.bf16 %v1284
      %v1286 = vunpack.c.h.bf16 %v1284
      %v1287 = vlaneseq
      %v1288 = vshrl.u32 %v1287, 7
      %v1289 = vsub.s32 6, %v1288
      %v1290 = vrot.slane %v311, %v1289
      %v1291 = vmul.f32 %v477, %v1290
      %v1292 = vmul.f32 %v478, %v1290
      %v1293 = vmul.f32 %v479, %v1290
      %v1294 = vmul.f32 %v480, %v1290
      %v1295 = vmul.f32 %v481, %v1290
      %v1296 = vmul.f32 %v482, %v1290
      %v1297 = vmul.f32 %v483, %v1290
      %v1298 = vmul.f32 %v484, %v1290
      %v1299 = vmul.f32 %v485, %v1290
      %v1300 = vmul.f32 %v486, %v1290
      %v1301 = vmul.f32 %v487, %v1290
      %v1302 = vmul.f32 %v488, %v1290
      %v1303 = vmul.f32 %v489, %v1290
      %v1304 = vmul.f32 %v490, %v1290
      %v1305 = vmul.f32 %v491, %v1290
      %v1306 = vmul.f32 %v492, %v1290
      %v1307 = vmul.f32 %v493, %v1290
      %v1308 = vmul.f32 %v494, %v1290
      %v1309 = vmul.f32 %v495, %v1290
      %v1310 = vmul.f32 %v496, %v1290
      %v1311 = vmul.f32 %v497, %v1290
      %v1312 = vmul.f32 %v498, %v1290
      %v1313 = vmul.f32 %v499, %v1290
      %v1314 = vmul.f32 %v500, %v1290
      %v1315 = vmul.f32 %v501, %v1290
      %v1316 = vmul.f32 %v502, %v1290
      %v1317 = vmul.f32 %v503, %v1290
      %v1318 = vmul.f32 %v504, %v1290
      %v1319 = vmul.f32 %v505, %v1290
      %v1320 = vmul.f32 %v506, %v1290
      %v1321 = vmul.f32 %v507, %v1290
      %v1322 = vmul.f32 %v508, %v1290
      %v1323 = vmul.f32 %v509, %v1290
      %v1324 = vmul.f32 %v510, %v1290
      %v1325 = vmul.f32 %v511, %v1290
      %v1326 = vmul.f32 %v512, %v1290
      %v1327 = vmul.f32 %v1012, %v1290
      %v1328 = vmul.f32 %v1013, %v1290
      %v1329 = vmul.f32 %v1285, %v1290
      %v1330 = vmul.f32 %v1286, %v1290
      %v1331 = vadd.f32 %v1238, %v1291
      %v1332 = vadd.f32 %v1239, %v1292
      %v1333 = vadd.f32 %v1240, %v1293
      %v1334 = vadd.f32 %v1241, %v1294
      %v1335 = vadd.f32 %v1242, %v1295
      %v1336 = vadd.f32 %v1243, %v1296
      %v1337 = vadd.f32 %v1244, %v1297
      %v1338 = vadd.f32 %v1245, %v1298
      %v1339 = vadd.f32 %v1246, %v1299
      %v1340 = vadd.f32 %v1247, %v1300
      %v1341 = vadd.f32 %v1248, %v1301
      %v1342 = vadd.f32 %v1249, %v1302
      %v1343 = vadd.f32 %v1250, %v1303
      %v1344 = vadd.f32 %v1251, %v1304
      %v1345 = vadd.f32 %v1252, %v1305
      %v1346 = vadd.f32 %v1253, %v1306
      %v1347 = vadd.f32 %v1254, %v1307
      %v1348 = vadd.f32 %v1255, %v1308
      %v1349 = vadd.f32 %v1256, %v1309
      %v1350 = vadd.f32 %v1257, %v1310
      %v1351 = vadd.f32 %v1258, %v1311
      %v1352 = vadd.f32 %v1259, %v1312
      %v1353 = vadd.f32 %v1260, %v1313
      %v1354 = vadd.f32 %v1261, %v1314
      %v1355 = vadd.f32 %v1262, %v1315
      %v1356 = vadd.f32 %v1263, %v1316
      %v1357 = vadd.f32 %v1264, %v1317
      %v1358 = vadd.f32 %v1265, %v1318
      %v1359 = vadd.f32 %v1266, %v1319
      %v1360 = vadd.f32 %v1267, %v1320
      %v1361 = vadd.f32 %v1268, %v1321
      %v1362 = vadd.f32 %v1269, %v1322
      %v1363 = vadd.f32 %v1270, %v1323
      %v1364 = vadd.f32 %v1271, %v1324
      %v1365 = vadd.f32 %v1272, %v1325
      %v1366 = vadd.f32 %v1273, %v1326
      %v1367 = vadd.f32 %v1274, %v1327
      %v1368 = vadd.f32 %v1275, %v1328
      %v1369 = vadd.f32 %v1276, %v1329
      %v1370 = vadd.f32 %v1277, %v1330
      %s1372 = sor.u32 256, 1
      %1373 = vbcast.lane.c.b16.xlu0 %v1281, %s1372
      %v1374 = vpop.permute.xlu0 %1373
      %v1375 = vunpack.c.l.bf16 %v1374
      %v1376 = vunpack.c.h.bf16 %v1374
      %v1377 = vlaneseq
      %v1378 = vshrl.u32 %v1377, 7
      %v1379 = vsub.s32 7, %v1378
      %v1380 = vrot.slane %v311, %v1379
      %v1381 = vmul.f32 %v681, %v1380
      %v1382 = vmul.f32 %v682, %v1380
      %v1383 = vmul.f32 %v683, %v1380
      %v1384 = vmul.f32 %v684, %v1380
      %v1385 = vmul.f32 %v685, %v1380
      %v1386 = vmul.f32 %v686, %v1380
      %v1387 = vmul.f32 %v687, %v1380
      %v1388 = vmul.f32 %v688, %v1380
      %v1389 = vmul.f32 %v689, %v1380
      %v1390 = vmul.f32 %v690, %v1380
      %v1391 = vmul.f32 %v691, %v1380
      %v1392 = vmul.f32 %v692, %v1380
      %v1393 = vmul.f32 %v693, %v1380
      %v1394 = vmul.f32 %v694, %v1380
      %v1395 = vmul.f32 %v695, %v1380
      %v1396 = vmul.f32 %v696, %v1380
      %v1397 = vmul.f32 %v697, %v1380
      %v1398 = vmul.f32 %v698, %v1380
      %v1399 = vmul.f32 %v699, %v1380
      %v1400 = vmul.f32 %v700, %v1380
      %v1401 = vmul.f32 %v701, %v1380
      %v1402 = vmul.f32 %v702, %v1380
      %v1403 = vmul.f32 %v703, %v1380
      %v1404 = vmul.f32 %v704, %v1380
      %v1405 = vmul.f32 %v705, %v1380
      %v1406 = vmul.f32 %v706, %v1380
      %v1407 = vmul.f32 %v707, %v1380
      %v1408 = vmul.f32 %v708, %v1380
      %v1409 = vmul.f32 %v709, %v1380
      %v1410 = vmul.f32 %v710, %v1380
      %v1411 = vmul.f32 %v711, %v1380
      %v1412 = vmul.f32 %v712, %v1380
      %v1413 = vmul.f32 %v713, %v1380
      %v1414 = vmul.f32 %v714, %v1380
      %v1415 = vmul.f32 %v715, %v1380
      %v1416 = vmul.f32 %v716, %v1380
      %v1417 = vmul.f32 %v1102, %v1380
      %v1418 = vmul.f32 %v1103, %v1380
      %v1419 = vmul.f32 %v1375, %v1380
      %v1420 = vmul.f32 %v1376, %v1380
      %v1421 = vadd.f32 %v1331, %v1381
      %v1422 = vadd.f32 %v1332, %v1382
      %v1423 = vadd.f32 %v1333, %v1383
      %v1424 = vadd.f32 %v1334, %v1384
      %v1425 = vadd.f32 %v1335, %v1385
      %v1426 = vadd.f32 %v1336, %v1386
      %v1427 = vadd.f32 %v1337, %v1387
      %v1428 = vadd.f32 %v1338, %v1388
      %v1429 = vadd.f32 %v1339, %v1389
      %v1430 = vadd.f32 %v1340, %v1390
      %v1431 = vadd.f32 %v1341, %v1391
      %v1432 = vadd.f32 %v1342, %v1392
      %v1433 = vadd.f32 %v1343, %v1393
      %v1434 = vadd.f32 %v1344, %v1394
      %v1435 = vadd.f32 %v1345, %v1395
      %v1436 = vadd.f32 %v1346, %v1396
      %v1437 = vadd.f32 %v1347, %v1397
      %v1438 = vadd.f32 %v1348, %v1398
      %v1439 = vadd.f32 %v1349, %v1399
      %v1440 = vadd.f32 %v1350, %v1400
      %v1441 = vadd.f32 %v1351, %v1401
      %v1442 = vadd.f32 %v1352, %v1402
      %v1443 = vadd.f32 %v1353, %v1403
      %v1444 = vadd.f32 %v1354, %v1404
      %v1445 = vadd.f32 %v1355, %v1405
      %v1446 = vadd.f32 %v1356, %v1406
      %v1447 = vadd.f32 %v1357, %v1407
      %v1448 = vadd.f32 %v1358, %v1408
      %v1449 = vadd.f32 %v1359, %v1409
      %v1450 = vadd.f32 %v1360, %v1410
      %v1451 = vadd.f32 %v1361, %v1411
      %v1452 = vadd.f32 %v1362, %v1412
      %v1453 = vadd.f32 %v1363, %v1413
      %v1454 = vadd.f32 %v1364, %v1414
      %v1455 = vadd.f32 %v1365, %v1415
      %v1456 = vadd.f32 %v1366, %v1416
      %v1457 = vadd.f32 %v1367, %v1417
      %v1458 = vadd.f32 %v1368, %v1418
      %v1459 = vadd.f32 %v1369, %v1419
      %v1460 = vadd.f32 %v1370, %v1420
      %s1462 = sor.u32 256, 2
      %1463 = vbcast.lane.c.b16.xlu0 %v1281, %s1462
      %v1464 = vpop.permute.xlu0 %1463
      %v1465 = vunpack.c.l.bf16 %v1464
      %v1466 = vunpack.c.h.bf16 %v1464
      %v1467 = vlaneseq
      %v1468 = vshrl.u32 %v1467, 7
      %v1469 = vsub.s32 0, %v1468
      %v1470 = vrot.slane %v312, %v1469
      %v1471 = vmul.f32 %v885, %v1470
      %v1472 = vmul.f32 %v886, %v1470
      %v1473 = vmul.f32 %v887, %v1470
      %v1474 = vmul.f32 %v888, %v1470
      %v1475 = vmul.f32 %v889, %v1470
      %v1476 = vmul.f32 %v890, %v1470
      %v1477 = vmul.f32 %v891, %v1470
      %v1478 = vmul.f32 %v892, %v1470
      %v1479 = vmul.f32 %v893, %v1470
      %v1480 = vmul.f32 %v894, %v1470
      %v1481 = vmul.f32 %v895, %v1470
      %v1482 = vmul.f32 %v896, %v1470
      %v1483 = vmul.f32 %v897, %v1470
      %v1484 = vmul.f32 %v898, %v1470
      %v1485 = vmul.f32 %v899, %v1470
      %v1486 = vmul.f32 %v900, %v1470
      %v1487 = vmul.f32 %v901, %v1470
      %v1488 = vmul.f32 %v902, %v1470
      %v1489 = vmul.f32 %v903, %v1470
      %v1490 = vmul.f32 %v904, %v1470
      %v1491 = vmul.f32 %v905, %v1470
      %v1492 = vmul.f32 %v906, %v1470
      %v1493 = vmul.f32 %v907, %v1470
      %v1494 = vmul.f32 %v908, %v1470
      %v1495 = vmul.f32 %v909, %v1470
      %v1496 = vmul.f32 %v910, %v1470
      %v1497 = vmul.f32 %v911, %v1470
      %v1498 = vmul.f32 %v912, %v1470
      %v1499 = vmul.f32 %v913, %v1470
      %v1500 = vmul.f32 %v914, %v1470
      %v1501 = vmul.f32 %v915, %v1470
      %v1502 = vmul.f32 %v916, %v1470
      %v1503 = vmul.f32 %v917, %v1470
      %v1504 = vmul.f32 %v918, %v1470
      %v1505 = vmul.f32 %v919, %v1470
      %v1506 = vmul.f32 %v920, %v1470
      %v1507 = vmul.f32 %v1192, %v1470
      %v1508 = vmul.f32 %v1193, %v1470
      %v1509 = vmul.f32 %v1465, %v1470
      %v1510 = vmul.f32 %v1466, %v1470
      %v1511 = vadd.f32 %v1421, %v1471
      %v1512 = vadd.f32 %v1422, %v1472
      %v1513 = vadd.f32 %v1423, %v1473
      %v1514 = vadd.f32 %v1424, %v1474
      %v1515 = vadd.f32 %v1425, %v1475
      %v1516 = vadd.f32 %v1426, %v1476
      %v1517 = vadd.f32 %v1427, %v1477
      %v1518 = vadd.f32 %v1428, %v1478
      %v1519 = vadd.f32 %v1429, %v1479
      %v1520 = vadd.f32 %v1430, %v1480
      %v1521 = vadd.f32 %v1431, %v1481
      %v1522 = vadd.f32 %v1432, %v1482
      %v1523 = vadd.f32 %v1433, %v1483
      %v1524 = vadd.f32 %v1434, %v1484
      %v1525 = vadd.f32 %v1435, %v1485
      %v1526 = vadd.f32 %v1436, %v1486
      %v1527 = vadd.f32 %v1437, %v1487
      %v1528 = vadd.f32 %v1438, %v1488
      %v1529 = vadd.f32 %v1439, %v1489
      %v1530 = vadd.f32 %v1440, %v1490
      %v1531 = vadd.f32 %v1441, %v1491
      %v1532 = vadd.f32 %v1442, %v1492
      %v1533 = vadd.f32 %v1443, %v1493
      %v1534 = vadd.f32 %v1444, %v1494
      %v1535 = vadd.f32 %v1445, %v1495
      %v1536 = vadd.f32 %v1446, %v1496
      %v1537 = vadd.f32 %v1447, %v1497
      %v1538 = vadd.f32 %v1448, %v1498
      %v1539 = vadd.f32 %v1449, %v1499
      %v1540 = vadd.f32 %v1450, %v1500
      %v1541 = vadd.f32 %v1451, %v1501
      %v1542 = vadd.f32 %v1452, %v1502
      %v1543 = vadd.f32 %v1453, %v1503
      %v1544 = vadd.f32 %v1454, %v1504
      %v1545 = vadd.f32 %v1455, %v1505
      %v1546 = vadd.f32 %v1456, %v1506
      %v1547 = vadd.f32 %v1457, %v1507
      %v1548 = vadd.f32 %v1458, %v1508
      %v1549 = vadd.f32 %v1459, %v1509
      %v1550 = vadd.f32 %v1460, %v1510
      %v1551 = vld [vmem:[%s2] sm:$0x1]
      %v1553 = vlaneseq
      %v1554 = vshrl.u32 %v1553, 7
      %v1555 = vsub.s32 0, %v1554
      %v1556 = vrot.slane %v1551, %v1555
      %v1558 = vadd.f32 %v1511, %v1556
      %v1559 = vadd.f32 %v1512, %v1556
      %v1560 = vadd.f32 %v1513, %v1556
      %v1561 = vadd.f32 %v1514, %v1556
      %v1562 = vadd.f32 %v1515, %v1556
      %v1563 = vadd.f32 %v1516, %v1556
      %v1564 = vadd.f32 %v1517, %v1556
      %v1565 = vadd.f32 %v1518, %v1556
      %v1566 = vadd.f32 %v1519, %v1556
      %v1567 = vadd.f32 %v1520, %v1556
      %v1568 = vadd.f32 %v1521, %v1556
      %v1569 = vadd.f32 %v1522, %v1556
      %v1570 = vadd.f32 %v1523, %v1556
      %v1571 = vadd.f32 %v1524, %v1556
      %v1572 = vadd.f32 %v1525, %v1556
      %v1573 = vadd.f32 %v1526, %v1556
      %v1574 = vadd.f32 %v1527, %v1556
      %v1575 = vadd.f32 %v1528, %v1556
      %v1576 = vadd.f32 %v1529, %v1556
      %v1577 = vadd.f32 %v1530, %v1556
      %v1578 = vadd.f32 %v1531, %v1556
      %v1579 = vadd.f32 %v1532, %v1556
      %v1580 = vadd.f32 %v1533, %v1556
      %v1581 = vadd.f32 %v1534, %v1556
      %v1582 = vadd.f32 %v1535, %v1556
      %v1583 = vadd.f32 %v1536, %v1556
      %v1584 = vadd.f32 %v1537, %v1556
      %v1585 = vadd.f32 %v1538, %v1556
      %v1586 = vadd.f32 %v1539, %v1556
      %v1587 = vadd.f32 %v1540, %v1556
      %v1588 = vadd.f32 %v1541, %v1556
      %v1589 = vadd.f32 %v1542, %v1556
      %v1590 = vadd.f32 %v1543, %v1556
      %v1591 = vadd.f32 %v1544, %v1556
      %v1592 = vadd.f32 %v1545, %v1556
      %v1593 = vadd.f32 %v1546, %v1556
      %v1594 = vadd.f32 %v1547, %v1556
      %v1595 = vadd.f32 %v1548, %v1556
      %v1596 = vadd.f32 %v1549, %v1556
      %v1597 = vadd.f32 %v1550, %v1556
      %v1598 = vmax.f32 %v1558, 0.0
      %v1599 = vmax.f32 %v1559, 0.0
      %v1600 = vmax.f32 %v1560, 0.0
      %v1601 = vmax.f32 %v1561, 0.0
      %v1602 = vmax.f32 %v1562, 0.0
      %v1603 = vmax.f32 %v1563, 0.0
      %v1604 = vmax.f32 %v1564, 0.0
      %v1605 = vmax.f32 %v1565, 0.0
      %v1606 = vmax.f32 %v1566, 0.0
      %v1607 = vmax.f32 %v1567, 0.0
      %v1608 = vmax.f32 %v1568, 0.0
      %v1609 = vmax.f32 %v1569, 0.0
      %v1610 = vmax.f32 %v1570, 0.0
      %v1611 = vmax.f32 %v1571, 0.0
      %v1612 = vmax.f32 %v1572, 0.0
      %v1613 = vmax.f32 %v1573, 0.0
      %v1614 = vmax.f32 %v1574, 0.0
      %v1615 = vmax.f32 %v1575, 0.0
      %v1616 = vmax.f32 %v1576, 0.0
      %v1617 = vmax.f32 %v1577, 0.0
      %v1618 = vmax.f32 %v1578, 0.0
      %v1619 = vmax.f32 %v1579, 0.0
      %v1620 = vmax.f32 %v1580, 0.0
      %v1621 = vmax.f32 %v1581, 0.0
      %v1622 = vmax.f32 %v1582, 0.0
      %v1623 = vmax.f32 %v1583, 0.0
      %v1624 = vmax.f32 %v1584, 0.0
      %v1625 = vmax.f32 %v1585, 0.0
      %v1626 = vmax.f32 %v1586, 0.0
      %v1627 = vmax.f32 %v1587, 0.0
      %v1628 = vmax.f32 %v1588, 0.0
      %v1629 = vmax.f32 %v1589, 0.0
      %v1630 = vmax.f32 %v1590, 0.0
      %v1631 = vmax.f32 %v1591, 0.0
      %v1632 = vmax.f32 %v1592, 0.0
      %v1633 = vmax.f32 %v1593, 0.0
      %v1634 = vmax.f32 %v1594, 0.0
      %v1635 = vmax.f32 %v1595, 0.0
      %v1636 = vmax.f32 %v1596, 0.0
      %v1637 = vmax.f32 %v1597, 0.0
      %v1638 = vlaneseq
      %v1639 = vshrl.u32 %v1638, 7
      %v1640 = vadd.s32 %v1639, 8
      %v1641 = vadd.s32 %v1639, 16
      %s1642 = ssub.s32 %s303, 2
      %v1643 = vstv %s1642
      %v1644 = vadd.s32 %v1639, %v1643
      %v1645 = vadd.s32 %v1640, %v1643
      %v1646 = vadd.s32 %v1641, %v1643
      %vm1647 = vcmp.ge.s32.totalorder %v1644, 0
      %vm1648 = vcmp.ge.s32.totalorder %v1645, 0
      %vm1649 = vcmp.ge.s32.totalorder %v1646, 0
      %vm1650 = vcmp.lt.s32.totalorder %v1644, 40
      %vm1651 = vcmp.lt.s32.totalorder %v1645, 40
      %vm1652 = vcmp.lt.s32.totalorder %v1646, 40
      %vm1653 = vmand %vm1647, %vm1650
      %vm1654 = vmand %vm1648, %vm1651
      %vm1655 = vmand %vm1649, %vm1652
      %v1656 = vsel %vm1653, 1, 0
      %v1657 = vsel %vm1654, 1, 0
      %v1658 = vsel %vm1655, 1, 0
      %v1659 = vlaneseq
      %v1660 = vshrl.u32 %v1659, 7
      %v1661 = vsub.s32 0, %v1660
      %v1662 = vrot.slane %v1656, %v1661
      %v1663 = vlaneseq
      %v1664 = vshrl.u32 %v1663, 7
      %v1665 = vsub.s32 1, %v1664
      %v1666 = vrot.slane %v1656, %v1665
      %v1667 = vlaneseq
      %v1668 = vshrl.u32 %v1667, 7
      %v1669 = vsub.s32 2, %v1668
      %v1670 = vrot.slane %v1656, %v1669
      %v1671 = vlaneseq
      %v1672 = vshrl.u32 %v1671, 7
      %v1673 = vsub.s32 3, %v1672
      %v1674 = vrot.slane %v1656, %v1673
      %v1675 = vlaneseq
      %v1676 = vshrl.u32 %v1675, 7
      %v1677 = vsub.s32 4, %v1676
      %v1678 = vrot.slane %v1656, %v1677
      %v1679 = vlaneseq
      %v1680 = vshrl.u32 %v1679, 7
      %v1681 = vsub.s32 5, %v1680
      %v1682 = vrot.slane %v1656, %v1681
      %v1683 = vlaneseq
      %v1684 = vshrl.u32 %v1683, 7
      %v1685 = vsub.s32 6, %v1684
      %v1686 = vrot.slane %v1656, %v1685
      %v1687 = vlaneseq
      %v1688 = vshrl.u32 %v1687, 7
      %v1689 = vsub.s32 7, %v1688
      %v1690 = vrot.slane %v1656, %v1689
      %v1691 = vlaneseq
      %v1692 = vshrl.u32 %v1691, 7
      %v1693 = vsub.s32 0, %v1692
      %v1694 = vrot.slane %v1657, %v1693
      %v1695 = vlaneseq
      %v1696 = vshrl.u32 %v1695, 7
      %v1697 = vsub.s32 1, %v1696
      %v1698 = vrot.slane %v1657, %v1697
      %v1699 = vlaneseq
      %v1700 = vshrl.u32 %v1699, 7
      %v1701 = vsub.s32 2, %v1700
      %v1702 = vrot.slane %v1657, %v1701
      %v1703 = vlaneseq
      %v1704 = vshrl.u32 %v1703, 7
      %v1705 = vsub.s32 3, %v1704
      %v1706 = vrot.slane %v1657, %v1705
      %v1707 = vlaneseq
      %v1708 = vshrl.u32 %v1707, 7
      %v1709 = vsub.s32 4, %v1708
      %v1710 = vrot.slane %v1657, %v1709
      %v1711 = vlaneseq
      %v1712 = vshrl.u32 %v1711, 7
      %v1713 = vsub.s32 5, %v1712
      %v1714 = vrot.slane %v1657, %v1713
      %v1715 = vlaneseq
      %v1716 = vshrl.u32 %v1715, 7
      %v1717 = vsub.s32 6, %v1716
      %v1718 = vrot.slane %v1657, %v1717
      %v1719 = vlaneseq
      %v1720 = vshrl.u32 %v1719, 7
      %v1721 = vsub.s32 7, %v1720
      %v1722 = vrot.slane %v1657, %v1721
      %v1723 = vlaneseq
      %v1724 = vshrl.u32 %v1723, 7
      %v1725 = vsub.s32 0, %v1724
      %v1726 = vrot.slane %v1658, %v1725
      %v1727 = vlaneseq
      %v1728 = vshrl.u32 %v1727, 7
      %v1729 = vsub.s32 1, %v1728
      %v1730 = vrot.slane %v1658, %v1729
      %v1731 = vlaneseq
      %v1732 = vshrl.u32 %v1731, 7
      %v1733 = vsub.s32 2, %v1732
      %v1734 = vrot.slane %v1658, %v1733
      %v1735 = vlaneseq
      %v1736 = vshrl.u32 %v1735, 7
      %v1737 = vsub.s32 3, %v1736
      %v1738 = vrot.slane %v1658, %v1737
      %vm1739 = vcmp.ne.s32.totalorder %v1662, 0
      %vm1740 = vcmp.ne.s32.totalorder %v1666, 0
      %vm1741 = vcmp.ne.s32.totalorder %v1670, 0
      %vm1742 = vcmp.ne.s32.totalorder %v1674, 0
      %vm1743 = vcmp.ne.s32.totalorder %v1678, 0
      %vm1744 = vcmp.ne.s32.totalorder %v1682, 0
      %vm1745 = vcmp.ne.s32.totalorder %v1686, 0
      %vm1746 = vcmp.ne.s32.totalorder %v1690, 0
      %vm1747 = vcmp.ne.s32.totalorder %v1694, 0
      %vm1748 = vcmp.ne.s32.totalorder %v1698, 0
      %vm1749 = vcmp.ne.s32.totalorder %v1702, 0
      %vm1750 = vcmp.ne.s32.totalorder %v1706, 0
      %vm1751 = vcmp.ne.s32.totalorder %v1710, 0
      %vm1752 = vcmp.ne.s32.totalorder %v1714, 0
      %vm1753 = vcmp.ne.s32.totalorder %v1718, 0
      %vm1754 = vcmp.ne.s32.totalorder %v1722, 0
      %vm1755 = vcmp.ne.s32.totalorder %v1726, 0
      %vm1756 = vcmp.ne.s32.totalorder %v1730, 0
      %vm1757 = vcmp.ne.s32.totalorder %v1734, 0
      %vm1758 = vcmp.ne.s32.totalorder %v1738, 0
      %v1759 = vsel %vm1739, 1, 0
      %v1760 = vsel %vm1740, 1, 0
      %v1761 = vsel %vm1741, 1, 0
      %v1762 = vsel %vm1742, 1, 0
      %v1763 = vsel %vm1743, 1, 0
      %v1764 = vsel %vm1744, 1, 0
      %v1765 = vsel %vm1745, 1, 0
      %v1766 = vsel %vm1746, 1, 0
      %v1767 = vsel %vm1747, 1, 0
      %v1768 = vsel %vm1748, 1, 0
      %v1769 = vsel %vm1749, 1, 0
      %v1770 = vsel %vm1750, 1, 0
      %v1771 = vsel %vm1751, 1, 0
      %v1772 = vsel %vm1752, 1, 0
      %v1773 = vsel %vm1753, 1, 0
      %v1774 = vsel %vm1754, 1, 0
      %v1775 = vsel %vm1755, 1, 0
      %v1776 = vsel %vm1756, 1, 0
      %v1777 = vsel %vm1757, 1, 0
      %v1778 = vsel %vm1758, 1, 0
      %vm1779 = vcmp.eq.s32.totalorder %v1759, 1
      %vm1780 = vcmp.eq.s32.totalorder %v1760, 1
      %vm1781 = vcmp.eq.s32.totalorder %v1761, 1
      %vm1782 = vcmp.eq.s32.totalorder %v1762, 1
      %vm1783 = vcmp.eq.s32.totalorder %v1763, 1
      %vm1784 = vcmp.eq.s32.totalorder %v1764, 1
      %vm1785 = vcmp.eq.s32.totalorder %v1765, 1
      %vm1786 = vcmp.eq.s32.totalorder %v1766, 1
      %vm1787 = vcmp.eq.s32.totalorder %v1767, 1
      %vm1788 = vcmp.eq.s32.totalorder %v1768, 1
      %vm1789 = vcmp.eq.s32.totalorder %v1769, 1
      %vm1790 = vcmp.eq.s32.totalorder %v1770, 1
      %vm1791 = vcmp.eq.s32.totalorder %v1771, 1
      %vm1792 = vcmp.eq.s32.totalorder %v1772, 1
      %vm1793 = vcmp.eq.s32.totalorder %v1773, 1
      %vm1794 = vcmp.eq.s32.totalorder %v1774, 1
      %vm1795 = vcmp.eq.s32.totalorder %v1775, 1
      %vm1796 = vcmp.eq.s32.totalorder %v1776, 1
      %vm1797 = vcmp.eq.s32.totalorder %v1777, 1
      %vm1798 = vcmp.eq.s32.totalorder %v1778, 1
      %v1799 = vsel %vm1779, %v1598, 0.0
      %v1800 = vsel %vm1779, %v1599, 0.0
      %v1801 = vsel %vm1780, %v1600, 0.0
      %v1802 = vsel %vm1780, %v1601, 0.0
      %v1803 = vsel %vm1781, %v1602, 0.0
      %v1804 = vsel %vm1781, %v1603, 0.0
      %v1805 = vsel %vm1782, %v1604, 0.0
      %v1806 = vsel %vm1782, %v1605, 0.0
      %v1807 = vsel %vm1783, %v1606, 0.0
      %v1808 = vsel %vm1783, %v1607, 0.0
      %v1809 = vsel %vm1784, %v1608, 0.0
      %v1810 = vsel %vm1784, %v1609, 0.0
      %v1811 = vsel %vm1785, %v1610, 0.0
      %v1812 = vsel %vm1785, %v1611, 0.0
      %v1813 = vsel %vm1786, %v1612, 0.0
      %v1814 = vsel %vm1786, %v1613, 0.0
      %v1815 = vsel %vm1787, %v1614, 0.0
      %v1816 = vsel %vm1787, %v1615, 0.0
      %v1817 = vsel %vm1788, %v1616, 0.0
      %v1818 = vsel %vm1788, %v1617, 0.0
      %v1819 = vsel %vm1789, %v1618, 0.0
      %v1820 = vsel %vm1789, %v1619, 0.0
      %v1821 = vsel %vm1790, %v1620, 0.0
      %v1822 = vsel %vm1790, %v1621, 0.0
      %v1823 = vsel %vm1791, %v1622, 0.0
      %v1824 = vsel %vm1791, %v1623, 0.0
      %v1825 = vsel %vm1792, %v1624, 0.0
      %v1826 = vsel %vm1792, %v1625, 0.0
      %v1827 = vsel %vm1793, %v1626, 0.0
      %v1828 = vsel %vm1793, %v1627, 0.0
      %v1829 = vsel %vm1794, %v1628, 0.0
      %v1830 = vsel %vm1794, %v1629, 0.0
      %v1831 = vsel %vm1795, %v1630, 0.0
      %v1832 = vsel %vm1795, %v1631, 0.0
      %v1833 = vsel %vm1796, %v1632, 0.0
      %v1834 = vsel %vm1796, %v1633, 0.0
      %v1835 = vsel %vm1797, %v1634, 0.0
      %v1836 = vsel %vm1797, %v1635, 0.0
      %v1837 = vsel %vm1798, %v1636, 0.0
      %v1838 = vsel %vm1798, %v1637, 0.0
      %vm1839 = vcmask 8192
      %vm1840 = vsmask.f32 256
      %vm1841 = vmand %vm1839, %vm1840
      %v1842 = vld [vmem:[#allocation2] sm:$0x1]
      %v1843 = vsel %vm1841, 0, %v1842
      %1844 = vst [vmem:[#allocation2] sm:$0x1] %v1843
      %v1845 = vld [vmem:[#allocation2 + $0xc] sm:$0x1]
      %v1846 = vsel %vm1841, 0, %v1845
      %1847 = vst [vmem:[#allocation2 + $0xc] sm:$0x1] %v1846
      %v1848 = vld [vmem:[#allocation2 + $0x18] sm:$0x1]
      %v1849 = vsel %vm1841, 0, %v1848
      %1850 = vst [vmem:[#allocation2 + $0x18] sm:$0x1] %v1849
      %v1851 = vld [vmem:[#allocation2 + $0x24] sm:$0x1]
      %v1852 = vsel %vm1841, 0, %v1851
      %1853 = vst [vmem:[#allocation2 + $0x24] sm:$0x1] %v1852
      %v1854 = vld [vmem:[#allocation2 + $0x30] sm:$0x1]
      %v1855 = vsel %vm1841, 0, %v1854
      %1856 = vst [vmem:[#allocation2 + $0x30] sm:$0x1] %v1855
      %v1857 = vld [vmem:[#allocation2 + $0x3c] sm:$0x1]
      %v1858 = vsel %vm1841, 0, %v1857
      %1859 = vst [vmem:[#allocation2 + $0x3c] sm:$0x1] %v1858
      %v1860 = vld [vmem:[#allocation2 + $0x48] sm:$0x1]
      %v1861 = vsel %vm1841, 0, %v1860
      %1862 = vst [vmem:[#allocation2 + $0x48] sm:$0x1] %v1861
      %v1863 = vld [vmem:[#allocation2 + $0x54] sm:$0x1]
      %v1864 = vsel %vm1841, 0, %v1863
      %1865 = vst [vmem:[#allocation2 + $0x54] sm:$0x1] %v1864
      %v1866 = vld [vmem:[#allocation2 + $0x60] sm:$0x1]
      %v1867 = vsel %vm1841, 0, %v1866
      %1868 = vst [vmem:[#allocation2 + $0x60] sm:$0x1] %v1867
      %v1869 = vld [vmem:[#allocation2 + $0x6c] sm:$0x1]
      %v1870 = vsel %vm1841, 0, %v1869
      %1871 = vst [vmem:[#allocation2 + $0x6c] sm:$0x1] %v1870
      %v1872 = vld [vmem:[#allocation2 + $0x78] sm:$0x1]
      %v1873 = vsel %vm1841, 0, %v1872
      %1874 = vst [vmem:[#allocation2 + $0x78] sm:$0x1] %v1873
      %v1875 = vld [vmem:[#allocation2 + $0x84] sm:$0x1]
      %v1876 = vsel %vm1841, 0, %v1875
      %1877 = vst [vmem:[#allocation2 + $0x84] sm:$0x1] %v1876
      %v1878 = vld [vmem:[#allocation2 + $0x90] sm:$0x1]
      %v1879 = vsel %vm1841, 0, %v1878
      %1880 = vst [vmem:[#allocation2 + $0x90] sm:$0x1] %v1879
      %v1881 = vld [vmem:[#allocation2 + $0x9c] sm:$0x1]
      %v1882 = vsel %vm1841, 0, %v1881
      %1883 = vst [vmem:[#allocation2 + $0x9c] sm:$0x1] %v1882
      %v1884 = vld [vmem:[#allocation2 + $0xa8] sm:$0x1]
      %v1885 = vsel %vm1841, 0, %v1884
      %1886 = vst [vmem:[#allocation2 + $0xa8] sm:$0x1] %v1885
      %v1887 = vld [vmem:[#allocation2 + $0xb4] sm:$0x1]
      %v1888 = vsel %vm1841, 0, %v1887
      %1889 = vst [vmem:[#allocation2 + $0xb4] sm:$0x1] %v1888
      %v1890 = vld [vmem:[#allocation2 + $0xc0] sm:$0x1]
      %v1891 = vsel %vm1841, 0, %v1890
      %1892 = vst [vmem:[#allocation2 + $0xc0] sm:$0x1] %v1891
      %v1893 = vld [vmem:[#allocation2 + $0xcc] sm:$0x1]
      %v1894 = vsel %vm1841, 0, %v1893
      %1895 = vst [vmem:[#allocation2 + $0xcc] sm:$0x1] %v1894
      %v1896 = vld [vmem:[#allocation2 + $0xd8] sm:$0x1]
      %v1897 = vsel %vm1841, 0, %v1896
      %1898 = vst [vmem:[#allocation2 + $0xd8] sm:$0x1] %v1897
      %v1899 = vld [vmem:[#allocation2 + $0xe4] sm:$0x1]
      %v1900 = vsel %vm1841, 0, %v1899
      %1901 = vst [vmem:[#allocation2 + $0xe4] sm:$0x1] %v1900
      %vm1902 = vsmask.f32 7938
      %vm1903 = vmand %vm1839, %vm1902
      %v1904 = vld [vmem:[#allocation2 + $0x8] sm:$0x1]
      %v1905 = vsel %vm1903, 0, %v1904
      %1906 = vst [vmem:[#allocation2 + $0x8] sm:$0x1] %v1905
      %v1907 = vld [vmem:[#allocation2 + $0x14] sm:$0x1]
      %v1908 = vsel %vm1903, 0, %v1907
      %1909 = vst [vmem:[#allocation2 + $0x14] sm:$0x1] %v1908
      %v1910 = vld [vmem:[#allocation2 + $0x20] sm:$0x1]
      %v1911 = vsel %vm1903, 0, %v1910
      %1912 = vst [vmem:[#allocation2 + $0x20] sm:$0x1] %v1911
      %v1913 = vld [vmem:[#allocation2 + $0x2c] sm:$0x1]
      %v1914 = vsel %vm1903, 0, %v1913
      %1915 = vst [vmem:[#allocation2 + $0x2c] sm:$0x1] %v1914
      %v1916 = vld [vmem:[#allocation2 + $0x38] sm:$0x1]
      %v1917 = vsel %vm1903, 0, %v1916
      %1918 = vst [vmem:[#allocation2 + $0x38] sm:$0x1] %v1917
      %v1919 = vld [vmem:[#allocation2 + $0x44] sm:$0x1]
      %v1920 = vsel %vm1903, 0, %v1919
      %1921 = vst [vmem:[#allocation2 + $0x44] sm:$0x1] %v1920
      %v1922 = vld [vmem:[#allocation2 + $0x50] sm:$0x1]
      %v1923 = vsel %vm1903, 0, %v1922
      %1924 = vst [vmem:[#allocation2 + $0x50] sm:$0x1] %v1923
      %v1925 = vld [vmem:[#allocation2 + $0x5c] sm:$0x1]
      %v1926 = vsel %vm1903, 0, %v1925
      %1927 = vst [vmem:[#allocation2 + $0x5c] sm:$0x1] %v1926
      %v1928 = vld [vmem:[#allocation2 + $0x68] sm:$0x1]
      %v1929 = vsel %vm1903, 0, %v1928
      %1930 = vst [vmem:[#allocation2 + $0x68] sm:$0x1] %v1929
      %v1931 = vld [vmem:[#allocation2 + $0x74] sm:$0x1]
      %v1932 = vsel %vm1903, 0, %v1931
      %1933 = vst [vmem:[#allocation2 + $0x74] sm:$0x1] %v1932
      %v1934 = vld [vmem:[#allocation2 + $0x80] sm:$0x1]
      %v1935 = vsel %vm1903, 0, %v1934
      %1936 = vst [vmem:[#allocation2 + $0x80] sm:$0x1] %v1935
      %v1937 = vld [vmem:[#allocation2 + $0x8c] sm:$0x1]
      %v1938 = vsel %vm1903, 0, %v1937
      %1939 = vst [vmem:[#allocation2 + $0x8c] sm:$0x1] %v1938
      %v1940 = vld [vmem:[#allocation2 + $0x98] sm:$0x1]
      %v1941 = vsel %vm1903, 0, %v1940
      %1942 = vst [vmem:[#allocation2 + $0x98] sm:$0x1] %v1941
      %v1943 = vld [vmem:[#allocation2 + $0xa4] sm:$0x1]
      %v1944 = vsel %vm1903, 0, %v1943
      %1945 = vst [vmem:[#allocation2 + $0xa4] sm:$0x1] %v1944
      %v1946 = vld [vmem:[#allocation2 + $0xb0] sm:$0x1]
      %v1947 = vsel %vm1903, 0, %v1946
      %1948 = vst [vmem:[#allocation2 + $0xb0] sm:$0x1] %v1947
      %v1949 = vld [vmem:[#allocation2 + $0xbc] sm:$0x1]
      %v1950 = vsel %vm1903, 0, %v1949
      %1951 = vst [vmem:[#allocation2 + $0xbc] sm:$0x1] %v1950
      %v1952 = vld [vmem:[#allocation2 + $0xc8] sm:$0x1]
      %v1953 = vsel %vm1903, 0, %v1952
      %1954 = vst [vmem:[#allocation2 + $0xc8] sm:$0x1] %v1953
      %v1955 = vld [vmem:[#allocation2 + $0xd4] sm:$0x1]
      %v1956 = vsel %vm1903, 0, %v1955
      %1957 = vst [vmem:[#allocation2 + $0xd4] sm:$0x1] %v1956
      %v1958 = vld [vmem:[#allocation2 + $0xe0] sm:$0x1]
      %v1959 = vsel %vm1903, 0, %v1958
      %1960 = vst [vmem:[#allocation2 + $0xe0] sm:$0x1] %v1959
      %v1961 = vld [vmem:[#allocation2 + $0xec] sm:$0x1]
      %v1962 = vsel %vm1903, 0, %v1961
      %1963 = vst [vmem:[#allocation2 + $0xec] sm:$0x1] %v1962
      %v1964 = vpack.c.bf16 %v1800, %v1799
      %v1965 = vpack.c.bf16 %v1802, %v1801
      %v1966 = vpack.c.bf16 %v1804, %v1803
      %v1967 = vpack.c.bf16 %v1806, %v1805
      %v1968 = vpack.c.bf16 %v1808, %v1807
      %v1969 = vpack.c.bf16 %v1810, %v1809
      %v1970 = vpack.c.bf16 %v1812, %v1811
      %v1971 = vpack.c.bf16 %v1814, %v1813
      %v1972 = vpack.c.bf16 %v1816, %v1815
      %v1973 = vpack.c.bf16 %v1818, %v1817
      %v1974 = vpack.c.bf16 %v1820, %v1819
      %v1975 = vpack.c.bf16 %v1822, %v1821
      %v1976 = vpack.c.bf16 %v1824, %v1823
      %v1977 = vpack.c.bf16 %v1826, %v1825
      %v1978 = vpack.c.bf16 %v1828, %v1827
      %v1979 = vpack.c.bf16 %v1830, %v1829
      %v1980 = vpack.c.bf16 %v1832, %v1831
      %v1981 = vpack.c.bf16 %v1834, %v1833
      %v1982 = vpack.c.bf16 %v1836, %v1835
      %v1983 = vpack.c.bf16 %v1838, %v1837
      %v2004 = vunpack.c.l.b16 %v1964
      %v2005 = vunpack.c.h.b16 %v1964
      %v2006 = vunpack.c.l.b16 %v1965
      %v2007 = vunpack.c.h.b16 %v1965
      %v2008 = vunpack.c.l.b16 %v1966
      %v2009 = vunpack.c.h.b16 %v1966
      %v2010 = vunpack.c.l.b16 %v1967
      %v2011 = vunpack.c.h.b16 %v1967
      %v2012 = vunpack.c.l.b16 %v1968
      %v2013 = vunpack.c.h.b16 %v1968
      %v2014 = vunpack.c.l.b16 %v1969
      %v2015 = vunpack.c.h.b16 %v1969
      %v2016 = vunpack.c.l.b16 %v1970
      %v2017 = vunpack.c.h.b16 %v1970
      %v2018 = vunpack.c.l.b16 %v1971
      %v2019 = vunpack.c.h.b16 %v1971
      %v2020 = vunpack.c.l.b16 %v1972
      %v2021 = vunpack.c.h.b16 %v1972
      %v2022 = vunpack.c.l.b16 %v1973
      %v2023 = vunpack.c.h.b16 %v1973
      %v2024 = vunpack.c.l.b16 %v1974
      %v2025 = vunpack.c.h.b16 %v1974
      %v2026 = vunpack.c.l.b16 %v1975
      %v2027 = vunpack.c.h.b16 %v1975
      %v2028 = vunpack.c.l.b16 %v1976
      %v2029 = vunpack.c.h.b16 %v1976
      %v2030 = vunpack.c.l.b16 %v1977
      %v2031 = vunpack.c.h.b16 %v1977
      %v2032 = vunpack.c.l.b16 %v1978
      %v2033 = vunpack.c.h.b16 %v1978
      %v2034 = vunpack.c.l.b16 %v1979
      %v2035 = vunpack.c.h.b16 %v1979
      %v2036 = vunpack.c.l.b16 %v1980
      %v2037 = vunpack.c.h.b16 %v1980
      %v2038 = vunpack.c.l.b16 %v1981
      %v2039 = vunpack.c.h.b16 %v1981
      %v2040 = vunpack.c.l.b16 %v1982
      %v2041 = vunpack.c.h.b16 %v1982
      %v2042 = vunpack.c.l.b16 %v1983
      %v2043 = vunpack.c.h.b16 %v1983
      %v2044 = vpack.c.b16 %v2004, %v2004
      %v2045 = vpack.c.b16 %v2005, %v2005
      %v2046 = vpack.c.b16 %v2006, %v2006
      %v2047 = vpack.c.b16 %v2007, %v2007
      %v2048 = vpack.c.b16 %v2008, %v2008
      %v2049 = vpack.c.b16 %v2009, %v2009
      %v2050 = vpack.c.b16 %v2010, %v2010
      %v2051 = vpack.c.b16 %v2011, %v2011
      %v2052 = vpack.c.b16 %v2012, %v2012
      %v2053 = vpack.c.b16 %v2013, %v2013
      %v2054 = vpack.c.b16 %v2014, %v2014
      %v2055 = vpack.c.b16 %v2015, %v2015
      %v2056 = vpack.c.b16 %v2016, %v2016
      %v2057 = vpack.c.b16 %v2017, %v2017
      %v2058 = vpack.c.b16 %v2018, %v2018
      %v2059 = vpack.c.b16 %v2019, %v2019
      %v2060 = vpack.c.b16 %v2020, %v2020
      %v2061 = vpack.c.b16 %v2021, %v2021
      %v2062 = vpack.c.b16 %v2022, %v2022
      %v2063 = vpack.c.b16 %v2023, %v2023
      %v2064 = vpack.c.b16 %v2024, %v2024
      %v2065 = vpack.c.b16 %v2025, %v2025
      %v2066 = vpack.c.b16 %v2026, %v2026
      %v2067 = vpack.c.b16 %v2027, %v2027
      %v2068 = vpack.c.b16 %v2028, %v2028
      %v2069 = vpack.c.b16 %v2029, %v2029
      %v2070 = vpack.c.b16 %v2030, %v2030
      %v2071 = vpack.c.b16 %v2031, %v2031
      %v2072 = vpack.c.b16 %v2032, %v2032
      %v2073 = vpack.c.b16 %v2033, %v2033
      %v2074 = vpack.c.b16 %v2034, %v2034
      %v2075 = vpack.c.b16 %v2035, %v2035
      %v2076 = vpack.c.b16 %v2036, %v2036
      %v2077 = vpack.c.b16 %v2037, %v2037
      %v2078 = vpack.c.b16 %v2038, %v2038
      %v2079 = vpack.c.b16 %v2039, %v2039
      %v2080 = vpack.c.b16 %v2040, %v2040
      %v2081 = vpack.c.b16 %v2041, %v2041
      %v2082 = vpack.c.b16 %v2042, %v2042
      %v2083 = vpack.c.b16 %v2043, %v2043
      %vm2084 = vsmask.f32 4368
      %vm2085 = vmor %vm1840, %vm2084
      %v2087 = vshrl.u32 %v2044, 16
      %v2089 = vrot.slane %v2087, 7
      %v2090 = vshll.u32 %v2044, 16
      %v2092 = vor.u32 %v2089, %v2090
      %v2093 = vrot.slane %v2089, 4
      %v2095 = vshrl.u32 %v2045, 16
      %v2097 = vrot.slane %v2095, 7
      %v2098 = vshll.u32 %v2045, 16
      %v2100 = vor.u32 %v2097, %v2098
      %v2101 = vsel %vm2085, %v2093, %v2100
      %v2102 = vrot.slane %v2097, 4
      %v2104 = vshrl.u32 %v2046, 16
      %v2106 = vrot.slane %v2104, 7
      %v2107 = vshll.u32 %v2046, 16
      %v2109 = vor.u32 %v2106, %v2107
      %v2110 = vrot.slane %v2106, 4
      %v2112 = vshrl.u32 %v2047, 16
      %v2114 = vrot.slane %v2112, 7
      %v2115 = vshll.u32 %v2047, 16
      %v2117 = vor.u32 %v2114, %v2115
      %v2118 = vsel %vm2085, %v2110, %v2117
      %v2119 = vrot.slane %v2114, 4
      %v2121 = vshrl.u32 %v2048, 16
      %v2123 = vrot.slane %v2121, 7
      %v2124 = vshll.u32 %v2048, 16
      %v2126 = vor.u32 %v2123, %v2124
      %v2127 = vrot.slane %v2123, 4
      %v2129 = vshrl.u32 %v2049, 16
      %v2131 = vrot.slane %v2129, 7
      %v2132 = vshll.u32 %v2049, 16
      %v2134 = vor.u32 %v2131, %v2132
      %v2135 = vsel %vm2085, %v2127, %v2134
      %v2136 = vrot.slane %v2131, 4
      %v2138 = vshrl.u32 %v2050, 16
      %v2140 = vrot.slane %v2138, 7
      %v2141 = vshll.u32 %v2050, 16
      %v2143 = vor.u32 %v2140, %v2141
      %v2144 = vrot.slane %v2140, 4
      %v2146 = vshrl.u32 %v2051, 16
      %v2148 = vrot.slane %v2146, 7
      %v2149 = vshll.u32 %v2051, 16
      %v2151 = vor.u32 %v2148, %v2149
      %v2152 = vsel %vm2085, %v2144, %v2151
      %v2153 = vrot.slane %v2148, 4
      %v2155 = vshrl.u32 %v2052, 16
      %v2157 = vrot.slane %v2155, 7
      %v2158 = vshll.u32 %v2052, 16
      %v2160 = vor.u32 %v2157, %v2158
      %v2161 = vrot.slane %v2157, 4
      %v2163 = vshrl.u32 %v2053, 16
      %v2165 = vrot.slane %v2163, 7
      %v2166 = vshll.u32 %v2053, 16
      %v2168 = vor.u32 %v2165, %v2166
      %v2169 = vsel %vm2085, %v2161, %v2168
      %v2170 = vrot.slane %v2165, 4
      %v2172 = vshrl.u32 %v2054, 16
      %v2174 = vrot.slane %v2172, 7
      %v2175 = vshll.u32 %v2054, 16
      %v2177 = vor.u32 %v2174, %v2175
      %v2178 = vrot.slane %v2174, 4
      %v2180 = vshrl.u32 %v2055, 16
      %v2182 = vrot.slane %v2180, 7
      %v2183 = vshll.u32 %v2055, 16
      %v2185 = vor.u32 %v2182, %v2183
      %v2186 = vsel %vm2085, %v2178, %v2185
      %v2187 = vrot.slane %v2182, 4
      %v2189 = vshrl.u32 %v2056, 16
      %v2191 = vrot.slane %v2189, 7
      %v2192 = vshll.u32 %v2056, 16
      %v2194 = vor.u32 %v2191, %v2192
      %v2195 = vrot.slane %v2191, 4
      %v2197 = vshrl.u32 %v2057, 16
      %v2199 = vrot.slane %v2197, 7
      %v2200 = vshll.u32 %v2057, 16
      %v2202 = vor.u32 %v2199, %v2200
      %v2203 = vsel %vm2085, %v2195, %v2202
      %v2204 = vrot.slane %v2199, 4
      %v2206 = vshrl.u32 %v2058, 16
      %v2208 = vrot.slane %v2206, 7
      %v2209 = vshll.u32 %v2058, 16
      %v2211 = vor.u32 %v2208, %v2209
      %v2212 = vrot.slane %v2208, 4
      %v2214 = vshrl.u32 %v2059, 16
      %v2216 = vrot.slane %v2214, 7
      %v2217 = vshll.u32 %v2059, 16
      %v2219 = vor.u32 %v2216, %v2217
      %v2220 = vsel %vm2085, %v2212, %v2219
      %v2221 = vrot.slane %v2216, 4
      %v2223 = vshrl.u32 %v2060, 16
      %v2225 = vrot.slane %v2223, 7
      %v2226 = vshll.u32 %v2060, 16
      %v2228 = vor.u32 %v2225, %v2226
      %v2229 = vrot.slane %v2225, 4
      %v2231 = vshrl.u32 %v2061, 16
      %v2233 = vrot.slane %v2231, 7
      %v2234 = vshll.u32 %v2061, 16
      %v2236 = vor.u32 %v2233, %v2234
      %v2237 = vsel %vm2085, %v2229, %v2236
      %v2238 = vrot.slane %v2233, 4
      %v2240 = vshrl.u32 %v2062, 16
      %v2242 = vrot.slane %v2240, 7
      %v2243 = vshll.u32 %v2062, 16
      %v2245 = vor.u32 %v2242, %v2243
      %v2246 = vrot.slane %v2242, 4
      %v2248 = vshrl.u32 %v2063, 16
      %v2250 = vrot.slane %v2248, 7
      %v2251 = vshll.u32 %v2063, 16
      %v2253 = vor.u32 %v2250, %v2251
      %v2254 = vsel %vm2085, %v2246, %v2253
      %v2255 = vrot.slane %v2250, 4
      %v2257 = vshrl.u32 %v2064, 16
      %v2259 = vrot.slane %v2257, 7
      %v2260 = vshll.u32 %v2064, 16
      %v2262 = vor.u32 %v2259, %v2260
      %v2263 = vrot.slane %v2259, 4
      %v2265 = vshrl.u32 %v2065, 16
      %v2267 = vrot.slane %v2265, 7
      %v2268 = vshll.u32 %v2065, 16
      %v2270 = vor.u32 %v2267, %v2268
      %v2271 = vsel %vm2085, %v2263, %v2270
      %v2272 = vrot.slane %v2267, 4
      %v2274 = vshrl.u32 %v2066, 16
      %v2276 = vrot.slane %v2274, 7
      %v2277 = vshll.u32 %v2066, 16
      %v2279 = vor.u32 %v2276, %v2277
      %v2280 = vrot.slane %v2276, 4
      %v2282 = vshrl.u32 %v2067, 16
      %v2284 = vrot.slane %v2282, 7
      %v2285 = vshll.u32 %v2067, 16
      %v2287 = vor.u32 %v2284, %v2285
      %v2288 = vsel %vm2085, %v2280, %v2287
      %v2289 = vrot.slane %v2284, 4
      %v2291 = vshrl.u32 %v2068, 16
      %v2293 = vrot.slane %v2291, 7
      %v2294 = vshll.u32 %v2068, 16
      %v2296 = vor.u32 %v2293, %v2294
      %v2297 = vrot.slane %v2293, 4
      %v2299 = vshrl.u32 %v2069, 16
      %v2301 = vrot.slane %v2299, 7
      %v2302 = vshll.u32 %v2069, 16
      %v2304 = vor.u32 %v2301, %v2302
      %v2305 = vsel %vm2085, %v2297, %v2304
      %v2306 = vrot.slane %v2301, 4
      %v2308 = vshrl.u32 %v2070, 16
      %v2310 = vrot.slane %v2308, 7
      %v2311 = vshll.u32 %v2070, 16
      %v2313 = vor.u32 %v2310, %v2311
      %v2314 = vrot.slane %v2310, 4
      %v2316 = vshrl.u32 %v2071, 16
      %v2318 = vrot.slane %v2316, 7
      %v2319 = vshll.u32 %v2071, 16
      %v2321 = vor.u32 %v2318, %v2319
      %v2322 = vsel %vm2085, %v2314, %v2321
      %v2323 = vrot.slane %v2318, 4
      %v2325 = vshrl.u32 %v2072, 16
      %v2327 = vrot.slane %v2325, 7
      %v2328 = vshll.u32 %v2072, 16
      %v2330 = vor.u32 %v2327, %v2328
      %v2331 = vrot.slane %v2327, 4
      %v2333 = vshrl.u32 %v2073, 16
      %v2335 = vrot.slane %v2333, 7
      %v2336 = vshll.u32 %v2073, 16
      %v2338 = vor.u32 %v2335, %v2336
      %v2339 = vsel %vm2085, %v2331, %v2338
      %v2340 = vrot.slane %v2335, 4
      %v2342 = vshrl.u32 %v2074, 16
      %v2344 = vrot.slane %v2342, 7
      %v2345 = vshll.u32 %v2074, 16
      %v2347 = vor.u32 %v2344, %v2345
      %v2348 = vrot.slane %v2344, 4
      %v2350 = vshrl.u32 %v2075, 16
      %v2352 = vrot.slane %v2350, 7
      %v2353 = vshll.u32 %v2075, 16
      %v2355 = vor.u32 %v2352, %v2353
      %v2356 = vsel %vm2085, %v2348, %v2355
      %v2357 = vrot.slane %v2352, 4
      %v2359 = vshrl.u32 %v2076, 16
      %v2361 = vrot.slane %v2359, 7
      %v2362 = vshll.u32 %v2076, 16
      %v2364 = vor.u32 %v2361, %v2362
      %v2365 = vrot.slane %v2361, 4
      %v2367 = vshrl.u32 %v2077, 16
      %v2369 = vrot.slane %v2367, 7
      %v2370 = vshll.u32 %v2077, 16
      %v2372 = vor.u32 %v2369, %v2370
      %v2373 = vsel %vm2085, %v2365, %v2372
      %v2374 = vrot.slane %v2369, 4
      %v2376 = vshrl.u32 %v2078, 16
      %v2378 = vrot.slane %v2376, 7
      %v2379 = vshll.u32 %v2078, 16
      %v2381 = vor.u32 %v2378, %v2379
      %v2382 = vrot.slane %v2378, 4
      %v2384 = vshrl.u32 %v2079, 16
      %v2386 = vrot.slane %v2384, 7
      %v2387 = vshll.u32 %v2079, 16
      %v2389 = vor.u32 %v2386, %v2387
      %v2390 = vsel %vm2085, %v2382, %v2389
      %v2391 = vrot.slane %v2386, 4
      %v2393 = vshrl.u32 %v2080, 16
      %v2395 = vrot.slane %v2393, 7
      %v2396 = vshll.u32 %v2080, 16
      %v2398 = vor.u32 %v2395, %v2396
      %v2399 = vrot.slane %v2395, 4
      %v2401 = vshrl.u32 %v2081, 16
      %v2403 = vrot.slane %v2401, 7
      %v2404 = vshll.u32 %v2081, 16
      %v2406 = vor.u32 %v2403, %v2404
      %v2407 = vsel %vm2085, %v2399, %v2406
      %v2408 = vrot.slane %v2403, 4
      %v2410 = vshrl.u32 %v2082, 16
      %v2412 = vrot.slane %v2410, 7
      %v2413 = vshll.u32 %v2082, 16
      %v2415 = vor.u32 %v2412, %v2413
      %v2416 = vrot.slane %v2412, 4
      %v2418 = vshrl.u32 %v2083, 16
      %v2420 = vrot.slane %v2418, 7
      %v2421 = vshll.u32 %v2083, 16
      %v2423 = vor.u32 %v2420, %v2421
      %v2424 = vsel %vm2085, %v2416, %v2423
      %v2425 = vrot.slane %v2420, 4
      %vm2486 = vcmask 11264
      %vm2487 = vmand %vm2486, %vm1902
      %v2488 = vld [vmem:[#allocation2] sm:$0xf]
      %v2489 = vsel %vm2487, %v2092, %v2488
      %2490 = vst [vmem:[#allocation2] sm:$0xf] %v2489
      %vm2491 = vcmask 11264
      %2492 = vst.msk [vmem:[#allocation2 + $0x4] sm:$0xf] %vm2491, %v2101
      %v2493 = vld [vmem:[#allocation2 + $0x8] sm:$0x1]
      %v2494 = vsel %vm1841, %v2102, %v2493
      %2495 = vst [vmem:[#allocation2 + $0x8] sm:$0x1] %v2494
      %v2496 = vld [vmem:[#allocation2 + $0xc] sm:$0xf]
      %v2497 = vsel %vm2487, %v2109, %v2496
      %2498 = vst [vmem:[#allocation2 + $0xc] sm:$0xf] %v2497
      %2499 = vst.msk [vmem:[#allocation2 + $0x10] sm:$0xf] %vm2491, %v2118
      %v2500 = vld [vmem:[#allocation2 + $0x14] sm:$0x1]
      %v2501 = vsel %vm1841, %v2119, %v2500
      %2502 = vst [vmem:[#allocation2 + $0x14] sm:$0x1] %v2501
      %v2503 = vld [vmem:[#allocation2 + $0x18] sm:$0xf]
      %v2504 = vsel %vm2487, %v2126, %v2503
      %2505 = vst [vmem:[#allocation2 + $0x18] sm:$0xf] %v2504
      %2506 = vst.msk [vmem:[#allocation2 + $0x1c] sm:$0xf] %vm2491, %v2135
      %v2507 = vld [vmem:[#allocation2 + $0x20] sm:$0x1]
      %v2508 = vsel %vm1841, %v2136, %v2507
      %2509 = vst [vmem:[#allocation2 + $0x20] sm:$0x1] %v2508
      %v2510 = vld [vmem:[#allocation2 + $0x24] sm:$0xf]
      %v2511 = vsel %vm2487, %v2143, %v2510
      %2512 = vst [vmem:[#allocation2 + $0x24] sm:$0xf] %v2511
      %2513 = vst.msk [vmem:[#allocation2 + $0x28] sm:$0xf] %vm2491, %v2152
      %v2514 = vld [vmem:[#allocation2 + $0x2c] sm:$0x1]
      %v2515 = vsel %vm1841, %v2153, %v2514
      %2516 = vst [vmem:[#allocation2 + $0x2c] sm:$0x1] %v2515
      %v2517 = vld [vmem:[#allocation2 + $0x30] sm:$0xf]
      %v2518 = vsel %vm2487, %v2160, %v2517
      %2519 = vst [vmem:[#allocation2 + $0x30] sm:$0xf] %v2518
      %2520 = vst.msk [vmem:[#allocation2 + $0x34] sm:$0xf] %vm2491, %v2169
      %v2521 = vld [vmem:[#allocation2 + $0x38] sm:$0x1]
      %v2522 = vsel %vm1841, %v2170, %v2521
      %2523 = vst [vmem:[#allocation2 + $0x38] sm:$0x1] %v2522
      %v2524 = vld [vmem:[#allocation2 + $0x3c] sm:$0xf]
      %v2525 = vsel %vm2487, %v2177, %v2524
      %2526 = vst [vmem:[#allocation2 + $0x3c] sm:$0xf] %v2525
      %2527 = vst.msk [vmem:[#allocation2 + $0x40] sm:$0xf] %vm2491, %v2186
      %v2528 = vld [vmem:[#allocation2 + $0x44] sm:$0x1]
      %v2529 = vsel %vm1841, %v2187, %v2528
      %2530 = vst [vmem:[#allocation2 + $0x44] sm:$0x1] %v2529
      %v2531 = vld [vmem:[#allocation2 + $0x48] sm:$0xf]
      %v2532 = vsel %vm2487, %v2194, %v2531
      %2533 = vst [vmem:[#allocation2 + $0x48] sm:$0xf] %v2532
      %2534 = vst.msk [vmem:[#allocation2 + $0x4c] sm:$0xf] %vm2491, %v2203
      %v2535 = vld [vmem:[#allocation2 + $0x50] sm:$0x1]
      %v2536 = vsel %vm1841, %v2204, %v2535
      %2537 = vst [vmem:[#allocation2 + $0x50] sm:$0x1] %v2536
      %v2538 = vld [vmem:[#allocation2 + $0x54] sm:$0xf]
      %v2539 = vsel %vm2487, %v2211, %v2538
      %2540 = vst [vmem:[#allocation2 + $0x54] sm:$0xf] %v2539
      %2541 = vst.msk [vmem:[#allocation2 + $0x58] sm:$0xf] %vm2491, %v2220
      %v2542 = vld [vmem:[#allocation2 + $0x5c] sm:$0x1]
      %v2543 = vsel %vm1841, %v2221, %v2542
      %2544 = vst [vmem:[#allocation2 + $0x5c] sm:$0x1] %v2543
      %v2545 = vld [vmem:[#allocation2 + $0x60] sm:$0xf]
      %v2546 = vsel %vm2487, %v2228, %v2545
      %2547 = vst [vmem:[#allocation2 + $0x60] sm:$0xf] %v2546
      %2548 = vst.msk [vmem:[#allocation2 + $0x64] sm:$0xf] %vm2491, %v2237
      %v2549 = vld [vmem:[#allocation2 + $0x68] sm:$0x1]
      %v2550 = vsel %vm1841, %v2238, %v2549
      %2551 = vst [vmem:[#allocation2 + $0x68] sm:$0x1] %v2550
      %v2552 = vld [vmem:[#allocation2 + $0x6c] sm:$0xf]
      %v2553 = vsel %vm2487, %v2245, %v2552
      %2554 = vst [vmem:[#allocation2 + $0x6c] sm:$0xf] %v2553
      %2555 = vst.msk [vmem:[#allocation2 + $0x70] sm:$0xf] %vm2491, %v2254
      %v2556 = vld [vmem:[#allocation2 + $0x74] sm:$0x1]
      %v2557 = vsel %vm1841, %v2255, %v2556
      %2558 = vst [vmem:[#allocation2 + $0x74] sm:$0x1] %v2557
      %v2559 = vld [vmem:[#allocation2 + $0x78] sm:$0xf]
      %v2560 = vsel %vm2487, %v2262, %v2559
      %2561 = vst [vmem:[#allocation2 + $0x78] sm:$0xf] %v2560
      %2562 = vst.msk [vmem:[#allocation2 + $0x7c] sm:$0xf] %vm2491, %v2271
      %v2563 = vld [vmem:[#allocation2 + $0x80] sm:$0x1]
      %v2564 = vsel %vm1841, %v2272, %v2563
      %2565 = vst [vmem:[#allocation2 + $0x80] sm:$0x1] %v2564
      %v2566 = vld [vmem:[#allocation2 + $0x84] sm:$0xf]
      %v2567 = vsel %vm2487, %v2279, %v2566
      %2568 = vst [vmem:[#allocation2 + $0x84] sm:$0xf] %v2567
      %2569 = vst.msk [vmem:[#allocation2 + $0x88] sm:$0xf] %vm2491, %v2288
      %v2570 = vld [vmem:[#allocation2 + $0x8c] sm:$0x1]
      %v2571 = vsel %vm1841, %v2289, %v2570
      %2572 = vst [vmem:[#allocation2 + $0x8c] sm:$0x1] %v2571
      %v2573 = vld [vmem:[#allocation2 + $0x90] sm:$0xf]
      %v2574 = vsel %vm2487, %v2296, %v2573
      %2575 = vst [vmem:[#allocation2 + $0x90] sm:$0xf] %v2574
      %2576 = vst.msk [vmem:[#allocation2 + $0x94] sm:$0xf] %vm2491, %v2305
      %v2577 = vld [vmem:[#allocation2 + $0x98] sm:$0x1]
      %v2578 = vsel %vm1841, %v2306, %v2577
      %2579 = vst [vmem:[#allocation2 + $0x98] sm:$0x1] %v2578
      %v2580 = vld [vmem:[#allocation2 + $0x9c] sm:$0xf]
      %v2581 = vsel %vm2487, %v2313, %v2580
      %2582 = vst [vmem:[#allocation2 + $0x9c] sm:$0xf] %v2581
      %2583 = vst.msk [vmem:[#allocation2 + $0xa0] sm:$0xf] %vm2491, %v2322
      %v2584 = vld [vmem:[#allocation2 + $0xa4] sm:$0x1]
      %v2585 = vsel %vm1841, %v2323, %v2584
      %2586 = vst [vmem:[#allocation2 + $0xa4] sm:$0x1] %v2585
      %v2587 = vld [vmem:[#allocation2 + $0xa8] sm:$0xf]
      %v2588 = vsel %vm2487, %v2330, %v2587
      %2589 = vst [vmem:[#allocation2 + $0xa8] sm:$0xf] %v2588
      %2590 = vst.msk [vmem:[#allocation2 + $0xac] sm:$0xf] %vm2491, %v2339
      %v2591 = vld [vmem:[#allocation2 + $0xb0] sm:$0x1]
      %v2592 = vsel %vm1841, %v2340, %v2591
      %2593 = vst [vmem:[#allocation2 + $0xb0] sm:$0x1] %v2592
      %v2594 = vld [vmem:[#allocation2 + $0xb4] sm:$0xf]
      %v2595 = vsel %vm2487, %v2347, %v2594
      %2596 = vst [vmem:[#allocation2 + $0xb4] sm:$0xf] %v2595
      %2597 = vst.msk [vmem:[#allocation2 + $0xb8] sm:$0xf] %vm2491, %v2356
      %v2598 = vld [vmem:[#allocation2 + $0xbc] sm:$0x1]
      %v2599 = vsel %vm1841, %v2357, %v2598
      %2600 = vst [vmem:[#allocation2 + $0xbc] sm:$0x1] %v2599
      %v2601 = vld [vmem:[#allocation2 + $0xc0] sm:$0xf]
      %v2602 = vsel %vm2487, %v2364, %v2601
      %2603 = vst [vmem:[#allocation2 + $0xc0] sm:$0xf] %v2602
      %2604 = vst.msk [vmem:[#allocation2 + $0xc4] sm:$0xf] %vm2491, %v2373
      %v2605 = vld [vmem:[#allocation2 + $0xc8] sm:$0x1]
      %v2606 = vsel %vm1841, %v2374, %v2605
      %2607 = vst [vmem:[#allocation2 + $0xc8] sm:$0x1] %v2606
      %v2608 = vld [vmem:[#allocation2 + $0xcc] sm:$0xf]
      %v2609 = vsel %vm2487, %v2381, %v2608
      %2610 = vst [vmem:[#allocation2 + $0xcc] sm:$0xf] %v2609
      %2611 = vst.msk [vmem:[#allocation2 + $0xd0] sm:$0xf] %vm2491, %v2390
      %v2612 = vld [vmem:[#allocation2 + $0xd4] sm:$0x1]
      %v2613 = vsel %vm1841, %v2391, %v2612
      %2614 = vst [vmem:[#allocation2 + $0xd4] sm:$0x1] %v2613
      %v2615 = vld [vmem:[#allocation2 + $0xd8] sm:$0xf]
      %v2616 = vsel %vm2487, %v2398, %v2615
      %2617 = vst [vmem:[#allocation2 + $0xd8] sm:$0xf] %v2616
      %2618 = vst.msk [vmem:[#allocation2 + $0xdc] sm:$0xf] %vm2491, %v2407
      %v2619 = vld [vmem:[#allocation2 + $0xe0] sm:$0x1]
      %v2620 = vsel %vm1841, %v2408, %v2619
      %2621 = vst [vmem:[#allocation2 + $0xe0] sm:$0x1] %v2620
      %v2622 = vld [vmem:[#allocation2 + $0xe4] sm:$0xf]
      %v2623 = vsel %vm2487, %v2415, %v2622
      %2624 = vst [vmem:[#allocation2 + $0xe4] sm:$0xf] %v2623
      %2625 = vst.msk [vmem:[#allocation2 + $0xe8] sm:$0xf] %vm2491, %v2424
      %v2626 = vld [vmem:[#allocation2 + $0xec] sm:$0x1]
      %v2627 = vsel %vm1841, %v2425, %v2626
      %2628 = vst [vmem:[#allocation2 + $0xec] sm:$0x1] %v2627
      %v2629 = vld [vmem:[#allocation2] sm:$0xf]
      %v2630 = vld [vmem:[#allocation2 + $0x4] sm:$0xf]
      %v2631 = vld [vmem:[#allocation2 + $0xc] sm:$0xf]
      %v2632 = vld [vmem:[#allocation2 + $0x10] sm:$0xf]
      %v2633 = vld [vmem:[#allocation2 + $0x18] sm:$0xf]
      %v2634 = vld [vmem:[#allocation2 + $0x1c] sm:$0xf]
      %v2635 = vld [vmem:[#allocation2 + $0x24] sm:$0xf]
      %v2636 = vld [vmem:[#allocation2 + $0x28] sm:$0xf]
      %v2637 = vld [vmem:[#allocation2 + $0x30] sm:$0xf]
      %v2638 = vld [vmem:[#allocation2 + $0x34] sm:$0xf]
      %v2639 = vld [vmem:[#allocation2 + $0x3c] sm:$0xf]
      %v2640 = vld [vmem:[#allocation2 + $0x40] sm:$0xf]
      %v2641 = vld [vmem:[#allocation2 + $0x48] sm:$0xf]
      %v2642 = vld [vmem:[#allocation2 + $0x4c] sm:$0xf]
      %v2643 = vld [vmem:[#allocation2 + $0x54] sm:$0xf]
      %v2644 = vld [vmem:[#allocation2 + $0x58] sm:$0xf]
      %v2645 = vld [vmem:[#allocation2 + $0x60] sm:$0xf]
      %v2646 = vld [vmem:[#allocation2 + $0x64] sm:$0xf]
      %v2647 = vld [vmem:[#allocation2 + $0x6c] sm:$0xf]
      %v2648 = vld [vmem:[#allocation2 + $0x70] sm:$0xf]
      %v2649 = vld [vmem:[#allocation2 + $0x78] sm:$0xf]
      %v2650 = vld [vmem:[#allocation2 + $0x7c] sm:$0xf]
      %v2651 = vld [vmem:[#allocation2 + $0x84] sm:$0xf]
      %v2652 = vld [vmem:[#allocation2 + $0x88] sm:$0xf]
      %v2653 = vld [vmem:[#allocation2 + $0x90] sm:$0xf]
      %v2654 = vld [vmem:[#allocation2 + $0x94] sm:$0xf]
      %v2655 = vld [vmem:[#allocation2 + $0x9c] sm:$0xf]
      %v2656 = vld [vmem:[#allocation2 + $0xa0] sm:$0xf]
      %v2657 = vld [vmem:[#allocation2 + $0xa8] sm:$0xf]
      %v2658 = vld [vmem:[#allocation2 + $0xac] sm:$0xf]
      %v2659 = vld [vmem:[#allocation2 + $0xb4] sm:$0xf]
      %v2660 = vld [vmem:[#allocation2 + $0xb8] sm:$0xf]
      %v2661 = vld [vmem:[#allocation2 + $0xc0] sm:$0xf]
      %v2662 = vld [vmem:[#allocation2 + $0xc4] sm:$0xf]
      %v2663 = vld [vmem:[#allocation2 + $0xcc] sm:$0xf]
      %v2664 = vld [vmem:[#allocation2 + $0xd0] sm:$0xf]
      %v2665 = vld [vmem:[#allocation2 + $0x8] sm:$0x1]
      %v2666 = vld [vmem:[#allocation2 + $0x14] sm:$0x1]
      %v2667 = vld [vmem:[#allocation2 + $0x20] sm:$0x1]
      %v2668 = vld [vmem:[#allocation2 + $0x2c] sm:$0x1]
      %v2669 = vld [vmem:[#allocation2 + $0x38] sm:$0x1]
      %v2670 = vld [vmem:[#allocation2 + $0x44] sm:$0x1]
      %v2671 = vld [vmem:[#allocation2 + $0x50] sm:$0x1]
      %v2672 = vld [vmem:[#allocation2 + $0x5c] sm:$0x1]
      %v2673 = vld [vmem:[#allocation2 + $0x68] sm:$0x1]
      %v2674 = vld [vmem:[#allocation2 + $0x74] sm:$0x1]
      %v2675 = vld [vmem:[#allocation2 + $0x80] sm:$0x1]
      %v2676 = vld [vmem:[#allocation2 + $0x8c] sm:$0x1]
      %v2677 = vld [vmem:[#allocation2 + $0x98] sm:$0x1]
      %v2678 = vld [vmem:[#allocation2 + $0xa4] sm:$0x1]
      %v2679 = vld [vmem:[#allocation2 + $0xb0] sm:$0x1]
      %v2680 = vld [vmem:[#allocation2 + $0xbc] sm:$0x1]
      %v2681 = vld [vmem:[#allocation2 + $0xc8] sm:$0x1]
      %v2682 = vld [vmem:[#allocation2 + $0xd4] sm:$0x1]
      %vm2683 = vsmask.f32 3328
      %vm2684 = vsmask.f32 7440
      %vm2685 = vmor %vm2683, %vm2684
      %v2687 = vshrl.u32 %v2629, 16
      %v2689 = vrot.slane %v2687, 4
      %v2690 = vshll.u32 %v2629, 16
      %v2692 = vrot.slane %v2690, 5
      %v2693 = vor.u32 %v2689, %v2692
      %v2694 = vrot.slane %v2693, 4
      %v2696 = vshll.u32 %v2630, 16
      %v2698 = vrot.slane %v2696, 5
      %v2699 = vsel %vm2685, %v2694, %v2698
      %v2700 = vshrl.u32 %v2630, 16
      %v2702 = vrot.slane %v2700, 4
      %v2703 = vor.u32 %v2702, %v2698
      %v2704 = vrot.slane %v2703, 4
      %v2706 = vshll.u32 %v2665, 16
      %v2708 = vrot.slane %v2706, 5
      %v2709 = vsel %vm2685, %v2704, %v2708
      %v2711 = vshrl.u32 %v2631, 16
      %v2713 = vrot.slane %v2711, 4
      %v2714 = vshll.u32 %v2631, 16
      %v2716 = vrot.slane %v2714, 5
      %v2717 = vor.u32 %v2713, %v2716
      %v2718 = vrot.slane %v2717, 4
      %v2720 = vshll.u32 %v2632, 16
      %v2722 = vrot.slane %v2720, 5
      %v2723 = vsel %vm2685, %v2718, %v2722
      %v2724 = vshrl.u32 %v2632, 16
      %v2726 = vrot.slane %v2724, 4
      %v2727 = vor.u32 %v2726, %v2722
      %v2728 = vrot.slane %v2727, 4
      %v2730 = vshll.u32 %v2666, 16
      %v2732 = vrot.slane %v2730, 5
      %v2733 = vsel %vm2685, %v2728, %v2732
      %v2735 = vshrl.u32 %v2633, 16
      %v2737 = vrot.slane %v2735, 4
      %v2738 = vshll.u32 %v2633, 16
      %v2740 = vrot.slane %v2738, 5
      %v2741 = vor.u32 %v2737, %v2740
      %v2742 = vrot.slane %v2741, 4
      %v2744 = vshll.u32 %v2634, 16
      %v2746 = vrot.slane %v2744, 5
      %v2747 = vsel %vm2685, %v2742, %v2746
      %v2748 = vshrl.u32 %v2634, 16
      %v2750 = vrot.slane %v2748, 4
      %v2751 = vor.u32 %v2750, %v2746
      %v2752 = vrot.slane %v2751, 4
      %v2754 = vshll.u32 %v2667, 16
      %v2756 = vrot.slane %v2754, 5
      %v2757 = vsel %vm2685, %v2752, %v2756
      %v2759 = vshrl.u32 %v2635, 16
      %v2761 = vrot.slane %v2759, 4
      %v2762 = vshll.u32 %v2635, 16
      %v2764 = vrot.slane %v2762, 5
      %v2765 = vor.u32 %v2761, %v2764
      %v2766 = vrot.slane %v2765, 4
      %v2768 = vshll.u32 %v2636, 16
      %v2770 = vrot.slane %v2768, 5
      %v2771 = vsel %vm2685, %v2766, %v2770
      %v2772 = vshrl.u32 %v2636, 16
      %v2774 = vrot.slane %v2772, 4
      %v2775 = vor.u32 %v2774, %v2770
      %v2776 = vrot.slane %v2775, 4
      %v2778 = vshll.u32 %v2668, 16
      %v2780 = vrot.slane %v2778, 5
      %v2781 = vsel %vm2685, %v2776, %v2780
      %v2783 = vshrl.u32 %v2637, 16
      %v2785 = vrot.slane %v2783, 4
      %v2786 = vshll.u32 %v2637, 16
      %v2788 = vrot.slane %v2786, 5
      %v2789 = vor.u32 %v2785, %v2788
      %v2790 = vrot.slane %v2789, 4
      %v2792 = vshll.u32 %v2638, 16
      %v2794 = vrot.slane %v2792, 5
      %v2795 = vsel %vm2685, %v2790, %v2794
      %v2796 = vshrl.u32 %v2638, 16
      %v2798 = vrot.slane %v2796, 4
      %v2799 = vor.u32 %v2798, %v2794
      %v2800 = vrot.slane %v2799, 4
      %v2802 = vshll.u32 %v2669, 16
      %v2804 = vrot.slane %v2802, 5
      %v2805 = vsel %vm2685, %v2800, %v2804
      %v2807 = vshrl.u32 %v2639, 16
      %v2809 = vrot.slane %v2807, 4
      %v2810 = vshll.u32 %v2639, 16
      %v2812 = vrot.slane %v2810, 5
      %v2813 = vor.u32 %v2809, %v2812
      %v2814 = vrot.slane %v2813, 4
      %v2816 = vshll.u32 %v2640, 16
      %v2818 = vrot.slane %v2816, 5
      %v2819 = vsel %vm2685, %v2814, %v2818
      %v2820 = vshrl.u32 %v2640, 16
      %v2822 = vrot.slane %v2820, 4
      %v2823 = vor.u32 %v2822, %v2818
      %v2824 = vrot.slane %v2823, 4
      %v2826 = vshll.u32 %v2670, 16
      %v2828 = vrot.slane %v2826, 5
      %v2829 = vsel %vm2685, %v2824, %v2828
      %v2831 = vshrl.u32 %v2641, 16
      %v2833 = vrot.slane %v2831, 4
      %v2834 = vshll.u32 %v2641, 16
      %v2836 = vrot.slane %v2834, 5
      %v2837 = vor.u32 %v2833, %v2836
      %v2838 = vrot.slane %v2837, 4
      %v2840 = vshll.u32 %v2642, 16
      %v2842 = vrot.slane %v2840, 5
      %v2843 = vsel %vm2685, %v2838, %v2842
      %v2844 = vshrl.u32 %v2642, 16
      %v2846 = vrot.slane %v2844, 4
      %v2847 = vor.u32 %v2846, %v2842
      %v2848 = vrot.slane %v2847, 4
      %v2850 = vshll.u32 %v2671, 16
      %v2852 = vrot.slane %v2850, 5
      %v2853 = vsel %vm2685, %v2848, %v2852
      %v2855 = vshrl.u32 %v2643, 16
      %v2857 = vrot.slane %v2855, 4
      %v2858 = vshll.u32 %v2643, 16
      %v2860 = vrot.slane %v2858, 5
      %v2861 = vor.u32 %v2857, %v2860
      %v2862 = vrot.slane %v2861, 4
      %v2864 = vshll.u32 %v2644, 16
      %v2866 = vrot.slane %v2864, 5
      %v2867 = vsel %vm2685, %v2862, %v2866
      %v2868 = vshrl.u32 %v2644, 16
      %v2870 = vrot.slane %v2868, 4
      %v2871 = vor.u32 %v2870, %v2866
      %v2872 = vrot.slane %v2871, 4
      %v2874 = vshll.u32 %v2672, 16
      %v2876 = vrot.slane %v2874, 5
      %v2877 = vsel %vm2685, %v2872, %v2876
      %v2879 = vshrl.u32 %v2645, 16
      %v2881 = vrot.slane %v2879, 4
      %v2882 = vshll.u32 %v2645, 16
      %v2884 = vrot.slane %v2882, 5
      %v2885 = vor.u32 %v2881, %v2884
      %v2886 = vrot.slane %v2885, 4
      %v2888 = vshll.u32 %v2646, 16
      %v2890 = vrot.slane %v2888, 5
      %v2891 = vsel %vm2685, %v2886, %v2890
      %v2892 = vshrl.u32 %v2646, 16
      %v2894 = vrot.slane %v2892, 4
      %v2895 = vor.u32 %v2894, %v2890
      %v2896 = vrot.slane %v2895, 4
      %v2898 = vshll.u32 %v2673, 16
      %v2900 = vrot.slane %v2898, 5
      %v2901 = vsel %vm2685, %v2896, %v2900
      %v2903 = vshrl.u32 %v2647, 16
      %v2905 = vrot.slane %v2903, 4
      %v2906 = vshll.u32 %v2647, 16
      %v2908 = vrot.slane %v2906, 5
      %v2909 = vor.u32 %v2905, %v2908
      %v2910 = vrot.slane %v2909, 4
      %v2912 = vshll.u32 %v2648, 16
      %v2914 = vrot.slane %v2912, 5
      %v2915 = vsel %vm2685, %v2910, %v2914
      %v2916 = vshrl.u32 %v2648, 16
      %v2918 = vrot.slane %v2916, 4
      %v2919 = vor.u32 %v2918, %v2914
      %v2920 = vrot.slane %v2919, 4
      %v2922 = vshll.u32 %v2674, 16
      %v2924 = vrot.slane %v2922, 5
      %v2925 = vsel %vm2685, %v2920, %v2924
      %v2927 = vshrl.u32 %v2649, 16
      %v2929 = vrot.slane %v2927, 4
      %v2930 = vshll.u32 %v2649, 16
      %v2932 = vrot.slane %v2930, 5
      %v2933 = vor.u32 %v2929, %v2932
      %v2934 = vrot.slane %v2933, 4
      %v2936 = vshll.u32 %v2650, 16
      %v2938 = vrot.slane %v2936, 5
      %v2939 = vsel %vm2685, %v2934, %v2938
      %v2940 = vshrl.u32 %v2650, 16
      %v2942 = vrot.slane %v2940, 4
      %v2943 = vor.u32 %v2942, %v2938
      %v2944 = vrot.slane %v2943, 4
      %v2946 = vshll.u32 %v2675, 16
      %v2948 = vrot.slane %v2946, 5
      %v2949 = vsel %vm2685, %v2944, %v2948
      %v2951 = vshrl.u32 %v2651, 16
      %v2953 = vrot.slane %v2951, 4
      %v2954 = vshll.u32 %v2651, 16
      %v2956 = vrot.slane %v2954, 5
      %v2957 = vor.u32 %v2953, %v2956
      %v2958 = vrot.slane %v2957, 4
      %v2960 = vshll.u32 %v2652, 16
      %v2962 = vrot.slane %v2960, 5
      %v2963 = vsel %vm2685, %v2958, %v2962
      %v2964 = vshrl.u32 %v2652, 16
      %v2966 = vrot.slane %v2964, 4
      %v2967 = vor.u32 %v2966, %v2962
      %v2968 = vrot.slane %v2967, 4
      %v2970 = vshll.u32 %v2676, 16
      %v2972 = vrot.slane %v2970, 5
      %v2973 = vsel %vm2685, %v2968, %v2972
      %v2975 = vshrl.u32 %v2653, 16
      %v2977 = vrot.slane %v2975, 4
      %v2978 = vshll.u32 %v2653, 16
      %v2980 = vrot.slane %v2978, 5
      %v2981 = vor.u32 %v2977, %v2980
      %v2982 = vrot.slane %v2981, 4
      %v2984 = vshll.u32 %v2654, 16
      %v2986 = vrot.slane %v2984, 5
      %v2987 = vsel %vm2685, %v2982, %v2986
      %v2988 = vshrl.u32 %v2654, 16
      %v2990 = vrot.slane %v2988, 4
      %v2991 = vor.u32 %v2990, %v2986
      %v2992 = vrot.slane %v2991, 4
      %v2994 = vshll.u32 %v2677, 16
      %v2996 = vrot.slane %v2994, 5
      %v2997 = vsel %vm2685, %v2992, %v2996
      %v2999 = vshrl.u32 %v2655, 16
      %v3001 = vrot.slane %v2999, 4
      %v3002 = vshll.u32 %v2655, 16
      %v3004 = vrot.slane %v3002, 5
      %v3005 = vor.u32 %v3001, %v3004
      %v3006 = vrot.slane %v3005, 4
      %v3008 = vshll.u32 %v2656, 16
      %v3010 = vrot.slane %v3008, 5
      %v3011 = vsel %vm2685, %v3006, %v3010
      %v3012 = vshrl.u32 %v2656, 16
      %v3014 = vrot.slane %v3012, 4
      %v3015 = vor.u32 %v3014, %v3010
      %v3016 = vrot.slane %v3015, 4
      %v3018 = vshll.u32 %v2678, 16
      %v3020 = vrot.slane %v3018, 5
      %v3021 = vsel %vm2685, %v3016, %v3020
      %v3023 = vshrl.u32 %v2657, 16
      %v3025 = vrot.slane %v3023, 4
      %v3026 = vshll.u32 %v2657, 16
      %v3028 = vrot.slane %v3026, 5
      %v3029 = vor.u32 %v3025, %v3028
      %v3030 = vrot.slane %v3029, 4
      %v3032 = vshll.u32 %v2658, 16
      %v3034 = vrot.slane %v3032, 5
      %v3035 = vsel %vm2685, %v3030, %v3034
      %v3036 = vshrl.u32 %v2658, 16
      %v3038 = vrot.slane %v3036, 4
      %v3039 = vor.u32 %v3038, %v3034
      %v3040 = vrot.slane %v3039, 4
      %v3042 = vshll.u32 %v2679, 16
      %v3044 = vrot.slane %v3042, 5
      %v3045 = vsel %vm2685, %v3040, %v3044
      %v3047 = vshrl.u32 %v2659, 16
      %v3049 = vrot.slane %v3047, 4
      %v3050 = vshll.u32 %v2659, 16
      %v3052 = vrot.slane %v3050, 5
      %v3053 = vor.u32 %v3049, %v3052
      %v3054 = vrot.slane %v3053, 4
      %v3056 = vshll.u32 %v2660, 16
      %v3058 = vrot.slane %v3056, 5
      %v3059 = vsel %vm2685, %v3054, %v3058
      %v3060 = vshrl.u32 %v2660, 16
      %v3062 = vrot.slane %v3060, 4
      %v3063 = vor.u32 %v3062, %v3058
      %v3064 = vrot.slane %v3063, 4
      %v3066 = vshll.u32 %v2680, 16
      %v3068 = vrot.slane %v3066, 5
      %v3069 = vsel %vm2685, %v3064, %v3068
      %v3071 = vshrl.u32 %v2661, 16
      %v3073 = vrot.slane %v3071, 4
      %v3074 = vshll.u32 %v2661, 16
      %v3076 = vrot.slane %v3074, 5
      %v3077 = vor.u32 %v3073, %v3076
      %v3078 = vrot.slane %v3077, 4
      %v3080 = vshll.u32 %v2662, 16
      %v3082 = vrot.slane %v3080, 5
      %v3083 = vsel %vm2685, %v3078, %v3082
      %v3084 = vshrl.u32 %v2662, 16
      %v3086 = vrot.slane %v3084, 4
      %v3087 = vor.u32 %v3086, %v3082
      %v3088 = vrot.slane %v3087, 4
      %v3090 = vshll.u32 %v2681, 16
      %v3092 = vrot.slane %v3090, 5
      %v3093 = vsel %vm2685, %v3088, %v3092
      %v3095 = vshrl.u32 %v2663, 16
      %v3097 = vrot.slane %v3095, 4
      %v3098 = vshll.u32 %v2663, 16
      %v3100 = vrot.slane %v3098, 5
      %v3101 = vor.u32 %v3097, %v3100
      %v3102 = vrot.slane %v3101, 4
      %v3104 = vshll.u32 %v2664, 16
      %v3106 = vrot.slane %v3104, 5
      %v3107 = vsel %vm2685, %v3102, %v3106
      %v3108 = vshrl.u32 %v2664, 16
      %v3110 = vrot.slane %v3108, 4
      %v3111 = vor.u32 %v3110, %v3106
      %v3112 = vrot.slane %v3111, 4
      %v3114 = vshll.u32 %v2682, 16
      %v3116 = vrot.slane %v3114, 5
      %v3117 = vsel %vm2685, %v3112, %v3116
      %v3118 = vld [vmem:[#allocation2] sm:$0xe]
      %v3119 = vld [vmem:[#allocation2 + $0xc] sm:$0xe]
      %v3120 = vld [vmem:[#allocation2 + $0x18] sm:$0xe]
      %v3121 = vld [vmem:[#allocation2 + $0x24] sm:$0xe]
      %v3122 = vld [vmem:[#allocation2 + $0x30] sm:$0xe]
      %v3123 = vld [vmem:[#allocation2 + $0x3c] sm:$0xe]
      %v3124 = vld [vmem:[#allocation2 + $0x48] sm:$0xe]
      %v3125 = vld [vmem:[#allocation2 + $0x54] sm:$0xe]
      %v3126 = vld [vmem:[#allocation2 + $0x60] sm:$0xe]
      %v3127 = vld [vmem:[#allocation2 + $0x6c] sm:$0xe]
      %v3128 = vld [vmem:[#allocation2 + $0x78] sm:$0xe]
      %v3129 = vld [vmem:[#allocation2 + $0x84] sm:$0xe]
      %v3130 = vld [vmem:[#allocation2 + $0x90] sm:$0xe]
      %v3131 = vld [vmem:[#allocation2 + $0x9c] sm:$0xe]
      %v3132 = vld [vmem:[#allocation2 + $0xa8] sm:$0xe]
      %v3133 = vld [vmem:[#allocation2 + $0xb4] sm:$0xe]
      %v3134 = vld [vmem:[#allocation2 + $0xc0] sm:$0xe]
      %v3135 = vld [vmem:[#allocation2 + $0xcc] sm:$0xe]
      %vm3190 = vcmask 1042432
      %vm3191 = vcmask 1046532
      %vm3192 = vmor %vm3190, %vm3191
      %v3193 = vrot.slane %v3118, 5
      %v3194 = vrot.slane %v3193, 4
      %v3195 = vrot.slane %v2630, 5
      %v3196 = vsel %vm3192, %v3194, %v3195
      %v3197 = vrot.slane %v3195, 4
      %v3198 = vrot.slane %v2665, 5
      %v3199 = vsel %vm3192, %v3197, %v3198
      %v3200 = vrot.slane %v3119, 5
      %v3201 = vrot.slane %v3200, 4
      %v3202 = vrot.slane %v2632, 5
      %v3203 = vsel %vm3192, %v3201, %v3202
      %v3204 = vrot.slane %v3202, 4
      %v3205 = vrot.slane %v2666, 5
      %v3206 = vsel %vm3192, %v3204, %v3205
      %v3207 = vrot.slane %v3120, 5
      %v3208 = vrot.slane %v3207, 4
      %v3209 = vrot.slane %v2634, 5
      %v3210 = vsel %vm3192, %v3208, %v3209
      %v3211 = vrot.slane %v3209, 4
      %v3212 = vrot.slane %v2667, 5
      %v3213 = vsel %vm3192, %v3211, %v3212
      %v3214 = vrot.slane %v3121, 5
      %v3215 = vrot.slane %v3214, 4
      %v3216 = vrot.slane %v2636, 5
      %v3217 = vsel %vm3192, %v3215, %v3216
      %v3218 = vrot.slane %v3216, 4
      %v3219 = vrot.slane %v2668, 5
      %v3220 = vsel %vm3192, %v3218, %v3219
      %v3221 = vrot.slane %v3122, 5
      %v3222 = vrot.slane %v3221, 4
      %v3223 = vrot.slane %v2638, 5
      %v3224 = vsel %vm3192, %v3222, %v3223
      %v3225 = vrot.slane %v3223, 4
      %v3226 = vrot.slane %v2669, 5
      %v3227 = vsel %vm3192, %v3225, %v3226
      %v3228 = vrot.slane %v3123, 5
      %v3229 = vrot.slane %v3228, 4
      %v3230 = vrot.slane %v2640, 5
      %v3231 = vsel %vm3192, %v3229, %v3230
      %v3232 = vrot.slane %v3230, 4
      %v3233 = vrot.slane %v2670, 5
      %v3234 = vsel %vm3192, %v3232, %v3233
      %v3235 = vrot.slane %v3124, 5
      %v3236 = vrot.slane %v3235, 4
      %v3237 = vrot.slane %v2642, 5
      %v3238 = vsel %vm3192, %v3236, %v3237
      %v3239 = vrot.slane %v3237, 4
      %v3240 = vrot.slane %v2671, 5
      %v3241 = vsel %vm3192, %v3239, %v3240
      %v3242 = vrot.slane %v3125, 5
      %v3243 = vrot.slane %v3242, 4
      %v3244 = vrot.slane %v2644, 5
      %v3245 = vsel %vm3192, %v3243, %v3244
      %v3246 = vrot.slane %v3244, 4
      %v3247 = vrot.slane %v2672, 5
      %v3248 = vsel %vm3192, %v3246, %v3247
      %v3249 = vrot.slane %v3126, 5
      %v3250 = vrot.slane %v3249, 4
      %v3251 = vrot.slane %v2646, 5
      %v3252 = vsel %vm3192, %v3250, %v3251
      %v3253 = vrot.slane %v3251, 4
      %v3254 = vrot.slane %v2673, 5
      %v3255 = vsel %vm3192, %v3253, %v3254
      %v3256 = vrot.slane %v3127, 5
      %v3257 = vrot.slane %v3256, 4
      %v3258 = vrot.slane %v2648, 5
      %v3259 = vsel %vm3192, %v3257, %v3258
      %v3260 = vrot.slane %v3258, 4
      %v3261 = vrot.slane %v2674, 5
      %v3262 = vsel %vm3192, %v3260, %v3261
      %v3263 = vrot.slane %v3128, 5
      %v3264 = vrot.slane %v3263, 4
      %v3265 = vrot.slane %v2650, 5
      %v3266 = vsel %vm3192, %v3264, %v3265
      %v3267 = vrot.slane %v3265, 4
      %v3268 = vrot.slane %v2675, 5
      %v3269 = vsel %vm3192, %v3267, %v3268
      %v3270 = vrot.slane %v3129, 5
      %v3271 = vrot.slane %v3270, 4
      %v3272 = vrot.slane %v2652, 5
      %v3273 = vsel %vm3192, %v3271, %v3272
      %v3274 = vrot.slane %v3272, 4
      %v3275 = vrot.slane %v2676, 5
      %v3276 = vsel %vm3192, %v3274, %v3275
      %v3277 = vrot.slane %v3130, 5
      %v3278 = vrot.slane %v3277, 4
      %v3279 = vrot.slane %v2654, 5
      %v3280 = vsel %vm3192, %v3278, %v3279
      %v3281 = vrot.slane %v3279, 4
      %v3282 = vrot.slane %v2677, 5
      %v3283 = vsel %vm3192, %v3281, %v3282
      %v3284 = vrot.slane %v3131, 5
      %v3285 = vrot.slane %v3284, 4
      %v3286 = vrot.slane %v2656, 5
      %v3287 = vsel %vm3192, %v3285, %v3286
      %v3288 = vrot.slane %v3286, 4
      %v3289 = vrot.slane %v2678, 5
      %v3290 = vsel %vm3192, %v3288, %v3289
      %v3291 = vrot.slane %v3132, 5
      %v3292 = vrot.slane %v3291, 4
      %v3293 = vrot.slane %v2658, 5
      %v3294 = vsel %vm3192, %v3292, %v3293
      %v3295 = vrot.slane %v3293, 4
      %v3296 = vrot.slane %v2679, 5
      %v3297 = vsel %vm3192, %v3295, %v3296
      %v3298 = vrot.slane %v3133, 5
      %v3299 = vrot.slane %v3298, 4
      %v3300 = vrot.slane %v2660, 5
      %v3301 = vsel %vm3192, %v3299, %v3300
      %v3302 = vrot.slane %v3300, 4
      %v3303 = vrot.slane %v2680, 5
      %v3304 = vsel %vm3192, %v3302, %v3303
      %v3305 = vrot.slane %v3134, 5
      %v3306 = vrot.slane %v3305, 4
      %v3307 = vrot.slane %v2662, 5
      %v3308 = vsel %vm3192, %v3306, %v3307
      %v3309 = vrot.slane %v3307, 4
      %v3310 = vrot.slane %v2681, 5
      %v3311 = vsel %vm3192, %v3309, %v3310
      %v3312 = vrot.slane %v3135, 5
      %v3313 = vrot.slane %v3312, 4
      %v3314 = vrot.slane %v2664, 5
      %v3315 = vsel %vm3192, %v3313, %v3314
      %v3316 = vrot.slane %v3314, 4
      %v3317 = vrot.slane %v2682, 5
      %v3318 = vsel %vm3192, %v3316, %v3317
      %v3337 = vunpack.c.l.b16 %v2629
      %v3338 = vunpack.c.l.b16 %v2630
      %v3339 = vunpack.c.l.b16 %v2631
      %v3340 = vunpack.c.l.b16 %v2632
      %v3341 = vunpack.c.l.b16 %v2633
      %v3342 = vunpack.c.l.b16 %v2634
      %v3343 = vunpack.c.l.b16 %v2635
      %v3344 = vunpack.c.l.b16 %v2636
      %v3345 = vunpack.c.l.b16 %v2637
      %v3346 = vunpack.c.l.b16 %v2638
      %v3347 = vunpack.c.l.b16 %v2639
      %v3348 = vunpack.c.l.b16 %v2640
      %v3349 = vunpack.c.l.b16 %v2641
      %v3350 = vunpack.c.l.b16 %v2642
      %v3351 = vunpack.c.l.b16 %v2643
      %v3352 = vunpack.c.l.b16 %v2644
      %v3353 = vunpack.c.l.b16 %v2645
      %v3354 = vunpack.c.l.b16 %v2646
      %v3355 = vunpack.c.l.b16 %v2647
      %v3356 = vunpack.c.l.b16 %v2648
      %v3357 = vunpack.c.l.b16 %v2649
      %v3358 = vunpack.c.l.b16 %v2650
      %v3359 = vunpack.c.l.b16 %v2651
      %v3360 = vunpack.c.l.b16 %v2652
      %v3361 = vunpack.c.l.b16 %v2653
      %v3362 = vunpack.c.l.b16 %v2654
      %v3363 = vunpack.c.l.b16 %v2655
      %v3364 = vunpack.c.l.b16 %v2656
      %v3365 = vunpack.c.l.b16 %v2657
      %v3366 = vunpack.c.l.b16 %v2658
      %v3367 = vunpack.c.l.b16 %v2659
      %v3368 = vunpack.c.l.b16 %v2660
      %v3369 = vunpack.c.l.b16 %v2661
      %v3370 = vunpack.c.l.b16 %v2662
      %v3371 = vunpack.c.l.b16 %v2663
      %v3372 = vunpack.c.l.b16 %v2664
      %v3373 = vpack.c.b16 %v3338, %v3337
      %v3374 = vpack.c.b16 %v3340, %v3339
      %v3375 = vpack.c.b16 %v3342, %v3341
      %v3376 = vpack.c.b16 %v3344, %v3343
      %v3377 = vpack.c.b16 %v3346, %v3345
      %v3378 = vpack.c.b16 %v3348, %v3347
      %v3379 = vpack.c.b16 %v3350, %v3349
      %v3380 = vpack.c.b16 %v3352, %v3351
      %v3381 = vpack.c.b16 %v3354, %v3353
      %v3382 = vpack.c.b16 %v3356, %v3355
      %v3383 = vpack.c.b16 %v3358, %v3357
      %v3384 = vpack.c.b16 %v3360, %v3359
      %v3385 = vpack.c.b16 %v3362, %v3361
      %v3386 = vpack.c.b16 %v3364, %v3363
      %v3387 = vpack.c.b16 %v3366, %v3365
      %v3388 = vpack.c.b16 %v3368, %v3367
      %v3389 = vpack.c.b16 %v3370, %v3369
      %v3390 = vpack.c.b16 %v3372, %v3371
      %v3391 = vunpack.c.l.b16 %v2699
      %v3392 = vunpack.c.l.b16 %v2709
      %v3393 = vunpack.c.l.b16 %v2723
      %v3394 = vunpack.c.l.b16 %v2733
      %v3395 = vunpack.c.l.b16 %v2747
      %v3396 = vunpack.c.l.b16 %v2757
      %v3397 = vunpack.c.l.b16 %v2771
      %v3398 = vunpack.c.l.b16 %v2781
      %v3399 = vunpack.c.l.b16 %v2795
      %v3400 = vunpack.c.l.b16 %v2805
      %v3401 = vunpack.c.l.b16 %v2819
      %v3402 = vunpack.c.l.b16 %v2829
      %v3403 = vunpack.c.l.b16 %v2843
      %v3404 = vunpack.c.l.b16 %v2853
      %v3405 = vunpack.c.l.b16 %v2867
      %v3406 = vunpack.c.l.b16 %v2877
      %v3407 = vunpack.c.l.b16 %v2891
      %v3408 = vunpack.c.l.b16 %v2901
      %v3409 = vunpack.c.l.b16 %v2915
      %v3410 = vunpack.c.l.b16 %v2925
      %v3411 = vunpack.c.l.b16 %v2939
      %v3412 = vunpack.c.l.b16 %v2949
      %v3413 = vunpack.c.l.b16 %v2963
      %v3414 = vunpack.c.l.b16 %v2973
      %v3415 = vunpack.c.l.b16 %v2987
      %v3416 = vunpack.c.l.b16 %v2997
      %v3417 = vunpack.c.l.b16 %v3011
      %v3418 = vunpack.c.l.b16 %v3021
      %v3419 = vunpack.c.l.b16 %v3035
      %v3420 = vunpack.c.l.b16 %v3045
      %v3421 = vunpack.c.l.b16 %v3059
      %v3422 = vunpack.c.l.b16 %v3069
      %v3423 = vunpack.c.l.b16 %v3083
      %v3424 = vunpack.c.l.b16 %v3093
      %v3425 = vunpack.c.l.b16 %v3107
      %v3426 = vunpack.c.l.b16 %v3117
      %v3427 = vpack.c.b16 %v3392, %v3391
      %v3428 = vpack.c.b16 %v3394, %v3393
      %v3429 = vpack.c.b16 %v3396, %v3395
      %v3430 = vpack.c.b16 %v3398, %v3397
      %v3431 = vpack.c.b16 %v3400, %v3399
      %v3432 = vpack.c.b16 %v3402, %v3401
      %v3433 = vpack.c.b16 %v3404, %v3403
      %v3434 = vpack.c.b16 %v3406, %v3405
      %v3435 = vpack.c.b16 %v3408, %v3407
      %v3436 = vpack.c.b16 %v3410, %v3409
      %v3437 = vpack.c.b16 %v3412, %v3411
      %v3438 = vpack.c.b16 %v3414, %v3413
      %v3439 = vpack.c.b16 %v3416, %v3415
      %v3440 = vpack.c.b16 %v3418, %v3417
      %v3441 = vpack.c.b16 %v3420, %v3419
      %v3442 = vpack.c.b16 %v3422, %v3421
      %v3443 = vpack.c.b16 %v3424, %v3423
      %v3444 = vpack.c.b16 %v3426, %v3425
      %3445 = vrot.lane.b32.xlu0 %v3427, 2
      %v3446 = vpop.permute.xlu0 %3445
      %3447 = vrot.lane.b32.xlu0 %v3428, 2
      %v3448 = vpop.permute.xlu0 %3447
      %3449 = vrot.lane.b32.xlu0 %v3429, 2
      %v3450 = vpop.permute.xlu0 %3449
      %3451 = vrot.lane.b32.xlu0 %v3430, 2
      %v3452 = vpop.permute.xlu0 %3451
      %3453 = vrot.lane.b32.xlu0 %v3431, 2
      %v3454 = vpop.permute.xlu0 %3453
      %3455 = vrot.lane.b32.xlu0 %v3432, 2
      %v3456 = vpop.permute.xlu0 %3455
      %3457 = vrot.lane.b32.xlu0 %v3433, 2
      %v3458 = vpop.permute.xlu0 %3457
      %3459 = vrot.lane.b32.xlu0 %v3434, 2
      %v3460 = vpop.permute.xlu0 %3459
      %3461 = vrot.lane.b32.xlu0 %v3435, 2
      %v3462 = vpop.permute.xlu0 %3461
      %3463 = vrot.lane.b32.xlu0 %v3436, 2
      %v3464 = vpop.permute.xlu0 %3463
      %3465 = vrot.lane.b32.xlu0 %v3437, 2
      %v3466 = vpop.permute.xlu0 %3465
      %3467 = vrot.lane.b32.xlu0 %v3438, 2
      %v3468 = vpop.permute.xlu0 %3467
      %3469 = vrot.lane.b32.xlu0 %v3439, 2
      %v3470 = vpop.permute.xlu0 %3469
      %3471 = vrot.lane.b32.xlu0 %v3440, 2
      %v3472 = vpop.permute.xlu0 %3471
      %3473 = vrot.lane.b32.xlu0 %v3441, 2
      %v3474 = vpop.permute.xlu0 %3473
      %3475 = vrot.lane.b32.xlu0 %v3442, 2
      %v3476 = vpop.permute.xlu0 %3475
      %3477 = vrot.lane.b32.xlu0 %v3443, 2
      %v3478 = vpop.permute.xlu0 %3477
      %3479 = vrot.lane.b32.xlu0 %v3444, 2
      %v3480 = vpop.permute.xlu0 %3479
      %v3481 = vunpack.c.l.b16 %v3196
      %v3482 = vunpack.c.l.b16 %v3199
      %v3483 = vunpack.c.l.b16 %v3203
      %v3484 = vunpack.c.l.b16 %v3206
      %v3485 = vunpack.c.l.b16 %v3210
      %v3486 = vunpack.c.l.b16 %v3213
      %v3487 = vunpack.c.l.b16 %v3217
      %v3488 = vunpack.c.l.b16 %v3220
      %v3489 = vunpack.c.l.b16 %v3224
      %v3490 = vunpack.c.l.b16 %v3227
      %v3491 = vunpack.c.l.b16 %v3231
      %v3492 = vunpack.c.l.b16 %v3234
      %v3493 = vunpack.c.l.b16 %v3238
      %v3494 = vunpack.c.l.b16 %v3241
      %v3495 = vunpack.c.l.b16 %v3245
      %v3496 = vunpack.c.l.b16 %v3248
      %v3497 = vunpack.c.l.b16 %v3252
      %v3498 = vunpack.c.l.b16 %v3255
      %v3499 = vunpack.c.l.b16 %v3259
      %v3500 = vunpack.c.l.b16 %v3262
      %v3501 = vunpack.c.l.b16 %v3266
      %v3502 = vunpack.c.l.b16 %v3269
      %v3503 = vunpack.c.l.b16 %v3273
      %v3504 = vunpack.c.l.b16 %v3276
      %v3505 = vunpack.c.l.b16 %v3280
      %v3506 = vunpack.c.l.b16 %v3283
      %v3507 = vunpack.c.l.b16 %v3287
      %v3508 = vunpack.c.l.b16 %v3290
      %v3509 = vunpack.c.l.b16 %v3294
      %v3510 = vunpack.c.l.b16 %v3297
      %v3511 = vunpack.c.l.b16 %v3301
      %v3512 = vunpack.c.l.b16 %v3304
      %v3513 = vunpack.c.l.b16 %v3308
      %v3514 = vunpack.c.l.b16 %v3311
      %v3515 = vunpack.c.l.b16 %v3315
      %v3516 = vunpack.c.l.b16 %v3318
      %v3517 = vpack.c.b16 %v3482, %v3481
      %v3518 = vpack.c.b16 %v3484, %v3483
      %v3519 = vpack.c.b16 %v3486, %v3485
      %v3520 = vpack.c.b16 %v3488, %v3487
      %v3521 = vpack.c.b16 %v3490, %v3489
      %v3522 = vpack.c.b16 %v3492, %v3491
      %v3523 = vpack.c.b16 %v3494, %v3493
      %v3524 = vpack.c.b16 %v3496, %v3495
      %v3525 = vpack.c.b16 %v3498, %v3497
      %v3526 = vpack.c.b16 %v3500, %v3499
      %v3527 = vpack.c.b16 %v3502, %v3501
      %v3528 = vpack.c.b16 %v3504, %v3503
      %v3529 = vpack.c.b16 %v3506, %v3505
      %v3530 = vpack.c.b16 %v3508, %v3507
      %v3531 = vpack.c.b16 %v3510, %v3509
      %v3532 = vpack.c.b16 %v3512, %v3511
      %v3533 = vpack.c.b16 %v3514, %v3513
      %v3534 = vpack.c.b16 %v3516, %v3515
      %3535 = vrot.lane.b32.xlu0 %v3517, 4
      %v3536 = vpop.permute.xlu0 %3535
      %3537 = vrot.lane.b32.xlu0 %v3518, 4
      %v3538 = vpop.permute.xlu0 %3537
      %3539 = vrot.lane.b32.xlu0 %v3519, 4
      %v3540 = vpop.permute.xlu0 %3539
      %3541 = vrot.lane.b32.xlu0 %v3520, 4
      %v3542 = vpop.permute.xlu0 %3541
      %3543 = vrot.lane.b32.xlu0 %v3521, 4
      %v3544 = vpop.permute.xlu0 %3543
      %3545 = vrot.lane.b32.xlu0 %v3522, 4
      %v3546 = vpop.permute.xlu0 %3545
      %3547 = vrot.lane.b32.xlu0 %v3523, 4
      %v3548 = vpop.permute.xlu0 %3547
      %3549 = vrot.lane.b32.xlu0 %v3524, 4
      %v3550 = vpop.permute.xlu0 %3549
      %3551 = vrot.lane.b32.xlu0 %v3525, 4
      %v3552 = vpop.permute.xlu0 %3551
      %3553 = vrot.lane.b32.xlu0 %v3526, 4
      %v3554 = vpop.permute.xlu0 %3553
      %3555 = vrot.lane.b32.xlu0 %v3527, 4
      %v3556 = vpop.permute.xlu0 %3555
      %3557 = vrot.lane.b32.xlu0 %v3528, 4
      %v3558 = vpop.permute.xlu0 %3557
      %3559 = vrot.lane.b32.xlu0 %v3529, 4
      %v3560 = vpop.permute.xlu0 %3559
      %3561 = vrot.lane.b32.xlu0 %v3530, 4
      %v3562 = vpop.permute.xlu0 %3561
      %3563 = vrot.lane.b32.xlu0 %v3531, 4
      %v3564 = vpop.permute.xlu0 %3563
      %3565 = vrot.lane.b32.xlu0 %v3532, 4
      %v3566 = vpop.permute.xlu0 %3565
      %3567 = vrot.lane.b32.xlu0 %v3533, 4
      %v3568 = vpop.permute.xlu0 %3567
      %3569 = vrot.lane.b32.xlu0 %v3534, 4
      %v3570 = vpop.permute.xlu0 %3569
      %vm3571 = vcmask 15360
      %v3574 = vsel %vm3571, %v3373, %v3446
      %v3577 = vsel %vm3571, %v3374, %v3448
      %v3580 = vsel %vm3571, %v3375, %v3450
      %v3583 = vsel %vm3571, %v3376, %v3452
      %v3586 = vsel %vm3571, %v3377, %v3454
      %v3589 = vsel %vm3571, %v3378, %v3456
      %v3592 = vsel %vm3571, %v3379, %v3458
      %v3595 = vsel %vm3571, %v3380, %v3460
      %v3598 = vsel %vm3571, %v3381, %v3462
      %v3601 = vsel %vm3571, %v3382, %v3464
      %v3604 = vsel %vm3571, %v3383, %v3466
      %v3607 = vsel %vm3571, %v3384, %v3468
      %v3610 = vsel %vm3571, %v3385, %v3470
      %v3613 = vsel %vm3571, %v3386, %v3472
      %v3616 = vsel %vm3571, %v3387, %v3474
      %v3619 = vsel %vm3571, %v3388, %v3476
      %v3622 = vsel %vm3571, %v3389, %v3478
      %v3625 = vsel %vm3571, %v3390, %v3480
      %vm3626 = vcmask 31744
      %v3628 = vsel %vm3626, %v3574, %v3536
      %v3630 = vsel %vm3626, %v3577, %v3538
      %v3632 = vsel %vm3626, %v3580, %v3540
      %v3634 = vsel %vm3626, %v3583, %v3542
      %v3636 = vsel %vm3626, %v3586, %v3544
      %v3638 = vsel %vm3626, %v3589, %v3546
      %v3640 = vsel %vm3626, %v3592, %v3548
      %v3642 = vsel %vm3626, %v3595, %v3550
      %v3644 = vsel %vm3626, %v3598, %v3552
      %v3646 = vsel %vm3626, %v3601, %v3554
      %v3648 = vsel %vm3626, %v3604, %v3556
      %v3650 = vsel %vm3626, %v3607, %v3558
      %v3652 = vsel %vm3626, %v3610, %v3560
      %v3654 = vsel %vm3626, %v3613, %v3562
      %v3656 = vsel %vm3626, %v3616, %v3564
      %v3658 = vsel %vm3626, %v3619, %v3566
      %v3660 = vsel %vm3626, %v3622, %v3568
      %v3662 = vsel %vm3626, %v3625, %v3570
      %v3663 = vld [vmem:[%s3] sm:$0x7]
      %s3664 = scalar_lea.vmem [#allocation2], 12
      %v3665 = vld [vmem:[%s3664] sm:$0xf]
      %v3666 = vld [vmem:[%s3664 + $0x4] sm:$0xf]
      %v3667 = vld [vmem:[%s3664 + $0xc] sm:$0xf]
      %v3668 = vld [vmem:[%s3664 + $0x10] sm:$0xf]
      %v3669 = vld [vmem:[%s3664 + $0x18] sm:$0xf]
      %v3670 = vld [vmem:[%s3664 + $0x1c] sm:$0xf]
      %v3671 = vld [vmem:[%s3664 + $0x24] sm:$0xf]
      %v3672 = vld [vmem:[%s3664 + $0x28] sm:$0xf]
      %v3673 = vld [vmem:[%s3664 + $0x30] sm:$0xf]
      %v3674 = vld [vmem:[%s3664 + $0x34] sm:$0xf]
      %v3675 = vld [vmem:[%s3664 + $0x3c] sm:$0xf]
      %v3676 = vld [vmem:[%s3664 + $0x40] sm:$0xf]
      %v3677 = vld [vmem:[%s3664 + $0x48] sm:$0xf]
      %v3678 = vld [vmem:[%s3664 + $0x4c] sm:$0xf]
      %v3679 = vld [vmem:[%s3664 + $0x54] sm:$0xf]
      %v3680 = vld [vmem:[%s3664 + $0x58] sm:$0xf]
      %v3681 = vld [vmem:[%s3664 + $0x60] sm:$0xf]
      %v3682 = vld [vmem:[%s3664 + $0x64] sm:$0xf]
      %v3683 = vld [vmem:[%s3664 + $0x6c] sm:$0xf]
      %v3684 = vld [vmem:[%s3664 + $0x70] sm:$0xf]
      %v3685 = vld [vmem:[%s3664 + $0x78] sm:$0xf]
      %v3686 = vld [vmem:[%s3664 + $0x7c] sm:$0xf]
      %v3687 = vld [vmem:[%s3664 + $0x84] sm:$0xf]
      %v3688 = vld [vmem:[%s3664 + $0x88] sm:$0xf]
      %v3689 = vld [vmem:[%s3664 + $0x90] sm:$0xf]
      %v3690 = vld [vmem:[%s3664 + $0x94] sm:$0xf]
      %v3691 = vld [vmem:[%s3664 + $0x9c] sm:$0xf]
      %v3692 = vld [vmem:[%s3664 + $0xa0] sm:$0xf]
      %v3693 = vld [vmem:[%s3664 + $0xa8] sm:$0xf]
      %v3694 = vld [vmem:[%s3664 + $0xac] sm:$0xf]
      %v3695 = vld [vmem:[%s3664 + $0xb4] sm:$0xf]
      %v3696 = vld [vmem:[%s3664 + $0xb8] sm:$0xf]
      %v3697 = vld [vmem:[%s3664 + $0xc0] sm:$0xf]
      %v3698 = vld [vmem:[%s3664 + $0xc4] sm:$0xf]
      %v3699 = vld [vmem:[%s3664 + $0xcc] sm:$0xf]
      %v3700 = vld [vmem:[%s3664 + $0xd0] sm:$0xf]
      %v3701 = vld [vmem:[%s3664 + $0x8] sm:$0x1]
      %v3702 = vld [vmem:[%s3664 + $0x14] sm:$0x1]
      %v3703 = vld [vmem:[%s3664 + $0x20] sm:$0x1]
      %v3704 = vld [vmem:[%s3664 + $0x2c] sm:$0x1]
      %v3705 = vld [vmem:[%s3664 + $0x38] sm:$0x1]
      %v3706 = vld [vmem:[%s3664 + $0x44] sm:$0x1]
      %v3707 = vld [vmem:[%s3664 + $0x50] sm:$0x1]
      %v3708 = vld [vmem:[%s3664 + $0x5c] sm:$0x1]
      %v3709 = vld [vmem:[%s3664 + $0x68] sm:$0x1]
      %v3710 = vld [vmem:[%s3664 + $0x74] sm:$0x1]
      %v3711 = vld [vmem:[%s3664 + $0x80] sm:$0x1]
      %v3712 = vld [vmem:[%s3664 + $0x8c] sm:$0x1]
      %v3713 = vld [vmem:[%s3664 + $0x98] sm:$0x1]
      %v3714 = vld [vmem:[%s3664 + $0xa4] sm:$0x1]
      %v3715 = vld [vmem:[%s3664 + $0xb0] sm:$0x1]
      %v3716 = vld [vmem:[%s3664 + $0xbc] sm:$0x1]
      %v3717 = vld [vmem:[%s3664 + $0xc8] sm:$0x1]
      %v3718 = vld [vmem:[%s3664 + $0xd4] sm:$0x1]
      %v3720 = vshrl.u32 %v3665, 16
      %v3722 = vrot.slane %v3720, 4
      %v3723 = vshll.u32 %v3665, 16
      %v3725 = vrot.slane %v3723, 5
      %v3726 = vor.u32 %v3722, %v3725
      %v3727 = vrot.slane %v3726, 4
      %v3729 = vshll.u32 %v3666, 16
      %v3731 = vrot.slane %v3729, 5
      %v3732 = vsel %vm2685, %v3727, %v3731
      %v3733 = vshrl.u32 %v3666, 16
      %v3735 = vrot.slane %v3733, 4
      %v3736 = vor.u32 %v3735, %v3731
      %v3737 = vrot.slane %v3736, 4
      %v3739 = vshll.u32 %v3701, 16
      %v3741 = vrot.slane %v3739, 5
      %v3742 = vsel %vm2685, %v3737, %v3741
      %v3744 = vshrl.u32 %v3667, 16
      %v3746 = vrot.slane %v3744, 4
      %v3747 = vshll.u32 %v3667, 16
      %v3749 = vrot.slane %v3747, 5
      %v3750 = vor.u32 %v3746, %v3749
      %v3751 = vrot.slane %v3750, 4
      %v3753 = vshll.u32 %v3668, 16
      %v3755 = vrot.slane %v3753, 5
      %v3756 = vsel %vm2685, %v3751, %v3755
      %v3757 = vshrl.u32 %v3668, 16
      %v3759 = vrot.slane %v3757, 4
      %v3760 = vor.u32 %v3759, %v3755
      %v3761 = vrot.slane %v3760, 4
      %v3763 = vshll.u32 %v3702, 16
      %v3765 = vrot.slane %v3763, 5
      %v3766 = vsel %vm2685, %v3761, %v3765
      %v3768 = vshrl.u32 %v3669, 16
      %v3770 = vrot.slane %v3768, 4
      %v3771 = vshll.u32 %v3669, 16
      %v3773 = vrot.slane %v3771, 5
      %v3774 = vor.u32 %v3770, %v3773
      %v3775 = vrot.slane %v3774, 4
      %v3777 = vshll.u32 %v3670, 16
      %v3779 = vrot.slane %v3777, 5
      %v3780 = vsel %vm2685, %v3775, %v3779
      %v3781 = vshrl.u32 %v3670, 16
      %v3783 = vrot.slane %v3781, 4
      %v3784 = vor.u32 %v3783, %v3779
      %v3785 = vrot.slane %v3784, 4
      %v3787 = vshll.u32 %v3703, 16
      %v3789 = vrot.slane %v3787, 5
      %v3790 = vsel %vm2685, %v3785, %v3789
      %v3792 = vshrl.u32 %v3671, 16
      %v3794 = vrot.slane %v3792, 4
      %v3795 = vshll.u32 %v3671, 16
      %v3797 = vrot.slane %v3795, 5
      %v3798 = vor.u32 %v3794, %v3797
      %v3799 = vrot.slane %v3798, 4
      %v3801 = vshll.u32 %v3672, 16
      %v3803 = vrot.slane %v3801, 5
      %v3804 = vsel %vm2685, %v3799, %v3803
      %v3805 = vshrl.u32 %v3672, 16
      %v3807 = vrot.slane %v3805, 4
      %v3808 = vor.u32 %v3807, %v3803
      %v3809 = vrot.slane %v3808, 4
      %v3811 = vshll.u32 %v3704, 16
      %v3813 = vrot.slane %v3811, 5
      %v3814 = vsel %vm2685, %v3809, %v3813
      %v3816 = vshrl.u32 %v3673, 16
      %v3818 = vrot.slane %v3816, 4
      %v3819 = vshll.u32 %v3673, 16
      %v3821 = vrot.slane %v3819, 5
      %v3822 = vor.u32 %v3818, %v3821
      %v3823 = vrot.slane %v3822, 4
      %v3825 = vshll.u32 %v3674, 16
      %v3827 = vrot.slane %v3825, 5
      %v3828 = vsel %vm2685, %v3823, %v3827
      %v3829 = vshrl.u32 %v3674, 16
      %v3831 = vrot.slane %v3829, 4
      %v3832 = vor.u32 %v3831, %v3827
      %v3833 = vrot.slane %v3832, 4
      %v3835 = vshll.u32 %v3705, 16
      %v3837 = vrot.slane %v3835, 5
      %v3838 = vsel %vm2685, %v3833, %v3837
      %v3840 = vshrl.u32 %v3675, 16
      %v3842 = vrot.slane %v3840, 4
      %v3843 = vshll.u32 %v3675, 16
      %v3845 = vrot.slane %v3843, 5
      %v3846 = vor.u32 %v3842, %v3845
      %v3847 = vrot.slane %v3846, 4
      %v3849 = vshll.u32 %v3676, 16
      %v3851 = vrot.slane %v3849, 5
      %v3852 = vsel %vm2685, %v3847, %v3851
      %v3853 = vshrl.u32 %v3676, 16
      %v3855 = vrot.slane %v3853, 4
      %v3856 = vor.u32 %v3855, %v3851
      %v3857 = vrot.slane %v3856, 4
      %v3859 = vshll.u32 %v3706, 16
      %v3861 = vrot.slane %v3859, 5
      %v3862 = vsel %vm2685, %v3857, %v3861
      %v3864 = vshrl.u32 %v3677, 16
      %v3866 = vrot.slane %v3864, 4
      %v3867 = vshll.u32 %v3677, 16
      %v3869 = vrot.slane %v3867, 5
      %v3870 = vor.u32 %v3866, %v3869
      %v3871 = vrot.slane %v3870, 4
      %v3873 = vshll.u32 %v3678, 16
      %v3875 = vrot.slane %v3873, 5
      %v3876 = vsel %vm2685, %v3871, %v3875
      %v3877 = vshrl.u32 %v3678, 16
      %v3879 = vrot.slane %v3877, 4
      %v3880 = vor.u32 %v3879, %v3875
      %v3881 = vrot.slane %v3880, 4
      %v3883 = vshll.u32 %v3707, 16
      %v3885 = vrot.slane %v3883, 5
      %v3886 = vsel %vm2685, %v3881, %v3885
      %v3888 = vshrl.u32 %v3679, 16
      %v3890 = vrot.slane %v3888, 4
      %v3891 = vshll.u32 %v3679, 16
      %v3893 = vrot.slane %v3891, 5
      %v3894 = vor.u32 %v3890, %v3893
      %v3895 = vrot.slane %v3894, 4
      %v3897 = vshll.u32 %v3680, 16
      %v3899 = vrot.slane %v3897, 5
      %v3900 = vsel %vm2685, %v3895, %v3899
      %v3901 = vshrl.u32 %v3680, 16
      %v3903 = vrot.slane %v3901, 4
      %v3904 = vor.u32 %v3903, %v3899
      %v3905 = vrot.slane %v3904, 4
      %v3907 = vshll.u32 %v3708, 16
      %v3909 = vrot.slane %v3907, 5
      %v3910 = vsel %vm2685, %v3905, %v3909
      %v3912 = vshrl.u32 %v3681, 16
      %v3914 = vrot.slane %v3912, 4
      %v3915 = vshll.u32 %v3681, 16
      %v3917 = vrot.slane %v3915, 5
      %v3918 = vor.u32 %v3914, %v3917
      %v3919 = vrot.slane %v3918, 4
      %v3921 = vshll.u32 %v3682, 16
      %v3923 = vrot.slane %v3921, 5
      %v3924 = vsel %vm2685, %v3919, %v3923
      %v3925 = vshrl.u32 %v3682, 16
      %v3927 = vrot.slane %v3925, 4
      %v3928 = vor.u32 %v3927, %v3923
      %v3929 = vrot.slane %v3928, 4
      %v3931 = vshll.u32 %v3709, 16
      %v3933 = vrot.slane %v3931, 5
      %v3934 = vsel %vm2685, %v3929, %v3933
      %v3936 = vshrl.u32 %v3683, 16
      %v3938 = vrot.slane %v3936, 4
      %v3939 = vshll.u32 %v3683, 16
      %v3941 = vrot.slane %v3939, 5
      %v3942 = vor.u32 %v3938, %v3941
      %v3943 = vrot.slane %v3942, 4
      %v3945 = vshll.u32 %v3684, 16
      %v3947 = vrot.slane %v3945, 5
      %v3948 = vsel %vm2685, %v3943, %v3947
      %v3949 = vshrl.u32 %v3684, 16
      %v3951 = vrot.slane %v3949, 4
      %v3952 = vor.u32 %v3951, %v3947
      %v3953 = vrot.slane %v3952, 4
      %v3955 = vshll.u32 %v3710, 16
      %v3957 = vrot.slane %v3955, 5
      %v3958 = vsel %vm2685, %v3953, %v3957
      %v3960 = vshrl.u32 %v3685, 16
      %v3962 = vrot.slane %v3960, 4
      %v3963 = vshll.u32 %v3685, 16
      %v3965 = vrot.slane %v3963, 5
      %v3966 = vor.u32 %v3962, %v3965
      %v3967 = vrot.slane %v3966, 4
      %v3969 = vshll.u32 %v3686, 16
      %v3971 = vrot.slane %v3969, 5
      %v3972 = vsel %vm2685, %v3967, %v3971
      %v3973 = vshrl.u32 %v3686, 16
      %v3975 = vrot.slane %v3973, 4
      %v3976 = vor.u32 %v3975, %v3971
      %v3977 = vrot.slane %v3976, 4
      %v3979 = vshll.u32 %v3711, 16
      %v3981 = vrot.slane %v3979, 5
      %v3982 = vsel %vm2685, %v3977, %v3981
      %v3984 = vshrl.u32 %v3687, 16
      %v3986 = vrot.slane %v3984, 4
      %v3987 = vshll.u32 %v3687, 16
      %v3989 = vrot.slane %v3987, 5
      %v3990 = vor.u32 %v3986, %v3989
      %v3991 = vrot.slane %v3990, 4
      %v3993 = vshll.u32 %v3688, 16
      %v3995 = vrot.slane %v3993, 5
      %v3996 = vsel %vm2685, %v3991, %v3995
      %v3997 = vshrl.u32 %v3688, 16
      %v3999 = vrot.slane %v3997, 4
      %v4000 = vor.u32 %v3999, %v3995
      %v4001 = vrot.slane %v4000, 4
      %v4003 = vshll.u32 %v3712, 16
      %v4005 = vrot.slane %v4003, 5
      %v4006 = vsel %vm2685, %v4001, %v4005
      %v4008 = vshrl.u32 %v3689, 16
      %v4010 = vrot.slane %v4008, 4
      %v4011 = vshll.u32 %v3689, 16
      %v4013 = vrot.slane %v4011, 5
      %v4014 = vor.u32 %v4010, %v4013
      %v4015 = vrot.slane %v4014, 4
      %v4017 = vshll.u32 %v3690, 16
      %v4019 = vrot.slane %v4017, 5
      %v4020 = vsel %vm2685, %v4015, %v4019
      %v4021 = vshrl.u32 %v3690, 16
      %v4023 = vrot.slane %v4021, 4
      %v4024 = vor.u32 %v4023, %v4019
      %v4025 = vrot.slane %v4024, 4
      %v4027 = vshll.u32 %v3713, 16
      %v4029 = vrot.slane %v4027, 5
      %v4030 = vsel %vm2685, %v4025, %v4029
      %v4032 = vshrl.u32 %v3691, 16
      %v4034 = vrot.slane %v4032, 4
      %v4035 = vshll.u32 %v3691, 16
      %v4037 = vrot.slane %v4035, 5
      %v4038 = vor.u32 %v4034, %v4037
      %v4039 = vrot.slane %v4038, 4
      %v4041 = vshll.u32 %v3692, 16
      %v4043 = vrot.slane %v4041, 5
      %v4044 = vsel %vm2685, %v4039, %v4043
      %v4045 = vshrl.u32 %v3692, 16
      %v4047 = vrot.slane %v4045, 4
      %v4048 = vor.u32 %v4047, %v4043
      %v4049 = vrot.slane %v4048, 4
      %v4051 = vshll.u32 %v3714, 16
      %v4053 = vrot.slane %v4051, 5
      %v4054 = vsel %vm2685, %v4049, %v4053
      %v4056 = vshrl.u32 %v3693, 16
      %v4058 = vrot.slane %v4056, 4
      %v4059 = vshll.u32 %v3693, 16
      %v4061 = vrot.slane %v4059, 5
      %v4062 = vor.u32 %v4058, %v4061
      %v4063 = vrot.slane %v4062, 4
      %v4065 = vshll.u32 %v3694, 16
      %v4067 = vrot.slane %v4065, 5
      %v4068 = vsel %vm2685, %v4063, %v4067
      %v4069 = vshrl.u32 %v3694, 16
      %v4071 = vrot.slane %v4069, 4
      %v4072 = vor.u32 %v4071, %v4067
      %v4073 = vrot.slane %v4072, 4
      %v4075 = vshll.u32 %v3715, 16
      %v4077 = vrot.slane %v4075, 5
      %v4078 = vsel %vm2685, %v4073, %v4077
      %v4080 = vshrl.u32 %v3695, 16
      %v4082 = vrot.slane %v4080, 4
      %v4083 = vshll.u32 %v3695, 16
      %v4085 = vrot.slane %v4083, 5
      %v4086 = vor.u32 %v4082, %v4085
      %v4087 = vrot.slane %v4086, 4
      %v4089 = vshll.u32 %v3696, 16
      %v4091 = vrot.slane %v4089, 5
      %v4092 = vsel %vm2685, %v4087, %v4091
      %v4093 = vshrl.u32 %v3696, 16
      %v4095 = vrot.slane %v4093, 4
      %v4096 = vor.u32 %v4095, %v4091
      %v4097 = vrot.slane %v4096, 4
      %v4099 = vshll.u32 %v3716, 16
      %v4101 = vrot.slane %v4099, 5
      %v4102 = vsel %vm2685, %v4097, %v4101
      %v4104 = vshrl.u32 %v3697, 16
      %v4106 = vrot.slane %v4104, 4
      %v4107 = vshll.u32 %v3697, 16
      %v4109 = vrot.slane %v4107, 5
      %v4110 = vor.u32 %v4106, %v4109
      %v4111 = vrot.slane %v4110, 4
      %v4113 = vshll.u32 %v3698, 16
      %v4115 = vrot.slane %v4113, 5
      %v4116 = vsel %vm2685, %v4111, %v4115
      %v4117 = vshrl.u32 %v3698, 16
      %v4119 = vrot.slane %v4117, 4
      %v4120 = vor.u32 %v4119, %v4115
      %v4121 = vrot.slane %v4120, 4
      %v4123 = vshll.u32 %v3717, 16
      %v4125 = vrot.slane %v4123, 5
      %v4126 = vsel %vm2685, %v4121, %v4125
      %v4128 = vshrl.u32 %v3699, 16
      %v4130 = vrot.slane %v4128, 4
      %v4131 = vshll.u32 %v3699, 16
      %v4133 = vrot.slane %v4131, 5
      %v4134 = vor.u32 %v4130, %v4133
      %v4135 = vrot.slane %v4134, 4
      %v4137 = vshll.u32 %v3700, 16
      %v4139 = vrot.slane %v4137, 5
      %v4140 = vsel %vm2685, %v4135, %v4139
      %v4141 = vshrl.u32 %v3700, 16
      %v4143 = vrot.slane %v4141, 4
      %v4144 = vor.u32 %v4143, %v4139
      %v4145 = vrot.slane %v4144, 4
      %v4147 = vshll.u32 %v3718, 16
      %v4149 = vrot.slane %v4147, 5
      %v4150 = vsel %vm2685, %v4145, %v4149
      %v4151 = vld [vmem:[%s3664] sm:$0xe]
      %v4152 = vld [vmem:[%s3664 + $0xc] sm:$0xe]
      %v4153 = vld [vmem:[%s3664 + $0x18] sm:$0xe]
      %v4154 = vld [vmem:[%s3664 + $0x24] sm:$0xe]
      %v4155 = vld [vmem:[%s3664 + $0x30] sm:$0xe]
      %v4156 = vld [vmem:[%s3664 + $0x3c] sm:$0xe]
      %v4157 = vld [vmem:[%s3664 + $0x48] sm:$0xe]
      %v4158 = vld [vmem:[%s3664 + $0x54] sm:$0xe]
      %v4159 = vld [vmem:[%s3664 + $0x60] sm:$0xe]
      %v4160 = vld [vmem:[%s3664 + $0x6c] sm:$0xe]
      %v4161 = vld [vmem:[%s3664 + $0x78] sm:$0xe]
      %v4162 = vld [vmem:[%s3664 + $0x84] sm:$0xe]
      %v4163 = vld [vmem:[%s3664 + $0x90] sm:$0xe]
      %v4164 = vld [vmem:[%s3664 + $0x9c] sm:$0xe]
      %v4165 = vld [vmem:[%s3664 + $0xa8] sm:$0xe]
      %v4166 = vld [vmem:[%s3664 + $0xb4] sm:$0xe]
      %v4167 = vld [vmem:[%s3664 + $0xc0] sm:$0xe]
      %v4168 = vld [vmem:[%s3664 + $0xcc] sm:$0xe]
      %v4223 = vrot.slane %v4151, 5
      %v4224 = vrot.slane %v4223, 4
      %v4225 = vrot.slane %v3666, 5
      %v4226 = vsel %vm3192, %v4224, %v4225
      %v4227 = vrot.slane %v4225, 4
      %v4228 = vrot.slane %v3701, 5
      %v4229 = vsel %vm3192, %v4227, %v4228
      %v4230 = vrot.slane %v4152, 5
      %v4231 = vrot.slane %v4230, 4
      %v4232 = vrot.slane %v3668, 5
      %v4233 = vsel %vm3192, %v4231, %v4232
      %v4234 = vrot.slane %v4232, 4
      %v4235 = vrot.slane %v3702, 5
      %v4236 = vsel %vm3192, %v4234, %v4235
      %v4237 = vrot.slane %v4153, 5
      %v4238 = vrot.slane %v4237, 4
      %v4239 = vrot.slane %v3670, 5
      %v4240 = vsel %vm3192, %v4238, %v4239
      %v4241 = vrot.slane %v4239, 4
      %v4242 = vrot.slane %v3703, 5
      %v4243 = vsel %vm3192, %v4241, %v4242
      %v4244 = vrot.slane %v4154, 5
      %v4245 = vrot.slane %v4244, 4
      %v4246 = vrot.slane %v3672, 5
      %v4247 = vsel %vm3192, %v4245, %v4246
      %v4248 = vrot.slane %v4246, 4
      %v4249 = vrot.slane %v3704, 5
      %v4250 = vsel %vm3192, %v4248, %v4249
      %v4251 = vrot.slane %v4155, 5
      %v4252 = vrot.slane %v4251, 4
      %v4253 = vrot.slane %v3674, 5
      %v4254 = vsel %vm3192, %v4252, %v4253
      %v4255 = vrot.slane %v4253, 4
      %v4256 = vrot.slane %v3705, 5
      %v4257 = vsel %vm3192, %v4255, %v4256
      %v4258 = vrot.slane %v4156, 5
      %v4259 = vrot.slane %v4258, 4
      %v4260 = vrot.slane %v3676, 5
      %v4261 = vsel %vm3192, %v4259, %v4260
      %v4262 = vrot.slane %v4260, 4
      %v4263 = vrot.slane %v3706, 5
      %v4264 = vsel %vm3192, %v4262, %v4263
      %v4265 = vrot.slane %v4157, 5
      %v4266 = vrot.slane %v4265, 4
      %v4267 = vrot.slane %v3678, 5
      %v4268 = vsel %vm3192, %v4266, %v4267
      %v4269 = vrot.slane %v4267, 4
      %v4270 = vrot.slane %v3707, 5
      %v4271 = vsel %vm3192, %v4269, %v4270
      %v4272 = vrot.slane %v4158, 5
      %v4273 = vrot.slane %v4272, 4
      %v4274 = vrot.slane %v3680, 5
      %v4275 = vsel %vm3192, %v4273, %v4274
      %v4276 = vrot.slane %v4274, 4
      %v4277 = vrot.slane %v3708, 5
      %v4278 = vsel %vm3192, %v4276, %v4277
      %v4279 = vrot.slane %v4159, 5
      %v4280 = vrot.slane %v4279, 4
      %v4281 = vrot.slane %v3682, 5
      %v4282 = vsel %vm3192, %v4280, %v4281
      %v4283 = vrot.slane %v4281, 4
      %v4284 = vrot.slane %v3709, 5
      %v4285 = vsel %vm3192, %v4283, %v4284
      %v4286 = vrot.slane %v4160, 5
      %v4287 = vrot.slane %v4286, 4
      %v4288 = vrot.slane %v3684, 5
      %v4289 = vsel %vm3192, %v4287, %v4288
      %v4290 = vrot.slane %v4288, 4
      %v4291 = vrot.slane %v3710, 5
      %v4292 = vsel %vm3192, %v4290, %v4291
      %v4293 = vrot.slane %v4161, 5
      %v4294 = vrot.slane %v4293, 4
      %v4295 = vrot.slane %v3686, 5
      %v4296 = vsel %vm3192, %v4294, %v4295
      %v4297 = vrot.slane %v4295, 4
      %v4298 = vrot.slane %v3711, 5
      %v4299 = vsel %vm3192, %v4297, %v4298
      %v4300 = vrot.slane %v4162, 5
      %v4301 = vrot.slane %v4300, 4
      %v4302 = vrot.slane %v3688, 5
      %v4303 = vsel %vm3192, %v4301, %v4302
      %v4304 = vrot.slane %v4302, 4
      %v4305 = vrot.slane %v3712, 5
      %v4306 = vsel %vm3192, %v4304, %v4305
      %v4307 = vrot.slane %v4163, 5
      %v4308 = vrot.slane %v4307, 4
      %v4309 = vrot.slane %v3690, 5
      %v4310 = vsel %vm3192, %v4308, %v4309
      %v4311 = vrot.slane %v4309, 4
      %v4312 = vrot.slane %v3713, 5
      %v4313 = vsel %vm3192, %v4311, %v4312
      %v4314 = vrot.slane %v4164, 5
      %v4315 = vrot.slane %v4314, 4
      %v4316 = vrot.slane %v3692, 5
      %v4317 = vsel %vm3192, %v4315, %v4316
      %v4318 = vrot.slane %v4316, 4
      %v4319 = vrot.slane %v3714, 5
      %v4320 = vsel %vm3192, %v4318, %v4319
      %v4321 = vrot.slane %v4165, 5
      %v4322 = vrot.slane %v4321, 4
      %v4323 = vrot.slane %v3694, 5
      %v4324 = vsel %vm3192, %v4322, %v4323
      %v4325 = vrot.slane %v4323, 4
      %v4326 = vrot.slane %v3715, 5
      %v4327 = vsel %vm3192, %v4325, %v4326
      %v4328 = vrot.slane %v4166, 5
      %v4329 = vrot.slane %v4328, 4
      %v4330 = vrot.slane %v3696, 5
      %v4331 = vsel %vm3192, %v4329, %v4330
      %v4332 = vrot.slane %v4330, 4
      %v4333 = vrot.slane %v3716, 5
      %v4334 = vsel %vm3192, %v4332, %v4333
      %v4335 = vrot.slane %v4167, 5
      %v4336 = vrot.slane %v4335, 4
      %v4337 = vrot.slane %v3698, 5
      %v4338 = vsel %vm3192, %v4336, %v4337
      %v4339 = vrot.slane %v4337, 4
      %v4340 = vrot.slane %v3717, 5
      %v4341 = vsel %vm3192, %v4339, %v4340
      %v4342 = vrot.slane %v4168, 5
      %v4343 = vrot.slane %v4342, 4
      %v4344 = vrot.slane %v3700, 5
      %v4345 = vsel %vm3192, %v4343, %v4344
      %v4346 = vrot.slane %v4344, 4
      %v4347 = vrot.slane %v3718, 5
      %v4348 = vsel %vm3192, %v4346, %v4347
      %v4367 = vunpack.c.l.b16 %v3665
      %v4368 = vunpack.c.l.b16 %v3666
      %v4369 = vunpack.c.l.b16 %v3667
      %v4370 = vunpack.c.l.b16 %v3668
      %v4371 = vunpack.c.l.b16 %v3669
      %v4372 = vunpack.c.l.b16 %v3670
      %v4373 = vunpack.c.l.b16 %v3671
      %v4374 = vunpack.c.l.b16 %v3672
      %v4375 = vunpack.c.l.b16 %v3673
      %v4376 = vunpack.c.l.b16 %v3674
      %v4377 = vunpack.c.l.b16 %v3675
      %v4378 = vunpack.c.l.b16 %v3676
      %v4379 = vunpack.c.l.b16 %v3677
      %v4380 = vunpack.c.l.b16 %v3678
      %v4381 = vunpack.c.l.b16 %v3679
      %v4382 = vunpack.c.l.b16 %v3680
      %v4383 = vunpack.c.l.b16 %v3681
      %v4384 = vunpack.c.l.b16 %v3682
      %v4385 = vunpack.c.l.b16 %v3683
      %v4386 = vunpack.c.l.b16 %v3684
      %v4387 = vunpack.c.l.b16 %v3685
      %v4388 = vunpack.c.l.b16 %v3686
      %v4389 = vunpack.c.l.b16 %v3687
      %v4390 = vunpack.c.l.b16 %v3688
      %v4391 = vunpack.c.l.b16 %v3689
      %v4392 = vunpack.c.l.b16 %v3690
      %v4393 = vunpack.c.l.b16 %v3691
      %v4394 = vunpack.c.l.b16 %v3692
      %v4395 = vunpack.c.l.b16 %v3693
      %v4396 = vunpack.c.l.b16 %v3694
      %v4397 = vunpack.c.l.b16 %v3695
      %v4398 = vunpack.c.l.b16 %v3696
      %v4399 = vunpack.c.l.b16 %v3697
      %v4400 = vunpack.c.l.b16 %v3698
      %v4401 = vunpack.c.l.b16 %v3699
      %v4402 = vunpack.c.l.b16 %v3700
      %v4403 = vpack.c.b16 %v4368, %v4367
      %v4404 = vpack.c.b16 %v4370, %v4369
      %v4405 = vpack.c.b16 %v4372, %v4371
      %v4406 = vpack.c.b16 %v4374, %v4373
      %v4407 = vpack.c.b16 %v4376, %v4375
      %v4408 = vpack.c.b16 %v4378, %v4377
      %v4409 = vpack.c.b16 %v4380, %v4379
      %v4410 = vpack.c.b16 %v4382, %v4381
      %v4411 = vpack.c.b16 %v4384, %v4383
      %v4412 = vpack.c.b16 %v4386, %v4385
      %v4413 = vpack.c.b16 %v4388, %v4387
      %v4414 = vpack.c.b16 %v4390, %v4389
      %v4415 = vpack.c.b16 %v4392, %v4391
      %v4416 = vpack.c.b16 %v4394, %v4393
      %v4417 = vpack.c.b16 %v4396, %v4395
      %v4418 = vpack.c.b16 %v4398, %v4397
      %v4419 = vpack.c.b16 %v4400, %v4399
      %v4420 = vpack.c.b16 %v4402, %v4401
      %v4421 = vunpack.c.l.b16 %v3732
      %v4422 = vunpack.c.l.b16 %v3742
      %v4423 = vunpack.c.l.b16 %v3756
      %v4424 = vunpack.c.l.b16 %v3766
      %v4425 = vunpack.c.l.b16 %v3780
      %v4426 = vunpack.c.l.b16 %v3790
      %v4427 = vunpack.c.l.b16 %v3804
      %v4428 = vunpack.c.l.b16 %v3814
      %v4429 = vunpack.c.l.b16 %v3828
      %v4430 = vunpack.c.l.b16 %v3838
      %v4431 = vunpack.c.l.b16 %v3852
      %v4432 = vunpack.c.l.b16 %v3862
      %v4433 = vunpack.c.l.b16 %v3876
      %v4434 = vunpack.c.l.b16 %v3886
      %v4435 = vunpack.c.l.b16 %v3900
      %v4436 = vunpack.c.l.b16 %v3910
      %v4437 = vunpack.c.l.b16 %v3924
      %v4438 = vunpack.c.l.b16 %v3934
      %v4439 = vunpack.c.l.b16 %v3948
      %v4440 = vunpack.c.l.b16 %v3958
      %v4441 = vunpack.c.l.b16 %v3972
      %v4442 = vunpack.c.l.b16 %v3982
      %v4443 = vunpack.c.l.b16 %v3996
      %v4444 = vunpack.c.l.b16 %v4006
      %v4445 = vunpack.c.l.b16 %v4020
      %v4446 = vunpack.c.l.b16 %v4030
      %v4447 = vunpack.c.l.b16 %v4044
      %v4448 = vunpack.c.l.b16 %v4054
      %v4449 = vunpack.c.l.b16 %v4068
      %v4450 = vunpack.c.l.b16 %v4078
      %v4451 = vunpack.c.l.b16 %v4092
      %v4452 = vunpack.c.l.b16 %v4102
      %v4453 = vunpack.c.l.b16 %v4116
      %v4454 = vunpack.c.l.b16 %v4126
      %v4455 = vunpack.c.l.b16 %v4140
      %v4456 = vunpack.c.l.b16 %v4150
      %v4457 = vpack.c.b16 %v4422, %v4421
      %v4458 = vpack.c.b16 %v4424, %v4423
      %v4459 = vpack.c.b16 %v4426, %v4425
      %v4460 = vpack.c.b16 %v4428, %v4427
      %v4461 = vpack.c.b16 %v4430, %v4429
      %v4462 = vpack.c.b16 %v4432, %v4431
      %v4463 = vpack.c.b16 %v4434, %v4433
      %v4464 = vpack.c.b16 %v4436, %v4435
      %v4465 = vpack.c.b16 %v4438, %v4437
      %v4466 = vpack.c.b16 %v4440, %v4439
      %v4467 = vpack.c.b16 %v4442, %v4441
      %v4468 = vpack.c.b16 %v4444, %v4443
      %v4469 = vpack.c.b16 %v4446, %v4445
      %v4470 = vpack.c.b16 %v4448, %v4447
      %v4471 = vpack.c.b16 %v4450, %v4449
      %v4472 = vpack.c.b16 %v4452, %v4451
      %v4473 = vpack.c.b16 %v4454, %v4453
      %v4474 = vpack.c.b16 %v4456, %v4455
      %4475 = vrot.lane.b32.xlu0 %v4457, 2
      %v4476 = vpop.permute.xlu0 %4475
      %4477 = vrot.lane.b32.xlu0 %v4458, 2
      %v4478 = vpop.permute.xlu0 %4477
      %4479 = vrot.lane.b32.xlu0 %v4459, 2
      %v4480 = vpop.permute.xlu0 %4479
      %4481 = vrot.lane.b32.xlu0 %v4460, 2
      %v4482 = vpop.permute.xlu0 %4481
      %4483 = vrot.lane.b32.xlu0 %v4461, 2
      %v4484 = vpop.permute.xlu0 %4483
      %4485 = vrot.lane.b32.xlu0 %v4462, 2
      %v4486 = vpop.permute.xlu0 %4485
      %4487 = vrot.lane.b32.xlu0 %v4463, 2
      %v4488 = vpop.permute.xlu0 %4487
      %4489 = vrot.lane.b32.xlu0 %v4464, 2
      %v4490 = vpop.permute.xlu0 %4489
      %4491 = vrot.lane.b32.xlu0 %v4465, 2
      %v4492 = vpop.permute.xlu0 %4491
      %4493 = vrot.lane.b32.xlu0 %v4466, 2
      %v4494 = vpop.permute.xlu0 %4493
      %4495 = vrot.lane.b32.xlu0 %v4467, 2
      %v4496 = vpop.permute.xlu0 %4495
      %4497 = vrot.lane.b32.xlu0 %v4468, 2
      %v4498 = vpop.permute.xlu0 %4497
      %4499 = vrot.lane.b32.xlu0 %v4469, 2
      %v4500 = vpop.permute.xlu0 %4499
      %4501 = vrot.lane.b32.xlu0 %v4470, 2
      %v4502 = vpop.permute.xlu0 %4501
      %4503 = vrot.lane.b32.xlu0 %v4471, 2
      %v4504 = vpop.permute.xlu0 %4503
      %4505 = vrot.lane.b32.xlu0 %v4472, 2
      %v4506 = vpop.permute.xlu0 %4505
      %4507 = vrot.lane.b32.xlu0 %v4473, 2
      %v4508 = vpop.permute.xlu0 %4507
      %4509 = vrot.lane.b32.xlu0 %v4474, 2
      %v4510 = vpop.permute.xlu0 %4509
      %v4511 = vunpack.c.l.b16 %v4226
      %v4512 = vunpack.c.l.b16 %v4229
      %v4513 = vunpack.c.l.b16 %v4233
      %v4514 = vunpack.c.l.b16 %v4236
      %v4515 = vunpack.c.l.b16 %v4240
      %v4516 = vunpack.c.l.b16 %v4243
      %v4517 = vunpack.c.l.b16 %v4247
      %v4518 = vunpack.c.l.b16 %v4250
      %v4519 = vunpack.c.l.b16 %v4254
      %v4520 = vunpack.c.l.b16 %v4257
      %v4521 = vunpack.c.l.b16 %v4261
      %v4522 = vunpack.c.l.b16 %v4264
      %v4523 = vunpack.c.l.b16 %v4268
      %v4524 = vunpack.c.l.b16 %v4271
      %v4525 = vunpack.c.l.b16 %v4275
      %v4526 = vunpack.c.l.b16 %v4278
      %v4527 = vunpack.c.l.b16 %v4282
      %v4528 = vunpack.c.l.b16 %v4285
      %v4529 = vunpack.c.l.b16 %v4289
      %v4530 = vunpack.c.l.b16 %v4292
      %v4531 = vunpack.c.l.b16 %v4296
      %v4532 = vunpack.c.l.b16 %v4299
      %v4533 = vunpack.c.l.b16 %v4303
      %v4534 = vunpack.c.l.b16 %v4306
      %v4535 = vunpack.c.l.b16 %v4310
      %v4536 = vunpack.c.l.b16 %v4313
      %v4537 = vunpack.c.l.b16 %v4317
      %v4538 = vunpack.c.l.b16 %v4320
      %v4539 = vunpack.c.l.b16 %v4324
      %v4540 = vunpack.c.l.b16 %v4327
      %v4541 = vunpack.c.l.b16 %v4331
      %v4542 = vunpack.c.l.b16 %v4334
      %v4543 = vunpack.c.l.b16 %v4338
      %v4544 = vunpack.c.l.b16 %v4341
      %v4545 = vunpack.c.l.b16 %v4345
      %v4546 = vunpack.c.l.b16 %v4348
      %v4547 = vpack.c.b16 %v4512, %v4511
      %v4548 = vpack.c.b16 %v4514, %v4513
      %v4549 = vpack.c.b16 %v4516, %v4515
      %v4550 = vpack.c.b16 %v4518, %v4517
      %v4551 = vpack.c.b16 %v4520, %v4519
      %v4552 = vpack.c.b16 %v4522, %v4521
      %v4553 = vpack.c.b16 %v4524, %v4523
      %v4554 = vpack.c.b16 %v4526, %v4525
      %v4555 = vpack.c.b16 %v4528, %v4527
      %v4556 = vpack.c.b16 %v4530, %v4529
      %v4557 = vpack.c.b16 %v4532, %v4531
      %v4558 = vpack.c.b16 %v4534, %v4533
      %v4559 = vpack.c.b16 %v4536, %v4535
      %v4560 = vpack.c.b16 %v4538, %v4537
      %v4561 = vpack.c.b16 %v4540, %v4539
      %v4562 = vpack.c.b16 %v4542, %v4541
      %v4563 = vpack.c.b16 %v4544, %v4543
      %v4564 = vpack.c.b16 %v4546, %v4545
      %4565 = vrot.lane.b32.xlu0 %v4547, 4
      %v4566 = vpop.permute.xlu0 %4565
      %4567 = vrot.lane.b32.xlu0 %v4548, 4
      %v4568 = vpop.permute.xlu0 %4567
      %4569 = vrot.lane.b32.xlu0 %v4549, 4
      %v4570 = vpop.permute.xlu0 %4569
      %4571 = vrot.lane.b32.xlu0 %v4550, 4
      %v4572 = vpop.permute.xlu0 %4571
      %4573 = vrot.lane.b32.xlu0 %v4551, 4
      %v4574 = vpop.permute.xlu0 %4573
      %4575 = vrot.lane.b32.xlu0 %v4552, 4
      %v4576 = vpop.permute.xlu0 %4575
      %4577 = vrot.lane.b32.xlu0 %v4553, 4
      %v4578 = vpop.permute.xlu0 %4577
      %4579 = vrot.lane.b32.xlu0 %v4554, 4
      %v4580 = vpop.permute.xlu0 %4579
      %4581 = vrot.lane.b32.xlu0 %v4555, 4
      %v4582 = vpop.permute.xlu0 %4581
      %4583 = vrot.lane.b32.xlu0 %v4556, 4
      %v4584 = vpop.permute.xlu0 %4583
      %4585 = vrot.lane.b32.xlu0 %v4557, 4
      %v4586 = vpop.permute.xlu0 %4585
      %4587 = vrot.lane.b32.xlu0 %v4558, 4
      %v4588 = vpop.permute.xlu0 %4587
      %4589 = vrot.lane.b32.xlu0 %v4559, 4
      %v4590 = vpop.permute.xlu0 %4589
      %4591 = vrot.lane.b32.xlu0 %v4560, 4
      %v4592 = vpop.permute.xlu0 %4591
      %4593 = vrot.lane.b32.xlu0 %v4561, 4
      %v4594 = vpop.permute.xlu0 %4593
      %4595 = vrot.lane.b32.xlu0 %v4562, 4
      %v4596 = vpop.permute.xlu0 %4595
      %4597 = vrot.lane.b32.xlu0 %v4563, 4
      %v4598 = vpop.permute.xlu0 %4597
      %4599 = vrot.lane.b32.xlu0 %v4564, 4
      %v4600 = vpop.permute.xlu0 %4599
      %v4603 = vsel %vm3571, %v4403, %v4476
      %v4606 = vsel %vm3571, %v4404, %v4478
      %v4609 = vsel %vm3571, %v4405, %v4480
      %v4612 = vsel %vm3571, %v4406, %v4482
      %v4615 = vsel %vm3571, %v4407, %v4484
      %v4618 = vsel %vm3571, %v4408, %v4486
      %v4621 = vsel %vm3571, %v4409, %v4488
      %v4624 = vsel %vm3571, %v4410, %v4490
      %v4627 = vsel %vm3571, %v4411, %v4492
      %v4630 = vsel %vm3571, %v4412, %v4494
      %v4633 = vsel %vm3571, %v4413, %v4496
      %v4636 = vsel %vm3571, %v4414, %v4498
      %v4639 = vsel %vm3571, %v4415, %v4500
      %v4642 = vsel %vm3571, %v4416, %v4502
      %v4645 = vsel %vm3571, %v4417, %v4504
      %v4648 = vsel %vm3571, %v4418, %v4506
      %v4651 = vsel %vm3571, %v4419, %v4508
      %v4654 = vsel %vm3571, %v4420, %v4510
      %v4656 = vsel %vm3626, %v4603, %v4566
      %v4658 = vsel %vm3626, %v4606, %v4568
      %v4660 = vsel %vm3626, %v4609, %v4570
      %v4662 = vsel %vm3626, %v4612, %v4572
      %v4664 = vsel %vm3626, %v4615, %v4574
      %v4666 = vsel %vm3626, %v4618, %v4576
      %v4668 = vsel %vm3626, %v4621, %v4578
      %v4670 = vsel %vm3626, %v4624, %v4580
      %v4672 = vsel %vm3626, %v4627, %v4582
      %v4674 = vsel %vm3626, %v4630, %v4584
      %v4676 = vsel %vm3626, %v4633, %v4586
      %v4678 = vsel %vm3626, %v4636, %v4588
      %v4680 = vsel %vm3626, %v4639, %v4590
      %v4682 = vsel %vm3626, %v4642, %v4592
      %v4684 = vsel %vm3626, %v4645, %v4594
      %v4686 = vsel %vm3626, %v4648, %v4596
      %v4688 = vsel %vm3626, %v4651, %v4598
      %v4690 = vsel %vm3626, %v4654, %v4600
      %s4691 = scalar_lea.vmem %s3, 4
      %v4692 = vld [vmem:[%s4691] sm:$0x7]
      %vm4693 = vcmask 48128
      %v4694 = vsel %vm4693, %v4656, 0
      %v4696 = vsel %vm4693, %v4658, 0
      %v4698 = vsel %vm4693, %v4660, 0
      %v4700 = vsel %vm4693, %v4662, 0
      %v4702 = vsel %vm4693, %v4664, 0
      %v4704 = vsel %vm4693, %v4666, 0
      %v4706 = vsel %vm4693, %v4668, 0
      %v4708 = vsel %vm4693, %v4670, 0
      %v4710 = vsel %vm4693, %v4672, 0
      %v4712 = vsel %vm4693, %v4674, 0
      %v4714 = vsel %vm4693, %v4676, 0
      %v4716 = vsel %vm4693, %v4678, 0
      %v4718 = vsel %vm4693, %v4680, 0
      %v4720 = vsel %vm4693, %v4682, 0
      %v4722 = vsel %vm4693, %v4684, 0
      %v4724 = vsel %vm4693, %v4686, 0
      %v4726 = vsel %vm4693, %v4688, 0
      %v4728 = vsel %vm4693, %v4690, 0
      %vm4730 = vcmask 1042432
      %v4732 = vsel %vm4730, %v4692, 0
      %4734 = vmatprep.subr.bf16.mxu0 0
      %4735 = vmatpush1.bf16.msra.mxu0 %v4732
      %4736 = vmatprep.subr.bf16.mxu0 0
      %4737 = vmatpush1.bf16.msra.mxu0 0
      %4738 = vmatprep.subr.bf16.mxu0 0
      %4739 = vmatpush1.bf16.msra.mxu0 0
      %4740 = vmatprep.subr.bf16.mxu0 0
      %4741 = vmatpush1.bf16.msra.mxu0 0
      %4742 = vmatprep.subr.bf16.mxu0 0
      %4743 = vmatpush1.bf16.msra.mxu0 0
      %4744 = vmatprep.subr.bf16.mxu0 0
      %4745 = vmatpush1.bf16.msra.mxu0 0
      %4746 = vmatprep.subr.bf16.mxu0 0
      %4747 = vmatpush1.bf16.msra.mxu0 0
      %4748 = vmatprep.subr.bf16.mxu0 0
      %4749 = vmatpush1.bf16.msra.mxu0 0
      %4750 = vmatprep.subr.bf16.mxu0 0
      %4751 = vmatpush1.bf16.msra.mxu0 0
      %4752 = vmatprep.subr.bf16.mxu0 0
      %4753 = vmatpush1.bf16.msra.mxu0 0
      %4754 = vmatprep.subr.bf16.mxu0 0
      %4755 = vmatpush1.bf16.msra.mxu0 0
      %4756 = vmatprep.subr.bf16.mxu0 0
      %4757 = vmatpush1.bf16.msra.mxu0 0
      %4758 = vmatprep.subr.bf16.mxu0 0
      %4759 = vmatpush1.bf16.msra.mxu0 0
      %4760 = vmatprep.subr.bf16.mxu0 0
      %4761 = vmatpush1.bf16.msra.mxu0 0
      %4762 = vmatprep.subr.bf16.mxu0 0
      %4763 = vmatpush1.bf16.msra.mxu0 0
      %4764 = vmatprep.subr.bf16.mxu0 0
      %4765 = vmatpush1.bf16.msra.mxu0 0
      %4766 = vmatprep.mubr.bf16.mxu0 0
      %4767 = vmatmul.mubr.bf16.gmra.mrb[0].mxu0 %v4694
      %v4768 = vpop.f32.mrb[0].mxu0
      %v4769 = vadd.f32 0.0, %v4768
      %v4770 = vpop.f32.mrb[0].mxu0
      %v4771 = vpop.f32.mrb[0].mxu0
      %v4772 = vadd.f32 0.0, %v4771
      %v4773 = vpop.f32.mrb[0].mxu0
      %4774 = vmatprep.mubr.bf16.mxu0 0
      %4775 = vmatmul.mubr.bf16.gmra.mrb[0].mxu0 %v4696
      %v4776 = vpop.f32.mrb[0].mxu0
      %v4777 = vadd.f32 0.0, %v4776
      %v4778 = vpop.f32.mrb[0].mxu0
      %v4779 = vpop.f32.mrb[0].mxu0
      %v4780 = vadd.f32 0.0, %v4779
      %v4781 = vpop.f32.mrb[0].mxu0
      %4782 = vmatprep.mubr.bf16.mxu0 0
      %4783 = vmatmul.mubr.bf16.gmra.mrb[0].mxu0 %v4698
      %v4784 = vpop.f32.mrb[0].mxu0
      %v4785 = vadd.f32 0.0, %v4784
      %v4786 = vpop.f32.mrb[0].mxu0
      %v4787 = vpop.f32.mrb[0].mxu0
      %v4788 = vadd.f32 0.0, %v4787
      %v4789 = vpop.f32.mrb[0].mxu0
      %4790 = vmatprep.mubr.bf16.mxu0 0
      %4791 = vmatmul.mubr.bf16.gmra.mrb[0].mxu0 %v4700
      %v4792 = vpop.f32.mrb[0].mxu0
      %v4793 = vadd.f32 0.0, %v4792
      %v4794 = vpop.f32.mrb[0].mxu0
      %v4795 = vpop.f32.mrb[0].mxu0
      %v4796 = vadd.f32 0.0, %v4795
      %v4797 = vpop.f32.mrb[0].mxu0
      %4798 = vmatprep.mubr.bf16.mxu0 0
      %4799 = vmatmul.mubr.bf16.gmra.mrb[0].mxu0 %v4702
      %v4800 = vpop.f32.mrb[0].mxu0
      %v4801 = vadd.f32 0.0, %v4800
      %v4802 = vpop.f32.mrb[0].mxu0
      %v4803 = vpop.f32.mrb[0].mxu0
      %v4804 = vadd.f32 0.0, %v4803
      %v4805 = vpop.f32.mrb[0].mxu0
      %4806 = vmatprep.mubr.bf16.mxu0 0
      %4807 = vmatmul.mubr.bf16.gmra.mrb[0].mxu0 %v4704
      %v4808 = vpop.f32.mrb[0].mxu0
      %v4809 = vadd.f32 0.0, %v4808
      %v4810 = vpop.f32.mrb[0].mxu0
      %v4811 = vpop.f32.mrb[0].mxu0
      %v4812 = vadd.f32 0.0, %v4811
      %v4813 = vpop.f32.mrb[0].mxu0
      %4814 = vmatprep.mubr.bf16.mxu0 0
      %4815 = vmatmul.mubr.bf16.gmra.mrb[0].mxu0 %v4706
      %v4816 = vpop.f32.mrb[0].mxu0
      %v4817 = vadd.f32 0.0, %v4816
      %v4818 = vpop.f32.mrb[0].mxu0
      %v4819 = vpop.f32.mrb[0].mxu0
      %v4820 = vadd.f32 0.0, %v4819
      %v4821 = vpop.f32.mrb[0].mxu0
      %4822 = vmatprep.mubr.bf16.mxu0 0
      %4823 = vmatmul.mubr.bf16.gmra.mrb[0].mxu0 %v4708
      %v4824 = vpop.f32.mrb[0].mxu0
      %v4825 = vadd.f32 0.0, %v4824
      %v4826 = vpop.f32.mrb[0].mxu0
      %v4827 = vpop.f32.mrb[0].mxu0
      %v4828 = vadd.f32 0.0, %v4827
      %v4829 = vpop.f32.mrb[0].mxu0
      %4830 = vmatprep.mubr.bf16.mxu0 0
      %4831 = vmatmul.mubr.bf16.gmra.mrb[0].mxu0 %v4710
      %v4832 = vpop.f32.mrb[0].mxu0
      %v4833 = vadd.f32 0.0, %v4832
      %v4834 = vpop.f32.mrb[0].mxu0
      %v4835 = vpop.f32.mrb[0].mxu0
      %v4836 = vadd.f32 0.0, %v4835
      %v4837 = vpop.f32.mrb[0].mxu0
      %4838 = vmatprep.mubr.bf16.mxu0 0
      %4839 = vmatmul.mubr.bf16.gmra.mrb[0].mxu0 %v4712
      %v4840 = vpop.f32.mrb[0].mxu0
      %v4841 = vadd.f32 0.0, %v4840
      %v4842 = vpop.f32.mrb[0].mxu0
      %v4843 = vpop.f32.mrb[0].mxu0
      %v4844 = vadd.f32 0.0, %v4843
      %v4845 = vpop.f32.mrb[0].mxu0
      %4846 = vmatprep.mubr.bf16.mxu0 0
      %4847 = vmatmul.mubr.bf16.gmra.mrb[0].mxu0 %v4714
      %v4848 = vpop.f32.mrb[0].mxu0
      %v4849 = vadd.f32 0.0, %v4848
      %v4850 = vpop.f32.mrb[0].mxu0
      %v4851 = vpop.f32.mrb[0].mxu0
      %v4852 = vadd.f32 0.0, %v4851
      %v4853 = vpop.f32.mrb[0].mxu0
      %4854 = vmatprep.mubr.bf16.mxu0 0
      %4855 = vmatmul.mubr.bf16.gmra.mrb[0].mxu0 %v4716
      %v4856 = vpop.f32.mrb[0].mxu0
      %v4857 = vadd.f32 0.0, %v4856
      %v4858 = vpop.f32.mrb[0].mxu0
      %v4859 = vpop.f32.mrb[0].mxu0
      %v4860 = vadd.f32 0.0, %v4859
      %v4861 = vpop.f32.mrb[0].mxu0
      %4862 = vmatprep.mubr.bf16.mxu0 0
      %4863 = vmatmul.mubr.bf16.gmra.mrb[0].mxu0 %v4718
      %v4864 = vpop.f32.mrb[0].mxu0
      %v4865 = vadd.f32 0.0, %v4864
      %v4866 = vpop.f32.mrb[0].mxu0
      %v4867 = vpop.f32.mrb[0].mxu0
      %v4868 = vadd.f32 0.0, %v4867
      %v4869 = vpop.f32.mrb[0].mxu0
      %4870 = vmatprep.mubr.bf16.mxu0 0
      %4871 = vmatmul.mubr.bf16.gmra.mrb[0].mxu0 %v4720
      %v4872 = vpop.f32.mrb[0].mxu0
      %v4873 = vadd.f32 0.0, %v4872
      %v4874 = vpop.f32.mrb[0].mxu0
      %v4875 = vpop.f32.mrb[0].mxu0
      %v4876 = vadd.f32 0.0, %v4875
      %v4877 = vpop.f32.mrb[0].mxu0
      %4878 = vmatprep.mubr.bf16.mxu0 0
      %4879 = vmatmul.mubr.bf16.gmra.mrb[0].mxu0 %v4722
      %v4880 = vpop.f32.mrb[0].mxu0
      %v4881 = vadd.f32 0.0, %v4880
      %v4882 = vpop.f32.mrb[0].mxu0
      %v4883 = vpop.f32.mrb[0].mxu0
      %v4884 = vadd.f32 0.0, %v4883
      %v4885 = vpop.f32.mrb[0].mxu0
      %4886 = vmatprep.mubr.bf16.mxu0 0
      %4887 = vmatmul.mubr.bf16.gmra.mrb[0].mxu0 %v4724
      %v4888 = vpop.f32.mrb[0].mxu0
      %v4889 = vadd.f32 0.0, %v4888
      %v4890 = vpop.f32.mrb[0].mxu0
      %v4891 = vpop.f32.mrb[0].mxu0
      %v4892 = vadd.f32 0.0, %v4891
      %v4893 = vpop.f32.mrb[0].mxu0
      %4894 = vmatprep.mubr.bf16.mxu0 0
      %4895 = vmatmul.mubr.bf16.gmra.mrb[0].mxu0 %v4726
      %v4896 = vpop.f32.mrb[0].mxu0
      %v4897 = vadd.f32 0.0, %v4896
      %v4898 = vpop.f32.mrb[0].mxu0
      %v4899 = vpop.f32.mrb[0].mxu0
      %v4900 = vadd.f32 0.0, %v4899
      %v4901 = vpop.f32.mrb[0].mxu0
      %4902 = vmatprep.mubr.bf16.mxu0 0
      %4903 = vmatmul.mubr.bf16.gmra.mrb[0].mxu0 %v4728
      %v4904 = vpop.f32.mrb[0].mxu0
      %v4905 = vadd.f32 0.0, %v4904
      %v4906 = vpop.f32.mrb[0].mxu0
      %v4907 = vpop.f32.mrb[0].mxu0
      %v4908 = vadd.f32 0.0, %v4907
      %v4909 = vpop.f32.mrb[0].mxu0
      %4910 = vdwg.mxu0
      %v4911 = vsel %vm4693, %v3628, 0
      %v4913 = vsel %vm4693, %v3630, 0
      %v4915 = vsel %vm4693, %v3632, 0
      %v4917 = vsel %vm4693, %v3634, 0
      %v4919 = vsel %vm4693, %v3636, 0
      %v4921 = vsel %vm4693, %v3638, 0
      %v4923 = vsel %vm4693, %v3640, 0
      %v4925 = vsel %vm4693, %v3642, 0
      %v4927 = vsel %vm4693, %v3644, 0
      %v4929 = vsel %vm4693, %v3646, 0
      %v4931 = vsel %vm4693, %v3648, 0
      %v4933 = vsel %vm4693, %v3650, 0
      %v4935 = vsel %vm4693, %v3652, 0
      %v4937 = vsel %vm4693, %v3654, 0
      %v4939 = vsel %vm4693, %v3656, 0
      %v4941 = vsel %vm4693, %v3658, 0
      %v4943 = vsel %vm4693, %v3660, 0
      %v4945 = vsel %vm4693, %v3662, 0
      %v4948 = vsel %vm4730, %v3663, 0
      %4950 = vmatprep.subr.bf16.mxu0 0
      %4951 = vmatpush1.bf16.msra.mxu0 %v4948
      %4952 = vmatprep.subr.bf16.mxu0 0
      %4953 = vmatpush1.bf16.msra.mxu0 0
      %4954 = vmatprep.subr.bf16.mxu0 0
      %4955 = vmatpush1.bf16.msra.mxu0 0
      %4956 = vmatprep.subr.bf16.mxu0 0
      %4957 = vmatpush1.bf16.msra.mxu0 0
      %4958 = vmatprep.subr.bf16.mxu0 0
      %4959 = vmatpush1.bf16.msra.mxu0 0
      %4960 = vmatprep.subr.bf16.mxu0 0
      %4961 = vmatpush1.bf16.msra.mxu0 0
      %4962 = vmatprep.subr.bf16.mxu0 0
      %4963 = vmatpush1.bf16.msra.mxu0 0
      %4964 = vmatprep.subr.bf16.mxu0 0
      %4965 = vmatpush1.bf16.msra.mxu0 0
      %4966 = vmatprep.subr.bf16.mxu0 0
      %4967 = vmatpush1.bf16.msra.mxu0 0
      %4968 = vmatprep.subr.bf16.mxu0 0
      %4969 = vmatpush1.bf16.msra.mxu0 0
      %4970 = vmatprep.subr.bf16.mxu0 0
      %4971 = vmatpush1.bf16.msra.mxu0 0
      %4972 = vmatprep.subr.bf16.mxu0 0
      %4973 = vmatpush1.bf16.msra.mxu0 0
      %4974 = vmatprep.subr.bf16.mxu0 0
      %4975 = vmatpush1.bf16.msra.mxu0 0
      %4976 = vmatprep.subr.bf16.mxu0 0
      %4977 = vmatpush1.bf16.msra.mxu0 0
      %4978 = vmatprep.subr.bf16.mxu0 0
      %4979 = vmatpush1.bf16.msra.mxu0 0
      %4980 = vmatprep.subr.bf16.mxu0 0
      %4981 = vmatpush1.bf16.msra.mxu0 0
      %4982 = vmatprep.mubr.bf16.mxu0 0
      %4983 = vmatmul.mubr.bf16.gmra.mrb[0].mxu0 %v4911
      %v4984 = vpop.f32.mrb[0].mxu0
      %v4985 = vadd.f32 %v4769, %v4984
      %v4986 = vpop.f32.mrb[0].mxu0
      %v4987 = vpop.f32.mrb[0].mxu0
      %v4988 = vadd.f32 %v4772, %v4987
      %v4989 = vpop.f32.mrb[0].mxu0
      %4990 = vmatprep.mubr.bf16.mxu0 0
      %4991 = vmatmul.mubr.bf16.gmra.mrb[0].mxu0 %v4913
      %v4992 = vpop.f32.mrb[0].mxu0
      %v4993 = vadd.f32 %v4777, %v4992
      %v4994 = vpop.f32.mrb[0].mxu0
      %v4995 = vpop.f32.mrb[0].mxu0
      %v4996 = vadd.f32 %v4780, %v4995
      %v4997 = vpop.f32.mrb[0].mxu0
      %4998 = vmatprep.mubr.bf16.mxu0 0
      %4999 = vmatmul.mubr.bf16.gmra.mrb[0].mxu0 %v4915
      %v5000 = vpop.f32.mrb[0].mxu0
      %v5001 = vadd.f32 %v4785, %v5000
      %v5002 = vpop.f32.mrb[0].mxu0
      %v5003 = vpop.f32.mrb[0].mxu0
      %v5004 = vadd.f32 %v4788, %v5003
      %v5005 = vpop.f32.mrb[0].mxu0
      %5006 = vmatprep.mubr.bf16.mxu0 0
      %5007 = vmatmul.mubr.bf16.gmra.mrb[0].mxu0 %v4917
      %v5008 = vpop.f32.mrb[0].mxu0
      %v5009 = vadd.f32 %v4793, %v5008
      %v5010 = vpop.f32.mrb[0].mxu0
      %v5011 = vpop.f32.mrb[0].mxu0
      %v5012 = vadd.f32 %v4796, %v5011
      %v5013 = vpop.f32.mrb[0].mxu0
      %5014 = vmatprep.mubr.bf16.mxu0 0
      %5015 = vmatmul.mubr.bf16.gmra.mrb[0].mxu0 %v4919
      %v5016 = vpop.f32.mrb[0].mxu0
      %v5017 = vadd.f32 %v4801, %v5016
      %v5018 = vpop.f32.mrb[0].mxu0
      %v5019 = vpop.f32.mrb[0].mxu0
      %v5020 = vadd.f32 %v4804, %v5019
      %v5021 = vpop.f32.mrb[0].mxu0
      %5022 = vmatprep.mubr.bf16.mxu0 0
      %5023 = vmatmul.mubr.bf16.gmra.mrb[0].mxu0 %v4921
      %v5024 = vpop.f32.mrb[0].mxu0
      %v5025 = vadd.f32 %v4809, %v5024
      %v5026 = vpop.f32.mrb[0].mxu0
      %v5027 = vpop.f32.mrb[0].mxu0
      %v5028 = vadd.f32 %v4812, %v5027
      %v5029 = vpop.f32.mrb[0].mxu0
      %5030 = vmatprep.mubr.bf16.mxu0 0
      %5031 = vmatmul.mubr.bf16.gmra.mrb[0].mxu0 %v4923
      %v5032 = vpop.f32.mrb[0].mxu0
      %v5033 = vadd.f32 %v4817, %v5032
      %v5034 = vpop.f32.mrb[0].mxu0
      %v5035 = vpop.f32.mrb[0].mxu0
      %v5036 = vadd.f32 %v4820, %v5035
      %v5037 = vpop.f32.mrb[0].mxu0
      %5038 = vmatprep.mubr.bf16.mxu0 0
      %5039 = vmatmul.mubr.bf16.gmra.mrb[0].mxu0 %v4925
      %v5040 = vpop.f32.mrb[0].mxu0
      %v5041 = vadd.f32 %v4825, %v5040
      %v5042 = vpop.f32.mrb[0].mxu0
      %v5043 = vpop.f32.mrb[0].mxu0
      %v5044 = vadd.f32 %v4828, %v5043
      %v5045 = vpop.f32.mrb[0].mxu0
      %5046 = vmatprep.mubr.bf16.mxu0 0
      %5047 = vmatmul.mubr.bf16.gmra.mrb[0].mxu0 %v4927
      %v5048 = vpop.f32.mrb[0].mxu0
      %v5049 = vadd.f32 %v4833, %v5048
      %v5050 = vpop.f32.mrb[0].mxu0
      %v5051 = vpop.f32.mrb[0].mxu0
      %v5052 = vadd.f32 %v4836, %v5051
      %v5053 = vpop.f32.mrb[0].mxu0
      %5054 = vmatprep.mubr.bf16.mxu0 0
      %5055 = vmatmul.mubr.bf16.gmra.mrb[0].mxu0 %v4929
      %v5056 = vpop.f32.mrb[0].mxu0
      %v5057 = vadd.f32 %v4841, %v5056
      %v5058 = vpop.f32.mrb[0].mxu0
      %v5059 = vpop.f32.mrb[0].mxu0
      %v5060 = vadd.f32 %v4844, %v5059
      %v5061 = vpop.f32.mrb[0].mxu0
      %5062 = vmatprep.mubr.bf16.mxu0 0
      %5063 = vmatmul.mubr.bf16.gmra.mrb[0].mxu0 %v4931
      %v5064 = vpop.f32.mrb[0].mxu0
      %v5065 = vadd.f32 %v4849, %v5064
      %v5066 = vpop.f32.mrb[0].mxu0
      %v5067 = vpop.f32.mrb[0].mxu0
      %v5068 = vadd.f32 %v4852, %v5067
      %v5069 = vpop.f32.mrb[0].mxu0
      %5070 = vmatprep.mubr.bf16.mxu0 0
      %5071 = vmatmul.mubr.bf16.gmra.mrb[0].mxu0 %v4933
      %v5072 = vpop.f32.mrb[0].mxu0
      %v5073 = vadd.f32 %v4857, %v5072
      %v5074 = vpop.f32.mrb[0].mxu0
      %v5075 = vpop.f32.mrb[0].mxu0
      %v5076 = vadd.f32 %v4860, %v5075
      %v5077 = vpop.f32.mrb[0].mxu0
      %5078 = vmatprep.mubr.bf16.mxu0 0
      %5079 = vmatmul.mubr.bf16.gmra.mrb[0].mxu0 %v4935
      %v5080 = vpop.f32.mrb[0].mxu0
      %v5081 = vadd.f32 %v4865, %v5080
      %v5082 = vpop.f32.mrb[0].mxu0
      %v5083 = vpop.f32.mrb[0].mxu0
      %v5084 = vadd.f32 %v4868, %v5083
      %v5085 = vpop.f32.mrb[0].mxu0
      %5086 = vmatprep.mubr.bf16.mxu0 0
      %5087 = vmatmul.mubr.bf16.gmra.mrb[0].mxu0 %v4937
      %v5088 = vpop.f32.mrb[0].mxu0
      %v5089 = vadd.f32 %v4873, %v5088
      %v5090 = vpop.f32.mrb[0].mxu0
      %v5091 = vpop.f32.mrb[0].mxu0
      %v5092 = vadd.f32 %v4876, %v5091
      %v5093 = vpop.f32.mrb[0].mxu0
      %5094 = vmatprep.mubr.bf16.mxu0 0
      %5095 = vmatmul.mubr.bf16.gmra.mrb[0].mxu0 %v4939
      %v5096 = vpop.f32.mrb[0].mxu0
      %v5097 = vadd.f32 %v4881, %v5096
      %v5098 = vpop.f32.mrb[0].mxu0
      %v5099 = vpop.f32.mrb[0].mxu0
      %v5100 = vadd.f32 %v4884, %v5099
      %v5101 = vpop.f32.mrb[0].mxu0
      %5102 = vmatprep.mubr.bf16.mxu0 0
      %5103 = vmatmul.mubr.bf16.gmra.mrb[0].mxu0 %v4941
      %v5104 = vpop.f32.mrb[0].mxu0
      %v5105 = vadd.f32 %v4889, %v5104
      %v5106 = vpop.f32.mrb[0].mxu0
      %v5107 = vpop.f32.mrb[0].mxu0
      %v5108 = vadd.f32 %v4892, %v5107
      %v5109 = vpop.f32.mrb[0].mxu0
      %5110 = vmatprep.mubr.bf16.mxu0 0
      %5111 = vmatmul.mubr.bf16.gmra.mrb[0].mxu0 %v4943
      %v5112 = vpop.f32.mrb[0].mxu0
      %v5113 = vadd.f32 %v4897, %v5112
      %v5114 = vpop.f32.mrb[0].mxu0
      %v5115 = vpop.f32.mrb[0].mxu0
      %v5116 = vadd.f32 %v4900, %v5115
      %v5117 = vpop.f32.mrb[0].mxu0
      %5118 = vmatprep.mubr.bf16.mxu0 0
      %5119 = vmatmul.mubr.bf16.gmra.mrb[0].mxu0 %v4945
      %v5120 = vpop.f32.mrb[0].mxu0
      %v5121 = vadd.f32 %v4905, %v5120
      %v5122 = vpop.f32.mrb[0].mxu0
      %v5123 = vpop.f32.mrb[0].mxu0
      %v5124 = vadd.f32 %v4908, %v5123
      %v5125 = vpop.f32.mrb[0].mxu0
      %5126 = vdwg.mxu0
      %s5127 = scalar_lea.vmem [#allocation2], 24
      %v5128 = vld [vmem:[%s5127] sm:$0xf]
      %v5129 = vld [vmem:[%s5127 + $0x4] sm:$0xf]
      %v5130 = vld [vmem:[%s5127 + $0xc] sm:$0xf]
      %v5131 = vld [vmem:[%s5127 + $0x10] sm:$0xf]
      %v5132 = vld [vmem:[%s5127 + $0x18] sm:$0xf]
      %v5133 = vld [vmem:[%s5127 + $0x1c] sm:$0xf]
      %v5134 = vld [vmem:[%s5127 + $0x24] sm:$0xf]
      %v5135 = vld [vmem:[%s5127 + $0x28] sm:$0xf]
      %v5136 = vld [vmem:[%s5127 + $0x30] sm:$0xf]
      %v5137 = vld [vmem:[%s5127 + $0x34] sm:$0xf]
      %v5138 = vld [vmem:[%s5127 + $0x3c] sm:$0xf]
      %v5139 = vld [vmem:[%s5127 + $0x40] sm:$0xf]
      %v5140 = vld [vmem:[%s5127 + $0x48] sm:$0xf]
      %v5141 = vld [vmem:[%s5127 + $0x4c] sm:$0xf]
      %v5142 = vld [vmem:[%s5127 + $0x54] sm:$0xf]
      %v5143 = vld [vmem:[%s5127 + $0x58] sm:$0xf]
      %v5144 = vld [vmem:[%s5127 + $0x60] sm:$0xf]
      %v5145 = vld [vmem:[%s5127 + $0x64] sm:$0xf]
      %v5146 = vld [vmem:[%s5127 + $0x6c] sm:$0xf]
      %v5147 = vld [vmem:[%s5127 + $0x70] sm:$0xf]
      %v5148 = vld [vmem:[%s5127 + $0x78] sm:$0xf]
      %v5149 = vld [vmem:[%s5127 + $0x7c] sm:$0xf]
      %v5150 = vld [vmem:[%s5127 + $0x84] sm:$0xf]
      %v5151 = vld [vmem:[%s5127 + $0x88] sm:$0xf]
      %v5152 = vld [vmem:[%s5127 + $0x90] sm:$0xf]
      %v5153 = vld [vmem:[%s5127 + $0x94] sm:$0xf]
      %v5154 = vld [vmem:[%s5127 + $0x9c] sm:$0xf]
      %v5155 = vld [vmem:[%s5127 + $0xa0] sm:$0xf]
      %v5156 = vld [vmem:[%s5127 + $0xa8] sm:$0xf]
      %v5157 = vld [vmem:[%s5127 + $0xac] sm:$0xf]
      %v5158 = vld [vmem:[%s5127 + $0xb4] sm:$0xf]
      %v5159 = vld [vmem:[%s5127 + $0xb8] sm:$0xf]
      %v5160 = vld [vmem:[%s5127 + $0xc0] sm:$0xf]
      %v5161 = vld [vmem:[%s5127 + $0xc4] sm:$0xf]
      %v5162 = vld [vmem:[%s5127 + $0xcc] sm:$0xf]
      %v5163 = vld [vmem:[%s5127 + $0xd0] sm:$0xf]
      %v5164 = vld [vmem:[%s5127 + $0x8] sm:$0x1]
      %v5165 = vld [vmem:[%s5127 + $0x14] sm:$0x1]
      %v5166 = vld [vmem:[%s5127 + $0x20] sm:$0x1]
      %v5167 = vld [vmem:[%s5127 + $0x2c] sm:$0x1]
      %v5168 = vld [vmem:[%s5127 + $0x38] sm:$0x1]
      %v5169 = vld [vmem:[%s5127 + $0x44] sm:$0x1]
      %v5170 = vld [vmem:[%s5127 + $0x50] sm:$0x1]
      %v5171 = vld [vmem:[%s5127 + $0x5c] sm:$0x1]
      %v5172 = vld [vmem:[%s5127 + $0x68] sm:$0x1]
      %v5173 = vld [vmem:[%s5127 + $0x74] sm:$0x1]
      %v5174 = vld [vmem:[%s5127 + $0x80] sm:$0x1]
      %v5175 = vld [vmem:[%s5127 + $0x8c] sm:$0x1]
      %v5176 = vld [vmem:[%s5127 + $0x98] sm:$0x1]
      %v5177 = vld [vmem:[%s5127 + $0xa4] sm:$0x1]
      %v5178 = vld [vmem:[%s5127 + $0xb0] sm:$0x1]
      %v5179 = vld [vmem:[%s5127 + $0xbc] sm:$0x1]
      %v5180 = vld [vmem:[%s5127 + $0xc8] sm:$0x1]
      %v5181 = vld [vmem:[%s5127 + $0xd4] sm:$0x1]
      %v5183 = vshrl.u32 %v5128, 16
      %v5185 = vrot.slane %v5183, 4
      %v5186 = vshll.u32 %v5128, 16
      %v5188 = vrot.slane %v5186, 5
      %v5189 = vor.u32 %v5185, %v5188
      %v5190 = vrot.slane %v5189, 4
      %v5192 = vshll.u32 %v5129, 16
      %v5194 = vrot.slane %v5192, 5
      %v5195 = vsel %vm2685, %v5190, %v5194
      %v5196 = vshrl.u32 %v5129, 16
      %v5198 = vrot.slane %v5196, 4
      %v5199 = vor.u32 %v5198, %v5194
      %v5200 = vrot.slane %v5199, 4
      %v5202 = vshll.u32 %v5164, 16
      %v5204 = vrot.slane %v5202, 5
      %v5205 = vsel %vm2685, %v5200, %v5204
      %v5207 = vshrl.u32 %v5130, 16
      %v5209 = vrot.slane %v5207, 4
      %v5210 = vshll.u32 %v5130, 16
      %v5212 = vrot.slane %v5210, 5
      %v5213 = vor.u32 %v5209, %v5212
      %v5214 = vrot.slane %v5213, 4
      %v5216 = vshll.u32 %v5131, 16
      %v5218 = vrot.slane %v5216, 5
      %v5219 = vsel %vm2685, %v5214, %v5218
      %v5220 = vshrl.u32 %v5131, 16
      %v5222 = vrot.slane %v5220, 4
      %v5223 = vor.u32 %v5222, %v5218
      %v5224 = vrot.slane %v5223, 4
      %v5226 = vshll.u32 %v5165, 16
      %v5228 = vrot.slane %v5226, 5
      %v5229 = vsel %vm2685, %v5224, %v5228
      %v5231 = vshrl.u32 %v5132, 16
      %v5233 = vrot.slane %v5231, 4
      %v5234 = vshll.u32 %v5132, 16
      %v5236 = vrot.slane %v5234, 5
      %v5237 = vor.u32 %v5233, %v5236
      %v5238 = vrot.slane %v5237, 4
      %v5240 = vshll.u32 %v5133, 16
      %v5242 = vrot.slane %v5240, 5
      %v5243 = vsel %vm2685, %v5238, %v5242
      %v5244 = vshrl.u32 %v5133, 16
      %v5246 = vrot.slane %v5244, 4
      %v5247 = vor.u32 %v5246, %v5242
      %v5248 = vrot.slane %v5247, 4
      %v5250 = vshll.u32 %v5166, 16
      %v5252 = vrot.slane %v5250, 5
      %v5253 = vsel %vm2685, %v5248, %v5252
      %v5255 = vshrl.u32 %v5134, 16
      %v5257 = vrot.slane %v5255, 4
      %v5258 = vshll.u32 %v5134, 16
      %v5260 = vrot.slane %v5258, 5
      %v5261 = vor.u32 %v5257, %v5260
      %v5262 = vrot.slane %v5261, 4
      %v5264 = vshll.u32 %v5135, 16
      %v5266 = vrot.slane %v5264, 5
      %v5267 = vsel %vm2685, %v5262, %v5266
      %v5268 = vshrl.u32 %v5135, 16
      %v5270 = vrot.slane %v5268, 4
      %v5271 = vor.u32 %v5270, %v5266
      %v5272 = vrot.slane %v5271, 4
      %v5274 = vshll.u32 %v5167, 16
      %v5276 = vrot.slane %v5274, 5
      %v5277 = vsel %vm2685, %v5272, %v5276
      %v5279 = vshrl.u32 %v5136, 16
      %v5281 = vrot.slane %v5279, 4
      %v5282 = vshll.u32 %v5136, 16
      %v5284 = vrot.slane %v5282, 5
      %v5285 = vor.u32 %v5281, %v5284
      %v5286 = vrot.slane %v5285, 4
      %v5288 = vshll.u32 %v5137, 16
      %v5290 = vrot.slane %v5288, 5
      %v5291 = vsel %vm2685, %v5286, %v5290
      %v5292 = vshrl.u32 %v5137, 16
      %v5294 = vrot.slane %v5292, 4
      %v5295 = vor.u32 %v5294, %v5290
      %v5296 = vrot.slane %v5295, 4
      %v5298 = vshll.u32 %v5168, 16
      %v5300 = vrot.slane %v5298, 5
      %v5301 = vsel %vm2685, %v5296, %v5300
      %v5303 = vshrl.u32 %v5138, 16
      %v5305 = vrot.slane %v5303, 4
      %v5306 = vshll.u32 %v5138, 16
      %v5308 = vrot.slane %v5306, 5
      %v5309 = vor.u32 %v5305, %v5308
      %v5310 = vrot.slane %v5309, 4
      %v5312 = vshll.u32 %v5139, 16
      %v5314 = vrot.slane %v5312, 5
      %v5315 = vsel %vm2685, %v5310, %v5314
      %v5316 = vshrl.u32 %v5139, 16
      %v5318 = vrot.slane %v5316, 4
      %v5319 = vor.u32 %v5318, %v5314
      %v5320 = vrot.slane %v5319, 4
      %v5322 = vshll.u32 %v5169, 16
      %v5324 = vrot.slane %v5322, 5
      %v5325 = vsel %vm2685, %v5320, %v5324
      %v5327 = vshrl.u32 %v5140, 16
      %v5329 = vrot.slane %v5327, 4
      %v5330 = vshll.u32 %v5140, 16
      %v5332 = vrot.slane %v5330, 5
      %v5333 = vor.u32 %v5329, %v5332
      %v5334 = vrot.slane %v5333, 4
      %v5336 = vshll.u32 %v5141, 16
      %v5338 = vrot.slane %v5336, 5
      %v5339 = vsel %vm2685, %v5334, %v5338
      %v5340 = vshrl.u32 %v5141, 16
      %v5342 = vrot.slane %v5340, 4
      %v5343 = vor.u32 %v5342, %v5338
      %v5344 = vrot.slane %v5343, 4
      %v5346 = vshll.u32 %v5170, 16
      %v5348 = vrot.slane %v5346, 5
      %v5349 = vsel %vm2685, %v5344, %v5348
      %v5351 = vshrl.u32 %v5142, 16
      %v5353 = vrot.slane %v5351, 4
      %v5354 = vshll.u32 %v5142, 16
      %v5356 = vrot.slane %v5354, 5
      %v5357 = vor.u32 %v5353, %v5356
      %v5358 = vrot.slane %v5357, 4
      %v5360 = vshll.u32 %v5143, 16
      %v5362 = vrot.slane %v5360, 5
      %v5363 = vsel %vm2685, %v5358, %v5362
      %v5364 = vshrl.u32 %v5143, 16
      %v5366 = vrot.slane %v5364, 4
      %v5367 = vor.u32 %v5366, %v5362
      %v5368 = vrot.slane %v5367, 4
      %v5370 = vshll.u32 %v5171, 16
      %v5372 = vrot.slane %v5370, 5
      %v5373 = vsel %vm2685, %v5368, %v5372
      %v5375 = vshrl.u32 %v5144, 16
      %v5377 = vrot.slane %v5375, 4
      %v5378 = vshll.u32 %v5144, 16
      %v5380 = vrot.slane %v5378, 5
      %v5381 = vor.u32 %v5377, %v5380
      %v5382 = vrot.slane %v5381, 4
      %v5384 = vshll.u32 %v5145, 16
      %v5386 = vrot.slane %v5384, 5
      %v5387 = vsel %vm2685, %v5382, %v5386
      %v5388 = vshrl.u32 %v5145, 16
      %v5390 = vrot.slane %v5388, 4
      %v5391 = vor.u32 %v5390, %v5386
      %v5392 = vrot.slane %v5391, 4
      %v5394 = vshll.u32 %v5172, 16
      %v5396 = vrot.slane %v5394, 5
      %v5397 = vsel %vm2685, %v5392, %v5396
      %v5399 = vshrl.u32 %v5146, 16
      %v5401 = vrot.slane %v5399, 4
      %v5402 = vshll.u32 %v5146, 16
      %v5404 = vrot.slane %v5402, 5
      %v5405 = vor.u32 %v5401, %v5404
      %v5406 = vrot.slane %v5405, 4
      %v5408 = vshll.u32 %v5147, 16
      %v5410 = vrot.slane %v5408, 5
      %v5411 = vsel %vm2685, %v5406, %v5410
      %v5412 = vshrl.u32 %v5147, 16
      %v5414 = vrot.slane %v5412, 4
      %v5415 = vor.u32 %v5414, %v5410
      %v5416 = vrot.slane %v5415, 4
      %v5418 = vshll.u32 %v5173, 16
      %v5420 = vrot.slane %v5418, 5
      %v5421 = vsel %vm2685, %v5416, %v5420
      %v5423 = vshrl.u32 %v5148, 16
      %v5425 = vrot.slane %v5423, 4
      %v5426 = vshll.u32 %v5148, 16
      %v5428 = vrot.slane %v5426, 5
      %v5429 = vor.u32 %v5425, %v5428
      %v5430 = vrot.slane %v5429, 4
      %v5432 = vshll.u32 %v5149, 16
      %v5434 = vrot.slane %v5432, 5
      %v5435 = vsel %vm2685, %v5430, %v5434
      %v5436 = vshrl.u32 %v5149, 16
      %v5438 = vrot.slane %v5436, 4
      %v5439 = vor.u32 %v5438, %v5434
      %v5440 = vrot.slane %v5439, 4
      %v5442 = vshll.u32 %v5174, 16
      %v5444 = vrot.slane %v5442, 5
      %v5445 = vsel %vm2685, %v5440, %v5444
      %v5447 = vshrl.u32 %v5150, 16
      %v5449 = vrot.slane %v5447, 4
      %v5450 = vshll.u32 %v5150, 16
      %v5452 = vrot.slane %v5450, 5
      %v5453 = vor.u32 %v5449, %v5452
      %v5454 = vrot.slane %v5453, 4
      %v5456 = vshll.u32 %v5151, 16
      %v5458 = vrot.slane %v5456, 5
      %v5459 = vsel %vm2685, %v5454, %v5458
      %v5460 = vshrl.u32 %v5151, 16
      %v5462 = vrot.slane %v5460, 4
      %v5463 = vor.u32 %v5462, %v5458
      %v5464 = vrot.slane %v5463, 4
      %v5466 = vshll.u32 %v5175, 16
      %v5468 = vrot.slane %v5466, 5
      %v5469 = vsel %vm2685, %v5464, %v5468
      %v5471 = vshrl.u32 %v5152, 16
      %v5473 = vrot.slane %v5471, 4
      %v5474 = vshll.u32 %v5152, 16
      %v5476 = vrot.slane %v5474, 5
      %v5477 = vor.u32 %v5473, %v5476
      %v5478 = vrot.slane %v5477, 4
      %v5480 = vshll.u32 %v5153, 16
      %v5482 = vrot.slane %v5480, 5
      %v5483 = vsel %vm2685, %v5478, %v5482
      %v5484 = vshrl.u32 %v5153, 16
      %v5486 = vrot.slane %v5484, 4
      %v5487 = vor.u32 %v5486, %v5482
      %v5488 = vrot.slane %v5487, 4
      %v5490 = vshll.u32 %v5176, 16
      %v5492 = vrot.slane %v5490, 5
      %v5493 = vsel %vm2685, %v5488, %v5492
      %v5495 = vshrl.u32 %v5154, 16
      %v5497 = vrot.slane %v5495, 4
      %v5498 = vshll.u32 %v5154, 16
      %v5500 = vrot.slane %v5498, 5
      %v5501 = vor.u32 %v5497, %v5500
      %v5502 = vrot.slane %v5501, 4
      %v5504 = vshll.u32 %v5155, 16
      %v5506 = vrot.slane %v5504, 5
      %v5507 = vsel %vm2685, %v5502, %v5506
      %v5508 = vshrl.u32 %v5155, 16
      %v5510 = vrot.slane %v5508, 4
      %v5511 = vor.u32 %v5510, %v5506
      %v5512 = vrot.slane %v5511, 4
      %v5514 = vshll.u32 %v5177, 16
      %v5516 = vrot.slane %v5514, 5
      %v5517 = vsel %vm2685, %v5512, %v5516
      %v5519 = vshrl.u32 %v5156, 16
      %v5521 = vrot.slane %v5519, 4
      %v5522 = vshll.u32 %v5156, 16
      %v5524 = vrot.slane %v5522, 5
      %v5525 = vor.u32 %v5521, %v5524
      %v5526 = vrot.slane %v5525, 4
      %v5528 = vshll.u32 %v5157, 16
      %v5530 = vrot.slane %v5528, 5
      %v5531 = vsel %vm2685, %v5526, %v5530
      %v5532 = vshrl.u32 %v5157, 16
      %v5534 = vrot.slane %v5532, 4
      %v5535 = vor.u32 %v5534, %v5530
      %v5536 = vrot.slane %v5535, 4
      %v5538 = vshll.u32 %v5178, 16
      %v5540 = vrot.slane %v5538, 5
      %v5541 = vsel %vm2685, %v5536, %v5540
      %v5543 = vshrl.u32 %v5158, 16
      %v5545 = vrot.slane %v5543, 4
      %v5546 = vshll.u32 %v5158, 16
      %v5548 = vrot.slane %v5546, 5
      %v5549 = vor.u32 %v5545, %v5548
      %v5550 = vrot.slane %v5549, 4
      %v5552 = vshll.u32 %v5159, 16
      %v5554 = vrot.slane %v5552, 5
      %v5555 = vsel %vm2685, %v5550, %v5554
      %v5556 = vshrl.u32 %v5159, 16
      %v5558 = vrot.slane %v5556, 4
      %v5559 = vor.u32 %v5558, %v5554
      %v5560 = vrot.slane %v5559, 4
      %v5562 = vshll.u32 %v5179, 16
      %v5564 = vrot.slane %v5562, 5
      %v5565 = vsel %vm2685, %v5560, %v5564
      %v5567 = vshrl.u32 %v5160, 16
      %v5569 = vrot.slane %v5567, 4
      %v5570 = vshll.u32 %v5160, 16
      %v5572 = vrot.slane %v5570, 5
      %v5573 = vor.u32 %v5569, %v5572
      %v5574 = vrot.slane %v5573, 4
      %v5576 = vshll.u32 %v5161, 16
      %v5578 = vrot.slane %v5576, 5
      %v5579 = vsel %vm2685, %v5574, %v5578
      %v5580 = vshrl.u32 %v5161, 16
      %v5582 = vrot.slane %v5580, 4
      %v5583 = vor.u32 %v5582, %v5578
      %v5584 = vrot.slane %v5583, 4
      %v5586 = vshll.u32 %v5180, 16
      %v5588 = vrot.slane %v5586, 5
      %v5589 = vsel %vm2685, %v5584, %v5588
      %v5591 = vshrl.u32 %v5162, 16
      %v5593 = vrot.slane %v5591, 4
      %v5594 = vshll.u32 %v5162, 16
      %v5596 = vrot.slane %v5594, 5
      %v5597 = vor.u32 %v5593, %v5596
      %v5598 = vrot.slane %v5597, 4
      %v5600 = vshll.u32 %v5163, 16
      %v5602 = vrot.slane %v5600, 5
      %v5603 = vsel %vm2685, %v5598, %v5602
      %v5604 = vshrl.u32 %v5163, 16
      %v5606 = vrot.slane %v5604, 4
      %v5607 = vor.u32 %v5606, %v5602
      %v5608 = vrot.slane %v5607, 4
      %v5610 = vshll.u32 %v5181, 16
      %v5612 = vrot.slane %v5610, 5
      %v5613 = vsel %vm2685, %v5608, %v5612
      %v5614 = vld [vmem:[%s5127] sm:$0xe]
      %v5615 = vld [vmem:[%s5127 + $0xc] sm:$0xe]
      %v5616 = vld [vmem:[%s5127 + $0x18] sm:$0xe]
      %v5617 = vld [vmem:[%s5127 + $0x24] sm:$0xe]
      %v5618 = vld [vmem:[%s5127 + $0x30] sm:$0xe]
      %v5619 = vld [vmem:[%s5127 + $0x3c] sm:$0xe]
      %v5620 = vld [vmem:[%s5127 + $0x48] sm:$0xe]
      %v5621 = vld [vmem:[%s5127 + $0x54] sm:$0xe]
      %v5622 = vld [vmem:[%s5127 + $0x60] sm:$0xe]
      %v5623 = vld [vmem:[%s5127 + $0x6c] sm:$0xe]
      %v5624 = vld [vmem:[%s5127 + $0x78] sm:$0xe]
      %v5625 = vld [vmem:[%s5127 + $0x84] sm:$0xe]
      %v5626 = vld [vmem:[%s5127 + $0x90] sm:$0xe]
      %v5627 = vld [vmem:[%s5127 + $0x9c] sm:$0xe]
      %v5628 = vld [vmem:[%s5127 + $0xa8] sm:$0xe]
      %v5629 = vld [vmem:[%s5127 + $0xb4] sm:$0xe]
      %v5630 = vld [vmem:[%s5127 + $0xc0] sm:$0xe]
      %v5631 = vld [vmem:[%s5127 + $0xcc] sm:$0xe]
      %v5686 = vrot.slane %v5614, 5
      %v5687 = vrot.slane %v5686, 4
      %v5688 = vrot.slane %v5129, 5
      %v5689 = vsel %vm3192, %v5687, %v5688
      %v5690 = vrot.slane %v5688, 4
      %v5691 = vrot.slane %v5164, 5
      %v5692 = vsel %vm3192, %v5690, %v5691
      %v5693 = vrot.slane %v5615, 5
      %v5694 = vrot.slane %v5693, 4
      %v5695 = vrot.slane %v5131, 5
      %v5696 = vsel %vm3192, %v5694, %v5695
      %v5697 = vrot.slane %v5695, 4
      %v5698 = vrot.slane %v5165, 5
      %v5699 = vsel %vm3192, %v5697, %v5698
      %v5700 = vrot.slane %v5616, 5
      %v5701 = vrot.slane %v5700, 4
      %v5702 = vrot.slane %v5133, 5
      %v5703 = vsel %vm3192, %v5701, %v5702
      %v5704 = vrot.slane %v5702, 4
      %v5705 = vrot.slane %v5166, 5
      %v5706 = vsel %vm3192, %v5704, %v5705
      %v5707 = vrot.slane %v5617, 5
      %v5708 = vrot.slane %v5707, 4
      %v5709 = vrot.slane %v5135, 5
      %v5710 = vsel %vm3192, %v5708, %v5709
      %v5711 = vrot.slane %v5709, 4
      %v5712 = vrot.slane %v5167, 5
      %v5713 = vsel %vm3192, %v5711, %v5712
      %v5714 = vrot.slane %v5618, 5
      %v5715 = vrot.slane %v5714, 4
      %v5716 = vrot.slane %v5137, 5
      %v5717 = vsel %vm3192, %v5715, %v5716
      %v5718 = vrot.slane %v5716, 4
      %v5719 = vrot.slane %v5168, 5
      %v5720 = vsel %vm3192, %v5718, %v5719
      %v5721 = vrot.slane %v5619, 5
      %v5722 = vrot.slane %v5721, 4
      %v5723 = vrot.slane %v5139, 5
      %v5724 = vsel %vm3192, %v5722, %v5723
      %v5725 = vrot.slane %v5723, 4
      %v5726 = vrot.slane %v5169, 5
      %v5727 = vsel %vm3192, %v5725, %v5726
      %v5728 = vrot.slane %v5620, 5
      %v5729 = vrot.slane %v5728, 4
      %v5730 = vrot.slane %v5141, 5
      %v5731 = vsel %vm3192, %v5729, %v5730
      %v5732 = vrot.slane %v5730, 4
      %v5733 = vrot.slane %v5170, 5
      %v5734 = vsel %vm3192, %v5732, %v5733
      %v5735 = vrot.slane %v5621, 5
      %v5736 = vrot.slane %v5735, 4
      %v5737 = vrot.slane %v5143, 5
      %v5738 = vsel %vm3192, %v5736, %v5737
      %v5739 = vrot.slane %v5737, 4
      %v5740 = vrot.slane %v5171, 5
      %v5741 = vsel %vm3192, %v5739, %v5740
      %v5742 = vrot.slane %v5622, 5
      %v5743 = vrot.slane %v5742, 4
      %v5744 = vrot.slane %v5145, 5
      %v5745 = vsel %vm3192, %v5743, %v5744
      %v5746 = vrot.slane %v5744, 4
      %v5747 = vrot.slane %v5172, 5
      %v5748 = vsel %vm3192, %v5746, %v5747
      %v5749 = vrot.slane %v5623, 5
      %v5750 = vrot.slane %v5749, 4
      %v5751 = vrot.slane %v5147, 5
      %v5752 = vsel %vm3192, %v5750, %v5751
      %v5753 = vrot.slane %v5751, 4
      %v5754 = vrot.slane %v5173, 5
      %v5755 = vsel %vm3192, %v5753, %v5754
      %v5756 = vrot.slane %v5624, 5
      %v5757 = vrot.slane %v5756, 4
      %v5758 = vrot.slane %v5149, 5
      %v5759 = vsel %vm3192, %v5757, %v5758
      %v5760 = vrot.slane %v5758, 4
      %v5761 = vrot.slane %v5174, 5
      %v5762 = vsel %vm3192, %v5760, %v5761
      %v5763 = vrot.slane %v5625, 5
      %v5764 = vrot.slane %v5763, 4
      %v5765 = vrot.slane %v5151, 5
      %v5766 = vsel %vm3192, %v5764, %v5765
      %v5767 = vrot.slane %v5765, 4
      %v5768 = vrot.slane %v5175, 5
      %v5769 = vsel %vm3192, %v5767, %v5768
      %v5770 = vrot.slane %v5626, 5
      %v5771 = vrot.slane %v5770, 4
      %v5772 = vrot.slane %v5153, 5
      %v5773 = vsel %vm3192, %v5771, %v5772
      %v5774 = vrot.slane %v5772, 4
      %v5775 = vrot.slane %v5176, 5
      %v5776 = vsel %vm3192, %v5774, %v5775
      %v5777 = vrot.slane %v5627, 5
      %v5778 = vrot.slane %v5777, 4
      %v5779 = vrot.slane %v5155, 5
      %v5780 = vsel %vm3192, %v5778, %v5779
      %v5781 = vrot.slane %v5779, 4
      %v5782 = vrot.slane %v5177, 5
      %v5783 = vsel %vm3192, %v5781, %v5782
      %v5784 = vrot.slane %v5628, 5
      %v5785 = vrot.slane %v5784, 4
      %v5786 = vrot.slane %v5157, 5
      %v5787 = vsel %vm3192, %v5785, %v5786
      %v5788 = vrot.slane %v5786, 4
      %v5789 = vrot.slane %v5178, 5
      %v5790 = vsel %vm3192, %v5788, %v5789
      %v5791 = vrot.slane %v5629, 5
      %v5792 = vrot.slane %v5791, 4
      %v5793 = vrot.slane %v5159, 5
      %v5794 = vsel %vm3192, %v5792, %v5793
      %v5795 = vrot.slane %v5793, 4
      %v5796 = vrot.slane %v5179, 5
      %v5797 = vsel %vm3192, %v5795, %v5796
      %v5798 = vrot.slane %v5630, 5
      %v5799 = vrot.slane %v5798, 4
      %v5800 = vrot.slane %v5161, 5
      %v5801 = vsel %vm3192, %v5799, %v5800
      %v5802 = vrot.slane %v5800, 4
      %v5803 = vrot.slane %v5180, 5
      %v5804 = vsel %vm3192, %v5802, %v5803
      %v5805 = vrot.slane %v5631, 5
      %v5806 = vrot.slane %v5805, 4
      %v5807 = vrot.slane %v5163, 5
      %v5808 = vsel %vm3192, %v5806, %v5807
      %v5809 = vrot.slane %v5807, 4
      %v5810 = vrot.slane %v5181, 5
      %v5811 = vsel %vm3192, %v5809, %v5810
      %v5830 = vunpack.c.l.b16 %v5128
      %v5831 = vunpack.c.l.b16 %v5129
      %v5832 = vunpack.c.l.b16 %v5130
      %v5833 = vunpack.c.l.b16 %v5131
      %v5834 = vunpack.c.l.b16 %v5132
      %v5835 = vunpack.c.l.b16 %v5133
      %v5836 = vunpack.c.l.b16 %v5134
      %v5837 = vunpack.c.l.b16 %v5135
      %v5838 = vunpack.c.l.b16 %v5136
      %v5839 = vunpack.c.l.b16 %v5137
      %v5840 = vunpack.c.l.b16 %v5138
      %v5841 = vunpack.c.l.b16 %v5139
      %v5842 = vunpack.c.l.b16 %v5140
      %v5843 = vunpack.c.l.b16 %v5141
      %v5844 = vunpack.c.l.b16 %v5142
      %v5845 = vunpack.c.l.b16 %v5143
      %v5846 = vunpack.c.l.b16 %v5144
      %v5847 = vunpack.c.l.b16 %v5145
      %v5848 = vunpack.c.l.b16 %v5146
      %v5849 = vunpack.c.l.b16 %v5147
      %v5850 = vunpack.c.l.b16 %v5148
      %v5851 = vunpack.c.l.b16 %v5149
      %v5852 = vunpack.c.l.b16 %v5150
      %v5853 = vunpack.c.l.b16 %v5151
      %v5854 = vunpack.c.l.b16 %v5152
      %v5855 = vunpack.c.l.b16 %v5153
      %v5856 = vunpack.c.l.b16 %v5154
      %v5857 = vunpack.c.l.b16 %v5155
      %v5858 = vunpack.c.l.b16 %v5156
      %v5859 = vunpack.c.l.b16 %v5157
      %v5860 = vunpack.c.l.b16 %v5158
      %v5861 = vunpack.c.l.b16 %v5159
      %v5862 = vunpack.c.l.b16 %v5160
      %v5863 = vunpack.c.l.b16 %v5161
      %v5864 = vunpack.c.l.b16 %v5162
      %v5865 = vunpack.c.l.b16 %v5163
      %v5866 = vpack.c.b16 %v5831, %v5830
      %v5867 = vpack.c.b16 %v5833, %v5832
      %v5868 = vpack.c.b16 %v5835, %v5834
      %v5869 = vpack.c.b16 %v5837, %v5836
      %v5870 = vpack.c.b16 %v5839, %v5838
      %v5871 = vpack.c.b16 %v5841, %v5840
      %v5872 = vpack.c.b16 %v5843, %v5842
      %v5873 = vpack.c.b16 %v5845, %v5844
      %v5874 = vpack.c.b16 %v5847, %v5846
      %v5875 = vpack.c.b16 %v5849, %v5848
      %v5876 = vpack.c.b16 %v5851, %v5850
      %v5877 = vpack.c.b16 %v5853, %v5852
      %v5878 = vpack.c.b16 %v5855, %v5854
      %v5879 = vpack.c.b16 %v5857, %v5856
      %v5880 = vpack.c.b16 %v5859, %v5858
      %v5881 = vpack.c.b16 %v5861, %v5860
      %v5882 = vpack.c.b16 %v5863, %v5862
      %v5883 = vpack.c.b16 %v5865, %v5864
      %v5884 = vunpack.c.l.b16 %v5195
      %v5885 = vunpack.c.l.b16 %v5205
      %v5886 = vunpack.c.l.b16 %v5219
      %v5887 = vunpack.c.l.b16 %v5229
      %v5888 = vunpack.c.l.b16 %v5243
      %v5889 = vunpack.c.l.b16 %v5253
      %v5890 = vunpack.c.l.b16 %v5267
      %v5891 = vunpack.c.l.b16 %v5277
      %v5892 = vunpack.c.l.b16 %v5291
      %v5893 = vunpack.c.l.b16 %v5301
      %v5894 = vunpack.c.l.b16 %v5315
      %v5895 = vunpack.c.l.b16 %v5325
      %v5896 = vunpack.c.l.b16 %v5339
      %v5897 = vunpack.c.l.b16 %v5349
      %v5898 = vunpack.c.l.b16 %v5363
      %v5899 = vunpack.c.l.b16 %v5373
      %v5900 = vunpack.c.l.b16 %v5387
      %v5901 = vunpack.c.l.b16 %v5397
      %v5902 = vunpack.c.l.b16 %v5411
      %v5903 = vunpack.c.l.b16 %v5421
      %v5904 = vunpack.c.l.b16 %v5435
      %v5905 = vunpack.c.l.b16 %v5445
      %v5906 = vunpack.c.l.b16 %v5459
      %v5907 = vunpack.c.l.b16 %v5469
      %v5908 = vunpack.c.l.b16 %v5483
      %v5909 = vunpack.c.l.b16 %v5493
      %v5910 = vunpack.c.l.b16 %v5507
      %v5911 = vunpack.c.l.b16 %v5517
      %v5912 = vunpack.c.l.b16 %v5531
      %v5913 = vunpack.c.l.b16 %v5541
      %v5914 = vunpack.c.l.b16 %v5555
      %v5915 = vunpack.c.l.b16 %v5565
      %v5916 = vunpack.c.l.b16 %v5579
      %v5917 = vunpack.c.l.b16 %v5589
      %v5918 = vunpack.c.l.b16 %v5603
      %v5919 = vunpack.c.l.b16 %v5613
      %v5920 = vpack.c.b16 %v5885, %v5884
      %v5921 = vpack.c.b16 %v5887, %v5886
      %v5922 = vpack.c.b16 %v5889, %v5888
      %v5923 = vpack.c.b16 %v5891, %v5890
      %v5924 = vpack.c.b16 %v5893, %v5892
      %v5925 = vpack.c.b16 %v5895, %v5894
      %v5926 = vpack.c.b16 %v5897, %v5896
      %v5927 = vpack.c.b16 %v5899, %v5898
      %v5928 = vpack.c.b16 %v5901, %v5900
      %v5929 = vpack.c.b16 %v5903, %v5902
      %v5930 = vpack.c.b16 %v5905, %v5904
      %v5931 = vpack.c.b16 %v5907, %v5906
      %v5932 = vpack.c.b16 %v5909, %v5908
      %v5933 = vpack.c.b16 %v5911, %v5910
      %v5934 = vpack.c.b16 %v5913, %v5912
      %v5935 = vpack.c.b16 %v5915, %v5914
      %v5936 = vpack.c.b16 %v5917, %v5916
      %v5937 = vpack.c.b16 %v5919, %v5918
      %5938 = vrot.lane.b32.xlu0 %v5920, 2
      %v5939 = vpop.permute.xlu0 %5938
      %5940 = vrot.lane.b32.xlu0 %v5921, 2
      %v5941 = vpop.permute.xlu0 %5940
      %5942 = vrot.lane.b32.xlu0 %v5922, 2
      %v5943 = vpop.permute.xlu0 %5942
      %5944 = vrot.lane.b32.xlu0 %v5923, 2
      %v5945 = vpop.permute.xlu0 %5944
      %5946 = vrot.lane.b32.xlu0 %v5924, 2
      %v5947 = vpop.permute.xlu0 %5946
      %5948 = vrot.lane.b32.xlu0 %v5925, 2
      %v5949 = vpop.permute.xlu0 %5948
      %5950 = vrot.lane.b32.xlu0 %v5926, 2
      %v5951 = vpop.permute.xlu0 %5950
      %5952 = vrot.lane.b32.xlu0 %v5927, 2
      %v5953 = vpop.permute.xlu0 %5952
      %5954 = vrot.lane.b32.xlu0 %v5928, 2
      %v5955 = vpop.permute.xlu0 %5954
      %5956 = vrot.lane.b32.xlu0 %v5929, 2
      %v5957 = vpop.permute.xlu0 %5956
      %5958 = vrot.lane.b32.xlu0 %v5930, 2
      %v5959 = vpop.permute.xlu0 %5958
      %5960 = vrot.lane.b32.xlu0 %v5931, 2
      %v5961 = vpop.permute.xlu0 %5960
      %5962 = vrot.lane.b32.xlu0 %v5932, 2
      %v5963 = vpop.permute.xlu0 %5962
      %5964 = vrot.lane.b32.xlu0 %v5933, 2
      %v5965 = vpop.permute.xlu0 %5964
      %5966 = vrot.lane.b32.xlu0 %v5934, 2
      %v5967 = vpop.permute.xlu0 %5966
      %5968 = vrot.lane.b32.xlu0 %v5935, 2
      %v5969 = vpop.permute.xlu0 %5968
      %5970 = vrot.lane.b32.xlu0 %v5936, 2
      %v5971 = vpop.permute.xlu0 %5970
      %5972 = vrot.lane.b32.xlu0 %v5937, 2
      %v5973 = vpop.permute.xlu0 %5972
      %v5974 = vunpack.c.l.b16 %v5689
      %v5975 = vunpack.c.l.b16 %v5692
      %v5976 = vunpack.c.l.b16 %v5696
      %v5977 = vunpack.c.l.b16 %v5699
      %v5978 = vunpack.c.l.b16 %v5703
      %v5979 = vunpack.c.l.b16 %v5706
      %v5980 = vunpack.c.l.b16 %v5710
      %v5981 = vunpack.c.l.b16 %v5713
      %v5982 = vunpack.c.l.b16 %v5717
      %v5983 = vunpack.c.l.b16 %v5720
      %v5984 = vunpack.c.l.b16 %v5724
      %v5985 = vunpack.c.l.b16 %v5727
      %v5986 = vunpack.c.l.b16 %v5731
      %v5987 = vunpack.c.l.b16 %v5734
      %v5988 = vunpack.c.l.b16 %v5738
      %v5989 = vunpack.c.l.b16 %v5741
      %v5990 = vunpack.c.l.b16 %v5745
      %v5991 = vunpack.c.l.b16 %v5748
      %v5992 = vunpack.c.l.b16 %v5752
      %v5993 = vunpack.c.l.b16 %v5755
      %v5994 = vunpack.c.l.b16 %v5759
      %v5995 = vunpack.c.l.b16 %v5762
      %v5996 = vunpack.c.l.b16 %v5766
      %v5997 = vunpack.c.l.b16 %v5769
      %v5998 = vunpack.c.l.b16 %v5773
      %v5999 = vunpack.c.l.b16 %v5776
      %v6000 = vunpack.c.l.b16 %v5780
      %v6001 = vunpack.c.l.b16 %v5783
      %v6002 = vunpack.c.l.b16 %v5787
      %v6003 = vunpack.c.l.b16 %v5790
      %v6004 = vunpack.c.l.b16 %v5794
      %v6005 = vunpack.c.l.b16 %v5797
      %v6006 = vunpack.c.l.b16 %v5801
      %v6007 = vunpack.c.l.b16 %v5804
      %v6008 = vunpack.c.l.b16 %v5808
      %v6009 = vunpack.c.l.b16 %v5811
      %v6010 = vpack.c.b16 %v5975, %v5974
      %v6011 = vpack.c.b16 %v5977, %v5976
      %v6012 = vpack.c.b16 %v5979, %v5978
      %v6013 = vpack.c.b16 %v5981, %v5980
      %v6014 = vpack.c.b16 %v5983, %v5982
      %v6015 = vpack.c.b16 %v5985, %v5984
      %v6016 = vpack.c.b16 %v5987, %v5986
      %v6017 = vpack.c.b16 %v5989, %v5988
      %v6018 = vpack.c.b16 %v5991, %v5990
      %v6019 = vpack.c.b16 %v5993, %v5992
      %v6020 = vpack.c.b16 %v5995, %v5994
      %v6021 = vpack.c.b16 %v5997, %v5996
      %v6022 = vpack.c.b16 %v5999, %v5998
      %v6023 = vpack.c.b16 %v6001, %v6000
      %v6024 = vpack.c.b16 %v6003, %v6002
      %v6025 = vpack.c.b16 %v6005, %v6004
      %v6026 = vpack.c.b16 %v6007, %v6006
      %v6027 = vpack.c.b16 %v6009, %v6008
      %6028 = vrot.lane.b32.xlu0 %v6010, 4
      %v6029 = vpop.permute.xlu0 %6028
      %6030 = vrot.lane.b32.xlu0 %v6011, 4
      %v6031 = vpop.permute.xlu0 %6030
      %6032 = vrot.lane.b32.xlu0 %v6012, 4
      %v6033 = vpop.permute.xlu0 %6032
      %6034 = vrot.lane.b32.xlu0 %v6013, 4
      %v6035 = vpop.permute.xlu0 %6034
      %6036 = vrot.lane.b32.xlu0 %v6014, 4
      %v6037 = vpop.permute.xlu0 %6036
      %6038 = vrot.lane.b32.xlu0 %v6015, 4
      %v6039 = vpop.permute.xlu0 %6038
      %6040 = vrot.lane.b32.xlu0 %v6016, 4
      %v6041 = vpop.permute.xlu0 %6040
      %6042 = vrot.lane.b32.xlu0 %v6017, 4
      %v6043 = vpop.permute.xlu0 %6042
      %6044 = vrot.lane.b32.xlu0 %v6018, 4
      %v6045 = vpop.permute.xlu0 %6044
      %6046 = vrot.lane.b32.xlu0 %v6019, 4
      %v6047 = vpop.permute.xlu0 %6046
      %6048 = vrot.lane.b32.xlu0 %v6020, 4
      %v6049 = vpop.permute.xlu0 %6048
      %6050 = vrot.lane.b32.xlu0 %v6021, 4
      %v6051 = vpop.permute.xlu0 %6050
      %6052 = vrot.lane.b32.xlu0 %v6022, 4
      %v6053 = vpop.permute.xlu0 %6052
      %6054 = vrot.lane.b32.xlu0 %v6023, 4
      %v6055 = vpop.permute.xlu0 %6054
      %6056 = vrot.lane.b32.xlu0 %v6024, 4
      %v6057 = vpop.permute.xlu0 %6056
      %6058 = vrot.lane.b32.xlu0 %v6025, 4
      %v6059 = vpop.permute.xlu0 %6058
      %6060 = vrot.lane.b32.xlu0 %v6026, 4
      %v6061 = vpop.permute.xlu0 %6060
      %6062 = vrot.lane.b32.xlu0 %v6027, 4
      %v6063 = vpop.permute.xlu0 %6062
      %v6066 = vsel %vm3571, %v5866, %v5939
      %v6069 = vsel %vm3571, %v5867, %v5941
      %v6072 = vsel %vm3571, %v5868, %v5943
      %v6075 = vsel %vm3571, %v5869, %v5945
      %v6078 = vsel %vm3571, %v5870, %v5947
      %v6081 = vsel %vm3571, %v5871, %v5949
      %v6084 = vsel %vm3571, %v5872, %v5951
      %v6087 = vsel %vm3571, %v5873, %v5953
      %v6090 = vsel %vm3571, %v5874, %v5955
      %v6093 = vsel %vm3571, %v5875, %v5957
      %v6096 = vsel %vm3571, %v5876, %v5959
      %v6099 = vsel %vm3571, %v5877, %v5961
      %v6102 = vsel %vm3571, %v5878, %v5963
      %v6105 = vsel %vm3571, %v5879, %v5965
      %v6108 = vsel %vm3571, %v5880, %v5967
      %v6111 = vsel %vm3571, %v5881, %v5969
      %v6114 = vsel %vm3571, %v5882, %v5971
      %v6117 = vsel %vm3571, %v5883, %v5973
      %v6119 = vsel %vm3626, %v6066, %v6029
      %v6121 = vsel %vm3626, %v6069, %v6031
      %v6123 = vsel %vm3626, %v6072, %v6033
      %v6125 = vsel %vm3626, %v6075, %v6035
      %v6127 = vsel %vm3626, %v6078, %v6037
      %v6129 = vsel %vm3626, %v6081, %v6039
      %v6131 = vsel %vm3626, %v6084, %v6041
      %v6133 = vsel %vm3626, %v6087, %v6043
      %v6135 = vsel %vm3626, %v6090, %v6045
      %v6137 = vsel %vm3626, %v6093, %v6047
      %v6139 = vsel %vm3626, %v6096, %v6049
      %v6141 = vsel %vm3626, %v6099, %v6051
      %v6143 = vsel %vm3626, %v6102, %v6053
      %v6145 = vsel %vm3626, %v6105, %v6055
      %v6147 = vsel %vm3626, %v6108, %v6057
      %v6149 = vsel %vm3626, %v6111, %v6059
      %v6151 = vsel %vm3626, %v6114, %v6061
      %v6153 = vsel %vm3626, %v6117, %v6063
      %s6154 = scalar_lea.vmem %s3, 8
      %v6155 = vld [vmem:[%s6154] sm:$0x7]
      %v6156 = vsel %vm4693, %v6119, 0
      %v6158 = vsel %vm4693, %v6121, 0
      %v6160 = vsel %vm4693, %v6123, 0
      %v6162 = vsel %vm4693, %v6125, 0
      %v6164 = vsel %vm4693, %v6127, 0
      %v6166 = vsel %vm4693, %v6129, 0
      %v6168 = vsel %vm4693, %v6131, 0
      %v6170 = vsel %vm4693, %v6133, 0
      %v6172 = vsel %vm4693, %v6135, 0
      %v6174 = vsel %vm4693, %v6137, 0
      %v6176 = vsel %vm4693, %v6139, 0
      %v6178 = vsel %vm4693, %v6141, 0
      %v6180 = vsel %vm4693, %v6143, 0
      %v6182 = vsel %vm4693, %v6145, 0
      %v6184 = vsel %vm4693, %v6147, 0
      %v6186 = vsel %vm4693, %v6149, 0
      %v6188 = vsel %vm4693, %v6151, 0
      %v6190 = vsel %vm4693, %v6153, 0
      %v6193 = vsel %vm4730, %v6155, 0
      %6195 = vmatprep.subr.bf16.mxu0 0
      %6196 = vmatpush1.bf16.msra.mxu0 %v6193
      %6197 = vmatprep.subr.bf16.mxu0 0
      %6198 = vmatpush1.bf16.msra.mxu0 0
      %6199 = vmatprep.subr.bf16.mxu0 0
      %6200 = vmatpush1.bf16.msra.mxu0 0
      %6201 = vmatprep.subr.bf16.mxu0 0
      %6202 = vmatpush1.bf16.msra.mxu0 0
      %6203 = vmatprep.subr.bf16.mxu0 0
      %6204 = vmatpush1.bf16.msra.mxu0 0
      %6205 = vmatprep.subr.bf16.mxu0 0
      %6206 = vmatpush1.bf16.msra.mxu0 0
      %6207 = vmatprep.subr.bf16.mxu0 0
      %6208 = vmatpush1.bf16.msra.mxu0 0
      %6209 = vmatprep.subr.bf16.mxu0 0
      %6210 = vmatpush1.bf16.msra.mxu0 0
      %6211 = vmatprep.subr.bf16.mxu0 0
      %6212 = vmatpush1.bf16.msra.mxu0 0
      %6213 = vmatprep.subr.bf16.mxu0 0
      %6214 = vmatpush1.bf16.msra.mxu0 0
      %6215 = vmatprep.subr.bf16.mxu0 0
      %6216 = vmatpush1.bf16.msra.mxu0 0
      %6217 = vmatprep.subr.bf16.mxu0 0
      %6218 = vmatpush1.bf16.msra.mxu0 0
      %6219 = vmatprep.subr.bf16.mxu0 0
      %6220 = vmatpush1.bf16.msra.mxu0 0
      %6221 = vmatprep.subr.bf16.mxu0 0
      %6222 = vmatpush1.bf16.msra.mxu0 0
      %6223 = vmatprep.subr.bf16.mxu0 0
      %6224 = vmatpush1.bf16.msra.mxu0 0
      %6225 = vmatprep.subr.bf16.mxu0 0
      %6226 = vmatpush1.bf16.msra.mxu0 0
      %6227 = vmatprep.mubr.bf16.mxu0 0
      %6228 = vmatmul.mubr.bf16.gmra.mrb[0].mxu0 %v6156
      %v6229 = vpop.f32.mrb[0].mxu0
      %v6230 = vadd.f32 0.0, %v6229
      %v6231 = vpop.f32.mrb[0].mxu0
      %v6232 = vpop.f32.mrb[0].mxu0
      %v6233 = vadd.f32 0.0, %v6232
      %v6234 = vpop.f32.mrb[0].mxu0
      %6235 = vmatprep.mubr.bf16.mxu0 0
      %6236 = vmatmul.mubr.bf16.gmra.mrb[0].mxu0 %v6158
      %v6237 = vpop.f32.mrb[0].mxu0
      %v6238 = vadd.f32 0.0, %v6237
      %v6239 = vpop.f32.mrb[0].mxu0
      %v6240 = vpop.f32.mrb[0].mxu0
      %v6241 = vadd.f32 0.0, %v6240
      %v6242 = vpop.f32.mrb[0].mxu0
      %6243 = vmatprep.mubr.bf16.mxu0 0
      %6244 = vmatmul.mubr.bf16.gmra.mrb[0].mxu0 %v6160
      %v6245 = vpop.f32.mrb[0].mxu0
      %v6246 = vadd.f32 0.0, %v6245
      %v6247 = vpop.f32.mrb[0].mxu0
      %v6248 = vpop.f32.mrb[0].mxu0
      %v6249 = vadd.f32 0.0, %v6248
      %v6250 = vpop.f32.mrb[0].mxu0
      %6251 = vmatprep.mubr.bf16.mxu0 0
      %6252 = vmatmul.mubr.bf16.gmra.mrb[0].mxu0 %v6162
      %v6253 = vpop.f32.mrb[0].mxu0
      %v6254 = vadd.f32 0.0, %v6253
      %v6255 = vpop.f32.mrb[0].mxu0
      %v6256 = vpop.f32.mrb[0].mxu0
      %v6257 = vadd.f32 0.0, %v6256
      %v6258 = vpop.f32.mrb[0].mxu0
      %6259 = vmatprep.mubr.bf16.mxu0 0
      %6260 = vmatmul.mubr.bf16.gmra.mrb[0].mxu0 %v6164
      %v6261 = vpop.f32.mrb[0].mxu0
      %v6262 = vadd.f32 0.0, %v6261
      %v6263 = vpop.f32.mrb[0].mxu0
      %v6264 = vpop.f32.mrb[0].mxu0
      %v6265 = vadd.f32 0.0, %v6264
      %v6266 = vpop.f32.mrb[0].mxu0
      %6267 = vmatprep.mubr.bf16.mxu0 0
      %6268 = vmatmul.mubr.bf16.gmra.mrb[0].mxu0 %v6166
      %v6269 = vpop.f32.mrb[0].mxu0
      %v6270 = vadd.f32 0.0, %v6269
      %v6271 = vpop.f32.mrb[0].mxu0
      %v6272 = vpop.f32.mrb[0].mxu0
      %v6273 = vadd.f32 0.0, %v6272
      %v6274 = vpop.f32.mrb[0].mxu0
      %6275 = vmatprep.mubr.bf16.mxu0 0
      %6276 = vmatmul.mubr.bf16.gmra.mrb[0].mxu0 %v6168
      %v6277 = vpop.f32.mrb[0].mxu0
      %v6278 = vadd.f32 0.0, %v6277
      %v6279 = vpop.f32.mrb[0].mxu0
      %v6280 = vpop.f32.mrb[0].mxu0
      %v6281 = vadd.f32 0.0, %v6280
      %v6282 = vpop.f32.mrb[0].mxu0
      %6283 = vmatprep.mubr.bf16.mxu0 0
      %6284 = vmatmul.mubr.bf16.gmra.mrb[0].mxu0 %v6170
      %v6285 = vpop.f32.mrb[0].mxu0
      %v6286 = vadd.f32 0.0, %v6285
      %v6287 = vpop.f32.mrb[0].mxu0
      %v6288 = vpop.f32.mrb[0].mxu0
      %v6289 = vadd.f32 0.0, %v6288
      %v6290 = vpop.f32.mrb[0].mxu0
      %6291 = vmatprep.mubr.bf16.mxu0 0
      %6292 = vmatmul.mubr.bf16.gmra.mrb[0].mxu0 %v6172
      %v6293 = vpop.f32.mrb[0].mxu0
      %v6294 = vadd.f32 0.0, %v6293
      %v6295 = vpop.f32.mrb[0].mxu0
      %v6296 = vpop.f32.mrb[0].mxu0
      %v6297 = vadd.f32 0.0, %v6296
      %v6298 = vpop.f32.mrb[0].mxu0
      %6299 = vmatprep.mubr.bf16.mxu0 0
      %6300 = vmatmul.mubr.bf16.gmra.mrb[0].mxu0 %v6174
      %v6301 = vpop.f32.mrb[0].mxu0
      %v6302 = vadd.f32 0.0, %v6301
      %v6303 = vpop.f32.mrb[0].mxu0
      %v6304 = vpop.f32.mrb[0].mxu0
      %v6305 = vadd.f32 0.0, %v6304
      %v6306 = vpop.f32.mrb[0].mxu0
      %6307 = vmatprep.mubr.bf16.mxu0 0
      %6308 = vmatmul.mubr.bf16.gmra.mrb[0].mxu0 %v6176
      %v6309 = vpop.f32.mrb[0].mxu0
      %v6310 = vadd.f32 0.0, %v6309
      %v6311 = vpop.f32.mrb[0].mxu0
      %v6312 = vpop.f32.mrb[0].mxu0
      %v6313 = vadd.f32 0.0, %v6312
      %v6314 = vpop.f32.mrb[0].mxu0
      %6315 = vmatprep.mubr.bf16.mxu0 0
      %6316 = vmatmul.mubr.bf16.gmra.mrb[0].mxu0 %v6178
      %v6317 = vpop.f32.mrb[0].mxu0
      %v6318 = vadd.f32 0.0, %v6317
      %v6319 = vpop.f32.mrb[0].mxu0
      %v6320 = vpop.f32.mrb[0].mxu0
      %v6321 = vadd.f32 0.0, %v6320
      %v6322 = vpop.f32.mrb[0].mxu0
      %6323 = vmatprep.mubr.bf16.mxu0 0
      %6324 = vmatmul.mubr.bf16.gmra.mrb[0].mxu0 %v6180
      %v6325 = vpop.f32.mrb[0].mxu0
      %v6326 = vadd.f32 0.0, %v6325
      %v6327 = vpop.f32.mrb[0].mxu0
      %v6328 = vpop.f32.mrb[0].mxu0
      %v6329 = vadd.f32 0.0, %v6328
      %v6330 = vpop.f32.mrb[0].mxu0
      %6331 = vmatprep.mubr.bf16.mxu0 0
      %6332 = vmatmul.mubr.bf16.gmra.mrb[0].mxu0 %v6182
      %v6333 = vpop.f32.mrb[0].mxu0
      %v6334 = vadd.f32 0.0, %v6333
      %v6335 = vpop.f32.mrb[0].mxu0
      %v6336 = vpop.f32.mrb[0].mxu0
      %v6337 = vadd.f32 0.0, %v6336
      %v6338 = vpop.f32.mrb[0].mxu0
      %6339 = vmatprep.mubr.bf16.mxu0 0
      %6340 = vmatmul.mubr.bf16.gmra.mrb[0].mxu0 %v6184
      %v6341 = vpop.f32.mrb[0].mxu0
      %v6342 = vadd.f32 0.0, %v6341
      %v6343 = vpop.f32.mrb[0].mxu0
      %v6344 = vpop.f32.mrb[0].mxu0
      %v6345 = vadd.f32 0.0, %v6344
      %v6346 = vpop.f32.mrb[0].mxu0
      %6347 = vmatprep.mubr.bf16.mxu0 0
      %6348 = vmatmul.mubr.bf16.gmra.mrb[0].mxu0 %v6186
      %v6349 = vpop.f32.mrb[0].mxu0
      %v6350 = vadd.f32 0.0, %v6349
      %v6351 = vpop.f32.mrb[0].mxu0
      %v6352 = vpop.f32.mrb[0].mxu0
      %v6353 = vadd.f32 0.0, %v6352
      %v6354 = vpop.f32.mrb[0].mxu0
      %6355 = vmatprep.mubr.bf16.mxu0 0
      %6356 = vmatmul.mubr.bf16.gmra.mrb[0].mxu0 %v6188
      %v6357 = vpop.f32.mrb[0].mxu0
      %v6358 = vadd.f32 0.0, %v6357
      %v6359 = vpop.f32.mrb[0].mxu0
      %v6360 = vpop.f32.mrb[0].mxu0
      %v6361 = vadd.f32 0.0, %v6360
      %v6362 = vpop.f32.mrb[0].mxu0
      %6363 = vmatprep.mubr.bf16.mxu0 0
      %6364 = vmatmul.mubr.bf16.gmra.mrb[0].mxu0 %v6190
      %v6365 = vpop.f32.mrb[0].mxu0
      %v6366 = vadd.f32 0.0, %v6365
      %v6367 = vpop.f32.mrb[0].mxu0
      %v6368 = vpop.f32.mrb[0].mxu0
      %v6369 = vadd.f32 0.0, %v6368
      %v6370 = vpop.f32.mrb[0].mxu0
      %6371 = vdwg.mxu0
      %v6372 = vadd.f32 %v4985, %v6230
      %v6373 = vadd.f32 %v4988, %v6233
      %v6374 = vadd.f32 %v4993, %v6238
      %v6375 = vadd.f32 %v4996, %v6241
      %v6376 = vadd.f32 %v5001, %v6246
      %v6377 = vadd.f32 %v5004, %v6249
      %v6378 = vadd.f32 %v5009, %v6254
      %v6379 = vadd.f32 %v5012, %v6257
      %v6380 = vadd.f32 %v5017, %v6262
      %v6381 = vadd.f32 %v5020, %v6265
      %v6382 = vadd.f32 %v5025, %v6270
      %v6383 = vadd.f32 %v5028, %v6273
      %v6384 = vadd.f32 %v5033, %v6278
      %v6385 = vadd.f32 %v5036, %v6281
      %v6386 = vadd.f32 %v5041, %v6286
      %v6387 = vadd.f32 %v5044, %v6289
      %v6388 = vadd.f32 %v5049, %v6294
      %v6389 = vadd.f32 %v5052, %v6297
      %v6390 = vadd.f32 %v5057, %v6302
      %v6391 = vadd.f32 %v5060, %v6305
      %v6392 = vadd.f32 %v5065, %v6310
      %v6393 = vadd.f32 %v5068, %v6313
      %v6394 = vadd.f32 %v5073, %v6318
      %v6395 = vadd.f32 %v5076, %v6321
      %v6396 = vadd.f32 %v5081, %v6326
      %v6397 = vadd.f32 %v5084, %v6329
      %v6398 = vadd.f32 %v5089, %v6334
      %v6399 = vadd.f32 %v5092, %v6337
      %v6400 = vadd.f32 %v5097, %v6342
      %v6401 = vadd.f32 %v5100, %v6345
      %v6402 = vadd.f32 %v5105, %v6350
      %v6403 = vadd.f32 %v5108, %v6353
      %v6404 = vadd.f32 %v5113, %v6358
      %v6405 = vadd.f32 %v5116, %v6361
      %v6406 = vadd.f32 %v5121, %v6366
      %v6407 = vadd.f32 %v5124, %v6369
      %v6408 = vld [vmem:[%s4] sm:$0x1]
      %v6410 = vlaneseq
      %v6411 = vshrl.u32 %v6410, 7
      %v6412 = vsub.s32 0, %v6411
      %v6413 = vrot.slane %v6408, %v6412
      %v6415 = vadd.f32 %v6372, %v6413
      %v6416 = vadd.f32 %v6373, %v6413
      %v6417 = vadd.f32 %v6374, %v6413
      %v6418 = vadd.f32 %v6375, %v6413
      %v6419 = vadd.f32 %v6376, %v6413
      %v6420 = vadd.f32 %v6377, %v6413
      %v6421 = vadd.f32 %v6378, %v6413
      %v6422 = vadd.f32 %v6379, %v6413
      %v6423 = vadd.f32 %v6380, %v6413
      %v6424 = vadd.f32 %v6381, %v6413
      %v6425 = vadd.f32 %v6382, %v6413
      %v6426 = vadd.f32 %v6383, %v6413
      %v6427 = vadd.f32 %v6384, %v6413
      %v6428 = vadd.f32 %v6385, %v6413
      %v6429 = vadd.f32 %v6386, %v6413
      %v6430 = vadd.f32 %v6387, %v6413
      %v6431 = vadd.f32 %v6388, %v6413
      %v6432 = vadd.f32 %v6389, %v6413
      %v6433 = vadd.f32 %v6390, %v6413
      %v6434 = vadd.f32 %v6391, %v6413
      %v6435 = vadd.f32 %v6392, %v6413
      %v6436 = vadd.f32 %v6393, %v6413
      %v6437 = vadd.f32 %v6394, %v6413
      %v6438 = vadd.f32 %v6395, %v6413
      %v6439 = vadd.f32 %v6396, %v6413
      %v6440 = vadd.f32 %v6397, %v6413
      %v6441 = vadd.f32 %v6398, %v6413
      %v6442 = vadd.f32 %v6399, %v6413
      %v6443 = vadd.f32 %v6400, %v6413
      %v6444 = vadd.f32 %v6401, %v6413
      %v6445 = vadd.f32 %v6402, %v6413
      %v6446 = vadd.f32 %v6403, %v6413
      %v6447 = vadd.f32 %v6404, %v6413
      %v6448 = vadd.f32 %v6405, %v6413
      %v6449 = vadd.f32 %v6406, %v6413
      %v6450 = vadd.f32 %v6407, %v6413
      %v6451 = vmax.f32 %v6415, 0.0
      %v6452 = vmax.f32 %v6416, 0.0
      %v6453 = vmax.f32 %v6417, 0.0
      %v6454 = vmax.f32 %v6418, 0.0
      %v6455 = vmax.f32 %v6419, 0.0
      %v6456 = vmax.f32 %v6420, 0.0
      %v6457 = vmax.f32 %v6421, 0.0
      %v6458 = vmax.f32 %v6422, 0.0
      %v6459 = vmax.f32 %v6423, 0.0
      %v6460 = vmax.f32 %v6424, 0.0
      %v6461 = vmax.f32 %v6425, 0.0
      %v6462 = vmax.f32 %v6426, 0.0
      %v6463 = vmax.f32 %v6427, 0.0
      %v6464 = vmax.f32 %v6428, 0.0
      %v6465 = vmax.f32 %v6429, 0.0
      %v6466 = vmax.f32 %v6430, 0.0
      %v6467 = vmax.f32 %v6431, 0.0
      %v6468 = vmax.f32 %v6432, 0.0
      %v6469 = vmax.f32 %v6433, 0.0
      %v6470 = vmax.f32 %v6434, 0.0
      %v6471 = vmax.f32 %v6435, 0.0
      %v6472 = vmax.f32 %v6436, 0.0
      %v6473 = vmax.f32 %v6437, 0.0
      %v6474 = vmax.f32 %v6438, 0.0
      %v6475 = vmax.f32 %v6439, 0.0
      %v6476 = vmax.f32 %v6440, 0.0
      %v6477 = vmax.f32 %v6441, 0.0
      %v6478 = vmax.f32 %v6442, 0.0
      %v6479 = vmax.f32 %v6443, 0.0
      %v6480 = vmax.f32 %v6444, 0.0
      %v6481 = vmax.f32 %v6445, 0.0
      %v6482 = vmax.f32 %v6446, 0.0
      %v6483 = vmax.f32 %v6447, 0.0
      %v6484 = vmax.f32 %v6448, 0.0
      %v6485 = vmax.f32 %v6449, 0.0
      %v6486 = vmax.f32 %v6450, 0.0
      %v6523 = vcombine.high %v6451, %v6451
      %v6525 = vunpack.c.l.s4 1983009808
      %v6526 = vunpack.c.0.s8 %v6525
      %v6527 = vlaneseq
      %v6528 = vshrl.u32 %v6527, 7
      %v6529 = vsub.s32 %v6526, %v6528
      %v6530 = vrot.slane %v6451, %v6529
      %v6532 = vunpack.c.l.s4 1983009808
      %v6533 = vunpack.c.0.s8 %v6532
      %v6534 = vlaneseq
      %v6535 = vshrl.u32 %v6534, 7
      %v6536 = vsub.s32 %v6533, %v6535
      %v6537 = vrot.slane %v6523, %v6536
      %v6538 = vcombine.high %v6530, %v6530
      %v6539 = vcombine.high %v6537, %v6537
      %v6540 = vcombine.high %v6452, %v6452
      %v6542 = vunpack.c.l.s4 1983009808
      %v6543 = vunpack.c.0.s8 %v6542
      %v6544 = vlaneseq
      %v6545 = vshrl.u32 %v6544, 7
      %v6546 = vsub.s32 %v6543, %v6545
      %v6547 = vrot.slane %v6452, %v6546
      %v6549 = vunpack.c.l.s4 1983009808
      %v6550 = vunpack.c.0.s8 %v6549
      %v6551 = vlaneseq
      %v6552 = vshrl.u32 %v6551, 7
      %v6553 = vsub.s32 %v6550, %v6552
      %v6554 = vrot.slane %v6540, %v6553
      %v6555 = vcombine.high %v6547, %v6547
      %v6556 = vcombine.high %v6554, %v6554
      %v6557 = vcombine.high %v6453, %v6453
      %v6559 = vunpack.c.l.s4 1983009808
      %v6560 = vunpack.c.0.s8 %v6559
      %v6561 = vlaneseq
      %v6562 = vshrl.u32 %v6561, 7
      %v6563 = vsub.s32 %v6560, %v6562
      %v6564 = vrot.slane %v6453, %v6563
      %v6566 = vunpack.c.l.s4 1983009808
      %v6567 = vunpack.c.0.s8 %v6566
      %v6568 = vlaneseq
      %v6569 = vshrl.u32 %v6568, 7
      %v6570 = vsub.s32 %v6567, %v6569
      %v6571 = vrot.slane %v6557, %v6570
      %v6572 = vcombine.high %v6564, %v6564
      %v6573 = vcombine.high %v6571, %v6571
      %v6574 = vcombine.high %v6454, %v6454
      %v6576 = vunpack.c.l.s4 1983009808
      %v6577 = vunpack.c.0.s8 %v6576
      %v6578 = vlaneseq
      %v6579 = vshrl.u32 %v6578, 7
      %v6580 = vsub.s32 %v6577, %v6579
      %v6581 = vrot.slane %v6454, %v6580
      %v6583 = vunpack.c.l.s4 1983009808
      %v6584 = vunpack.c.0.s8 %v6583
      %v6585 = vlaneseq
      %v6586 = vshrl.u32 %v6585, 7
      %v6587 = vsub.s32 %v6584, %v6586
      %v6588 = vrot.slane %v6574, %v6587
      %v6589 = vcombine.high %v6581, %v6581
      %v6590 = vcombine.high %v6588, %v6588
      %v6591 = vcombine.high %v6455, %v6455
      %v6593 = vunpack.c.l.s4 1983009808
      %v6594 = vunpack.c.0.s8 %v6593
      %v6595 = vlaneseq
      %v6596 = vshrl.u32 %v6595, 7
      %v6597 = vsub.s32 %v6594, %v6596
      %v6598 = vrot.slane %v6455, %v6597
      %v6600 = vunpack.c.l.s4 1983009808
      %v6601 = vunpack.c.0.s8 %v6600
      %v6602 = vlaneseq
      %v6603 = vshrl.u32 %v6602, 7
      %v6604 = vsub.s32 %v6601, %v6603
      %v6605 = vrot.slane %v6591, %v6604
      %v6606 = vcombine.high %v6598, %v6598
      %v6607 = vcombine.high %v6605, %v6605
      %v6608 = vcombine.high %v6456, %v6456
      %v6610 = vunpack.c.l.s4 1983009808
      %v6611 = vunpack.c.0.s8 %v6610
      %v6612 = vlaneseq
      %v6613 = vshrl.u32 %v6612, 7
      %v6614 = vsub.s32 %v6611, %v6613
      %v6615 = vrot.slane %v6456, %v6614
      %v6617 = vunpack.c.l.s4 1983009808
      %v6618 = vunpack.c.0.s8 %v6617
      %v6619 = vlaneseq
      %v6620 = vshrl.u32 %v6619, 7
      %v6621 = vsub.s32 %v6618, %v6620
      %v6622 = vrot.slane %v6608, %v6621
      %v6623 = vcombine.high %v6615, %v6615
      %v6624 = vcombine.high %v6622, %v6622
      %v6625 = vcombine.high %v6457, %v6457
      %v6627 = vunpack.c.l.s4 1983009808
      %v6628 = vunpack.c.0.s8 %v6627
      %v6629 = vlaneseq
      %v6630 = vshrl.u32 %v6629, 7
      %v6631 = vsub.s32 %v6628, %v6630
      %v6632 = vrot.slane %v6457, %v6631
      %v6634 = vunpack.c.l.s4 1983009808
      %v6635 = vunpack.c.0.s8 %v6634
      %v6636 = vlaneseq
      %v6637 = vshrl.u32 %v6636, 7
      %v6638 = vsub.s32 %v6635, %v6637
      %v6639 = vrot.slane %v6625, %v6638
      %v6640 = vcombine.high %v6632, %v6632
      %v6641 = vcombine.high %v6639, %v6639
      %v6642 = vcombine.high %v6458, %v6458
      %v6644 = vunpack.c.l.s4 1983009808
      %v6645 = vunpack.c.0.s8 %v6644
      %v6646 = vlaneseq
      %v6647 = vshrl.u32 %v6646, 7
      %v6648 = vsub.s32 %v6645, %v6647
      %v6649 = vrot.slane %v6458, %v6648
      %v6651 = vunpack.c.l.s4 1983009808
      %v6652 = vunpack.c.0.s8 %v6651
      %v6653 = vlaneseq
      %v6654 = vshrl.u32 %v6653, 7
      %v6655 = vsub.s32 %v6652, %v6654
      %v6656 = vrot.slane %v6642, %v6655
      %v6657 = vcombine.high %v6649, %v6649
      %v6658 = vcombine.high %v6656, %v6656
      %v6659 = vcombine.high %v6459, %v6459
      %v6661 = vunpack.c.l.s4 1983009808
      %v6662 = vunpack.c.0.s8 %v6661
      %v6663 = vlaneseq
      %v6664 = vshrl.u32 %v6663, 7
      %v6665 = vsub.s32 %v6662, %v6664
      %v6666 = vrot.slane %v6459, %v6665
      %v6668 = vunpack.c.l.s4 1983009808
      %v6669 = vunpack.c.0.s8 %v6668
      %v6670 = vlaneseq
      %v6671 = vshrl.u32 %v6670, 7
      %v6672 = vsub.s32 %v6669, %v6671
      %v6673 = vrot.slane %v6659, %v6672
      %v6674 = vcombine.high %v6666, %v6666
      %v6675 = vcombine.high %v6673, %v6673
      %v6676 = vcombine.high %v6460, %v6460
      %v6678 = vunpack.c.l.s4 1983009808
      %v6679 = vunpack.c.0.s8 %v6678
      %v6680 = vlaneseq
      %v6681 = vshrl.u32 %v6680, 7
      %v6682 = vsub.s32 %v6679, %v6681
      %v6683 = vrot.slane %v6460, %v6682
      %v6685 = vunpack.c.l.s4 1983009808
      %v6686 = vunpack.c.0.s8 %v6685
      %v6687 = vlaneseq
      %v6688 = vshrl.u32 %v6687, 7
      %v6689 = vsub.s32 %v6686, %v6688
      %v6690 = vrot.slane %v6676, %v6689
      %v6691 = vcombine.high %v6683, %v6683
      %v6692 = vcombine.high %v6690, %v6690
      %v6693 = vcombine.high %v6461, %v6461
      %v6695 = vunpack.c.l.s4 1983009808
      %v6696 = vunpack.c.0.s8 %v6695
      %v6697 = vlaneseq
      %v6698 = vshrl.u32 %v6697, 7
      %v6699 = vsub.s32 %v6696, %v6698
      %v6700 = vrot.slane %v6461, %v6699
      %v6702 = vunpack.c.l.s4 1983009808
      %v6703 = vunpack.c.0.s8 %v6702
      %v6704 = vlaneseq
      %v6705 = vshrl.u32 %v6704, 7
      %v6706 = vsub.s32 %v6703, %v6705
      %v6707 = vrot.slane %v6693, %v6706
      %v6708 = vcombine.high %v6700, %v6700
      %v6709 = vcombine.high %v6707, %v6707
      %v6710 = vcombine.high %v6462, %v6462
      %v6712 = vunpack.c.l.s4 1983009808
      %v6713 = vunpack.c.0.s8 %v6712
      %v6714 = vlaneseq
      %v6715 = vshrl.u32 %v6714, 7
      %v6716 = vsub.s32 %v6713, %v6715
      %v6717 = vrot.slane %v6462, %v6716
      %v6719 = vunpack.c.l.s4 1983009808
      %v6720 = vunpack.c.0.s8 %v6719
      %v6721 = vlaneseq
      %v6722 = vshrl.u32 %v6721, 7
      %v6723 = vsub.s32 %v6720, %v6722
      %v6724 = vrot.slane %v6710, %v6723
      %v6725 = vcombine.high %v6717, %v6717
      %v6726 = vcombine.high %v6724, %v6724
      %v6727 = vcombine.high %v6463, %v6463
      %v6729 = vunpack.c.l.s4 1983009808
      %v6730 = vunpack.c.0.s8 %v6729
      %v6731 = vlaneseq
      %v6732 = vshrl.u32 %v6731, 7
      %v6733 = vsub.s32 %v6730, %v6732
      %v6734 = vrot.slane %v6463, %v6733
      %v6736 = vunpack.c.l.s4 1983009808
      %v6737 = vunpack.c.0.s8 %v6736
      %v6738 = vlaneseq
      %v6739 = vshrl.u32 %v6738, 7
      %v6740 = vsub.s32 %v6737, %v6739
      %v6741 = vrot.slane %v6727, %v6740
      %v6742 = vcombine.high %v6734, %v6734
      %v6743 = vcombine.high %v6741, %v6741
      %v6744 = vcombine.high %v6464, %v6464
      %v6746 = vunpack.c.l.s4 1983009808
      %v6747 = vunpack.c.0.s8 %v6746
      %v6748 = vlaneseq
      %v6749 = vshrl.u32 %v6748, 7
      %v6750 = vsub.s32 %v6747, %v6749
      %v6751 = vrot.slane %v6464, %v6750
      %v6753 = vunpack.c.l.s4 1983009808
      %v6754 = vunpack.c.0.s8 %v6753
      %v6755 = vlaneseq
      %v6756 = vshrl.u32 %v6755, 7
      %v6757 = vsub.s32 %v6754, %v6756
      %v6758 = vrot.slane %v6744, %v6757
      %v6759 = vcombine.high %v6751, %v6751
      %v6760 = vcombine.high %v6758, %v6758
      %v6761 = vcombine.high %v6465, %v6465
      %v6763 = vunpack.c.l.s4 1983009808
      %v6764 = vunpack.c.0.s8 %v6763
      %v6765 = vlaneseq
      %v6766 = vshrl.u32 %v6765, 7
      %v6767 = vsub.s32 %v6764, %v6766
      %v6768 = vrot.slane %v6465, %v6767
      %v6770 = vunpack.c.l.s4 1983009808
      %v6771 = vunpack.c.0.s8 %v6770
      %v6772 = vlaneseq
      %v6773 = vshrl.u32 %v6772, 7
      %v6774 = vsub.s32 %v6771, %v6773
      %v6775 = vrot.slane %v6761, %v6774
      %v6776 = vcombine.high %v6768, %v6768
      %v6777 = vcombine.high %v6775, %v6775
      %v6778 = vcombine.high %v6466, %v6466
      %v6780 = vunpack.c.l.s4 1983009808
      %v6781 = vunpack.c.0.s8 %v6780
      %v6782 = vlaneseq
      %v6783 = vshrl.u32 %v6782, 7
      %v6784 = vsub.s32 %v6781, %v6783
      %v6785 = vrot.slane %v6466, %v6784
      %v6787 = vunpack.c.l.s4 1983009808
      %v6788 = vunpack.c.0.s8 %v6787
      %v6789 = vlaneseq
      %v6790 = vshrl.u32 %v6789, 7
      %v6791 = vsub.s32 %v6788, %v6790
      %v6792 = vrot.slane %v6778, %v6791
      %v6793 = vcombine.high %v6785, %v6785
      %v6794 = vcombine.high %v6792, %v6792
      %v6795 = vcombine.high %v6467, %v6467
      %v6797 = vunpack.c.l.s4 1983009808
      %v6798 = vunpack.c.0.s8 %v6797
      %v6799 = vlaneseq
      %v6800 = vshrl.u32 %v6799, 7
      %v6801 = vsub.s32 %v6798, %v6800
      %v6802 = vrot.slane %v6467, %v6801
      %v6804 = vunpack.c.l.s4 1983009808
      %v6805 = vunpack.c.0.s8 %v6804
      %v6806 = vlaneseq
      %v6807 = vshrl.u32 %v6806, 7
      %v6808 = vsub.s32 %v6805, %v6807
      %v6809 = vrot.slane %v6795, %v6808
      %v6810 = vcombine.high %v6802, %v6802
      %v6811 = vcombine.high %v6809, %v6809
      %v6812 = vcombine.high %v6468, %v6468
      %v6814 = vunpack.c.l.s4 1983009808
      %v6815 = vunpack.c.0.s8 %v6814
      %v6816 = vlaneseq
      %v6817 = vshrl.u32 %v6816, 7
      %v6818 = vsub.s32 %v6815, %v6817
      %v6819 = vrot.slane %v6468, %v6818
      %v6821 = vunpack.c.l.s4 1983009808
      %v6822 = vunpack.c.0.s8 %v6821
      %v6823 = vlaneseq
      %v6824 = vshrl.u32 %v6823, 7
      %v6825 = vsub.s32 %v6822, %v6824
      %v6826 = vrot.slane %v6812, %v6825
      %v6827 = vcombine.high %v6819, %v6819
      %v6828 = vcombine.high %v6826, %v6826
      %v6829 = vcombine.high %v6469, %v6469
      %v6831 = vunpack.c.l.s4 1983009808
      %v6832 = vunpack.c.0.s8 %v6831
      %v6833 = vlaneseq
      %v6834 = vshrl.u32 %v6833, 7
      %v6835 = vsub.s32 %v6832, %v6834
      %v6836 = vrot.slane %v6469, %v6835
      %v6838 = vunpack.c.l.s4 1983009808
      %v6839 = vunpack.c.0.s8 %v6838
      %v6840 = vlaneseq
      %v6841 = vshrl.u32 %v6840, 7
      %v6842 = vsub.s32 %v6839, %v6841
      %v6843 = vrot.slane %v6829, %v6842
      %v6844 = vcombine.high %v6836, %v6836
      %v6845 = vcombine.high %v6843, %v6843
      %v6846 = vcombine.high %v6470, %v6470
      %v6848 = vunpack.c.l.s4 1983009808
      %v6849 = vunpack.c.0.s8 %v6848
      %v6850 = vlaneseq
      %v6851 = vshrl.u32 %v6850, 7
      %v6852 = vsub.s32 %v6849, %v6851
      %v6853 = vrot.slane %v6470, %v6852
      %v6855 = vunpack.c.l.s4 1983009808
      %v6856 = vunpack.c.0.s8 %v6855
      %v6857 = vlaneseq
      %v6858 = vshrl.u32 %v6857, 7
      %v6859 = vsub.s32 %v6856, %v6858
      %v6860 = vrot.slane %v6846, %v6859
      %v6861 = vcombine.high %v6853, %v6853
      %v6862 = vcombine.high %v6860, %v6860
      %v6863 = vcombine.high %v6471, %v6471
      %v6865 = vunpack.c.l.s4 1983009808
      %v6866 = vunpack.c.0.s8 %v6865
      %v6867 = vlaneseq
      %v6868 = vshrl.u32 %v6867, 7
      %v6869 = vsub.s32 %v6866, %v6868
      %v6870 = vrot.slane %v6471, %v6869
      %v6872 = vunpack.c.l.s4 1983009808
      %v6873 = vunpack.c.0.s8 %v6872
      %v6874 = vlaneseq
      %v6875 = vshrl.u32 %v6874, 7
      %v6876 = vsub.s32 %v6873, %v6875
      %v6877 = vrot.slane %v6863, %v6876
      %v6878 = vcombine.high %v6870, %v6870
      %v6879 = vcombine.high %v6877, %v6877
      %v6880 = vcombine.high %v6472, %v6472
      %v6882 = vunpack.c.l.s4 1983009808
      %v6883 = vunpack.c.0.s8 %v6882
      %v6884 = vlaneseq
      %v6885 = vshrl.u32 %v6884, 7
      %v6886 = vsub.s32 %v6883, %v6885
      %v6887 = vrot.slane %v6472, %v6886
      %v6889 = vunpack.c.l.s4 1983009808
      %v6890 = vunpack.c.0.s8 %v6889
      %v6891 = vlaneseq
      %v6892 = vshrl.u32 %v6891, 7
      %v6893 = vsub.s32 %v6890, %v6892
      %v6894 = vrot.slane %v6880, %v6893
      %v6895 = vcombine.high %v6887, %v6887
      %v6896 = vcombine.high %v6894, %v6894
      %v6897 = vcombine.high %v6473, %v6473
      %v6899 = vunpack.c.l.s4 1983009808
      %v6900 = vunpack.c.0.s8 %v6899
      %v6901 = vlaneseq
      %v6902 = vshrl.u32 %v6901, 7
      %v6903 = vsub.s32 %v6900, %v6902
      %v6904 = vrot.slane %v6473, %v6903
      %v6906 = vunpack.c.l.s4 1983009808
      %v6907 = vunpack.c.0.s8 %v6906
      %v6908 = vlaneseq
      %v6909 = vshrl.u32 %v6908, 7
      %v6910 = vsub.s32 %v6907, %v6909
      %v6911 = vrot.slane %v6897, %v6910
      %v6912 = vcombine.high %v6904, %v6904
      %v6913 = vcombine.high %v6911, %v6911
      %v6914 = vcombine.high %v6474, %v6474
      %v6916 = vunpack.c.l.s4 1983009808
      %v6917 = vunpack.c.0.s8 %v6916
      %v6918 = vlaneseq
      %v6919 = vshrl.u32 %v6918, 7
      %v6920 = vsub.s32 %v6917, %v6919
      %v6921 = vrot.slane %v6474, %v6920
      %v6923 = vunpack.c.l.s4 1983009808
      %v6924 = vunpack.c.0.s8 %v6923
      %v6925 = vlaneseq
      %v6926 = vshrl.u32 %v6925, 7
      %v6927 = vsub.s32 %v6924, %v6926
      %v6928 = vrot.slane %v6914, %v6927
      %v6929 = vcombine.high %v6921, %v6921
      %v6930 = vcombine.high %v6928, %v6928
      %v6931 = vcombine.high %v6475, %v6475
      %v6933 = vunpack.c.l.s4 1983009808
      %v6934 = vunpack.c.0.s8 %v6933
      %v6935 = vlaneseq
      %v6936 = vshrl.u32 %v6935, 7
      %v6937 = vsub.s32 %v6934, %v6936
      %v6938 = vrot.slane %v6475, %v6937
      %v6940 = vunpack.c.l.s4 1983009808
      %v6941 = vunpack.c.0.s8 %v6940
      %v6942 = vlaneseq
      %v6943 = vshrl.u32 %v6942, 7
      %v6944 = vsub.s32 %v6941, %v6943
      %v6945 = vrot.slane %v6931, %v6944
      %v6946 = vcombine.high %v6938, %v6938
      %v6947 = vcombine.high %v6945, %v6945
      %v6948 = vcombine.high %v6476, %v6476
      %v6950 = vunpack.c.l.s4 1983009808
      %v6951 = vunpack.c.0.s8 %v6950
      %v6952 = vlaneseq
      %v6953 = vshrl.u32 %v6952, 7
      %v6954 = vsub.s32 %v6951, %v6953
      %v6955 = vrot.slane %v6476, %v6954
      %v6957 = vunpack.c.l.s4 1983009808
      %v6958 = vunpack.c.0.s8 %v6957
      %v6959 = vlaneseq
      %v6960 = vshrl.u32 %v6959, 7
      %v6961 = vsub.s32 %v6958, %v6960
      %v6962 = vrot.slane %v6948, %v6961
      %v6963 = vcombine.high %v6955, %v6955
      %v6964 = vcombine.high %v6962, %v6962
      %v6965 = vcombine.high %v6477, %v6477
      %v6967 = vunpack.c.l.s4 1983009808
      %v6968 = vunpack.c.0.s8 %v6967
      %v6969 = vlaneseq
      %v6970 = vshrl.u32 %v6969, 7
      %v6971 = vsub.s32 %v6968, %v6970
      %v6972 = vrot.slane %v6477, %v6971
      %v6974 = vunpack.c.l.s4 1983009808
      %v6975 = vunpack.c.0.s8 %v6974
      %v6976 = vlaneseq
      %v6977 = vshrl.u32 %v6976, 7
      %v6978 = vsub.s32 %v6975, %v6977
      %v6979 = vrot.slane %v6965, %v6978
      %v6980 = vcombine.high %v6972, %v6972
      %v6981 = vcombine.high %v6979, %v6979
      %v6982 = vcombine.high %v6478, %v6478
      %v6984 = vunpack.c.l.s4 1983009808
      %v6985 = vunpack.c.0.s8 %v6984
      %v6986 = vlaneseq
      %v6987 = vshrl.u32 %v6986, 7
      %v6988 = vsub.s32 %v6985, %v6987
      %v6989 = vrot.slane %v6478, %v6988
      %v6991 = vunpack.c.l.s4 1983009808
      %v6992 = vunpack.c.0.s8 %v6991
      %v6993 = vlaneseq
      %v6994 = vshrl.u32 %v6993, 7
      %v6995 = vsub.s32 %v6992, %v6994
      %v6996 = vrot.slane %v6982, %v6995
      %v6997 = vcombine.high %v6989, %v6989
      %v6998 = vcombine.high %v6996, %v6996
      %v6999 = vcombine.high %v6479, %v6479
      %v7001 = vunpack.c.l.s4 1983009808
      %v7002 = vunpack.c.0.s8 %v7001
      %v7003 = vlaneseq
      %v7004 = vshrl.u32 %v7003, 7
      %v7005 = vsub.s32 %v7002, %v7004
      %v7006 = vrot.slane %v6479, %v7005
      %v7008 = vunpack.c.l.s4 1983009808
      %v7009 = vunpack.c.0.s8 %v7008
      %v7010 = vlaneseq
      %v7011 = vshrl.u32 %v7010, 7
      %v7012 = vsub.s32 %v7009, %v7011
      %v7013 = vrot.slane %v6999, %v7012
      %v7014 = vcombine.high %v7006, %v7006
      %v7015 = vcombine.high %v7013, %v7013
      %v7016 = vcombine.high %v6480, %v6480
      %v7018 = vunpack.c.l.s4 1983009808
      %v7019 = vunpack.c.0.s8 %v7018
      %v7020 = vlaneseq
      %v7021 = vshrl.u32 %v7020, 7
      %v7022 = vsub.s32 %v7019, %v7021
      %v7023 = vrot.slane %v6480, %v7022
      %v7025 = vunpack.c.l.s4 1983009808
      %v7026 = vunpack.c.0.s8 %v7025
      %v7027 = vlaneseq
      %v7028 = vshrl.u32 %v7027, 7
      %v7029 = vsub.s32 %v7026, %v7028
      %v7030 = vrot.slane %v7016, %v7029
      %v7031 = vcombine.high %v7023, %v7023
      %v7032 = vcombine.high %v7030, %v7030
      %v7033 = vcombine.high %v6481, %v6481
      %v7035 = vunpack.c.l.s4 1983009808
      %v7036 = vunpack.c.0.s8 %v7035
      %v7037 = vlaneseq
      %v7038 = vshrl.u32 %v7037, 7
      %v7039 = vsub.s32 %v7036, %v7038
      %v7040 = vrot.slane %v6481, %v7039
      %v7042 = vunpack.c.l.s4 1983009808
      %v7043 = vunpack.c.0.s8 %v7042
      %v7044 = vlaneseq
      %v7045 = vshrl.u32 %v7044, 7
      %v7046 = vsub.s32 %v7043, %v7045
      %v7047 = vrot.slane %v7033, %v7046
      %v7048 = vcombine.high %v7040, %v7040
      %v7049 = vcombine.high %v7047, %v7047
      %v7050 = vcombine.high %v6482, %v6482
      %v7052 = vunpack.c.l.s4 1983009808
      %v7053 = vunpack.c.0.s8 %v7052
      %v7054 = vlaneseq
      %v7055 = vshrl.u32 %v7054, 7
      %v7056 = vsub.s32 %v7053, %v7055
      %v7057 = vrot.slane %v6482, %v7056
      %v7059 = vunpack.c.l.s4 1983009808
      %v7060 = vunpack.c.0.s8 %v7059
      %v7061 = vlaneseq
      %v7062 = vshrl.u32 %v7061, 7
      %v7063 = vsub.s32 %v7060, %v7062
      %v7064 = vrot.slane %v7050, %v7063
      %v7065 = vcombine.high %v7057, %v7057
      %v7066 = vcombine.high %v7064, %v7064
      %v7067 = vcombine.high %v6483, %v6483
      %v7069 = vunpack.c.l.s4 1983009808
      %v7070 = vunpack.c.0.s8 %v7069
      %v7071 = vlaneseq
      %v7072 = vshrl.u32 %v7071, 7
      %v7073 = vsub.s32 %v7070, %v7072
      %v7074 = vrot.slane %v6483, %v7073
      %v7076 = vunpack.c.l.s4 1983009808
      %v7077 = vunpack.c.0.s8 %v7076
      %v7078 = vlaneseq
      %v7079 = vshrl.u32 %v7078, 7
      %v7080 = vsub.s32 %v7077, %v7079
      %v7081 = vrot.slane %v7067, %v7080
      %v7082 = vcombine.high %v7074, %v7074
      %v7083 = vcombine.high %v7081, %v7081
      %v7084 = vcombine.high %v6484, %v6484
      %v7086 = vunpack.c.l.s4 1983009808
      %v7087 = vunpack.c.0.s8 %v7086
      %v7088 = vlaneseq
      %v7089 = vshrl.u32 %v7088, 7
      %v7090 = vsub.s32 %v7087, %v7089
      %v7091 = vrot.slane %v6484, %v7090
      %v7093 = vunpack.c.l.s4 1983009808
      %v7094 = vunpack.c.0.s8 %v7093
      %v7095 = vlaneseq
      %v7096 = vshrl.u32 %v7095, 7
      %v7097 = vsub.s32 %v7094, %v7096
      %v7098 = vrot.slane %v7084, %v7097
      %v7099 = vcombine.high %v7091, %v7091
      %v7100 = vcombine.high %v7098, %v7098
      %v7101 = vcombine.high %v6485, %v6485
      %v7103 = vunpack.c.l.s4 1983009808
      %v7104 = vunpack.c.0.s8 %v7103
      %v7105 = vlaneseq
      %v7106 = vshrl.u32 %v7105, 7
      %v7107 = vsub.s32 %v7104, %v7106
      %v7108 = vrot.slane %v6485, %v7107
      %v7110 = vunpack.c.l.s4 1983009808
      %v7111 = vunpack.c.0.s8 %v7110
      %v7112 = vlaneseq
      %v7113 = vshrl.u32 %v7112, 7
      %v7114 = vsub.s32 %v7111, %v7113
      %v7115 = vrot.slane %v7101, %v7114
      %v7116 = vcombine.high %v7108, %v7108
      %v7117 = vcombine.high %v7115, %v7115
      %v7118 = vcombine.high %v6486, %v6486
      %v7120 = vunpack.c.l.s4 1983009808
      %v7121 = vunpack.c.0.s8 %v7120
      %v7122 = vlaneseq
      %v7123 = vshrl.u32 %v7122, 7
      %v7124 = vsub.s32 %v7121, %v7123
      %v7125 = vrot.slane %v6486, %v7124
      %v7127 = vunpack.c.l.s4 1983009808
      %v7128 = vunpack.c.0.s8 %v7127
      %v7129 = vlaneseq
      %v7130 = vshrl.u32 %v7129, 7
      %v7131 = vsub.s32 %v7128, %v7130
      %v7132 = vrot.slane %v7118, %v7131
      %v7133 = vcombine.high %v7125, %v7125
      %v7134 = vcombine.high %v7132, %v7132
      %v7279 = vrot.slane %v6530, 7
      %v7280 = vrot.slane %v7279, 2
      %v7281 = vrot.slane %v6538, 7
      %v7282 = vrot.slane %v7281, 2
      %v7283 = vrot.slane %v6537, 7
      %v7284 = vrot.slane %v7283, 2
      %v7285 = vrot.slane %v6539, 7
      %v7286 = vrot.slane %v7285, 2
      %v7287 = vrot.slane %v6547, 7
      %v7288 = vrot.slane %v7287, 2
      %v7289 = vrot.slane %v6555, 7
      %v7290 = vrot.slane %v7289, 2
      %v7291 = vrot.slane %v6554, 7
      %v7292 = vrot.slane %v7291, 2
      %v7293 = vrot.slane %v6556, 7
      %v7294 = vrot.slane %v7293, 2
      %v7295 = vrot.slane %v6564, 7
      %v7296 = vrot.slane %v7295, 2
      %v7297 = vrot.slane %v6572, 7
      %v7298 = vrot.slane %v7297, 2
      %v7299 = vrot.slane %v6571, 7
      %v7300 = vrot.slane %v7299, 2
      %v7301 = vrot.slane %v6573, 7
      %v7302 = vrot.slane %v7301, 2
      %v7303 = vrot.slane %v6581, 7
      %v7304 = vrot.slane %v7303, 2
      %v7305 = vrot.slane %v6589, 7
      %v7306 = vrot.slane %v7305, 2
      %v7307 = vrot.slane %v6588, 7
      %v7308 = vrot.slane %v7307, 2
      %v7309 = vrot.slane %v6590, 7
      %v7310 = vrot.slane %v7309, 2
      %v7311 = vrot.slane %v6598, 7
      %v7312 = vrot.slane %v7311, 2
      %v7313 = vrot.slane %v6606, 7
      %v7314 = vrot.slane %v7313, 2
      %v7315 = vrot.slane %v6605, 7
      %v7316 = vrot.slane %v7315, 2
      %v7317 = vrot.slane %v6607, 7
      %v7318 = vrot.slane %v7317, 2
      %v7319 = vrot.slane %v6615, 7
      %v7320 = vrot.slane %v7319, 2
      %v7321 = vrot.slane %v6623, 7
      %v7322 = vrot.slane %v7321, 2
      %v7323 = vrot.slane %v6622, 7
      %v7324 = vrot.slane %v7323, 2
      %v7325 = vrot.slane %v6624, 7
      %v7326 = vrot.slane %v7325, 2
      %v7327 = vrot.slane %v6632, 7
      %v7328 = vrot.slane %v7327, 2
      %v7329 = vrot.slane %v6640, 7
      %v7330 = vrot.slane %v7329, 2
      %v7331 = vrot.slane %v6639, 7
      %v7332 = vrot.slane %v7331, 2
      %v7333 = vrot.slane %v6641, 7
      %v7334 = vrot.slane %v7333, 2
      %v7335 = vrot.slane %v6649, 7
      %v7336 = vrot.slane %v7335, 2
      %v7337 = vrot.slane %v6657, 7
      %v7338 = vrot.slane %v7337, 2
      %v7339 = vrot.slane %v6656, 7
      %v7340 = vrot.slane %v7339, 2
      %v7341 = vrot.slane %v6658, 7
      %v7342 = vrot.slane %v7341, 2
      %v7343 = vrot.slane %v6666, 7
      %v7344 = vrot.slane %v7343, 2
      %v7345 = vrot.slane %v6674, 7
      %v7346 = vrot.slane %v7345, 2
      %v7347 = vrot.slane %v6673, 7
      %v7348 = vrot.slane %v7347, 2
      %v7349 = vrot.slane %v6675, 7
      %v7350 = vrot.slane %v7349, 2
      %v7351 = vrot.slane %v6683, 7
      %v7352 = vrot.slane %v7351, 2
      %v7353 = vrot.slane %v6691, 7
      %v7354 = vrot.slane %v7353, 2
      %v7355 = vrot.slane %v6690, 7
      %v7356 = vrot.slane %v7355, 2
      %v7357 = vrot.slane %v6692, 7
      %v7358 = vrot.slane %v7357, 2
      %v7359 = vrot.slane %v6700, 7
      %v7360 = vrot.slane %v7359, 2
      %v7361 = vrot.slane %v6708, 7
      %v7362 = vrot.slane %v7361, 2
      %v7363 = vrot.slane %v6707, 7
      %v7364 = vrot.slane %v7363, 2
      %v7365 = vrot.slane %v6709, 7
      %v7366 = vrot.slane %v7365, 2
      %v7367 = vrot.slane %v6717, 7
      %v7368 = vrot.slane %v7367, 2
      %v7369 = vrot.slane %v6725, 7
      %v7370 = vrot.slane %v7369, 2
      %v7371 = vrot.slane %v6724, 7
      %v7372 = vrot.slane %v7371, 2
      %v7373 = vrot.slane %v6726, 7
      %v7374 = vrot.slane %v7373, 2
      %v7375 = vrot.slane %v6734, 7
      %v7376 = vrot.slane %v7375, 2
      %v7377 = vrot.slane %v6742, 7
      %v7378 = vrot.slane %v7377, 2
      %v7379 = vrot.slane %v6741, 7
      %v7380 = vrot.slane %v7379, 2
      %v7381 = vrot.slane %v6743, 7
      %v7382 = vrot.slane %v7381, 2
      %v7383 = vrot.slane %v6751, 7
      %v7384 = vrot.slane %v7383, 2
      %v7385 = vrot.slane %v6759, 7
      %v7386 = vrot.slane %v7385, 2
      %v7387 = vrot.slane %v6758, 7
      %v7388 = vrot.slane %v7387, 2
      %v7389 = vrot.slane %v6760, 7
      %v7390 = vrot.slane %v7389, 2
      %v7391 = vrot.slane %v6768, 7
      %v7392 = vrot.slane %v7391, 2
      %v7393 = vrot.slane %v6776, 7
      %v7394 = vrot.slane %v7393, 2
      %v7395 = vrot.slane %v6775, 7
      %v7396 = vrot.slane %v7395, 2
      %v7397 = vrot.slane %v6777, 7
      %v7398 = vrot.slane %v7397, 2
      %v7399 = vrot.slane %v6785, 7
      %v7400 = vrot.slane %v7399, 2
      %v7401 = vrot.slane %v6793, 7
      %v7402 = vrot.slane %v7401, 2
      %v7403 = vrot.slane %v6792, 7
      %v7404 = vrot.slane %v7403, 2
      %v7405 = vrot.slane %v6794, 7
      %v7406 = vrot.slane %v7405, 2
      %v7407 = vrot.slane %v6802, 7
      %v7408 = vrot.slane %v7407, 2
      %v7409 = vrot.slane %v6810, 7
      %v7410 = vrot.slane %v7409, 2
      %v7411 = vrot.slane %v6809, 7
      %v7412 = vrot.slane %v7411, 2
      %v7413 = vrot.slane %v6811, 7
      %v7414 = vrot.slane %v7413, 2
      %v7415 = vrot.slane %v6819, 7
      %v7416 = vrot.slane %v7415, 2
      %v7417 = vrot.slane %v6827, 7
      %v7418 = vrot.slane %v7417, 2
      %v7419 = vrot.slane %v6826, 7
      %v7420 = vrot.slane %v7419, 2
      %v7421 = vrot.slane %v6828, 7
      %v7422 = vrot.slane %v7421, 2
      %v7423 = vrot.slane %v6836, 7
      %v7424 = vrot.slane %v7423, 2
      %v7425 = vrot.slane %v6844, 7
      %v7426 = vrot.slane %v7425, 2
      %v7427 = vrot.slane %v6843, 7
      %v7428 = vrot.slane %v7427, 2
      %v7429 = vrot.slane %v6845, 7
      %v7430 = vrot.slane %v7429, 2
      %v7431 = vrot.slane %v6853, 7
      %v7432 = vrot.slane %v7431, 2
      %v7433 = vrot.slane %v6861, 7
      %v7434 = vrot.slane %v7433, 2
      %v7435 = vrot.slane %v6860, 7
      %v7436 = vrot.slane %v7435, 2
      %v7437 = vrot.slane %v6862, 7
      %v7438 = vrot.slane %v7437, 2
      %v7439 = vrot.slane %v6870, 7
      %v7440 = vrot.slane %v7439, 2
      %v7441 = vrot.slane %v6878, 7
      %v7442 = vrot.slane %v7441, 2
      %v7443 = vrot.slane %v6877, 7
      %v7444 = vrot.slane %v7443, 2
      %v7445 = vrot.slane %v6879, 7
      %v7446 = vrot.slane %v7445, 2
      %v7447 = vrot.slane %v6887, 7
      %v7448 = vrot.slane %v7447, 2
      %v7449 = vrot.slane %v6895, 7
      %v7450 = vrot.slane %v7449, 2
      %v7451 = vrot.slane %v6894, 7
      %v7452 = vrot.slane %v7451, 2
      %v7453 = vrot.slane %v6896, 7
      %v7454 = vrot.slane %v7453, 2
      %v7455 = vrot.slane %v6904, 7
      %v7456 = vrot.slane %v7455, 2
      %v7457 = vrot.slane %v6912, 7
      %v7458 = vrot.slane %v7457, 2
      %v7459 = vrot.slane %v6911, 7
      %v7460 = vrot.slane %v7459, 2
      %v7461 = vrot.slane %v6913, 7
      %v7462 = vrot.slane %v7461, 2
      %v7463 = vrot.slane %v6921, 7
      %v7464 = vrot.slane %v7463, 2
      %v7465 = vrot.slane %v6929, 7
      %v7466 = vrot.slane %v7465, 2
      %v7467 = vrot.slane %v6928, 7
      %v7468 = vrot.slane %v7467, 2
      %v7469 = vrot.slane %v6930, 7
      %v7470 = vrot.slane %v7469, 2
      %v7471 = vrot.slane %v6938, 7
      %v7472 = vrot.slane %v7471, 2
      %v7473 = vrot.slane %v6946, 7
      %v7474 = vrot.slane %v7473, 2
      %v7475 = vrot.slane %v6945, 7
      %v7476 = vrot.slane %v7475, 2
      %v7477 = vrot.slane %v6947, 7
      %v7478 = vrot.slane %v7477, 2
      %v7479 = vrot.slane %v6955, 7
      %v7480 = vrot.slane %v7479, 2
      %v7481 = vrot.slane %v6963, 7
      %v7482 = vrot.slane %v7481, 2
      %v7483 = vrot.slane %v6962, 7
      %v7484 = vrot.slane %v7483, 2
      %v7485 = vrot.slane %v6964, 7
      %v7486 = vrot.slane %v7485, 2
      %v7487 = vrot.slane %v6972, 7
      %v7488 = vrot.slane %v7487, 2
      %v7489 = vrot.slane %v6980, 7
      %v7490 = vrot.slane %v7489, 2
      %v7491 = vrot.slane %v6979, 7
      %v7492 = vrot.slane %v7491, 2
      %v7493 = vrot.slane %v6981, 7
      %v7494 = vrot.slane %v7493, 2
      %v7495 = vrot.slane %v6989, 7
      %v7496 = vrot.slane %v7495, 2
      %v7497 = vrot.slane %v6997, 7
      %v7498 = vrot.slane %v7497, 2
      %v7499 = vrot.slane %v6996, 7
      %v7500 = vrot.slane %v7499, 2
      %v7501 = vrot.slane %v6998, 7
      %v7502 = vrot.slane %v7501, 2
      %v7503 = vrot.slane %v7006, 7
      %v7504 = vrot.slane %v7503, 2
      %v7505 = vrot.slane %v7014, 7
      %v7506 = vrot.slane %v7505, 2
      %v7507 = vrot.slane %v7013, 7
      %v7508 = vrot.slane %v7507, 2
      %v7509 = vrot.slane %v7015, 7
      %v7510 = vrot.slane %v7509, 2
      %v7511 = vrot.slane %v7023, 7
      %v7512 = vrot.slane %v7511, 2
      %v7513 = vrot.slane %v7031, 7
      %v7514 = vrot.slane %v7513, 2
      %v7515 = vrot.slane %v7030, 7
      %v7516 = vrot.slane %v7515, 2
      %v7517 = vrot.slane %v7032, 7
      %v7518 = vrot.slane %v7517, 2
      %v7519 = vrot.slane %v7040, 7
      %v7520 = vrot.slane %v7519, 2
      %v7521 = vrot.slane %v7048, 7
      %v7522 = vrot.slane %v7521, 2
      %v7523 = vrot.slane %v7047, 7
      %v7524 = vrot.slane %v7523, 2
      %v7525 = vrot.slane %v7049, 7
      %v7526 = vrot.slane %v7525, 2
      %v7527 = vrot.slane %v7057, 7
      %v7528 = vrot.slane %v7527, 2
      %v7529 = vrot.slane %v7065, 7
      %v7530 = vrot.slane %v7529, 2
      %v7531 = vrot.slane %v7064, 7
      %v7532 = vrot.slane %v7531, 2
      %v7533 = vrot.slane %v7066, 7
      %v7534 = vrot.slane %v7533, 2
      %v7535 = vrot.slane %v7074, 7
      %v7536 = vrot.slane %v7535, 2
      %v7537 = vrot.slane %v7082, 7
      %v7538 = vrot.slane %v7537, 2
      %v7539 = vrot.slane %v7081, 7
      %v7540 = vrot.slane %v7539, 2
      %v7541 = vrot.slane %v7083, 7
      %v7542 = vrot.slane %v7541, 2
      %v7543 = vrot.slane %v7091, 7
      %v7544 = vrot.slane %v7543, 2
      %v7545 = vrot.slane %v7099, 7
      %v7546 = vrot.slane %v7545, 2
      %v7547 = vrot.slane %v7098, 7
      %v7548 = vrot.slane %v7547, 2
      %v7549 = vrot.slane %v7100, 7
      %v7550 = vrot.slane %v7549, 2
      %v7551 = vrot.slane %v7108, 7
      %v7552 = vrot.slane %v7551, 2
      %v7553 = vrot.slane %v7116, 7
      %v7554 = vrot.slane %v7553, 2
      %v7555 = vrot.slane %v7115, 7
      %v7556 = vrot.slane %v7555, 2
      %v7557 = vrot.slane %v7117, 7
      %v7558 = vrot.slane %v7557, 2
      %v7559 = vrot.slane %v7125, 7
      %v7560 = vrot.slane %v7559, 2
      %v7561 = vrot.slane %v7133, 7
      %v7562 = vrot.slane %v7561, 2
      %v7563 = vrot.slane %v7132, 7
      %v7564 = vrot.slane %v7563, 2
      %v7565 = vrot.slane %v7134, 7
      %v7566 = vrot.slane %v7565, 2
      %v7711 = vmax.f32 %v6530, %v7280
      %v7712 = vmax.f32 %v6538, %v7282
      %v7713 = vmax.f32 %v6537, %v7284
      %v7714 = vmax.f32 %v6539, %v7286
      %v7715 = vmax.f32 %v6547, %v7288
      %v7716 = vmax.f32 %v6555, %v7290
      %v7717 = vmax.f32 %v6554, %v7292
      %v7718 = vmax.f32 %v6556, %v7294
      %v7719 = vmax.f32 %v6564, %v7296
      %v7720 = vmax.f32 %v6572, %v7298
      %v7721 = vmax.f32 %v6571, %v7300
      %v7722 = vmax.f32 %v6573, %v7302
      %v7723 = vmax.f32 %v6581, %v7304
      %v7724 = vmax.f32 %v6589, %v7306
      %v7725 = vmax.f32 %v6588, %v7308
      %v7726 = vmax.f32 %v6590, %v7310
      %v7727 = vmax.f32 %v6598, %v7312
      %v7728 = vmax.f32 %v6606, %v7314
      %v7729 = vmax.f32 %v6605, %v7316
      %v7730 = vmax.f32 %v6607, %v7318
      %v7731 = vmax.f32 %v6615, %v7320
      %v7732 = vmax.f32 %v6623, %v7322
      %v7733 = vmax.f32 %v6622, %v7324
      %v7734 = vmax.f32 %v6624, %v7326
      %v7735 = vmax.f32 %v6632, %v7328
      %v7736 = vmax.f32 %v6640, %v7330
      %v7737 = vmax.f32 %v6639, %v7332
      %v7738 = vmax.f32 %v6641, %v7334
      %v7739 = vmax.f32 %v6649, %v7336
      %v7740 = vmax.f32 %v6657, %v7338
      %v7741 = vmax.f32 %v6656, %v7340
      %v7742 = vmax.f32 %v6658, %v7342
      %v7743 = vmax.f32 %v6666, %v7344
      %v7744 = vmax.f32 %v6674, %v7346
      %v7745 = vmax.f32 %v6673, %v7348
      %v7746 = vmax.f32 %v6675, %v7350
      %v7747 = vmax.f32 %v6683, %v7352
      %v7748 = vmax.f32 %v6691, %v7354
      %v7749 = vmax.f32 %v6690, %v7356
      %v7750 = vmax.f32 %v6692, %v7358
      %v7751 = vmax.f32 %v6700, %v7360
      %v7752 = vmax.f32 %v6708, %v7362
      %v7753 = vmax.f32 %v6707, %v7364
      %v7754 = vmax.f32 %v6709, %v7366
      %v7755 = vmax.f32 %v6717, %v7368
      %v7756 = vmax.f32 %v6725, %v7370
      %v7757 = vmax.f32 %v6724, %v7372
      %v7758 = vmax.f32 %v6726, %v7374
      %v7759 = vmax.f32 %v6734, %v7376
      %v7760 = vmax.f32 %v6742, %v7378
      %v7761 = vmax.f32 %v6741, %v7380
      %v7762 = vmax.f32 %v6743, %v7382
      %v7763 = vmax.f32 %v6751, %v7384
      %v7764 = vmax.f32 %v6759, %v7386
      %v7765 = vmax.f32 %v6758, %v7388
      %v7766 = vmax.f32 %v6760, %v7390
      %v7767 = vmax.f32 %v6768, %v7392
      %v7768 = vmax.f32 %v6776, %v7394
      %v7769 = vmax.f32 %v6775, %v7396
      %v7770 = vmax.f32 %v6777, %v7398
      %v7771 = vmax.f32 %v6785, %v7400
      %v7772 = vmax.f32 %v6793, %v7402
      %v7773 = vmax.f32 %v6792, %v7404
      %v7774 = vmax.f32 %v6794, %v7406
      %v7775 = vmax.f32 %v6802, %v7408
      %v7776 = vmax.f32 %v6810, %v7410
      %v7777 = vmax.f32 %v6809, %v7412
      %v7778 = vmax.f32 %v6811, %v7414
      %v7779 = vmax.f32 %v6819, %v7416
      %v7780 = vmax.f32 %v6827, %v7418
      %v7781 = vmax.f32 %v6826, %v7420
      %v7782 = vmax.f32 %v6828, %v7422
      %v7783 = vmax.f32 %v6836, %v7424
      %v7784 = vmax.f32 %v6844, %v7426
      %v7785 = vmax.f32 %v6843, %v7428
      %v7786 = vmax.f32 %v6845, %v7430
      %v7787 = vmax.f32 %v6853, %v7432
      %v7788 = vmax.f32 %v6861, %v7434
      %v7789 = vmax.f32 %v6860, %v7436
      %v7790 = vmax.f32 %v6862, %v7438
      %v7791 = vmax.f32 %v6870, %v7440
      %v7792 = vmax.f32 %v6878, %v7442
      %v7793 = vmax.f32 %v6877, %v7444
      %v7794 = vmax.f32 %v6879, %v7446
      %v7795 = vmax.f32 %v6887, %v7448
      %v7796 = vmax.f32 %v6895, %v7450
      %v7797 = vmax.f32 %v6894, %v7452
      %v7798 = vmax.f32 %v6896, %v7454
      %v7799 = vmax.f32 %v6904, %v7456
      %v7800 = vmax.f32 %v6912, %v7458
      %v7801 = vmax.f32 %v6911, %v7460
      %v7802 = vmax.f32 %v6913, %v7462
      %v7803 = vmax.f32 %v6921, %v7464
      %v7804 = vmax.f32 %v6929, %v7466
      %v7805 = vmax.f32 %v6928, %v7468
      %v7806 = vmax.f32 %v6930, %v7470
      %v7807 = vmax.f32 %v6938, %v7472
      %v7808 = vmax.f32 %v6946, %v7474
      %v7809 = vmax.f32 %v6945, %v7476
      %v7810 = vmax.f32 %v6947, %v7478
      %v7811 = vmax.f32 %v6955, %v7480
      %v7812 = vmax.f32 %v6963, %v7482
      %v7813 = vmax.f32 %v6962, %v7484
      %v7814 = vmax.f32 %v6964, %v7486
      %v7815 = vmax.f32 %v6972, %v7488
      %v7816 = vmax.f32 %v6980, %v7490
      %v7817 = vmax.f32 %v6979, %v7492
      %v7818 = vmax.f32 %v6981, %v7494
      %v7819 = vmax.f32 %v6989, %v7496
      %v7820 = vmax.f32 %v6997, %v7498
      %v7821 = vmax.f32 %v6996, %v7500
      %v7822 = vmax.f32 %v6998, %v7502
      %v7823 = vmax.f32 %v7006, %v7504
      %v7824 = vmax.f32 %v7014, %v7506
      %v7825 = vmax.f32 %v7013, %v7508
      %v7826 = vmax.f32 %v7015, %v7510
      %v7827 = vmax.f32 %v7023, %v7512
      %v7828 = vmax.f32 %v7031, %v7514
      %v7829 = vmax.f32 %v7030, %v7516
      %v7830 = vmax.f32 %v7032, %v7518
      %v7831 = vmax.f32 %v7040, %v7520
      %v7832 = vmax.f32 %v7048, %v7522
      %v7833 = vmax.f32 %v7047, %v7524
      %v7834 = vmax.f32 %v7049, %v7526
      %v7835 = vmax.f32 %v7057, %v7528
      %v7836 = vmax.f32 %v7065, %v7530
      %v7837 = vmax.f32 %v7064, %v7532
      %v7838 = vmax.f32 %v7066, %v7534
      %v7839 = vmax.f32 %v7074, %v7536
      %v7840 = vmax.f32 %v7082, %v7538
      %v7841 = vmax.f32 %v7081, %v7540
      %v7842 = vmax.f32 %v7083, %v7542
      %v7843 = vmax.f32 %v7091, %v7544
      %v7844 = vmax.f32 %v7099, %v7546
      %v7845 = vmax.f32 %v7098, %v7548
      %v7846 = vmax.f32 %v7100, %v7550
      %v7847 = vmax.f32 %v7108, %v7552
      %v7848 = vmax.f32 %v7116, %v7554
      %v7849 = vmax.f32 %v7115, %v7556
      %v7850 = vmax.f32 %v7117, %v7558
      %v7851 = vmax.f32 %v7125, %v7560
      %v7852 = vmax.f32 %v7133, %v7562
      %v7853 = vmax.f32 %v7132, %v7564
      %v7854 = vmax.f32 %v7134, %v7566
      %s7855 = ssub.s32 %s303, 1
      %v7856 = vstv %s7855
      %v7857 = vadd.s32 %v1639, %v7856
      %v7858 = vadd.s32 %v1640, %v7856
      %v7859 = vadd.s32 %v1641, %v7856
      %vm7860 = vcmp.ge.s32.totalorder %v7857, 0
      %vm7861 = vcmp.ge.s32.totalorder %v7858, 0
      %vm7862 = vcmp.ge.s32.totalorder %v7859, 0
      %vm7863 = vcmp.lt.s32.totalorder %v7857, 40
      %vm7864 = vcmp.lt.s32.totalorder %v7858, 40
      %vm7865 = vcmp.lt.s32.totalorder %v7859, 40
      %vm7866 = vmand %vm7860, %vm7863
      %vm7867 = vmand %vm7861, %vm7864
      %vm7868 = vmand %vm7862, %vm7865
      %v7869 = vsel %vm7866, 1, 0
      %v7870 = vsel %vm7867, 1, 0
      %v7871 = vsel %vm7868, 1, 0
      %v7872 = vlaneseq
      %v7873 = vshrl.u32 %v7872, 7
      %v7874 = vsub.s32 0, %v7873
      %v7875 = vrot.slane %v7869, %v7874
      %v7876 = vlaneseq
      %v7877 = vshrl.u32 %v7876, 7
      %v7878 = vsub.s32 1, %v7877
      %v7879 = vrot.slane %v7869, %v7878
      %v7880 = vlaneseq
      %v7881 = vshrl.u32 %v7880, 7
      %v7882 = vsub.s32 2, %v7881
      %v7883 = vrot.slane %v7869, %v7882
      %v7884 = vlaneseq
      %v7885 = vshrl.u32 %v7884, 7
      %v7886 = vsub.s32 3, %v7885
      %v7887 = vrot.slane %v7869, %v7886
      %v7888 = vlaneseq
      %v7889 = vshrl.u32 %v7888, 7
      %v7890 = vsub.s32 4, %v7889
      %v7891 = vrot.slane %v7869, %v7890
      %v7892 = vlaneseq
      %v7893 = vshrl.u32 %v7892, 7
      %v7894 = vsub.s32 5, %v7893
      %v7895 = vrot.slane %v7869, %v7894
      %v7896 = vlaneseq
      %v7897 = vshrl.u32 %v7896, 7
      %v7898 = vsub.s32 6, %v7897
      %v7899 = vrot.slane %v7869, %v7898
      %v7900 = vlaneseq
      %v7901 = vshrl.u32 %v7900, 7
      %v7902 = vsub.s32 7, %v7901
      %v7903 = vrot.slane %v7869, %v7902
      %v7904 = vlaneseq
      %v7905 = vshrl.u32 %v7904, 7
      %v7906 = vsub.s32 0, %v7905
      %v7907 = vrot.slane %v7870, %v7906
      %v7908 = vlaneseq
      %v7909 = vshrl.u32 %v7908, 7
      %v7910 = vsub.s32 1, %v7909
      %v7911 = vrot.slane %v7870, %v7910
      %v7912 = vlaneseq
      %v7913 = vshrl.u32 %v7912, 7
      %v7914 = vsub.s32 2, %v7913
      %v7915 = vrot.slane %v7870, %v7914
      %v7916 = vlaneseq
      %v7917 = vshrl.u32 %v7916, 7
      %v7918 = vsub.s32 3, %v7917
      %v7919 = vrot.slane %v7870, %v7918
      %v7920 = vlaneseq
      %v7921 = vshrl.u32 %v7920, 7
      %v7922 = vsub.s32 4, %v7921
      %v7923 = vrot.slane %v7870, %v7922
      %v7924 = vlaneseq
      %v7925 = vshrl.u32 %v7924, 7
      %v7926 = vsub.s32 5, %v7925
      %v7927 = vrot.slane %v7870, %v7926
      %v7928 = vlaneseq
      %v7929 = vshrl.u32 %v7928, 7
      %v7930 = vsub.s32 6, %v7929
      %v7931 = vrot.slane %v7870, %v7930
      %v7932 = vlaneseq
      %v7933 = vshrl.u32 %v7932, 7
      %v7934 = vsub.s32 7, %v7933
      %v7935 = vrot.slane %v7870, %v7934
      %v7936 = vlaneseq
      %v7937 = vshrl.u32 %v7936, 7
      %v7938 = vsub.s32 0, %v7937
      %v7939 = vrot.slane %v7871, %v7938
      %v7940 = vlaneseq
      %v7941 = vshrl.u32 %v7940, 7
      %v7942 = vsub.s32 1, %v7941
      %v7943 = vrot.slane %v7871, %v7942
      %vm7944 = vcmp.ne.s32.totalorder %v7875, 0
      %vm7945 = vcmp.ne.s32.totalorder %v7879, 0
      %vm7946 = vcmp.ne.s32.totalorder %v7883, 0
      %vm7947 = vcmp.ne.s32.totalorder %v7887, 0
      %vm7948 = vcmp.ne.s32.totalorder %v7891, 0
      %vm7949 = vcmp.ne.s32.totalorder %v7895, 0
      %vm7950 = vcmp.ne.s32.totalorder %v7899, 0
      %vm7951 = vcmp.ne.s32.totalorder %v7903, 0
      %vm7952 = vcmp.ne.s32.totalorder %v7907, 0
      %vm7953 = vcmp.ne.s32.totalorder %v7911, 0
      %vm7954 = vcmp.ne.s32.totalorder %v7915, 0
      %vm7955 = vcmp.ne.s32.totalorder %v7919, 0
      %vm7956 = vcmp.ne.s32.totalorder %v7923, 0
      %vm7957 = vcmp.ne.s32.totalorder %v7927, 0
      %vm7958 = vcmp.ne.s32.totalorder %v7931, 0
      %vm7959 = vcmp.ne.s32.totalorder %v7935, 0
      %vm7960 = vcmp.ne.s32.totalorder %v7939, 0
      %vm7961 = vcmp.ne.s32.totalorder %v7943, 0
      %v7962 = vsel %vm7944, 1, 0
      %v7963 = vsel %vm7945, 1, 0
      %v7964 = vsel %vm7946, 1, 0
      %v7965 = vsel %vm7947, 1, 0
      %v7966 = vsel %vm7948, 1, 0
      %v7967 = vsel %vm7949, 1, 0
      %v7968 = vsel %vm7950, 1, 0
      %v7969 = vsel %vm7951, 1, 0
      %v7970 = vsel %vm7952, 1, 0
      %v7971 = vsel %vm7953, 1, 0
      %v7972 = vsel %vm7954, 1, 0
      %v7973 = vsel %vm7955, 1, 0
      %v7974 = vsel %vm7956, 1, 0
      %v7975 = vsel %vm7957, 1, 0
      %v7976 = vsel %vm7958, 1, 0
      %v7977 = vsel %vm7959, 1, 0
      %v7978 = vsel %vm7960, 1, 0
      %v7979 = vsel %vm7961, 1, 0
      %vm7980 = vcmp.eq.s32.totalorder %v7962, 1
      %vm7981 = vcmp.eq.s32.totalorder %v7963, 1
      %vm7982 = vcmp.eq.s32.totalorder %v7964, 1
      %vm7983 = vcmp.eq.s32.totalorder %v7965, 1
      %vm7984 = vcmp.eq.s32.totalorder %v7966, 1
      %vm7985 = vcmp.eq.s32.totalorder %v7967, 1
      %vm7986 = vcmp.eq.s32.totalorder %v7968, 1
      %vm7987 = vcmp.eq.s32.totalorder %v7969, 1
      %vm7988 = vcmp.eq.s32.totalorder %v7970, 1
      %vm7989 = vcmp.eq.s32.totalorder %v7971, 1
      %vm7990 = vcmp.eq.s32.totalorder %v7972, 1
      %vm7991 = vcmp.eq.s32.totalorder %v7973, 1
      %vm7992 = vcmp.eq.s32.totalorder %v7974, 1
      %vm7993 = vcmp.eq.s32.totalorder %v7975, 1
      %vm7994 = vcmp.eq.s32.totalorder %v7976, 1
      %vm7995 = vcmp.eq.s32.totalorder %v7977, 1
      %vm7996 = vcmp.eq.s32.totalorder %v7978, 1
      %vm7997 = vcmp.eq.s32.totalorder %v7979, 1
      %v7998 = vsel %vm7980, %v7711, 0.0
      %v7999 = vsel %vm7980, %v7712, 0.0
      %v8000 = vsel %vm7980, %v7713, 0.0
      %v8001 = vsel %vm7980, %v7714, 0.0
      %v8002 = vsel %vm7980, %v7715, 0.0
      %v8003 = vsel %vm7980, %v7716, 0.0
      %v8004 = vsel %vm7980, %v7717, 0.0
      %v8005 = vsel %vm7980, %v7718, 0.0
      %v8006 = vsel %vm7981, %v7719, 0.0
      %v8007 = vsel %vm7981, %v7720, 0.0
      %v8008 = vsel %vm7981, %v7721, 0.0
      %v8009 = vsel %vm7981, %v7722, 0.0
      %v8010 = vsel %vm7981, %v7723, 0.0
      %v8011 = vsel %vm7981, %v7724, 0.0
      %v8012 = vsel %vm7981, %v7725, 0.0
      %v8013 = vsel %vm7981, %v7726, 0.0
      %v8014 = vsel %vm7982, %v7727, 0.0
      %v8015 = vsel %vm7982, %v7728, 0.0
      %v8016 = vsel %vm7982, %v7729, 0.0
      %v8017 = vsel %vm7982, %v7730, 0.0
      %v8018 = vsel %vm7982, %v7731, 0.0
      %v8019 = vsel %vm7982, %v7732, 0.0
      %v8020 = vsel %vm7982, %v7733, 0.0
      %v8021 = vsel %vm7982, %v7734, 0.0
      %v8022 = vsel %vm7983, %v7735, 0.0
      %v8023 = vsel %vm7983, %v7736, 0.0
      %v8024 = vsel %vm7983, %v7737, 0.0
      %v8025 = vsel %vm7983, %v7738, 0.0
      %v8026 = vsel %vm7983, %v7739, 0.0
      %v8027 = vsel %vm7983, %v7740, 0.0
      %v8028 = vsel %vm7983, %v7741, 0.0
      %v8029 = vsel %vm7983, %v7742, 0.0
      %v8030 = vsel %vm7984, %v7743, 0.0
      %v8031 = vsel %vm7984, %v7744, 0.0
      %v8032 = vsel %vm7984, %v7745, 0.0
      %v8033 = vsel %vm7984, %v7746, 0.0
      %v8034 = vsel %vm7984, %v7747, 0.0
      %v8035 = vsel %vm7984, %v7748, 0.0
      %v8036 = vsel %vm7984, %v7749, 0.0
      %v8037 = vsel %vm7984, %v7750, 0.0
      %v8038 = vsel %vm7985, %v7751, 0.0
      %v8039 = vsel %vm7985, %v7752, 0.0
      %v8040 = vsel %vm7985, %v7753, 0.0
      %v8041 = vsel %vm7985, %v7754, 0.0
      %v8042 = vsel %vm7985, %v7755, 0.0
      %v8043 = vsel %vm7985, %v7756, 0.0
      %v8044 = vsel %vm7985, %v7757, 0.0
      %v8045 = vsel %vm7985, %v7758, 0.0
      %v8046 = vsel %vm7986, %v7759, 0.0
      %v8047 = vsel %vm7986, %v7760, 0.0
      %v8048 = vsel %vm7986, %v7761, 0.0
      %v8049 = vsel %vm7986, %v7762, 0.0
      %v8050 = vsel %vm7986, %v7763, 0.0
      %v8051 = vsel %vm7986, %v7764, 0.0
      %v8052 = vsel %vm7986, %v7765, 0.0
      %v8053 = vsel %vm7986, %v7766, 0.0
      %v8054 = vsel %vm7987, %v7767, 0.0
      %v8055 = vsel %vm7987, %v7768, 0.0
      %v8056 = vsel %vm7987, %v7769, 0.0
      %v8057 = vsel %vm7987, %v7770, 0.0
      %v8058 = vsel %vm7987, %v7771, 0.0
      %v8059 = vsel %vm7987, %v7772, 0.0
      %v8060 = vsel %vm7987, %v7773, 0.0
      %v8061 = vsel %vm7987, %v7774, 0.0
      %v8062 = vsel %vm7988, %v7775, 0.0
      %v8063 = vsel %vm7988, %v7776, 0.0
      %v8064 = vsel %vm7988, %v7777, 0.0
      %v8065 = vsel %vm7988, %v7778, 0.0
      %v8066 = vsel %vm7988, %v7779, 0.0
      %v8067 = vsel %vm7988, %v7780, 0.0
      %v8068 = vsel %vm7988, %v7781, 0.0
      %v8069 = vsel %vm7988, %v7782, 0.0
      %v8070 = vsel %vm7989, %v7783, 0.0
      %v8071 = vsel %vm7989, %v7784, 0.0
      %v8072 = vsel %vm7989, %v7785, 0.0
      %v8073 = vsel %vm7989, %v7786, 0.0
      %v8074 = vsel %vm7989, %v7787, 0.0
      %v8075 = vsel %vm7989, %v7788, 0.0
      %v8076 = vsel %vm7989, %v7789, 0.0
      %v8077 = vsel %vm7989, %v7790, 0.0
      %v8078 = vsel %vm7990, %v7791, 0.0
      %v8079 = vsel %vm7990, %v7792, 0.0
      %v8080 = vsel %vm7990, %v7793, 0.0
      %v8081 = vsel %vm7990, %v7794, 0.0
      %v8082 = vsel %vm7990, %v7795, 0.0
      %v8083 = vsel %vm7990, %v7796, 0.0
      %v8084 = vsel %vm7990, %v7797, 0.0
      %v8085 = vsel %vm7990, %v7798, 0.0
      %v8086 = vsel %vm7991, %v7799, 0.0
      %v8087 = vsel %vm7991, %v7800, 0.0
      %v8088 = vsel %vm7991, %v7801, 0.0
      %v8089 = vsel %vm7991, %v7802, 0.0
      %v8090 = vsel %vm7991, %v7803, 0.0
      %v8091 = vsel %vm7991, %v7804, 0.0
      %v8092 = vsel %vm7991, %v7805, 0.0
      %v8093 = vsel %vm7991, %v7806, 0.0
      %v8094 = vsel %vm7992, %v7807, 0.0
      %v8095 = vsel %vm7992, %v7808, 0.0
      %v8096 = vsel %vm7992, %v7809, 0.0
      %v8097 = vsel %vm7992, %v7810, 0.0
      %v8098 = vsel %vm7992, %v7811, 0.0
      %v8099 = vsel %vm7992, %v7812, 0.0
      %v8100 = vsel %vm7992, %v7813, 0.0
      %v8101 = vsel %vm7992, %v7814, 0.0
      %v8102 = vsel %vm7993, %v7815, 0.0
      %v8103 = vsel %vm7993, %v7816, 0.0
      %v8104 = vsel %vm7993, %v7817, 0.0
      %v8105 = vsel %vm7993, %v7818, 0.0
      %v8106 = vsel %vm7993, %v7819, 0.0
      %v8107 = vsel %vm7993, %v7820, 0.0
      %v8108 = vsel %vm7993, %v7821, 0.0
      %v8109 = vsel %vm7993, %v7822, 0.0
      %v8110 = vsel %vm7994, %v7823, 0.0
      %v8111 = vsel %vm7994, %v7824, 0.0
      %v8112 = vsel %vm7994, %v7825, 0.0
      %v8113 = vsel %vm7994, %v7826, 0.0
      %v8114 = vsel %vm7994, %v7827, 0.0
      %v8115 = vsel %vm7994, %v7828, 0.0
      %v8116 = vsel %vm7994, %v7829, 0.0
      %v8117 = vsel %vm7994, %v7830, 0.0
      %v8118 = vsel %vm7995, %v7831, 0.0
      %v8119 = vsel %vm7995, %v7832, 0.0
      %v8120 = vsel %vm7995, %v7833, 0.0
      %v8121 = vsel %vm7995, %v7834, 0.0
      %v8122 = vsel %vm7995, %v7835, 0.0
      %v8123 = vsel %vm7995, %v7836, 0.0
      %v8124 = vsel %vm7995, %v7837, 0.0
      %v8125 = vsel %vm7995, %v7838, 0.0
      %v8126 = vsel %vm7996, %v7839, 0.0
      %v8127 = vsel %vm7996, %v7840, 0.0
      %v8128 = vsel %vm7996, %v7841, 0.0
      %v8129 = vsel %vm7996, %v7842, 0.0
      %v8130 = vsel %vm7996, %v7843, 0.0
      %v8131 = vsel %vm7996, %v7844, 0.0
      %v8132 = vsel %vm7996, %v7845, 0.0
      %v8133 = vsel %vm7996, %v7846, 0.0
      %v8134 = vsel %vm7997, %v7847, 0.0
      %v8135 = vsel %vm7997, %v7848, 0.0
      %v8136 = vsel %vm7997, %v7849, 0.0
      %v8137 = vsel %vm7997, %v7850, 0.0
      %v8138 = vsel %vm7997, %v7851, 0.0
      %v8139 = vsel %vm7997, %v7852, 0.0
      %v8140 = vsel %vm7997, %v7853, 0.0
      %v8141 = vsel %vm7997, %v7854, 0.0
      %v8142 = vld [vmem:[#allocation3] sm:$0x1]
      %v8143 = vsel %vm1841, 0, %v8142
      %8144 = vst [vmem:[#allocation3] sm:$0x1] %v8143
      %v8145 = vld [vmem:[#allocation3 + $0x8] sm:$0x1]
      %v8146 = vsel %vm1841, 0, %v8145
      %8147 = vst [vmem:[#allocation3 + $0x8] sm:$0x1] %v8146
      %v8148 = vld [vmem:[#allocation3 + $0x10] sm:$0x1]
      %v8149 = vsel %vm1841, 0, %v8148
      %8150 = vst [vmem:[#allocation3 + $0x10] sm:$0x1] %v8149
      %v8151 = vld [vmem:[#allocation3 + $0x18] sm:$0x1]
      %v8152 = vsel %vm1841, 0, %v8151
      %8153 = vst [vmem:[#allocation3 + $0x18] sm:$0x1] %v8152
      %v8154 = vld [vmem:[#allocation3 + $0x20] sm:$0x1]
      %v8155 = vsel %vm1841, 0, %v8154
      %8156 = vst [vmem:[#allocation3 + $0x20] sm:$0x1] %v8155
      %v8157 = vld [vmem:[#allocation3 + $0x28] sm:$0x1]
      %v8158 = vsel %vm1841, 0, %v8157
      %8159 = vst [vmem:[#allocation3 + $0x28] sm:$0x1] %v8158
      %v8160 = vld [vmem:[#allocation3 + $0x30] sm:$0x1]
      %v8161 = vsel %vm1841, 0, %v8160
      %8162 = vst [vmem:[#allocation3 + $0x30] sm:$0x1] %v8161
      %v8163 = vld [vmem:[#allocation3 + $0x38] sm:$0x1]
      %v8164 = vsel %vm1841, 0, %v8163
      %8165 = vst [vmem:[#allocation3 + $0x38] sm:$0x1] %v8164
      %v8166 = vld [vmem:[#allocation3 + $0x40] sm:$0x1]
      %v8167 = vsel %vm1841, 0, %v8166
      %8168 = vst [vmem:[#allocation3 + $0x40] sm:$0x1] %v8167
      %v8169 = vld [vmem:[#allocation3 + $0x48] sm:$0x1]
      %v8170 = vsel %vm1841, 0, %v8169
      %8171 = vst [vmem:[#allocation3 + $0x48] sm:$0x1] %v8170
      %v8172 = vld [vmem:[#allocation3 + $0x50] sm:$0x1]
      %v8173 = vsel %vm1841, 0, %v8172
      %8174 = vst [vmem:[#allocation3 + $0x50] sm:$0x1] %v8173
      %v8175 = vld [vmem:[#allocation3 + $0x58] sm:$0x1]
      %v8176 = vsel %vm1841, 0, %v8175
      %8177 = vst [vmem:[#allocation3 + $0x58] sm:$0x1] %v8176
      %v8178 = vld [vmem:[#allocation3 + $0x60] sm:$0x1]
      %v8179 = vsel %vm1841, 0, %v8178
      %8180 = vst [vmem:[#allocation3 + $0x60] sm:$0x1] %v8179
      %v8181 = vld [vmem:[#allocation3 + $0x68] sm:$0x1]
      %v8182 = vsel %vm1841, 0, %v8181
      %8183 = vst [vmem:[#allocation3 + $0x68] sm:$0x1] %v8182
      %v8184 = vld [vmem:[#allocation3 + $0x70] sm:$0x1]
      %v8185 = vsel %vm1841, 0, %v8184
      %8186 = vst [vmem:[#allocation3 + $0x70] sm:$0x1] %v8185
      %v8187 = vld [vmem:[#allocation3 + $0x78] sm:$0x1]
      %v8188 = vsel %vm1841, 0, %v8187
      %8189 = vst [vmem:[#allocation3 + $0x78] sm:$0x1] %v8188
      %v8190 = vld [vmem:[#allocation3 + $0x80] sm:$0x1]
      %v8191 = vsel %vm1841, 0, %v8190
      %8192 = vst [vmem:[#allocation3 + $0x80] sm:$0x1] %v8191
      %v8193 = vld [vmem:[#allocation3 + $0x88] sm:$0x1]
      %v8194 = vsel %vm1841, 0, %v8193
      %8195 = vst [vmem:[#allocation3 + $0x88] sm:$0x1] %v8194
      %v8196 = vld [vmem:[#allocation3 + $0x4] sm:$0x1]
      %v8197 = vsel %vm1903, 0, %v8196
      %8198 = vst [vmem:[#allocation3 + $0x4] sm:$0x1] %v8197
      %v8199 = vld [vmem:[#allocation3 + $0xc] sm:$0x1]
      %v8200 = vsel %vm1903, 0, %v8199
      %8201 = vst [vmem:[#allocation3 + $0xc] sm:$0x1] %v8200
      %v8202 = vld [vmem:[#allocation3 + $0x14] sm:$0x1]
      %v8203 = vsel %vm1903, 0, %v8202
      %8204 = vst [vmem:[#allocation3 + $0x14] sm:$0x1] %v8203
      %v8205 = vld [vmem:[#allocation3 + $0x1c] sm:$0x1]
      %v8206 = vsel %vm1903, 0, %v8205
      %8207 = vst [vmem:[#allocation3 + $0x1c] sm:$0x1] %v8206
      %v8208 = vld [vmem:[#allocation3 + $0x24] sm:$0x1]
      %v8209 = vsel %vm1903, 0, %v8208
      %8210 = vst [vmem:[#allocation3 + $0x24] sm:$0x1] %v8209
      %v8211 = vld [vmem:[#allocation3 + $0x2c] sm:$0x1]
      %v8212 = vsel %vm1903, 0, %v8211
      %8213 = vst [vmem:[#allocation3 + $0x2c] sm:$0x1] %v8212
      %v8214 = vld [vmem:[#allocation3 + $0x34] sm:$0x1]
      %v8215 = vsel %vm1903, 0, %v8214
      %8216 = vst [vmem:[#allocation3 + $0x34] sm:$0x1] %v8215
      %v8217 = vld [vmem:[#allocation3 + $0x3c] sm:$0x1]
      %v8218 = vsel %vm1903, 0, %v8217
      %8219 = vst [vmem:[#allocation3 + $0x3c] sm:$0x1] %v8218
      %v8220 = vld [vmem:[#allocation3 + $0x44] sm:$0x1]
      %v8221 = vsel %vm1903, 0, %v8220
      %8222 = vst [vmem:[#allocation3 + $0x44] sm:$0x1] %v8221
      %v8223 = vld [vmem:[#allocation3 + $0x4c] sm:$0x1]
      %v8224 = vsel %vm1903, 0, %v8223
      %8225 = vst [vmem:[#allocation3 + $0x4c] sm:$0x1] %v8224
      %v8226 = vld [vmem:[#allocation3 + $0x54] sm:$0x1]
      %v8227 = vsel %vm1903, 0, %v8226
      %8228 = vst [vmem:[#allocation3 + $0x54] sm:$0x1] %v8227
      %v8229 = vld [vmem:[#allocation3 + $0x5c] sm:$0x1]
      %v8230 = vsel %vm1903, 0, %v8229
      %8231 = vst [vmem:[#allocation3 + $0x5c] sm:$0x1] %v8230
      %v8232 = vld [vmem:[#allocation3 + $0x64] sm:$0x1]
      %v8233 = vsel %vm1903, 0, %v8232
      %8234 = vst [vmem:[#allocation3 + $0x64] sm:$0x1] %v8233
      %v8235 = vld [vmem:[#allocation3 + $0x6c] sm:$0x1]
      %v8236 = vsel %vm1903, 0, %v8235
      %8237 = vst [vmem:[#allocation3 + $0x6c] sm:$0x1] %v8236
      %v8238 = vld [vmem:[#allocation3 + $0x74] sm:$0x1]
      %v8239 = vsel %vm1903, 0, %v8238
      %8240 = vst [vmem:[#allocation3 + $0x74] sm:$0x1] %v8239
      %v8241 = vld [vmem:[#allocation3 + $0x7c] sm:$0x1]
      %v8242 = vsel %vm1903, 0, %v8241
      %8243 = vst [vmem:[#allocation3 + $0x7c] sm:$0x1] %v8242
      %v8244 = vld [vmem:[#allocation3 + $0x84] sm:$0x1]
      %v8245 = vsel %vm1903, 0, %v8244
      %8246 = vst [vmem:[#allocation3 + $0x84] sm:$0x1] %v8245
      %v8247 = vld [vmem:[#allocation3 + $0x8c] sm:$0x1]
      %v8248 = vsel %vm1903, 0, %v8247
      %8249 = vst [vmem:[#allocation3 + $0x8c] sm:$0x1] %v8248
      %v8250 = vpack.c.bf16 %v7998, %v7998
      %v8251 = vpack.c.bf16 %v7999, %v7999
      %v8252 = vpack.c.bf16 %v8000, %v8000
      %v8253 = vpack.c.bf16 %v8001, %v8001
      %v8254 = vpack.c.bf16 %v8002, %v8002
      %v8255 = vpack.c.bf16 %v8003, %v8003
      %v8256 = vpack.c.bf16 %v8004, %v8004
      %v8257 = vpack.c.bf16 %v8005, %v8005
      %v8258 = vpack.c.bf16 %v8006, %v8006
      %v8259 = vpack.c.bf16 %v8007, %v8007
      %v8260 = vpack.c.bf16 %v8008, %v8008
      %v8261 = vpack.c.bf16 %v8009, %v8009
      %v8262 = vpack.c.bf16 %v8010, %v8010
      %v8263 = vpack.c.bf16 %v8011, %v8011
      %v8264 = vpack.c.bf16 %v8012, %v8012
      %v8265 = vpack.c.bf16 %v8013, %v8013
      %v8266 = vpack.c.bf16 %v8014, %v8014
      %v8267 = vpack.c.bf16 %v8015, %v8015
      %v8268 = vpack.c.bf16 %v8016, %v8016
      %v8269 = vpack.c.bf16 %v8017, %v8017
      %v8270 = vpack.c.bf16 %v8018, %v8018
      %v8271 = vpack.c.bf16 %v8019, %v8019
      %v8272 = vpack.c.bf16 %v8020, %v8020
      %v8273 = vpack.c.bf16 %v8021, %v8021
      %v8274 = vpack.c.bf16 %v8022, %v8022
      %v8275 = vpack.c.bf16 %v8023, %v8023
      %v8276 = vpack.c.bf16 %v8024, %v8024
      %v8277 = vpack.c.bf16 %v8025, %v8025
      %v8278 = vpack.c.bf16 %v8026, %v8026
      %v8279 = vpack.c.bf16 %v8027, %v8027
      %v8280 = vpack.c.bf16 %v8028, %v8028
      %v8281 = vpack.c.bf16 %v8029, %v8029
      %v8282 = vpack.c.bf16 %v8030, %v8030
      %v8283 = vpack.c.bf16 %v8031, %v8031
      %v8284 = vpack.c.bf16 %v8032, %v8032
      %v8285 = vpack.c.bf16 %v8033, %v8033
      %v8286 = vpack.c.bf16 %v8034, %v8034
      %v8287 = vpack.c.bf16 %v8035, %v8035
      %v8288 = vpack.c.bf16 %v8036, %v8036
      %v8289 = vpack.c.bf16 %v8037, %v8037
      %v8290 = vpack.c.bf16 %v8038, %v8038
      %v8291 = vpack.c.bf16 %v8039, %v8039
      %v8292 = vpack.c.bf16 %v8040, %v8040
      %v8293 = vpack.c.bf16 %v8041, %v8041
      %v8294 = vpack.c.bf16 %v8042, %v8042
      %v8295 = vpack.c.bf16 %v8043, %v8043
      %v8296 = vpack.c.bf16 %v8044, %v8044
      %v8297 = vpack.c.bf16 %v8045, %v8045
      %v8298 = vpack.c.bf16 %v8046, %v8046
      %v8299 = vpack.c.bf16 %v8047, %v8047
      %v8300 = vpack.c.bf16 %v8048, %v8048
      %v8301 = vpack.c.bf16 %v8049, %v8049
      %v8302 = vpack.c.bf16 %v8050, %v8050
      %v8303 = vpack.c.bf16 %v8051, %v8051
      %v8304 = vpack.c.bf16 %v8052, %v8052
      %v8305 = vpack.c.bf16 %v8053, %v8053
      %v8306 = vpack.c.bf16 %v8054, %v8054
      %v8307 = vpack.c.bf16 %v8055, %v8055
      %v8308 = vpack.c.bf16 %v8056, %v8056
      %v8309 = vpack.c.bf16 %v8057, %v8057
      %v8310 = vpack.c.bf16 %v8058, %v8058
      %v8311 = vpack.c.bf16 %v8059, %v8059
      %v8312 = vpack.c.bf16 %v8060, %v8060
      %v8313 = vpack.c.bf16 %v8061, %v8061
      %v8314 = vpack.c.bf16 %v8062, %v8062
      %v8315 = vpack.c.bf16 %v8063, %v8063
      %v8316 = vpack.c.bf16 %v8064, %v8064
      %v8317 = vpack.c.bf16 %v8065, %v8065
      %v8318 = vpack.c.bf16 %v8066, %v8066
      %v8319 = vpack.c.bf16 %v8067, %v8067
      %v8320 = vpack.c.bf16 %v8068, %v8068
      %v8321 = vpack.c.bf16 %v8069, %v8069
      %v8322 = vpack.c.bf16 %v8070, %v8070
      %v8323 = vpack.c.bf16 %v8071, %v8071
      %v8324 = vpack.c.bf16 %v8072, %v8072
      %v8325 = vpack.c.bf16 %v8073, %v8073
      %v8326 = vpack.c.bf16 %v8074, %v8074
      %v8327 = vpack.c.bf16 %v8075, %v8075
      %v8328 = vpack.c.bf16 %v8076, %v8076
      %v8329 = vpack.c.bf16 %v8077, %v8077
      %v8330 = vpack.c.bf16 %v8078, %v8078
      %v8331 = vpack.c.bf16 %v8079, %v8079
      %v8332 = vpack.c.bf16 %v8080, %v8080
      %v8333 = vpack.c.bf16 %v8081, %v8081
      %v8334 = vpack.c.bf16 %v8082, %v8082
      %v8335 = vpack.c.bf16 %v8083, %v8083
      %v8336 = vpack.c.bf16 %v8084, %v8084
      %v8337 = vpack.c.bf16 %v8085, %v8085
      %v8338 = vpack.c.bf16 %v8086, %v8086
      %v8339 = vpack.c.bf16 %v8087, %v8087
      %v8340 = vpack.c.bf16 %v8088, %v8088
      %v8341 = vpack.c.bf16 %v8089, %v8089
      %v8342 = vpack.c.bf16 %v8090, %v8090
      %v8343 = vpack.c.bf16 %v8091, %v8091
      %v8344 = vpack.c.bf16 %v8092, %v8092
      %v8345 = vpack.c.bf16 %v8093, %v8093
      %v8346 = vpack.c.bf16 %v8094, %v8094
      %v8347 = vpack.c.bf16 %v8095, %v8095
      %v8348 = vpack.c.bf16 %v8096, %v8096
      %v8349 = vpack.c.bf16 %v8097, %v8097
      %v8350 = vpack.c.bf16 %v8098, %v8098
      %v8351 = vpack.c.bf16 %v8099, %v8099
      %v8352 = vpack.c.bf16 %v8100, %v8100
      %v8353 = vpack.c.bf16 %v8101, %v8101
      %v8354 = vpack.c.bf16 %v8102, %v8102
      %v8355 = vpack.c.bf16 %v8103, %v8103
      %v8356 = vpack.c.bf16 %v8104, %v8104
      %v8357 = vpack.c.bf16 %v8105, %v8105
      %v8358 = vpack.c.bf16 %v8106, %v8106
      %v8359 = vpack.c.bf16 %v8107, %v8107
      %v8360 = vpack.c.bf16 %v8108, %v8108
      %v8361 = vpack.c.bf16 %v8109, %v8109
      %v8362 = vpack.c.bf16 %v8110, %v8110
      %v8363 = vpack.c.bf16 %v8111, %v8111
      %v8364 = vpack.c.bf16 %v8112, %v8112
      %v8365 = vpack.c.bf16 %v8113, %v8113
      %v8366 = vpack.c.bf16 %v8114, %v8114
      %v8367 = vpack.c.bf16 %v8115, %v8115
      %v8368 = vpack.c.bf16 %v8116, %v8116
      %v8369 = vpack.c.bf16 %v8117, %v8117
      %v8370 = vpack.c.bf16 %v8118, %v8118
      %v8371 = vpack.c.bf16 %v8119, %v8119
      %v8372 = vpack.c.bf16 %v8120, %v8120
      %v8373 = vpack.c.bf16 %v8121, %v8121
      %v8374 = vpack.c.bf16 %v8122, %v8122
      %v8375 = vpack.c.bf16 %v8123, %v8123
      %v8376 = vpack.c.bf16 %v8124, %v8124
      %v8377 = vpack.c.bf16 %v8125, %v8125
      %v8378 = vpack.c.bf16 %v8126, %v8126
      %v8379 = vpack.c.bf16 %v8127, %v8127
      %v8380 = vpack.c.bf16 %v8128, %v8128
      %v8381 = vpack.c.bf16 %v8129, %v8129
      %v8382 = vpack.c.bf16 %v8130, %v8130
      %v8383 = vpack.c.bf16 %v8131, %v8131
      %v8384 = vpack.c.bf16 %v8132, %v8132
      %v8385 = vpack.c.bf16 %v8133, %v8133
      %v8386 = vpack.c.bf16 %v8134, %v8134
      %v8387 = vpack.c.bf16 %v8135, %v8135
      %v8388 = vpack.c.bf16 %v8136, %v8136
      %v8389 = vpack.c.bf16 %v8137, %v8137
      %v8390 = vpack.c.bf16 %v8138, %v8138
      %v8391 = vpack.c.bf16 %v8139, %v8139
      %v8392 = vpack.c.bf16 %v8140, %v8140
      %v8393 = vpack.c.bf16 %v8141, %v8141
      %v8538 = vunpack.c.l.b16 %v8250
      %v8539 = vunpack.c.l.b16 %v8251
      %v8540 = vunpack.c.l.b16 %v8252
      %v8541 = vunpack.c.l.b16 %v8253
      %v8542 = vunpack.c.l.b16 %v8254
      %v8543 = vunpack.c.l.b16 %v8255
      %v8544 = vunpack.c.l.b16 %v8256
      %v8545 = vunpack.c.l.b16 %v8257
      %v8546 = vunpack.c.l.b16 %v8258
      %v8547 = vunpack.c.l.b16 %v8259
      %v8548 = vunpack.c.l.b16 %v8260
      %v8549 = vunpack.c.l.b16 %v8261
      %v8550 = vunpack.c.l.b16 %v8262
      %v8551 = vunpack.c.l.b16 %v8263
      %v8552 = vunpack.c.l.b16 %v8264
      %v8553 = vunpack.c.l.b16 %v8265
      %v8554 = vunpack.c.l.b16 %v8266
      %v8555 = vunpack.c.l.b16 %v8267
      %v8556 = vunpack.c.l.b16 %v8268
      %v8557 = vunpack.c.l.b16 %v8269
      %v8558 = vunpack.c.l.b16 %v8270
      %v8559 = vunpack.c.l.b16 %v8271
      %v8560 = vunpack.c.l.b16 %v8272
      %v8561 = vunpack.c.l.b16 %v8273
      %v8562 = vunpack.c.l.b16 %v8274
      %v8563 = vunpack.c.l.b16 %v8275
      %v8564 = vunpack.c.l.b16 %v8276
      %v8565 = vunpack.c.l.b16 %v8277
      %v8566 = vunpack.c.l.b16 %v8278
      %v8567 = vunpack.c.l.b16 %v8279
      %v8568 = vunpack.c.l.b16 %v8280
      %v8569 = vunpack.c.l.b16 %v8281
      %v8570 = vunpack.c.l.b16 %v8282
      %v8571 = vunpack.c.l.b16 %v8283
      %v8572 = vunpack.c.l.b16 %v8284
      %v8573 = vunpack.c.l.b16 %v8285
      %v8574 = vunpack.c.l.b16 %v8286
      %v8575 = vunpack.c.l.b16 %v8287
      %v8576 = vunpack.c.l.b16 %v8288
      %v8577 = vunpack.c.l.b16 %v8289
      %v8578 = vunpack.c.l.b16 %v8290
      %v8579 = vunpack.c.l.b16 %v8291
      %v8580 = vunpack.c.l.b16 %v8292
      %v8581 = vunpack.c.l.b16 %v8293
      %v8582 = vunpack.c.l.b16 %v8294
      %v8583 = vunpack.c.l.b16 %v8295
      %v8584 = vunpack.c.l.b16 %v8296
      %v8585 = vunpack.c.l.b16 %v8297
      %v8586 = vunpack.c.l.b16 %v8298
      %v8587 = vunpack.c.l.b16 %v8299
      %v8588 = vunpack.c.l.b16 %v8300
      %v8589 = vunpack.c.l.b16 %v8301
      %v8590 = vunpack.c.l.b16 %v8302
      %v8591 = vunpack.c.l.b16 %v8303
      %v8592 = vunpack.c.l.b16 %v8304
      %v8593 = vunpack.c.l.b16 %v8305
      %v8594 = vunpack.c.l.b16 %v8306
      %v8595 = vunpack.c.l.b16 %v8307
      %v8596 = vunpack.c.l.b16 %v8308
      %v8597 = vunpack.c.l.b16 %v8309
      %v8598 = vunpack.c.l.b16 %v8310
      %v8599 = vunpack.c.l.b16 %v8311
      %v8600 = vunpack.c.l.b16 %v8312
      %v8601 = vunpack.c.l.b16 %v8313
      %v8602 = vunpack.c.l.b16 %v8314
      %v8603 = vunpack.c.l.b16 %v8315
      %v8604 = vunpack.c.l.b16 %v8316
      %v8605 = vunpack.c.l.b16 %v8317
      %v8606 = vunpack.c.l.b16 %v8318
      %v8607 = vunpack.c.l.b16 %v8319
      %v8608 = vunpack.c.l.b16 %v8320
      %v8609 = vunpack.c.l.b16 %v8321
      %v8610 = vunpack.c.l.b16 %v8322
      %v8611 = vunpack.c.l.b16 %v8323
      %v8612 = vunpack.c.l.b16 %v8324
      %v8613 = vunpack.c.l.b16 %v8325
      %v8614 = vunpack.c.l.b16 %v8326
      %v8615 = vunpack.c.l.b16 %v8327
      %v8616 = vunpack.c.l.b16 %v8328
      %v8617 = vunpack.c.l.b16 %v8329
      %v8618 = vunpack.c.l.b16 %v8330
      %v8619 = vunpack.c.l.b16 %v8331
      %v8620 = vunpack.c.l.b16 %v8332
      %v8621 = vunpack.c.l.b16 %v8333
      %v8622 = vunpack.c.l.b16 %v8334
      %v8623 = vunpack.c.l.b16 %v8335
      %v8624 = vunpack.c.l.b16 %v8336
      %v8625 = vunpack.c.l.b16 %v8337
      %v8626 = vunpack.c.l.b16 %v8338
      %v8627 = vunpack.c.l.b16 %v8339
      %v8628 = vunpack.c.l.b16 %v8340
      %v8629 = vunpack.c.l.b16 %v8341
      %v8630 = vunpack.c.l.b16 %v8342
      %v8631 = vunpack.c.l.b16 %v8343
      %v8632 = vunpack.c.l.b16 %v8344
      %v8633 = vunpack.c.l.b16 %v8345
      %v8634 = vunpack.c.l.b16 %v8346
      %v8635 = vunpack.c.l.b16 %v8347
      %v8636 = vunpack.c.l.b16 %v8348
      %v8637 = vunpack.c.l.b16 %v8349
      %v8638 = vunpack.c.l.b16 %v8350
      %v8639 = vunpack.c.l.b16 %v8351
      %v8640 = vunpack.c.l.b16 %v8352
      %v8641 = vunpack.c.l.b16 %v8353
      %v8642 = vunpack.c.l.b16 %v8354
      %v8643 = vunpack.c.l.b16 %v8355
      %v8644 = vunpack.c.l.b16 %v8356
      %v8645 = vunpack.c.l.b16 %v8357
      %v8646 = vunpack.c.l.b16 %v8358
      %v8647 = vunpack.c.l.b16 %v8359
      %v8648 = vunpack.c.l.b16 %v8360
      %v8649 = vunpack.c.l.b16 %v8361
      %v8650 = vunpack.c.l.b16 %v8362
      %v8651 = vunpack.c.l.b16 %v8363
      %v8652 = vunpack.c.l.b16 %v8364
      %v8653 = vunpack.c.l.b16 %v8365
      %v8654 = vunpack.c.l.b16 %v8366
      %v8655 = vunpack.c.l.b16 %v8367
      %v8656 = vunpack.c.l.b16 %v8368
      %v8657 = vunpack.c.l.b16 %v8369
      %v8658 = vunpack.c.l.b16 %v8370
      %v8659 = vunpack.c.l.b16 %v8371
      %v8660 = vunpack.c.l.b16 %v8372
      %v8661 = vunpack.c.l.b16 %v8373
      %v8662 = vunpack.c.l.b16 %v8374
      %v8663 = vunpack.c.l.b16 %v8375
      %v8664 = vunpack.c.l.b16 %v8376
      %v8665 = vunpack.c.l.b16 %v8377
      %v8666 = vunpack.c.l.b16 %v8378
      %v8667 = vunpack.c.l.b16 %v8379
      %v8668 = vunpack.c.l.b16 %v8380
      %v8669 = vunpack.c.l.b16 %v8381
      %v8670 = vunpack.c.l.b16 %v8382
      %v8671 = vunpack.c.l.b16 %v8383
      %v8672 = vunpack.c.l.b16 %v8384
      %v8673 = vunpack.c.l.b16 %v8385
      %v8674 = vunpack.c.l.b16 %v8386
      %v8675 = vunpack.c.l.b16 %v8387
      %v8676 = vunpack.c.l.b16 %v8388
      %v8677 = vunpack.c.l.b16 %v8389
      %v8678 = vunpack.c.l.b16 %v8390
      %v8679 = vunpack.c.l.b16 %v8391
      %v8680 = vunpack.c.l.b16 %v8392
      %v8681 = vunpack.c.l.b16 %v8393
      %v8682 = vpack.c.b16 %v8538, %v8538
      %v8683 = vpack.c.b16 %v8539, %v8539
      %v8684 = vpack.c.b16 %v8540, %v8540
      %v8685 = vpack.c.b16 %v8541, %v8541
      %v8686 = vpack.c.b16 %v8542, %v8542
      %v8687 = vpack.c.b16 %v8543, %v8543
      %v8688 = vpack.c.b16 %v8544, %v8544
      %v8689 = vpack.c.b16 %v8545, %v8545
      %v8690 = vpack.c.b16 %v8546, %v8546
      %v8691 = vpack.c.b16 %v8547, %v8547
      %v8692 = vpack.c.b16 %v8548, %v8548
      %v8693 = vpack.c.b16 %v8549, %v8549
      %v8694 = vpack.c.b16 %v8550, %v8550
      %v8695 = vpack.c.b16 %v8551, %v8551
      %v8696 = vpack.c.b16 %v8552, %v8552
      %v8697 = vpack.c.b16 %v8553, %v8553
      %v8698 = vpack.c.b16 %v8554, %v8554
      %v8699 = vpack.c.b16 %v8555, %v8555
      %v8700 = vpack.c.b16 %v8556, %v8556
      %v8701 = vpack.c.b16 %v8557, %v8557
      %v8702 = vpack.c.b16 %v8558, %v8558
      %v8703 = vpack.c.b16 %v8559, %v8559
      %v8704 = vpack.c.b16 %v8560, %v8560
      %v8705 = vpack.c.b16 %v8561, %v8561
      %v8706 = vpack.c.b16 %v8562, %v8562
      %v8707 = vpack.c.b16 %v8563, %v8563
      %v8708 = vpack.c.b16 %v8564, %v8564
      %v8709 = vpack.c.b16 %v8565, %v8565
      %v8710 = vpack.c.b16 %v8566, %v8566
      %v8711 = vpack.c.b16 %v8567, %v8567
      %v8712 = vpack.c.b16 %v8568, %v8568
      %v8713 = vpack.c.b16 %v8569, %v8569
      %v8714 = vpack.c.b16 %v8570, %v8570
      %v8715 = vpack.c.b16 %v8571, %v8571
      %v8716 = vpack.c.b16 %v8572, %v8572
      %v8717 = vpack.c.b16 %v8573, %v8573
      %v8718 = vpack.c.b16 %v8574, %v8574
      %v8719 = vpack.c.b16 %v8575, %v8575
      %v8720 = vpack.c.b16 %v8576, %v8576
      %v8721 = vpack.c.b16 %v8577, %v8577
      %v8722 = vpack.c.b16 %v8578, %v8578
      %v8723 = vpack.c.b16 %v8579, %v8579
      %v8724 = vpack.c.b16 %v8580, %v8580
      %v8725 = vpack.c.b16 %v8581, %v8581
      %v8726 = vpack.c.b16 %v8582, %v8582
      %v8727 = vpack.c.b16 %v8583, %v8583
      %v8728 = vpack.c.b16 %v8584, %v8584
      %v8729 = vpack.c.b16 %v8585, %v8585
      %v8730 = vpack.c.b16 %v8586, %v8586
      %v8731 = vpack.c.b16 %v8587, %v8587
      %v8732 = vpack.c.b16 %v8588, %v8588
      %v8733 = vpack.c.b16 %v8589, %v8589
      %v8734 = vpack.c.b16 %v8590, %v8590
      %v8735 = vpack.c.b16 %v8591, %v8591
      %v8736 = vpack.c.b16 %v8592, %v8592
      %v8737 = vpack.c.b16 %v8593, %v8593
      %v8738 = vpack.c.b16 %v8594, %v8594
      %v8739 = vpack.c.b16 %v8595, %v8595
      %v8740 = vpack.c.b16 %v8596, %v8596
      %v8741 = vpack.c.b16 %v8597, %v8597
      %v8742 = vpack.c.b16 %v8598, %v8598
      %v8743 = vpack.c.b16 %v8599, %v8599
      %v8744 = vpack.c.b16 %v8600, %v8600
      %v8745 = vpack.c.b16 %v8601, %v8601
      %v8746 = vpack.c.b16 %v8602, %v8602
      %v8747 = vpack.c.b16 %v8603, %v8603
      %v8748 = vpack.c.b16 %v8604, %v8604
      %v8749 = vpack.c.b16 %v8605, %v8605
      %v8750 = vpack.c.b16 %v8606, %v8606
      %v8751 = vpack.c.b16 %v8607, %v8607
      %v8752 = vpack.c.b16 %v8608, %v8608
      %v8753 = vpack.c.b16 %v8609, %v8609
      %v8754 = vpack.c.b16 %v8610, %v8610
      %v8755 = vpack.c.b16 %v8611, %v8611
      %v8756 = vpack.c.b16 %v8612, %v8612
      %v8757 = vpack.c.b16 %v8613, %v8613
      %v8758 = vpack.c.b16 %v8614, %v8614
      %v8759 = vpack.c.b16 %v8615, %v8615
      %v8760 = vpack.c.b16 %v8616, %v8616
      %v8761 = vpack.c.b16 %v8617, %v8617
      %v8762 = vpack.c.b16 %v8618, %v8618
      %v8763 = vpack.c.b16 %v8619, %v8619
      %v8764 = vpack.c.b16 %v8620, %v8620
      %v8765 = vpack.c.b16 %v8621, %v8621
      %v8766 = vpack.c.b16 %v8622, %v8622
      %v8767 = vpack.c.b16 %v8623, %v8623
      %v8768 = vpack.c.b16 %v8624, %v8624
      %v8769 = vpack.c.b16 %v8625, %v8625
      %v8770 = vpack.c.b16 %v8626, %v8626
      %v8771 = vpack.c.b16 %v8627, %v8627
      %v8772 = vpack.c.b16 %v8628, %v8628
      %v8773 = vpack.c.b16 %v8629, %v8629
      %v8774 = vpack.c.b16 %v8630, %v8630
      %v8775 = vpack.c.b16 %v8631, %v8631
      %v8776 = vpack.c.b16 %v8632, %v8632
      %v8777 = vpack.c.b16 %v8633, %v8633
      %v8778 = vpack.c.b16 %v8634, %v8634
      %v8779 = vpack.c.b16 %v8635, %v8635
      %v8780 = vpack.c.b16 %v8636, %v8636
      %v8781 = vpack.c.b16 %v8637, %v8637
      %v8782 = vpack.c.b16 %v8638, %v8638
      %v8783 = vpack.c.b16 %v8639, %v8639
      %v8784 = vpack.c.b16 %v8640, %v8640
      %v8785 = vpack.c.b16 %v8641, %v8641
      %v8786 = vpack.c.b16 %v8642, %v8642
      %v8787 = vpack.c.b16 %v8643, %v8643
      %v8788 = vpack.c.b16 %v8644, %v8644
      %v8789 = vpack.c.b16 %v8645, %v8645
      %v8790 = vpack.c.b16 %v8646, %v8646
      %v8791 = vpack.c.b16 %v8647, %v8647
      %v8792 = vpack.c.b16 %v8648, %v8648
      %v8793 = vpack.c.b16 %v8649, %v8649
      %v8794 = vpack.c.b16 %v8650, %v8650
      %v8795 = vpack.c.b16 %v8651, %v8651
      %v8796 = vpack.c.b16 %v8652, %v8652
      %v8797 = vpack.c.b16 %v8653, %v8653
      %v8798 = vpack.c.b16 %v8654, %v8654
      %v8799 = vpack.c.b16 %v8655, %v8655
      %v8800 = vpack.c.b16 %v8656, %v8656
      %v8801 = vpack.c.b16 %v8657, %v8657
      %v8802 = vpack.c.b16 %v8658, %v8658
      %v8803 = vpack.c.b16 %v8659, %v8659
      %v8804 = vpack.c.b16 %v8660, %v8660
      %v8805 = vpack.c.b16 %v8661, %v8661
      %v8806 = vpack.c.b16 %v8662, %v8662
      %v8807 = vpack.c.b16 %v8663, %v8663
      %v8808 = vpack.c.b16 %v8664, %v8664
      %v8809 = vpack.c.b16 %v8665, %v8665
      %v8810 = vpack.c.b16 %v8666, %v8666
      %v8811 = vpack.c.b16 %v8667, %v8667
      %v8812 = vpack.c.b16 %v8668, %v8668
      %v8813 = vpack.c.b16 %v8669, %v8669
      %v8814 = vpack.c.b16 %v8670, %v8670
      %v8815 = vpack.c.b16 %v8671, %v8671
      %v8816 = vpack.c.b16 %v8672, %v8672
      %v8817 = vpack.c.b16 %v8673, %v8673
      %v8818 = vpack.c.b16 %v8674, %v8674
      %v8819 = vpack.c.b16 %v8675, %v8675
      %v8820 = vpack.c.b16 %v8676, %v8676
      %v8821 = vpack.c.b16 %v8677, %v8677
      %v8822 = vpack.c.b16 %v8678, %v8678
      %v8823 = vpack.c.b16 %v8679, %v8679
      %v8824 = vpack.c.b16 %v8680, %v8680
      %v8825 = vpack.c.b16 %v8681, %v8681
      %v8826 = vunpack.c.l.b16 %v8682
      %v8827 = vunpack.c.l.b16 %v8683
      %v8828 = vunpack.c.l.b16 %v8684
      %v8829 = vunpack.c.l.b16 %v8685
      %v8830 = vunpack.c.l.b16 %v8686
      %v8831 = vunpack.c.l.b16 %v8687
      %v8832 = vunpack.c.l.b16 %v8688
      %v8833 = vunpack.c.l.b16 %v8689
      %v8834 = vunpack.c.l.b16 %v8690
      %v8835 = vunpack.c.l.b16 %v8691
      %v8836 = vunpack.c.l.b16 %v8692
      %v8837 = vunpack.c.l.b16 %v8693
      %v8838 = vunpack.c.l.b16 %v8694
      %v8839 = vunpack.c.l.b16 %v8695
      %v8840 = vunpack.c.l.b16 %v8696
      %v8841 = vunpack.c.l.b16 %v8697
      %v8842 = vunpack.c.l.b16 %v8698
      %v8843 = vunpack.c.l.b16 %v8699
      %v8844 = vunpack.c.l.b16 %v8700
      %v8845 = vunpack.c.l.b16 %v8701
      %v8846 = vunpack.c.l.b16 %v8702
      %v8847 = vunpack.c.l.b16 %v8703
      %v8848 = vunpack.c.l.b16 %v8704
      %v8849 = vunpack.c.l.b16 %v8705
      %v8850 = vunpack.c.l.b16 %v8706
      %v8851 = vunpack.c.l.b16 %v8707
      %v8852 = vunpack.c.l.b16 %v8708
      %v8853 = vunpack.c.l.b16 %v8709
      %v8854 = vunpack.c.l.b16 %v8710
      %v8855 = vunpack.c.l.b16 %v8711
      %v8856 = vunpack.c.l.b16 %v8712
      %v8857 = vunpack.c.l.b16 %v8713
      %v8858 = vunpack.c.l.b16 %v8714
      %v8859 = vunpack.c.l.b16 %v8715
      %v8860 = vunpack.c.l.b16 %v8716
      %v8861 = vunpack.c.l.b16 %v8717
      %v8862 = vunpack.c.l.b16 %v8718
      %v8863 = vunpack.c.l.b16 %v8719
      %v8864 = vunpack.c.l.b16 %v8720
      %v8865 = vunpack.c.l.b16 %v8721
      %v8866 = vunpack.c.l.b16 %v8722
      %v8867 = vunpack.c.l.b16 %v8723
      %v8868 = vunpack.c.l.b16 %v8724
      %v8869 = vunpack.c.l.b16 %v8725
      %v8870 = vunpack.c.l.b16 %v8726
      %v8871 = vunpack.c.l.b16 %v8727
      %v8872 = vunpack.c.l.b16 %v8728
      %v8873 = vunpack.c.l.b16 %v8729
      %v8874 = vunpack.c.l.b16 %v8730
      %v8875 = vunpack.c.l.b16 %v8731
      %v8876 = vunpack.c.l.b16 %v8732
      %v8877 = vunpack.c.l.b16 %v8733
      %v8878 = vunpack.c.l.b16 %v8734
      %v8879 = vunpack.c.l.b16 %v8735
      %v8880 = vunpack.c.l.b16 %v8736
      %v8881 = vunpack.c.l.b16 %v8737
      %v8882 = vunpack.c.l.b16 %v8738
      %v8883 = vunpack.c.l.b16 %v8739
      %v8884 = vunpack.c.l.b16 %v8740
      %v8885 = vunpack.c.l.b16 %v8741
      %v8886 = vunpack.c.l.b16 %v8742
      %v8887 = vunpack.c.l.b16 %v8743
      %v8888 = vunpack.c.l.b16 %v8744
      %v8889 = vunpack.c.l.b16 %v8745
      %v8890 = vunpack.c.l.b16 %v8746
      %v8891 = vunpack.c.l.b16 %v8747
      %v8892 = vunpack.c.l.b16 %v8748
      %v8893 = vunpack.c.l.b16 %v8749
      %v8894 = vunpack.c.l.b16 %v8750
      %v8895 = vunpack.c.l.b16 %v8751
      %v8896 = vunpack.c.l.b16 %v8752
      %v8897 = vunpack.c.l.b16 %v8753
      %v8898 = vunpack.c.l.b16 %v8754
      %v8899 = vunpack.c.l.b16 %v8755
      %v8900 = vunpack.c.l.b16 %v8756
      %v8901 = vunpack.c.l.b16 %v8757
      %v8902 = vunpack.c.l.b16 %v8758
      %v8903 = vunpack.c.l.b16 %v8759
      %v8904 = vunpack.c.l.b16 %v8760
      %v8905 = vunpack.c.l.b16 %v8761
      %v8906 = vunpack.c.l.b16 %v8762
      %v8907 = vunpack.c.l.b16 %v8763
      %v8908 = vunpack.c.l.b16 %v8764
      %v8909 = vunpack.c.l.b16 %v8765
      %v8910 = vunpack.c.l.b16 %v8766
      %v8911 = vunpack.c.l.b16 %v8767
      %v8912 = vunpack.c.l.b16 %v8768
      %v8913 = vunpack.c.l.b16 %v8769
      %v8914 = vunpack.c.l.b16 %v8770
      %v8915 = vunpack.c.l.b16 %v8771
      %v8916 = vunpack.c.l.b16 %v8772
      %v8917 = vunpack.c.l.b16 %v8773
      %v8918 = vunpack.c.l.b16 %v8774
      %v8919 = vunpack.c.l.b16 %v8775
      %v8920 = vunpack.c.l.b16 %v8776
      %v8921 = vunpack.c.l.b16 %v8777
      %v8922 = vunpack.c.l.b16 %v8778
      %v8923 = vunpack.c.l.b16 %v8779
      %v8924 = vunpack.c.l.b16 %v8780
      %v8925 = vunpack.c.l.b16 %v8781
      %v8926 = vunpack.c.l.b16 %v8782
      %v8927 = vunpack.c.l.b16 %v8783
      %v8928 = vunpack.c.l.b16 %v8784
      %v8929 = vunpack.c.l.b16 %v8785
      %v8930 = vunpack.c.l.b16 %v8786
      %v8931 = vunpack.c.l.b16 %v8787
      %v8932 = vunpack.c.l.b16 %v8788
      %v8933 = vunpack.c.l.b16 %v8789
      %v8934 = vunpack.c.l.b16 %v8790
      %v8935 = vunpack.c.l.b16 %v8791
      %v8936 = vunpack.c.l.b16 %v8792
      %v8937 = vunpack.c.l.b16 %v8793
      %v8938 = vunpack.c.l.b16 %v8794
      %v8939 = vunpack.c.l.b16 %v8795
      %v8940 = vunpack.c.l.b16 %v8796
      %v8941 = vunpack.c.l.b16 %v8797
      %v8942 = vunpack.c.l.b16 %v8798
      %v8943 = vunpack.c.l.b16 %v8799
      %v8944 = vunpack.c.l.b16 %v8800
      %v8945 = vunpack.c.l.b16 %v8801
      %v8946 = vunpack.c.l.b16 %v8802
      %v8947 = vunpack.c.l.b16 %v8803
      %v8948 = vunpack.c.l.b16 %v8804
      %v8949 = vunpack.c.l.b16 %v8805
      %v8950 = vunpack.c.l.b16 %v8806
      %v8951 = vunpack.c.l.b16 %v8807
      %v8952 = vunpack.c.l.b16 %v8808
      %v8953 = vunpack.c.l.b16 %v8809
      %v8954 = vunpack.c.l.b16 %v8810
      %v8955 = vunpack.c.l.b16 %v8811
      %v8956 = vunpack.c.l.b16 %v8812
      %v8957 = vunpack.c.l.b16 %v8813
      %v8958 = vunpack.c.l.b16 %v8814
      %v8959 = vunpack.c.l.b16 %v8815
      %v8960 = vunpack.c.l.b16 %v8816
      %v8961 = vunpack.c.l.b16 %v8817
      %v8962 = vunpack.c.l.b16 %v8818
      %v8963 = vunpack.c.l.b16 %v8819
      %v8964 = vunpack.c.l.b16 %v8820
      %v8965 = vunpack.c.l.b16 %v8821
      %v8966 = vunpack.c.l.b16 %v8822
      %v8967 = vunpack.c.l.b16 %v8823
      %v8968 = vunpack.c.l.b16 %v8824
      %v8969 = vunpack.c.l.b16 %v8825
      %v8970 = vrot.slane %v8826, 7
      %v8971 = vrot.slane %v8827, 6
      %vm8972 = vcmask 1042434
      %v8973 = vsel %vm8972, %v8971, %v8970
      %v8974 = vrot.slane %v8828, 5
      %vm8975 = vcmask 1043459
      %v8976 = vsel %vm8975, %v8974, %v8973
      %v8977 = vrot.slane %v8829, 4
      %vm8978 = vcmask 1044484
      %v8979 = vsel %vm8978, %v8977, %v8976
      %v8980 = vrot.slane %v8830, 3
      %vm8981 = vcmask 1045509
      %v8982 = vsel %vm8981, %v8980, %v8979
      %v8983 = vrot.slane %v8831, 2
      %vm8984 = vcmask 1046534
      %v8985 = vsel %vm8984, %v8983, %v8982
      %v8986 = vrot.slane %v8832, 1
      %vm8987 = vcmask 1047559
      %v8988 = vsel %vm8987, %v8986, %v8985
      %v8989 = vrot.slane %v8834, 7
      %v8990 = vrot.slane %v8835, 6
      %v8991 = vsel %vm8972, %v8990, %v8989
      %v8992 = vrot.slane %v8836, 5
      %v8993 = vsel %vm8975, %v8992, %v8991
      %v8994 = vrot.slane %v8837, 4
      %v8995 = vsel %vm8978, %v8994, %v8993
      %v8996 = vrot.slane %v8838, 3
      %v8997 = vsel %vm8981, %v8996, %v8995
      %v8998 = vrot.slane %v8839, 2
      %v8999 = vsel %vm8984, %v8998, %v8997
      %v9000 = vrot.slane %v8840, 1
      %v9001 = vsel %vm8987, %v9000, %v8999
      %v9002 = vrot.slane %v8842, 7
      %v9003 = vrot.slane %v8843, 6
      %v9004 = vsel %vm8972, %v9003, %v9002
      %v9005 = vrot.slane %v8844, 5
      %v9006 = vsel %vm8975, %v9005, %v9004
      %v9007 = vrot.slane %v8845, 4
      %v9008 = vsel %vm8978, %v9007, %v9006
      %v9009 = vrot.slane %v8846, 3
      %v9010 = vsel %vm8981, %v9009, %v9008
      %v9011 = vrot.slane %v8847, 2
      %v9012 = vsel %vm8984, %v9011, %v9010
      %v9013 = vrot.slane %v8848, 1
      %v9014 = vsel %vm8987, %v9013, %v9012
      %v9015 = vrot.slane %v8850, 7
      %v9016 = vrot.slane %v8851, 6
      %v9017 = vsel %vm8972, %v9016, %v9015
      %v9018 = vrot.slane %v8852, 5
      %v9019 = vsel %vm8975, %v9018, %v9017
      %v9020 = vrot.slane %v8853, 4
      %v9021 = vsel %vm8978, %v9020, %v9019
      %v9022 = vrot.slane %v8854, 3
      %v9023 = vsel %vm8981, %v9022, %v9021
      %v9024 = vrot.slane %v8855, 2
      %v9025 = vsel %vm8984, %v9024, %v9023
      %v9026 = vrot.slane %v8856, 1
      %v9027 = vsel %vm8987, %v9026, %v9025
      %v9028 = vrot.slane %v8858, 7
      %v9029 = vrot.slane %v8859, 6
      %v9030 = vsel %vm8972, %v9029, %v9028
      %v9031 = vrot.slane %v8860, 5
      %v9032 = vsel %vm8975, %v9031, %v9030
      %v9033 = vrot.slane %v8861, 4
      %v9034 = vsel %vm8978, %v9033, %v9032
      %v9035 = vrot.slane %v8862, 3
      %v9036 = vsel %vm8981, %v9035, %v9034
      %v9037 = vrot.slane %v8863, 2
      %v9038 = vsel %vm8984, %v9037, %v9036
      %v9039 = vrot.slane %v8864, 1
      %v9040 = vsel %vm8987, %v9039, %v9038
      %v9041 = vrot.slane %v8866, 7
      %v9042 = vrot.slane %v8867, 6
      %v9043 = vsel %vm8972, %v9042, %v9041
      %v9044 = vrot.slane %v8868, 5
      %v9045 = vsel %vm8975, %v9044, %v9043
      %v9046 = vrot.slane %v8869, 4
      %v9047 = vsel %vm8978, %v9046, %v9045
      %v9048 = vrot.slane %v8870, 3
      %v9049 = vsel %vm8981, %v9048, %v9047
      %v9050 = vrot.slane %v8871, 2
      %v9051 = vsel %vm8984, %v9050, %v9049
      %v9052 = vrot.slane %v8872, 1
      %v9053 = vsel %vm8987, %v9052, %v9051
      %v9054 = vrot.slane %v8874, 7
      %v9055 = vrot.slane %v8875, 6
      %v9056 = vsel %vm8972, %v9055, %v9054
      %v9057 = vrot.slane %v8876, 5
      %v9058 = vsel %vm8975, %v9057, %v9056
      %v9059 = vrot.slane %v8877, 4
      %v9060 = vsel %vm8978, %v9059, %v9058
      %v9061 = vrot.slane %v8878, 3
      %v9062 = vsel %vm8981, %v9061, %v9060
      %v9063 = vrot.slane %v8879, 2
      %v9064 = vsel %vm8984, %v9063, %v9062
      %v9065 = vrot.slane %v8880, 1
      %v9066 = vsel %vm8987, %v9065, %v9064
      %v9067 = vrot.slane %v8882, 7
      %v9068 = vrot.slane %v8883, 6
      %v9069 = vsel %vm8972, %v9068, %v9067
      %v9070 = vrot.slane %v8884, 5
      %v9071 = vsel %vm8975, %v9070, %v9069
      %v9072 = vrot.slane %v8885, 4
      %v9073 = vsel %vm8978, %v9072, %v9071
      %v9074 = vrot.slane %v8886, 3
      %v9075 = vsel %vm8981, %v9074, %v9073
      %v9076 = vrot.slane %v8887, 2
      %v9077 = vsel %vm8984, %v9076, %v9075
      %v9078 = vrot.slane %v8888, 1
      %v9079 = vsel %vm8987, %v9078, %v9077
      %v9080 = vrot.slane %v8890, 7
      %v9081 = vrot.slane %v8891, 6
      %v9082 = vsel %vm8972, %v9081, %v9080
      %v9083 = vrot.slane %v8892, 5
      %v9084 = vsel %vm8975, %v9083, %v9082
      %v9085 = vrot.slane %v8893, 4
      %v9086 = vsel %vm8978, %v9085, %v9084
      %v9087 = vrot.slane %v8894, 3
      %v9088 = vsel %vm8981, %v9087, %v9086
      %v9089 = vrot.slane %v8895, 2
      %v9090 = vsel %vm8984, %v9089, %v9088
      %v9091 = vrot.slane %v8896, 1
      %v9092 = vsel %vm8987, %v9091, %v9090
      %v9093 = vrot.slane %v8898, 7
      %v9094 = vrot.slane %v8899, 6
      %v9095 = vsel %vm8972, %v9094, %v9093
      %v9096 = vrot.slane %v8900, 5
      %v9097 = vsel %vm8975, %v9096, %v9095
      %v9098 = vrot.slane %v8901, 4
      %v9099 = vsel %vm8978, %v9098, %v9097
      %v9100 = vrot.slane %v8902, 3
      %v9101 = vsel %vm8981, %v9100, %v9099
      %v9102 = vrot.slane %v8903, 2
      %v9103 = vsel %vm8984, %v9102, %v9101
      %v9104 = vrot.slane %v8904, 1
      %v9105 = vsel %vm8987, %v9104, %v9103
      %v9106 = vrot.slane %v8906, 7
      %v9107 = vrot.slane %v8907, 6
      %v9108 = vsel %vm8972, %v9107, %v9106
      %v9109 = vrot.slane %v8908, 5
      %v9110 = vsel %vm8975, %v9109, %v9108
      %v9111 = vrot.slane %v8909, 4
      %v9112 = vsel %vm8978, %v9111, %v9110
      %v9113 = vrot.slane %v8910, 3
      %v9114 = vsel %vm8981, %v9113, %v9112
      %v9115 = vrot.slane %v8911, 2
      %v9116 = vsel %vm8984, %v9115, %v9114
      %v9117 = vrot.slane %v8912, 1
      %v9118 = vsel %vm8987, %v9117, %v9116
      %v9119 = vrot.slane %v8914, 7
      %v9120 = vrot.slane %v8915, 6
      %v9121 = vsel %vm8972, %v9120, %v9119
      %v9122 = vrot.slane %v8916, 5
      %v9123 = vsel %vm8975, %v9122, %v9121
      %v9124 = vrot.slane %v8917, 4
      %v9125 = vsel %vm8978, %v9124, %v9123
      %v9126 = vrot.slane %v8918, 3
      %v9127 = vsel %vm8981, %v9126, %v9125
      %v9128 = vrot.slane %v8919, 2
      %v9129 = vsel %vm8984, %v9128, %v9127
      %v9130 = vrot.slane %v8920, 1
      %v9131 = vsel %vm8987, %v9130, %v9129
      %v9132 = vrot.slane %v8922, 7
      %v9133 = vrot.slane %v8923, 6
      %v9134 = vsel %vm8972, %v9133, %v9132
      %v9135 = vrot.slane %v8924, 5
      %v9136 = vsel %vm8975, %v9135, %v9134
      %v9137 = vrot.slane %v8925, 4
      %v9138 = vsel %vm8978, %v9137, %v9136
      %v9139 = vrot.slane %v8926, 3
      %v9140 = vsel %vm8981, %v9139, %v9138
      %v9141 = vrot.slane %v8927, 2
      %v9142 = vsel %vm8984, %v9141, %v9140
      %v9143 = vrot.slane %v8928, 1
      %v9144 = vsel %vm8987, %v9143, %v9142
      %v9145 = vrot.slane %v8930, 7
      %v9146 = vrot.slane %v8931, 6
      %v9147 = vsel %vm8972, %v9146, %v9145
      %v9148 = vrot.slane %v8932, 5
      %v9149 = vsel %vm8975, %v9148, %v9147
      %v9150 = vrot.slane %v8933, 4
      %v9151 = vsel %vm8978, %v9150, %v9149
      %v9152 = vrot.slane %v8934, 3
      %v9153 = vsel %vm8981, %v9152, %v9151
      %v9154 = vrot.slane %v8935, 2
      %v9155 = vsel %vm8984, %v9154, %v9153
      %v9156 = vrot.slane %v8936, 1
      %v9157 = vsel %vm8987, %v9156, %v9155
      %v9158 = vrot.slane %v8938, 7
      %v9159 = vrot.slane %v8939, 6
      %v9160 = vsel %vm8972, %v9159, %v9158
      %v9161 = vrot.slane %v8940, 5
      %v9162 = vsel %vm8975, %v9161, %v9160
      %v9163 = vrot.slane %v8941, 4
      %v9164 = vsel %vm8978, %v9163, %v9162
      %v9165 = vrot.slane %v8942, 3
      %v9166 = vsel %vm8981, %v9165, %v9164
      %v9167 = vrot.slane %v8943, 2
      %v9168 = vsel %vm8984, %v9167, %v9166
      %v9169 = vrot.slane %v8944, 1
      %v9170 = vsel %vm8987, %v9169, %v9168
      %v9171 = vrot.slane %v8946, 7
      %v9172 = vrot.slane %v8947, 6
      %v9173 = vsel %vm8972, %v9172, %v9171
      %v9174 = vrot.slane %v8948, 5
      %v9175 = vsel %vm8975, %v9174, %v9173
      %v9176 = vrot.slane %v8949, 4
      %v9177 = vsel %vm8978, %v9176, %v9175
      %v9178 = vrot.slane %v8950, 3
      %v9179 = vsel %vm8981, %v9178, %v9177
      %v9180 = vrot.slane %v8951, 2
      %v9181 = vsel %vm8984, %v9180, %v9179
      %v9182 = vrot.slane %v8952, 1
      %v9183 = vsel %vm8987, %v9182, %v9181
      %v9184 = vrot.slane %v8954, 7
      %v9185 = vrot.slane %v8955, 6
      %v9186 = vsel %vm8972, %v9185, %v9184
      %v9187 = vrot.slane %v8956, 5
      %v9188 = vsel %vm8975, %v9187, %v9186
      %v9189 = vrot.slane %v8957, 4
      %v9190 = vsel %vm8978, %v9189, %v9188
      %v9191 = vrot.slane %v8958, 3
      %v9192 = vsel %vm8981, %v9191, %v9190
      %v9193 = vrot.slane %v8959, 2
      %v9194 = vsel %vm8984, %v9193, %v9192
      %v9195 = vrot.slane %v8960, 1
      %v9196 = vsel %vm8987, %v9195, %v9194
      %v9197 = vrot.slane %v8962, 7
      %v9198 = vrot.slane %v8963, 6
      %v9199 = vsel %vm8972, %v9198, %v9197
      %v9200 = vrot.slane %v8964, 5
      %v9201 = vsel %vm8975, %v9200, %v9199
      %v9202 = vrot.slane %v8965, 4
      %v9203 = vsel %vm8978, %v9202, %v9201
      %v9204 = vrot.slane %v8966, 3
      %v9205 = vsel %vm8981, %v9204, %v9203
      %v9206 = vrot.slane %v8967, 2
      %v9207 = vsel %vm8984, %v9206, %v9205
      %v9208 = vrot.slane %v8968, 1
      %v9209 = vsel %vm8987, %v9208, %v9207
      %v9210 = vpack.c.b16 %v8988, %v8988
      %v9211 = vpack.c.b16 %v8833, %v8833
      %v9212 = vpack.c.b16 %v9001, %v9001
      %v9213 = vpack.c.b16 %v8841, %v8841
      %v9214 = vpack.c.b16 %v9014, %v9014
      %v9215 = vpack.c.b16 %v8849, %v8849
      %v9216 = vpack.c.b16 %v9027, %v9027
      %v9217 = vpack.c.b16 %v8857, %v8857
      %v9218 = vpack.c.b16 %v9040, %v9040
      %v9219 = vpack.c.b16 %v8865, %v8865
      %v9220 = vpack.c.b16 %v9053, %v9053
      %v9221 = vpack.c.b16 %v8873, %v8873
      %v9222 = vpack.c.b16 %v9066, %v9066
      %v9223 = vpack.c.b16 %v8881, %v8881
      %v9224 = vpack.c.b16 %v9079, %v9079
      %v9225 = vpack.c.b16 %v8889, %v8889
      %v9226 = vpack.c.b16 %v9092, %v9092
      %v9227 = vpack.c.b16 %v8897, %v8897
      %v9228 = vpack.c.b16 %v9105, %v9105
      %v9229 = vpack.c.b16 %v8905, %v8905
      %v9230 = vpack.c.b16 %v9118, %v9118
      %v9231 = vpack.c.b16 %v8913, %v8913
      %v9232 = vpack.c.b16 %v9131, %v9131
      %v9233 = vpack.c.b16 %v8921, %v8921
      %v9234 = vpack.c.b16 %v9144, %v9144
      %v9235 = vpack.c.b16 %v8929, %v8929
      %v9236 = vpack.c.b16 %v9157, %v9157
      %v9237 = vpack.c.b16 %v8937, %v8937
      %v9238 = vpack.c.b16 %v9170, %v9170
      %v9239 = vpack.c.b16 %v8945, %v8945
      %v9240 = vpack.c.b16 %v9183, %v9183
      %v9241 = vpack.c.b16 %v8953, %v8953
      %v9242 = vpack.c.b16 %v9196, %v9196
      %v9243 = vpack.c.b16 %v8961, %v8961
      %v9244 = vpack.c.b16 %v9209, %v9209
      %v9245 = vpack.c.b16 %v8969, %v8969
      %v9282 = vld [vmem:[#allocation3] sm:$0xf]
      %v9283 = vsel %vm2487, %v9210, %v9282
      %9284 = vst [vmem:[#allocation3] sm:$0xf] %v9283
      %v9285 = vld [vmem:[#allocation3 + $0x4] sm:$0x1]
      %v9286 = vsel %vm1841, %v9211, %v9285
      %9287 = vst [vmem:[#allocation3 + $0x4] sm:$0x1] %v9286
      %v9288 = vld [vmem:[#allocation3 + $0x8] sm:$0xf]
      %v9289 = vsel %vm2487, %v9212, %v9288
      %9290 = vst [vmem:[#allocation3 + $0x8] sm:$0xf] %v9289
      %v9291 = vld [vmem:[#allocation3 + $0xc] sm:$0x1]
      %v9292 = vsel %vm1841, %v9213, %v9291
      %9293 = vst [vmem:[#allocation3 + $0xc] sm:$0x1] %v9292
      %v9294 = vld [vmem:[#allocation3 + $0x10] sm:$0xf]
      %v9295 = vsel %vm2487, %v9214, %v9294
      %9296 = vst [vmem:[#allocation3 + $0x10] sm:$0xf] %v9295
      %v9297 = vld [vmem:[#allocation3 + $0x14] sm:$0x1]
      %v9298 = vsel %vm1841, %v9215, %v9297
      %9299 = vst [vmem:[#allocation3 + $0x14] sm:$0x1] %v9298
      %v9300 = vld [vmem:[#allocation3 + $0x18] sm:$0xf]
      %v9301 = vsel %vm2487, %v9216, %v9300
      %9302 = vst [vmem:[#allocation3 + $0x18] sm:$0xf] %v9301
      %v9303 = vld [vmem:[#allocation3 + $0x1c] sm:$0x1]
      %v9304 = vsel %vm1841, %v9217, %v9303
      %9305 = vst [vmem:[#allocation3 + $0x1c] sm:$0x1] %v9304
      %v9306 = vld [vmem:[#allocation3 + $0x20] sm:$0xf]
      %v9307 = vsel %vm2487, %v9218, %v9306
      %9308 = vst [vmem:[#allocation3 + $0x20] sm:$0xf] %v9307
      %v9309 = vld [vmem:[#allocation3 + $0x24] sm:$0x1]
      %v9310 = vsel %vm1841, %v9219, %v9309
      %9311 = vst [vmem:[#allocation3 + $0x24] sm:$0x1] %v9310
      %v9312 = vld [vmem:[#allocation3 + $0x28] sm:$0xf]
      %v9313 = vsel %vm2487, %v9220, %v9312
      %9314 = vst [vmem:[#allocation3 + $0x28] sm:$0xf] %v9313
      %v9315 = vld [vmem:[#allocation3 + $0x2c] sm:$0x1]
      %v9316 = vsel %vm1841, %v9221, %v9315
      %9317 = vst [vmem:[#allocation3 + $0x2c] sm:$0x1] %v9316
      %v9318 = vld [vmem:[#allocation3 + $0x30] sm:$0xf]
      %v9319 = vsel %vm2487, %v9222, %v9318
      %9320 = vst [vmem:[#allocation3 + $0x30] sm:$0xf] %v9319
      %v9321 = vld [vmem:[#allocation3 + $0x34] sm:$0x1]
      %v9322 = vsel %vm1841, %v9223, %v9321
      %9323 = vst [vmem:[#allocation3 + $0x34] sm:$0x1] %v9322
      %v9324 = vld [vmem:[#allocation3 + $0x38] sm:$0xf]
      %v9325 = vsel %vm2487, %v9224, %v9324
      %9326 = vst [vmem:[#allocation3 + $0x38] sm:$0xf] %v9325
      %v9327 = vld [vmem:[#allocation3 + $0x3c] sm:$0x1]
      %v9328 = vsel %vm1841, %v9225, %v9327
      %9329 = vst [vmem:[#allocation3 + $0x3c] sm:$0x1] %v9328
      %v9330 = vld [vmem:[#allocation3 + $0x40] sm:$0xf]
      %v9331 = vsel %vm2487, %v9226, %v9330
      %9332 = vst [vmem:[#allocation3 + $0x40] sm:$0xf] %v9331
      %v9333 = vld [vmem:[#allocation3 + $0x44] sm:$0x1]
      %v9334 = vsel %vm1841, %v9227, %v9333
      %9335 = vst [vmem:[#allocation3 + $0x44] sm:$0x1] %v9334
      %v9336 = vld [vmem:[#allocation3 + $0x48] sm:$0xf]
      %v9337 = vsel %vm2487, %v9228, %v9336
      %9338 = vst [vmem:[#allocation3 + $0x48] sm:$0xf] %v9337
      %v9339 = vld [vmem:[#allocation3 + $0x4c] sm:$0x1]
      %v9340 = vsel %vm1841, %v9229, %v9339
      %9341 = vst [vmem:[#allocation3 + $0x4c] sm:$0x1] %v9340
      %v9342 = vld [vmem:[#allocation3 + $0x50] sm:$0xf]
      %v9343 = vsel %vm2487, %v9230, %v9342
      %9344 = vst [vmem:[#allocation3 + $0x50] sm:$0xf] %v9343
      %v9345 = vld [vmem:[#allocation3 + $0x54] sm:$0x1]
      %v9346 = vsel %vm1841, %v9231, %v9345
      %9347 = vst [vmem:[#allocation3 + $0x54] sm:$0x1] %v9346
      %v9348 = vld [vmem:[#allocation3 + $0x58] sm:$0xf]
      %v9349 = vsel %vm2487, %v9232, %v9348
      %9350 = vst [vmem:[#allocation3 + $0x58] sm:$0xf] %v9349
      %v9351 = vld [vmem:[#allocation3 + $0x5c] sm:$0x1]
      %v9352 = vsel %vm1841, %v9233, %v9351
      %9353 = vst [vmem:[#allocation3 + $0x5c] sm:$0x1] %v9352
      %v9354 = vld [vmem:[#allocation3 + $0x60] sm:$0xf]
      %v9355 = vsel %vm2487, %v9234, %v9354
      %9356 = vst [vmem:[#allocation3 + $0x60] sm:$0xf] %v9355
      %v9357 = vld [vmem:[#allocation3 + $0x64] sm:$0x1]
      %v9358 = vsel %vm1841, %v9235, %v9357
      %9359 = vst [vmem:[#allocation3 + $0x64] sm:$0x1] %v9358
      %v9360 = vld [vmem:[#allocation3 + $0x68] sm:$0xf]
      %v9361 = vsel %vm2487, %v9236, %v9360
      %9362 = vst [vmem:[#allocation3 + $0x68] sm:$0xf] %v9361
      %v9363 = vld [vmem:[#allocation3 + $0x6c] sm:$0x1]
      %v9364 = vsel %vm1841, %v9237, %v9363
      %9365 = vst [vmem:[#allocation3 + $0x6c] sm:$0x1] %v9364
      %v9366 = vld [vmem:[#allocation3 + $0x70] sm:$0xf]
      %v9367 = vsel %vm2487, %v9238, %v9366
      %9368 = vst [vmem:[#allocation3 + $0x70] sm:$0xf] %v9367
      %v9369 = vld [vmem:[#allocation3 + $0x74] sm:$0x1]
      %v9370 = vsel %vm1841, %v9239, %v9369
      %9371 = vst [vmem:[#allocation3 + $0x74] sm:$0x1] %v9370
      %v9372 = vld [vmem:[#allocation3 + $0x78] sm:$0xf]
      %v9373 = vsel %vm2487, %v9240, %v9372
      %9374 = vst [vmem:[#allocation3 + $0x78] sm:$0xf] %v9373
      %v9375 = vld [vmem:[#allocation3 + $0x7c] sm:$0x1]
      %v9376 = vsel %vm1841, %v9241, %v9375
      %9377 = vst [vmem:[#allocation3 + $0x7c] sm:$0x1] %v9376
      %v9378 = vld [vmem:[#allocation3 + $0x80] sm:$0xf]
      %v9379 = vsel %vm2487, %v9242, %v9378
      %9380 = vst [vmem:[#allocation3 + $0x80] sm:$0xf] %v9379
      %v9381 = vld [vmem:[#allocation3 + $0x84] sm:$0x1]
      %v9382 = vsel %vm1841, %v9243, %v9381
      %9383 = vst [vmem:[#allocation3 + $0x84] sm:$0x1] %v9382
      %v9384 = vld [vmem:[#allocation3 + $0x88] sm:$0xf]
      %v9385 = vsel %vm2487, %v9244, %v9384
      %9386 = vst [vmem:[#allocation3 + $0x88] sm:$0xf] %v9385
      %v9387 = vld [vmem:[#allocation3 + $0x8c] sm:$0x1]
      %v9388 = vsel %vm1841, %v9245, %v9387
      %9389 = vst [vmem:[#allocation3 + $0x8c] sm:$0x1] %v9388
      %v9390 = vld [vmem:[#allocation3] sm:$0xf]
      %v9391 = vld [vmem:[#allocation3 + $0x8] sm:$0xf]
      %v9392 = vld [vmem:[#allocation3 + $0x10] sm:$0xf]
      %v9393 = vld [vmem:[#allocation3 + $0x18] sm:$0xf]
      %v9394 = vld [vmem:[#allocation3 + $0x20] sm:$0xf]
      %v9395 = vld [vmem:[#allocation3 + $0x28] sm:$0xf]
      %v9396 = vld [vmem:[#allocation3 + $0x30] sm:$0xf]
      %v9397 = vld [vmem:[#allocation3 + $0x38] sm:$0xf]
      %v9398 = vld [vmem:[#allocation3 + $0x40] sm:$0xf]
      %v9399 = vld [vmem:[#allocation3 + $0x48] sm:$0xf]
      %v9400 = vld [vmem:[#allocation3 + $0x50] sm:$0xf]
      %v9401 = vld [vmem:[#allocation3 + $0x58] sm:$0xf]
      %v9402 = vld [vmem:[#allocation3 + $0x60] sm:$0xf]
      %v9403 = vld [vmem:[#allocation3 + $0x68] sm:$0xf]
      %v9404 = vld [vmem:[#allocation3 + $0x70] sm:$0xf]
      %v9405 = vld [vmem:[#allocation3 + $0x78] sm:$0xf]
      %v9406 = vld [vmem:[#allocation3 + $0x4] sm:$0x1]
      %v9407 = vld [vmem:[#allocation3 + $0xc] sm:$0x1]
      %v9408 = vld [vmem:[#allocation3 + $0x14] sm:$0x1]
      %v9409 = vld [vmem:[#allocation3 + $0x1c] sm:$0x1]
      %v9410 = vld [vmem:[#allocation3 + $0x24] sm:$0x1]
      %v9411 = vld [vmem:[#allocation3 + $0x2c] sm:$0x1]
      %v9412 = vld [vmem:[#allocation3 + $0x34] sm:$0x1]
      %v9413 = vld [vmem:[#allocation3 + $0x3c] sm:$0x1]
      %v9414 = vld [vmem:[#allocation3 + $0x44] sm:$0x1]
      %v9415 = vld [vmem:[#allocation3 + $0x4c] sm:$0x1]
      %v9416 = vld [vmem:[#allocation3 + $0x54] sm:$0x1]
      %v9417 = vld [vmem:[#allocation3 + $0x5c] sm:$0x1]
      %v9418 = vld [vmem:[#allocation3 + $0x64] sm:$0x1]
      %v9419 = vld [vmem:[#allocation3 + $0x6c] sm:$0x1]
      %v9420 = vld [vmem:[#allocation3 + $0x74] sm:$0x1]
      %v9421 = vld [vmem:[#allocation3 + $0x7c] sm:$0x1]
      %v9423 = vshrl.u32 %v9390, 16
      %v9425 = vrot.slane %v9423, 4
      %v9426 = vshll.u32 %v9390, 16
      %v9428 = vrot.slane %v9426, 5
      %v9429 = vor.u32 %v9425, %v9428
      %v9430 = vrot.slane %v9429, 4
      %v9432 = vshll.u32 %v9406, 16
      %v9434 = vrot.slane %v9432, 5
      %v9435 = vsel %vm2685, %v9430, %v9434
      %v9437 = vshrl.u32 %v9391, 16
      %v9439 = vrot.slane %v9437, 4
      %v9440 = vshll.u32 %v9391, 16
      %v9442 = vrot.slane %v9440, 5
      %v9443 = vor.u32 %v9439, %v9442
      %v9444 = vrot.slane %v9443, 4
      %v9446 = vshll.u32 %v9407, 16
      %v9448 = vrot.slane %v9446, 5
      %v9449 = vsel %vm2685, %v9444, %v9448
      %v9451 = vshrl.u32 %v9392, 16
      %v9453 = vrot.slane %v9451, 4
      %v9454 = vshll.u32 %v9392, 16
      %v9456 = vrot.slane %v9454, 5
      %v9457 = vor.u32 %v9453, %v9456
      %v9458 = vrot.slane %v9457, 4
      %v9460 = vshll.u32 %v9408, 16
      %v9462 = vrot.slane %v9460, 5
      %v9463 = vsel %vm2685, %v9458, %v9462
      %v9465 = vshrl.u32 %v9393, 16
      %v9467 = vrot.slane %v9465, 4
      %v9468 = vshll.u32 %v9393, 16
      %v9470 = vrot.slane %v9468, 5
      %v9471 = vor.u32 %v9467, %v9470
      %v9472 = vrot.slane %v9471, 4
      %v9474 = vshll.u32 %v9409, 16
      %v9476 = vrot.slane %v9474, 5
      %v9477 = vsel %vm2685, %v9472, %v9476
      %v9479 = vshrl.u32 %v9394, 16
      %v9481 = vrot.slane %v9479, 4
      %v9482 = vshll.u32 %v9394, 16
      %v9484 = vrot.slane %v9482, 5
      %v9485 = vor.u32 %v9481, %v9484
      %v9486 = vrot.slane %v9485, 4
      %v9488 = vshll.u32 %v9410, 16
      %v9490 = vrot.slane %v9488, 5
      %v9491 = vsel %vm2685, %v9486, %v9490
      %v9493 = vshrl.u32 %v9395, 16
      %v9495 = vrot.slane %v9493, 4
      %v9496 = vshll.u32 %v9395, 16
      %v9498 = vrot.slane %v9496, 5
      %v9499 = vor.u32 %v9495, %v9498
      %v9500 = vrot.slane %v9499, 4
      %v9502 = vshll.u32 %v9411, 16
      %v9504 = vrot.slane %v9502, 5
      %v9505 = vsel %vm2685, %v9500, %v9504
      %v9507 = vshrl.u32 %v9396, 16
      %v9509 = vrot.slane %v9507, 4
      %v9510 = vshll.u32 %v9396, 16
      %v9512 = vrot.slane %v9510, 5
      %v9513 = vor.u32 %v9509, %v9512
      %v9514 = vrot.slane %v9513, 4
      %v9516 = vshll.u32 %v9412, 16
      %v9518 = vrot.slane %v9516, 5
      %v9519 = vsel %vm2685, %v9514, %v9518
      %v9521 = vshrl.u32 %v9397, 16
      %v9523 = vrot.slane %v9521, 4
      %v9524 = vshll.u32 %v9397, 16
      %v9526 = vrot.slane %v9524, 5
      %v9527 = vor.u32 %v9523, %v9526
      %v9528 = vrot.slane %v9527, 4
      %v9530 = vshll.u32 %v9413, 16
      %v9532 = vrot.slane %v9530, 5
      %v9533 = vsel %vm2685, %v9528, %v9532
      %v9535 = vshrl.u32 %v9398, 16
      %v9537 = vrot.slane %v9535, 4
      %v9538 = vshll.u32 %v9398, 16
      %v9540 = vrot.slane %v9538, 5
      %v9541 = vor.u32 %v9537, %v9540
      %v9542 = vrot.slane %v9541, 4
      %v9544 = vshll.u32 %v9414, 16
      %v9546 = vrot.slane %v9544, 5
      %v9547 = vsel %vm2685, %v9542, %v9546
      %v9549 = vshrl.u32 %v9399, 16
      %v9551 = vrot.slane %v9549, 4
      %v9552 = vshll.u32 %v9399, 16
      %v9554 = vrot.slane %v9552, 5
      %v9555 = vor.u32 %v9551, %v9554
      %v9556 = vrot.slane %v9555, 4
      %v9558 = vshll.u32 %v9415, 16
      %v9560 = vrot.slane %v9558, 5
      %v9561 = vsel %vm2685, %v9556, %v9560
      %v9563 = vshrl.u32 %v9400, 16
      %v9565 = vrot.slane %v9563, 4
      %v9566 = vshll.u32 %v9400, 16
      %v9568 = vrot.slane %v9566, 5
      %v9569 = vor.u32 %v9565, %v9568
      %v9570 = vrot.slane %v9569, 4
      %v9572 = vshll.u32 %v9416, 16
      %v9574 = vrot.slane %v9572, 5
      %v9575 = vsel %vm2685, %v9570, %v9574
      %v9577 = vshrl.u32 %v9401, 16
      %v9579 = vrot.slane %v9577, 4
      %v9580 = vshll.u32 %v9401, 16
      %v9582 = vrot.slane %v9580, 5
      %v9583 = vor.u32 %v9579, %v9582
      %v9584 = vrot.slane %v9583, 4
      %v9586 = vshll.u32 %v9417, 16
      %v9588 = vrot.slane %v9586, 5
      %v9589 = vsel %vm2685, %v9584, %v9588
      %v9591 = vshrl.u32 %v9402, 16
      %v9593 = vrot.slane %v9591, 4
      %v9594 = vshll.u32 %v9402, 16
      %v9596 = vrot.slane %v9594, 5
      %v9597 = vor.u32 %v9593, %v9596
      %v9598 = vrot.slane %v9597, 4
      %v9600 = vshll.u32 %v9418, 16
      %v9602 = vrot.slane %v9600, 5
      %v9603 = vsel %vm2685, %v9598, %v9602
      %v9605 = vshrl.u32 %v9403, 16
      %v9607 = vrot.slane %v9605, 4
      %v9608 = vshll.u32 %v9403, 16
      %v9610 = vrot.slane %v9608, 5
      %v9611 = vor.u32 %v9607, %v9610
      %v9612 = vrot.slane %v9611, 4
      %v9614 = vshll.u32 %v9419, 16
      %v9616 = vrot.slane %v9614, 5
      %v9617 = vsel %vm2685, %v9612, %v9616
      %v9619 = vshrl.u32 %v9404, 16
      %v9621 = vrot.slane %v9619, 4
      %v9622 = vshll.u32 %v9404, 16
      %v9624 = vrot.slane %v9622, 5
      %v9625 = vor.u32 %v9621, %v9624
      %v9626 = vrot.slane %v9625, 4
      %v9628 = vshll.u32 %v9420, 16
      %v9630 = vrot.slane %v9628, 5
      %v9631 = vsel %vm2685, %v9626, %v9630
      %v9633 = vshrl.u32 %v9405, 16
      %v9635 = vrot.slane %v9633, 4
      %v9636 = vshll.u32 %v9405, 16
      %v9638 = vrot.slane %v9636, 5
      %v9639 = vor.u32 %v9635, %v9638
      %v9640 = vrot.slane %v9639, 4
      %v9642 = vshll.u32 %v9421, 16
      %v9644 = vrot.slane %v9642, 5
      %v9645 = vsel %vm2685, %v9640, %v9644
      %v9646 = vld [vmem:[#allocation3] sm:$0xe]
      %v9647 = vld [vmem:[#allocation3 + $0x8] sm:$0xe]
      %v9648 = vld [vmem:[#allocation3 + $0x10] sm:$0xe]
      %v9649 = vld [vmem:[#allocation3 + $0x18] sm:$0xe]
      %v9650 = vld [vmem:[#allocation3 + $0x20] sm:$0xe]
      %v9651 = vld [vmem:[#allocation3 + $0x28] sm:$0xe]
      %v9652 = vld [vmem:[#allocation3 + $0x30] sm:$0xe]
      %v9653 = vld [vmem:[#allocation3 + $0x38] sm:$0xe]
      %v9654 = vld [vmem:[#allocation3 + $0x40] sm:$0xe]
      %v9655 = vld [vmem:[#allocation3 + $0x48] sm:$0xe]
      %v9656 = vld [vmem:[#allocation3 + $0x50] sm:$0xe]
      %v9657 = vld [vmem:[#allocation3 + $0x58] sm:$0xe]
      %v9658 = vld [vmem:[#allocation3 + $0x60] sm:$0xe]
      %v9659 = vld [vmem:[#allocation3 + $0x68] sm:$0xe]
      %v9660 = vld [vmem:[#allocation3 + $0x70] sm:$0xe]
      %v9661 = vld [vmem:[#allocation3 + $0x78] sm:$0xe]
      %v9694 = vrot.slane %v9646, 5
      %v9695 = vrot.slane %v9694, 4
      %v9696 = vrot.slane %v9406, 5
      %v9697 = vsel %vm3192, %v9695, %v9696
      %v9698 = vrot.slane %v9647, 5
      %v9699 = vrot.slane %v9698, 4
      %v9700 = vrot.slane %v9407, 5
      %v9701 = vsel %vm3192, %v9699, %v9700
      %v9702 = vrot.slane %v9648, 5
      %v9703 = vrot.slane %v9702, 4
      %v9704 = vrot.slane %v9408, 5
      %v9705 = vsel %vm3192, %v9703, %v9704
      %v9706 = vrot.slane %v9649, 5
      %v9707 = vrot.slane %v9706, 4
      %v9708 = vrot.slane %v9409, 5
      %v9709 = vsel %vm3192, %v9707, %v9708
      %v9710 = vrot.slane %v9650, 5
      %v9711 = vrot.slane %v9710, 4
      %v9712 = vrot.slane %v9410, 5
      %v9713 = vsel %vm3192, %v9711, %v9712
      %v9714 = vrot.slane %v9651, 5
      %v9715 = vrot.slane %v9714, 4
      %v9716 = vrot.slane %v9411, 5
      %v9717 = vsel %vm3192, %v9715, %v9716
      %v9718 = vrot.slane %v9652, 5
      %v9719 = vrot.slane %v9718, 4
      %v9720 = vrot.slane %v9412, 5
      %v9721 = vsel %vm3192, %v9719, %v9720
      %v9722 = vrot.slane %v9653, 5
      %v9723 = vrot.slane %v9722, 4
      %v9724 = vrot.slane %v9413, 5
      %v9725 = vsel %vm3192, %v9723, %v9724
      %v9726 = vrot.slane %v9654, 5
      %v9727 = vrot.slane %v9726, 4
      %v9728 = vrot.slane %v9414, 5
      %v9729 = vsel %vm3192, %v9727, %v9728
      %v9730 = vrot.slane %v9655, 5
      %v9731 = vrot.slane %v9730, 4
      %v9732 = vrot.slane %v9415, 5
      %v9733 = vsel %vm3192, %v9731, %v9732
      %v9734 = vrot.slane %v9656, 5
      %v9735 = vrot.slane %v9734, 4
      %v9736 = vrot.slane %v9416, 5
      %v9737 = vsel %vm3192, %v9735, %v9736
      %v9738 = vrot.slane %v9657, 5
      %v9739 = vrot.slane %v9738, 4
      %v9740 = vrot.slane %v9417, 5
      %v9741 = vsel %vm3192, %v9739, %v9740
      %v9742 = vrot.slane %v9658, 5
      %v9743 = vrot.slane %v9742, 4
      %v9744 = vrot.slane %v9418, 5
      %v9745 = vsel %vm3192, %v9743, %v9744
      %v9746 = vrot.slane %v9659, 5
      %v9747 = vrot.slane %v9746, 4
      %v9748 = vrot.slane %v9419, 5
      %v9749 = vsel %vm3192, %v9747, %v9748
      %v9750 = vrot.slane %v9660, 5
      %v9751 = vrot.slane %v9750, 4
      %v9752 = vrot.slane %v9420, 5
      %v9753 = vsel %vm3192, %v9751, %v9752
      %v9754 = vrot.slane %v9661, 5
      %v9755 = vrot.slane %v9754, 4
      %v9756 = vrot.slane %v9421, 5
      %v9757 = vsel %vm3192, %v9755, %v9756
      %v9774 = vunpack.c.l.b16 %v9390
      %v9775 = vunpack.c.l.b16 %v9391
      %v9776 = vunpack.c.l.b16 %v9392
      %v9777 = vunpack.c.l.b16 %v9393
      %v9778 = vunpack.c.l.b16 %v9394
      %v9779 = vunpack.c.l.b16 %v9395
      %v9780 = vunpack.c.l.b16 %v9396
      %v9781 = vunpack.c.l.b16 %v9397
      %v9782 = vunpack.c.l.b16 %v9398
      %v9783 = vunpack.c.l.b16 %v9399
      %v9784 = vunpack.c.l.b16 %v9400
      %v9785 = vunpack.c.l.b16 %v9401
      %v9786 = vunpack.c.l.b16 %v9402
      %v9787 = vunpack.c.l.b16 %v9403
      %v9788 = vunpack.c.l.b16 %v9404
      %v9789 = vunpack.c.l.b16 %v9405
      %v9790 = vpack.c.b16 %v9775, %v9774
      %v9791 = vpack.c.b16 %v9777, %v9776
      %v9792 = vpack.c.b16 %v9779, %v9778
      %v9793 = vpack.c.b16 %v9781, %v9780
      %v9794 = vpack.c.b16 %v9783, %v9782
      %v9795 = vpack.c.b16 %v9785, %v9784
      %v9796 = vpack.c.b16 %v9787, %v9786
      %v9797 = vpack.c.b16 %v9789, %v9788
      %v9798 = vunpack.c.l.b16 %v9435
      %v9799 = vunpack.c.l.b16 %v9449
      %v9800 = vunpack.c.l.b16 %v9463
      %v9801 = vunpack.c.l.b16 %v9477
      %v9802 = vunpack.c.l.b16 %v9491
      %v9803 = vunpack.c.l.b16 %v9505
      %v9804 = vunpack.c.l.b16 %v9519
      %v9805 = vunpack.c.l.b16 %v9533
      %v9806 = vunpack.c.l.b16 %v9547
      %v9807 = vunpack.c.l.b16 %v9561
      %v9808 = vunpack.c.l.b16 %v9575
      %v9809 = vunpack.c.l.b16 %v9589
      %v9810 = vunpack.c.l.b16 %v9603
      %v9811 = vunpack.c.l.b16 %v9617
      %v9812 = vunpack.c.l.b16 %v9631
      %v9813 = vunpack.c.l.b16 %v9645
      %v9814 = vpack.c.b16 %v9799, %v9798
      %v9815 = vpack.c.b16 %v9801, %v9800
      %v9816 = vpack.c.b16 %v9803, %v9802
      %v9817 = vpack.c.b16 %v9805, %v9804
      %v9818 = vpack.c.b16 %v9807, %v9806
      %v9819 = vpack.c.b16 %v9809, %v9808
      %v9820 = vpack.c.b16 %v9811, %v9810
      %v9821 = vpack.c.b16 %v9813, %v9812
      %9822 = vrot.lane.b32.xlu0 %v9814, 2
      %v9823 = vpop.permute.xlu0 %9822
      %9824 = vrot.lane.b32.xlu0 %v9815, 2
      %v9825 = vpop.permute.xlu0 %9824
      %9826 = vrot.lane.b32.xlu0 %v9816, 2
      %v9827 = vpop.permute.xlu0 %9826
      %9828 = vrot.lane.b32.xlu0 %v9817, 2
      %v9829 = vpop.permute.xlu0 %9828
      %9830 = vrot.lane.b32.xlu0 %v9818, 2
      %v9831 = vpop.permute.xlu0 %9830
      %9832 = vrot.lane.b32.xlu0 %v9819, 2
      %v9833 = vpop.permute.xlu0 %9832
      %9834 = vrot.lane.b32.xlu0 %v9820, 2
      %v9835 = vpop.permute.xlu0 %9834
      %9836 = vrot.lane.b32.xlu0 %v9821, 2
      %v9837 = vpop.permute.xlu0 %9836
      %v9838 = vunpack.c.l.b16 %v9697
      %v9839 = vunpack.c.l.b16 %v9701
      %v9840 = vunpack.c.l.b16 %v9705
      %v9841 = vunpack.c.l.b16 %v9709
      %v9842 = vunpack.c.l.b16 %v9713
      %v9843 = vunpack.c.l.b16 %v9717
      %v9844 = vunpack.c.l.b16 %v9721
      %v9845 = vunpack.c.l.b16 %v9725
      %v9846 = vunpack.c.l.b16 %v9729
      %v9847 = vunpack.c.l.b16 %v9733
      %v9848 = vunpack.c.l.b16 %v9737
      %v9849 = vunpack.c.l.b16 %v9741
      %v9850 = vunpack.c.l.b16 %v9745
      %v9851 = vunpack.c.l.b16 %v9749
      %v9852 = vunpack.c.l.b16 %v9753
      %v9853 = vunpack.c.l.b16 %v9757
      %v9854 = vpack.c.b16 %v9839, %v9838
      %v9855 = vpack.c.b16 %v9841, %v9840
      %v9856 = vpack.c.b16 %v9843, %v9842
      %v9857 = vpack.c.b16 %v9845, %v9844
      %v9858 = vpack.c.b16 %v9847, %v9846
      %v9859 = vpack.c.b16 %v9849, %v9848
      %v9860 = vpack.c.b16 %v9851, %v9850
      %v9861 = vpack.c.b16 %v9853, %v9852
      %9862 = vrot.lane.b32.xlu0 %v9854, 4
      %v9863 = vpop.permute.xlu0 %9862
      %9864 = vrot.lane.b32.xlu0 %v9855, 4
      %v9865 = vpop.permute.xlu0 %9864
      %9866 = vrot.lane.b32.xlu0 %v9856, 4
      %v9867 = vpop.permute.xlu0 %9866
      %9868 = vrot.lane.b32.xlu0 %v9857, 4
      %v9869 = vpop.permute.xlu0 %9868
      %9870 = vrot.lane.b32.xlu0 %v9858, 4
      %v9871 = vpop.permute.xlu0 %9870
      %9872 = vrot.lane.b32.xlu0 %v9859, 4
      %v9873 = vpop.permute.xlu0 %9872
      %9874 = vrot.lane.b32.xlu0 %v9860, 4
      %v9875 = vpop.permute.xlu0 %9874
      %9876 = vrot.lane.b32.xlu0 %v9861, 4
      %v9877 = vpop.permute.xlu0 %9876
      %v9880 = vsel %vm3571, %v9790, %v9823
      %v9883 = vsel %vm3571, %v9791, %v9825
      %v9886 = vsel %vm3571, %v9792, %v9827
      %v9889 = vsel %vm3571, %v9793, %v9829
      %v9892 = vsel %vm3571, %v9794, %v9831
      %v9895 = vsel %vm3571, %v9795, %v9833
      %v9898 = vsel %vm3571, %v9796, %v9835
      %v9901 = vsel %vm3571, %v9797, %v9837
      %v9903 = vsel %vm3626, %v9880, %v9863
      %v9905 = vsel %vm3626, %v9883, %v9865
      %v9907 = vsel %vm3626, %v9886, %v9867
      %v9909 = vsel %vm3626, %v9889, %v9869
      %v9911 = vsel %vm3626, %v9892, %v9871
      %v9913 = vsel %vm3626, %v9895, %v9873
      %v9915 = vsel %vm3626, %v9898, %v9875
      %v9917 = vsel %vm3626, %v9901, %v9877
      %v9918 = vld [vmem:[%s5] sm:$0x7]
      %s9919 = scalar_lea.vmem [#allocation3], 8
      %v9920 = vld [vmem:[%s9919] sm:$0xf]
      %v9921 = vld [vmem:[%s9919 + $0x8] sm:$0xf]
      %v9922 = vld [vmem:[%s9919 + $0x10] sm:$0xf]
      %v9923 = vld [vmem:[%s9919 + $0x18] sm:$0xf]
      %v9924 = vld [vmem:[%s9919 + $0x20] sm:$0xf]
      %v9925 = vld [vmem:[%s9919 + $0x28] sm:$0xf]
      %v9926 = vld [vmem:[%s9919 + $0x30] sm:$0xf]
      %v9927 = vld [vmem:[%s9919 + $0x38] sm:$0xf]
      %v9928 = vld [vmem:[%s9919 + $0x40] sm:$0xf]
      %v9929 = vld [vmem:[%s9919 + $0x48] sm:$0xf]
      %v9930 = vld [vmem:[%s9919 + $0x50] sm:$0xf]
      %v9931 = vld [vmem:[%s9919 + $0x58] sm:$0xf]
      %v9932 = vld [vmem:[%s9919 + $0x60] sm:$0xf]
      %v9933 = vld [vmem:[%s9919 + $0x68] sm:$0xf]
      %v9934 = vld [vmem:[%s9919 + $0x70] sm:$0xf]
      %v9935 = vld [vmem:[%s9919 + $0x78] sm:$0xf]
      %v9936 = vld [vmem:[%s9919 + $0x4] sm:$0x1]
      %v9937 = vld [vmem:[%s9919 + $0xc] sm:$0x1]
      %v9938 = vld [vmem:[%s9919 + $0x14] sm:$0x1]
      %v9939 = vld [vmem:[%s9919 + $0x1c] sm:$0x1]
      %v9940 = vld [vmem:[%s9919 + $0x24] sm:$0x1]
      %v9941 = vld [vmem:[%s9919 + $0x2c] sm:$0x1]
      %v9942 = vld [vmem:[%s9919 + $0x34] sm:$0x1]
      %v9943 = vld [vmem:[%s9919 + $0x3c] sm:$0x1]
      %v9944 = vld [vmem:[%s9919 + $0x44] sm:$0x1]
      %v9945 = vld [vmem:[%s9919 + $0x4c] sm:$0x1]
      %v9946 = vld [vmem:[%s9919 + $0x54] sm:$0x1]
      %v9947 = vld [vmem:[%s9919 + $0x5c] sm:$0x1]
      %v9948 = vld [vmem:[%s9919 + $0x64] sm:$0x1]
      %v9949 = vld [vmem:[%s9919 + $0x6c] sm:$0x1]
      %v9950 = vld [vmem:[%s9919 + $0x74] sm:$0x1]
      %v9951 = vld [vmem:[%s9919 + $0x7c] sm:$0x1]
      %v9953 = vshrl.u32 %v9920, 16
      %v9955 = vrot.slane %v9953, 4
      %v9956 = vshll.u32 %v9920, 16
      %v9958 = vrot.slane %v9956, 5
      %v9959 = vor.u32 %v9955, %v9958
      %v9960 = vrot.slane %v9959, 4
      %v9962 = vshll.u32 %v9936, 16
      %v9964 = vrot.slane %v9962, 5
      %v9965 = vsel %vm2685, %v9960, %v9964
      %v9967 = vshrl.u32 %v9921, 16
      %v9969 = vrot.slane %v9967, 4
      %v9970 = vshll.u32 %v9921, 16
      %v9972 = vrot.slane %v9970, 5
      %v9973 = vor.u32 %v9969, %v9972
      %v9974 = vrot.slane %v9973, 4
      %v9976 = vshll.u32 %v9937, 16
      %v9978 = vrot.slane %v9976, 5
      %v9979 = vsel %vm2685, %v9974, %v9978
      %v9981 = vshrl.u32 %v9922, 16
      %v9983 = vrot.slane %v9981, 4
      %v9984 = vshll.u32 %v9922, 16
      %v9986 = vrot.slane %v9984, 5
      %v9987 = vor.u32 %v9983, %v9986
      %v9988 = vrot.slane %v9987, 4
      %v9990 = vshll.u32 %v9938, 16
      %v9992 = vrot.slane %v9990, 5
      %v9993 = vsel %vm2685, %v9988, %v9992
      %v9995 = vshrl.u32 %v9923, 16
      %v9997 = vrot.slane %v9995, 4
      %v9998 = vshll.u32 %v9923, 16
      %v10000 = vrot.slane %v9998, 5
      %v10001 = vor.u32 %v9997, %v10000
      %v10002 = vrot.slane %v10001, 4
      %v10004 = vshll.u32 %v9939, 16
      %v10006 = vrot.slane %v10004, 5
      %v10007 = vsel %vm2685, %v10002, %v10006
      %v10009 = vshrl.u32 %v9924, 16
      %v10011 = vrot.slane %v10009, 4
      %v10012 = vshll.u32 %v9924, 16
      %v10014 = vrot.slane %v10012, 5
      %v10015 = vor.u32 %v10011, %v10014
      %v10016 = vrot.slane %v10015, 4
      %v10018 = vshll.u32 %v9940, 16
      %v10020 = vrot.slane %v10018, 5
      %v10021 = vsel %vm2685, %v10016, %v10020
      %v10023 = vshrl.u32 %v9925, 16
      %v10025 = vrot.slane %v10023, 4
      %v10026 = vshll.u32 %v9925, 16
      %v10028 = vrot.slane %v10026, 5
      %v10029 = vor.u32 %v10025, %v10028
      %v10030 = vrot.slane %v10029, 4
      %v10032 = vshll.u32 %v9941, 16
      %v10034 = vrot.slane %v10032, 5
      %v10035 = vsel %vm2685, %v10030, %v10034
      %v10037 = vshrl.u32 %v9926, 16
      %v10039 = vrot.slane %v10037, 4
      %v10040 = vshll.u32 %v9926, 16
      %v10042 = vrot.slane %v10040, 5
      %v10043 = vor.u32 %v10039, %v10042
      %v10044 = vrot.slane %v10043, 4
      %v10046 = vshll.u32 %v9942, 16
      %v10048 = vrot.slane %v10046, 5
      %v10049 = vsel %vm2685, %v10044, %v10048
      %v10051 = vshrl.u32 %v9927, 16
      %v10053 = vrot.slane %v10051, 4
      %v10054 = vshll.u32 %v9927, 16
      %v10056 = vrot.slane %v10054, 5
      %v10057 = vor.u32 %v10053, %v10056
      %v10058 = vrot.slane %v10057, 4
      %v10060 = vshll.u32 %v9943, 16
      %v10062 = vrot.slane %v10060, 5
      %v10063 = vsel %vm2685, %v10058, %v10062
      %v10065 = vshrl.u32 %v9928, 16
      %v10067 = vrot.slane %v10065, 4
      %v10068 = vshll.u32 %v9928, 16
      %v10070 = vrot.slane %v10068, 5
      %v10071 = vor.u32 %v10067, %v10070
      %v10072 = vrot.slane %v10071, 4
      %v10074 = vshll.u32 %v9944, 16
      %v10076 = vrot.slane %v10074, 5
      %v10077 = vsel %vm2685, %v10072, %v10076
      %v10079 = vshrl.u32 %v9929, 16
      %v10081 = vrot.slane %v10079, 4
      %v10082 = vshll.u32 %v9929, 16
      %v10084 = vrot.slane %v10082, 5
      %v10085 = vor.u32 %v10081, %v10084
      %v10086 = vrot.slane %v10085, 4
      %v10088 = vshll.u32 %v9945, 16
      %v10090 = vrot.slane %v10088, 5
      %v10091 = vsel %vm2685, %v10086, %v10090
      %v10093 = vshrl.u32 %v9930, 16
      %v10095 = vrot.slane %v10093, 4
      %v10096 = vshll.u32 %v9930, 16
      %v10098 = vrot.slane %v10096, 5
      %v10099 = vor.u32 %v10095, %v10098
      %v10100 = vrot.slane %v10099, 4
      %v10102 = vshll.u32 %v9946, 16
      %v10104 = vrot.slane %v10102, 5
      %v10105 = vsel %vm2685, %v10100, %v10104
      %v10107 = vshrl.u32 %v9931, 16
      %v10109 = vrot.slane %v10107, 4
      %v10110 = vshll.u32 %v9931, 16
      %v10112 = vrot.slane %v10110, 5
      %v10113 = vor.u32 %v10109, %v10112
      %v10114 = vrot.slane %v10113, 4
      %v10116 = vshll.u32 %v9947, 16
      %v10118 = vrot.slane %v10116, 5
      %v10119 = vsel %vm2685, %v10114, %v10118
      %v10121 = vshrl.u32 %v9932, 16
      %v10123 = vrot.slane %v10121, 4
      %v10124 = vshll.u32 %v9932, 16
      %v10126 = vrot.slane %v10124, 5
      %v10127 = vor.u32 %v10123, %v10126
      %v10128 = vrot.slane %v10127, 4
      %v10130 = vshll.u32 %v9948, 16
      %v10132 = vrot.slane %v10130, 5
      %v10133 = vsel %vm2685, %v10128, %v10132
      %v10135 = vshrl.u32 %v9933, 16
      %v10137 = vrot.slane %v10135, 4
      %v10138 = vshll.u32 %v9933, 16
      %v10140 = vrot.slane %v10138, 5
      %v10141 = vor.u32 %v10137, %v10140
      %v10142 = vrot.slane %v10141, 4
      %v10144 = vshll.u32 %v9949, 16
      %v10146 = vrot.slane %v10144, 5
      %v10147 = vsel %vm2685, %v10142, %v10146
      %v10149 = vshrl.u32 %v9934, 16
      %v10151 = vrot.slane %v10149, 4
      %v10152 = vshll.u32 %v9934, 16
      %v10154 = vrot.slane %v10152, 5
      %v10155 = vor.u32 %v10151, %v10154
      %v10156 = vrot.slane %v10155, 4
      %v10158 = vshll.u32 %v9950, 16
      %v10160 = vrot.slane %v10158, 5
      %v10161 = vsel %vm2685, %v10156, %v10160
      %v10163 = vshrl.u32 %v9935, 16
      %v10165 = vrot.slane %v10163, 4
      %v10166 = vshll.u32 %v9935, 16
      %v10168 = vrot.slane %v10166, 5
      %v10169 = vor.u32 %v10165, %v10168
      %v10170 = vrot.slane %v10169, 4
      %v10172 = vshll.u32 %v9951, 16
      %v10174 = vrot.slane %v10172, 5
      %v10175 = vsel %vm2685, %v10170, %v10174
      %v10176 = vld [vmem:[%s9919] sm:$0xe]
      %v10177 = vld [vmem:[%s9919 + $0x8] sm:$0xe]
      %v10178 = vld [vmem:[%s9919 + $0x10] sm:$0xe]
      %v10179 = vld [vmem:[%s9919 + $0x18] sm:$0xe]
      %v10180 = vld [vmem:[%s9919 + $0x20] sm:$0xe]
      %v10181 = vld [vmem:[%s9919 + $0x28] sm:$0xe]
      %v10182 = vld [vmem:[%s9919 + $0x30] sm:$0xe]
      %v10183 = vld [vmem:[%s9919 + $0x38] sm:$0xe]
      %v10184 = vld [vmem:[%s9919 + $0x40] sm:$0xe]
      %v10185 = vld [vmem:[%s9919 + $0x48] sm:$0xe]
      %v10186 = vld [vmem:[%s9919 + $0x50] sm:$0xe]
      %v10187 = vld [vmem:[%s9919 + $0x58] sm:$0xe]
      %v10188 = vld [vmem:[%s9919 + $0x60] sm:$0xe]
      %v10189 = vld [vmem:[%s9919 + $0x68] sm:$0xe]
      %v10190 = vld [vmem:[%s9919 + $0x70] sm:$0xe]
      %v10191 = vld [vmem:[%s9919 + $0x78] sm:$0xe]
      %v10224 = vrot.slane %v10176, 5
      %v10225 = vrot.slane %v10224, 4
      %v10226 = vrot.slane %v9936, 5
      %v10227 = vsel %vm3192, %v10225, %v10226
      %v10228 = vrot.slane %v10177, 5
      %v10229 = vrot.slane %v10228, 4
      %v10230 = vrot.slane %v9937, 5
      %v10231 = vsel %vm3192, %v10229, %v10230
      %v10232 = vrot.slane %v10178, 5
      %v10233 = vrot.slane %v10232, 4
      %v10234 = vrot.slane %v9938, 5
      %v10235 = vsel %vm3192, %v10233, %v10234
      %v10236 = vrot.slane %v10179, 5
      %v10237 = vrot.slane %v10236, 4
      %v10238 = vrot.slane %v9939, 5
      %v10239 = vsel %vm3192, %v10237, %v10238
      %v10240 = vrot.slane %v10180, 5
      %v10241 = vrot.slane %v10240, 4
      %v10242 = vrot.slane %v9940, 5
      %v10243 = vsel %vm3192, %v10241, %v10242
      %v10244 = vrot.slane %v10181, 5
      %v10245 = vrot.slane %v10244, 4
      %v10246 = vrot.slane %v9941, 5
      %v10247 = vsel %vm3192, %v10245, %v10246
      %v10248 = vrot.slane %v10182, 5
      %v10249 = vrot.slane %v10248, 4
      %v10250 = vrot.slane %v9942, 5
      %v10251 = vsel %vm3192, %v10249, %v10250
      %v10252 = vrot.slane %v10183, 5
      %v10253 = vrot.slane %v10252, 4
      %v10254 = vrot.slane %v9943, 5
      %v10255 = vsel %vm3192, %v10253, %v10254
      %v10256 = vrot.slane %v10184, 5
      %v10257 = vrot.slane %v10256, 4
      %v10258 = vrot.slane %v9944, 5
      %v10259 = vsel %vm3192, %v10257, %v10258
      %v10260 = vrot.slane %v10185, 5
      %v10261 = vrot.slane %v10260, 4
      %v10262 = vrot.slane %v9945, 5
      %v10263 = vsel %vm3192, %v10261, %v10262
      %v10264 = vrot.slane %v10186, 5
      %v10265 = vrot.slane %v10264, 4
      %v10266 = vrot.slane %v9946, 5
      %v10267 = vsel %vm3192, %v10265, %v10266
      %v10268 = vrot.slane %v10187, 5
      %v10269 = vrot.slane %v10268, 4
      %v10270 = vrot.slane %v9947, 5
      %v10271 = vsel %vm3192, %v10269, %v10270
      %v10272 = vrot.slane %v10188, 5
      %v10273 = vrot.slane %v10272, 4
      %v10274 = vrot.slane %v9948, 5
      %v10275 = vsel %vm3192, %v10273, %v10274
      %v10276 = vrot.slane %v10189, 5
      %v10277 = vrot.slane %v10276, 4
      %v10278 = vrot.slane %v9949, 5
      %v10279 = vsel %vm3192, %v10277, %v10278
      %v10280 = vrot.slane %v10190, 5
      %v10281 = vrot.slane %v10280, 4
      %v10282 = vrot.slane %v9950, 5
      %v10283 = vsel %vm3192, %v10281, %v10282
      %v10284 = vrot.slane %v10191, 5
      %v10285 = vrot.slane %v10284, 4
      %v10286 = vrot.slane %v9951, 5
      %v10287 = vsel %vm3192, %v10285, %v10286
      %v10304 = vunpack.c.l.b16 %v9920
      %v10305 = vunpack.c.l.b16 %v9921
      %v10306 = vunpack.c.l.b16 %v9922
      %v10307 = vunpack.c.l.b16 %v9923
      %v10308 = vunpack.c.l.b16 %v9924
      %v10309 = vunpack.c.l.b16 %v9925
      %v10310 = vunpack.c.l.b16 %v9926
      %v10311 = vunpack.c.l.b16 %v9927
      %v10312 = vunpack.c.l.b16 %v9928
      %v10313 = vunpack.c.l.b16 %v9929
      %v10314 = vunpack.c.l.b16 %v9930
      %v10315 = vunpack.c.l.b16 %v9931
      %v10316 = vunpack.c.l.b16 %v9932
      %v10317 = vunpack.c.l.b16 %v9933
      %v10318 = vunpack.c.l.b16 %v9934
      %v10319 = vunpack.c.l.b16 %v9935
      %v10320 = vpack.c.b16 %v10305, %v10304
      %v10321 = vpack.c.b16 %v10307, %v10306
      %v10322 = vpack.c.b16 %v10309, %v10308
      %v10323 = vpack.c.b16 %v10311, %v10310
      %v10324 = vpack.c.b16 %v10313, %v10312
      %v10325 = vpack.c.b16 %v10315, %v10314
      %v10326 = vpack.c.b16 %v10317, %v10316
      %v10327 = vpack.c.b16 %v10319, %v10318
      %v10328 = vunpack.c.l.b16 %v9965
      %v10329 = vunpack.c.l.b16 %v9979
      %v10330 = vunpack.c.l.b16 %v9993
      %v10331 = vunpack.c.l.b16 %v10007
      %v10332 = vunpack.c.l.b16 %v10021
      %v10333 = vunpack.c.l.b16 %v10035
      %v10334 = vunpack.c.l.b16 %v10049
      %v10335 = vunpack.c.l.b16 %v10063
      %v10336 = vunpack.c.l.b16 %v10077
      %v10337 = vunpack.c.l.b16 %v10091
      %v10338 = vunpack.c.l.b16 %v10105
      %v10339 = vunpack.c.l.b16 %v10119
      %v10340 = vunpack.c.l.b16 %v10133
      %v10341 = vunpack.c.l.b16 %v10147
      %v10342 = vunpack.c.l.b16 %v10161
      %v10343 = vunpack.c.l.b16 %v10175
      %v10344 = vpack.c.b16 %v10329, %v10328
      %v10345 = vpack.c.b16 %v10331, %v10330
      %v10346 = vpack.c.b16 %v10333, %v10332
      %v10347 = vpack.c.b16 %v10335, %v10334
      %v10348 = vpack.c.b16 %v10337, %v10336
      %v10349 = vpack.c.b16 %v10339, %v10338
      %v10350 = vpack.c.b16 %v10341, %v10340
      %v10351 = vpack.c.b16 %v10343, %v10342
      %10352 = vrot.lane.b32.xlu0 %v10344, 2
      %v10353 = vpop.permute.xlu0 %10352
      %10354 = vrot.lane.b32.xlu0 %v10345, 2
      %v10355 = vpop.permute.xlu0 %10354
      %10356 = vrot.lane.b32.xlu0 %v10346, 2
      %v10357 = vpop.permute.xlu0 %10356
      %10358 = vrot.lane.b32.xlu0 %v10347, 2
      %v10359 = vpop.permute.xlu0 %10358
      %10360 = vrot.lane.b32.xlu0 %v10348, 2
      %v10361 = vpop.permute.xlu0 %10360
      %10362 = vrot.lane.b32.xlu0 %v10349, 2
      %v10363 = vpop.permute.xlu0 %10362
      %10364 = vrot.lane.b32.xlu0 %v10350, 2
      %v10365 = vpop.permute.xlu0 %10364
      %10366 = vrot.lane.b32.xlu0 %v10351, 2
      %v10367 = vpop.permute.xlu0 %10366
      %v10368 = vunpack.c.l.b16 %v10227
      %v10369 = vunpack.c.l.b16 %v10231
      %v10370 = vunpack.c.l.b16 %v10235
      %v10371 = vunpack.c.l.b16 %v10239
      %v10372 = vunpack.c.l.b16 %v10243
      %v10373 = vunpack.c.l.b16 %v10247
      %v10374 = vunpack.c.l.b16 %v10251
      %v10375 = vunpack.c.l.b16 %v10255
      %v10376 = vunpack.c.l.b16 %v10259
      %v10377 = vunpack.c.l.b16 %v10263
      %v10378 = vunpack.c.l.b16 %v10267
      %v10379 = vunpack.c.l.b16 %v10271
      %v10380 = vunpack.c.l.b16 %v10275
      %v10381 = vunpack.c.l.b16 %v10279
      %v10382 = vunpack.c.l.b16 %v10283
      %v10383 = vunpack.c.l.b16 %v10287
      %v10384 = vpack.c.b16 %v10369, %v10368
      %v10385 = vpack.c.b16 %v10371, %v10370
      %v10386 = vpack.c.b16 %v10373, %v10372
      %v10387 = vpack.c.b16 %v10375, %v10374
      %v10388 = vpack.c.b16 %v10377, %v10376
      %v10389 = vpack.c.b16 %v10379, %v10378
      %v10390 = vpack.c.b16 %v10381, %v10380
      %v10391 = vpack.c.b16 %v10383, %v10382
      %10392 = vrot.lane.b32.xlu0 %v10384, 4
      %v10393 = vpop.permute.xlu0 %10392
      %10394 = vrot.lane.b32.xlu0 %v10385, 4
      %v10395 = vpop.permute.xlu0 %10394
      %10396 = vrot.lane.b32.xlu0 %v10386, 4
      %v10397 = vpop.permute.xlu0 %10396
      %10398 = vrot.lane.b32.xlu0 %v10387, 4
      %v10399 = vpop.permute.xlu0 %10398
      %10400 = vrot.lane.b32.xlu0 %v10388, 4
      %v10401 = vpop.permute.xlu0 %10400
      %10402 = vrot.lane.b32.xlu0 %v10389, 4
      %v10403 = vpop.permute.xlu0 %10402
      %10404 = vrot.lane.b32.xlu0 %v10390, 4
      %v10405 = vpop.permute.xlu0 %10404
      %10406 = vrot.lane.b32.xlu0 %v10391, 4
      %v10407 = vpop.permute.xlu0 %10406
      %v10410 = vsel %vm3571, %v10320, %v10353
      %v10413 = vsel %vm3571, %v10321, %v10355
      %v10416 = vsel %vm3571, %v10322, %v10357
      %v10419 = vsel %vm3571, %v10323, %v10359
      %v10422 = vsel %vm3571, %v10324, %v10361
      %v10425 = vsel %vm3571, %v10325, %v10363
      %v10428 = vsel %vm3571, %v10326, %v10365
      %v10431 = vsel %vm3571, %v10327, %v10367
      %v10433 = vsel %vm3626, %v10410, %v10393
      %v10435 = vsel %vm3626, %v10413, %v10395
      %v10437 = vsel %vm3626, %v10416, %v10397
      %v10439 = vsel %vm3626, %v10419, %v10399
      %v10441 = vsel %vm3626, %v10422, %v10401
      %v10443 = vsel %vm3626, %v10425, %v10403
      %v10445 = vsel %vm3626, %v10428, %v10405
      %v10447 = vsel %vm3626, %v10431, %v10407
      %s10448 = scalar_lea.vmem %s5, 4
      %v10449 = vld [vmem:[%s10448] sm:$0x7]
      %v10450 = vsel %vm4693, %v10433, 0
      %v10452 = vsel %vm4693, %v10435, 0
      %v10454 = vsel %vm4693, %v10437, 0
      %v10456 = vsel %vm4693, %v10439, 0
      %v10458 = vsel %vm4693, %v10441, 0
      %v10460 = vsel %vm4693, %v10443, 0
      %v10462 = vsel %vm4693, %v10445, 0
      %v10464 = vsel %vm4693, %v10447, 0
      %v10467 = vsel %vm4730, %v10449, 0
      %10469 = vmatprep.subr.bf16.mxu0 0
      %10470 = vmatpush1.bf16.msra.mxu0 %v10467
      %10471 = vmatprep.subr.bf16.mxu0 0
      %10472 = vmatpush1.bf16.msra.mxu0 0
      %10473 = vmatprep.subr.bf16.mxu0 0
      %10474 = vmatpush1.bf16.msra.mxu0 0
      %10475 = vmatprep.subr.bf16.mxu0 0
      %10476 = vmatpush1.bf16.msra.mxu0 0
      %10477 = vmatprep.subr.bf16.mxu0 0
      %10478 = vmatpush1.bf16.msra.mxu0 0
      %10479 = vmatprep.subr.bf16.mxu0 0
      %10480 = vmatpush1.bf16.msra.mxu0 0
      %10481 = vmatprep.subr.bf16.mxu0 0
      %10482 = vmatpush1.bf16.msra.mxu0 0
      %10483 = vmatprep.subr.bf16.mxu0 0
      %10484 = vmatpush1.bf16.msra.mxu0 0
      %10485 = vmatprep.subr.bf16.mxu0 0
      %10486 = vmatpush1.bf16.msra.mxu0 0
      %10487 = vmatprep.subr.bf16.mxu0 0
      %10488 = vmatpush1.bf16.msra.mxu0 0
      %10489 = vmatprep.subr.bf16.mxu0 0
      %10490 = vmatpush1.bf16.msra.mxu0 0
      %10491 = vmatprep.subr.bf16.mxu0 0
      %10492 = vmatpush1.bf16.msra.mxu0 0
      %10493 = vmatprep.subr.bf16.mxu0 0
      %10494 = vmatpush1.bf16.msra.mxu0 0
      %10495 = vmatprep.subr.bf16.mxu0 0
      %10496 = vmatpush1.bf16.msra.mxu0 0
      %10497 = vmatprep.subr.bf16.mxu0 0
      %10498 = vmatpush1.bf16.msra.mxu0 0
      %10499 = vmatprep.subr.bf16.mxu0 0
      %10500 = vmatpush1.bf16.msra.mxu0 0
      %10501 = vmatprep.mubr.bf16.mxu0 0
      %10502 = vmatmul.mubr.bf16.gmra.mrb[0].mxu0 %v10450
      %v10503 = vpop.f32.mrb[0].mxu0
      %v10504 = vadd.f32 0.0, %v10503
      %v10505 = vpop.f32.mrb[0].mxu0
      %v10506 = vpop.f32.mrb[0].mxu0
      %v10507 = vadd.f32 0.0, %v10506
      %v10508 = vpop.f32.mrb[0].mxu0
      %10509 = vmatprep.mubr.bf16.mxu0 0
      %10510 = vmatmul.mubr.bf16.gmra.mrb[0].mxu0 %v10452
      %v10511 = vpop.f32.mrb[0].mxu0
      %v10512 = vadd.f32 0.0, %v10511
      %v10513 = vpop.f32.mrb[0].mxu0
      %v10514 = vpop.f32.mrb[0].mxu0
      %v10515 = vadd.f32 0.0, %v10514
      %v10516 = vpop.f32.mrb[0].mxu0
      %10517 = vmatprep.mubr.bf16.mxu0 0
      %10518 = vmatmul.mubr.bf16.gmra.mrb[0].mxu0 %v10454
      %v10519 = vpop.f32.mrb[0].mxu0
      %v10520 = vadd.f32 0.0, %v10519
      %v10521 = vpop.f32.mrb[0].mxu0
      %v10522 = vpop.f32.mrb[0].mxu0
      %v10523 = vadd.f32 0.0, %v10522
      %v10524 = vpop.f32.mrb[0].mxu0
      %10525 = vmatprep.mubr.bf16.mxu0 0
      %10526 = vmatmul.mubr.bf16.gmra.mrb[0].mxu0 %v10456
      %v10527 = vpop.f32.mrb[0].mxu0
      %v10528 = vadd.f32 0.0, %v10527
      %v10529 = vpop.f32.mrb[0].mxu0
      %v10530 = vpop.f32.mrb[0].mxu0
      %v10531 = vadd.f32 0.0, %v10530
      %v10532 = vpop.f32.mrb[0].mxu0
      %10533 = vmatprep.mubr.bf16.mxu0 0
      %10534 = vmatmul.mubr.bf16.gmra.mrb[0].mxu0 %v10458
      %v10535 = vpop.f32.mrb[0].mxu0
      %v10536 = vadd.f32 0.0, %v10535
      %v10537 = vpop.f32.mrb[0].mxu0
      %v10538 = vpop.f32.mrb[0].mxu0
      %v10539 = vadd.f32 0.0, %v10538
      %v10540 = vpop.f32.mrb[0].mxu0
      %10541 = vmatprep.mubr.bf16.mxu0 0
      %10542 = vmatmul.mubr.bf16.gmra.mrb[0].mxu0 %v10460
      %v10543 = vpop.f32.mrb[0].mxu0
      %v10544 = vadd.f32 0.0, %v10543
      %v10545 = vpop.f32.mrb[0].mxu0
      %v10546 = vpop.f32.mrb[0].mxu0
      %v10547 = vadd.f32 0.0, %v10546
      %v10548 = vpop.f32.mrb[0].mxu0
      %10549 = vmatprep.mubr.bf16.mxu0 0
      %10550 = vmatmul.mubr.bf16.gmra.mrb[0].mxu0 %v10462
      %v10551 = vpop.f32.mrb[0].mxu0
      %v10552 = vadd.f32 0.0, %v10551
      %v10553 = vpop.f32.mrb[0].mxu0
      %v10554 = vpop.f32.mrb[0].mxu0
      %v10555 = vadd.f32 0.0, %v10554
      %v10556 = vpop.f32.mrb[0].mxu0
      %10557 = vmatprep.mubr.bf16.mxu0 0
      %10558 = vmatmul.mubr.bf16.gmra.mrb[0].mxu0 %v10464
      %v10559 = vpop.f32.mrb[0].mxu0
      %v10560 = vadd.f32 0.0, %v10559
      %v10561 = vpop.f32.mrb[0].mxu0
      %v10562 = vpop.f32.mrb[0].mxu0
      %v10563 = vadd.f32 0.0, %v10562
      %v10564 = vpop.f32.mrb[0].mxu0
      %10565 = vdwg.mxu0
      %v10566 = vsel %vm4693, %v9903, 0
      %v10568 = vsel %vm4693, %v9905, 0
      %v10570 = vsel %vm4693, %v9907, 0
      %v10572 = vsel %vm4693, %v9909, 0
      %v10574 = vsel %vm4693, %v9911, 0
      %v10576 = vsel %vm4693, %v9913, 0
      %v10578 = vsel %vm4693, %v9915, 0
      %v10580 = vsel %vm4693, %v9917, 0
      %v10583 = vsel %vm4730, %v9918, 0
      %10585 = vmatprep.subr.bf16.mxu0 0
      %10586 = vmatpush1.bf16.msra.mxu0 %v10583
      %10587 = vmatprep.subr.bf16.mxu0 0
      %10588 = vmatpush1.bf16.msra.mxu0 0
      %10589 = vmatprep.subr.bf16.mxu0 0
      %10590 = vmatpush1.bf16.msra.mxu0 0
      %10591 = vmatprep.subr.bf16.mxu0 0
      %10592 = vmatpush1.bf16.msra.mxu0 0
      %10593 = vmatprep.subr.bf16.mxu0 0
      %10594 = vmatpush1.bf16.msra.mxu0 0
      %10595 = vmatprep.subr.bf16.mxu0 0
      %10596 = vmatpush1.bf16.msra.mxu0 0
      %10597 = vmatprep.subr.bf16.mxu0 0
      %10598 = vmatpush1.bf16.msra.mxu0 0
      %10599 = vmatprep.subr.bf16.mxu0 0
      %10600 = vmatpush1.bf16.msra.mxu0 0
      %10601 = vmatprep.subr.bf16.mxu0 0
      %10602 = vmatpush1.bf16.msra.mxu0 0
      %10603 = vmatprep.subr.bf16.mxu0 0
      %10604 = vmatpush1.bf16.msra.mxu0 0
      %10605 = vmatprep.subr.bf16.mxu0 0
      %10606 = vmatpush1.bf16.msra.mxu0 0
      %10607 = vmatprep.subr.bf16.mxu0 0
      %10608 = vmatpush1.bf16.msra.mxu0 0
      %10609 = vmatprep.subr.bf16.mxu0 0
      %10610 = vmatpush1.bf16.msra.mxu0 0
      %10611 = vmatprep.subr.bf16.mxu0 0
      %10612 = vmatpush1.bf16.msra.mxu0 0
      %10613 = vmatprep.subr.bf16.mxu0 0
      %10614 = vmatpush1.bf16.msra.mxu0 0
      %10615 = vmatprep.subr.bf16.mxu0 0
      %10616 = vmatpush1.bf16.msra.mxu0 0
      %10617 = vmatprep.mubr.bf16.mxu0 0
      %10618 = vmatmul.mubr.bf16.gmra.mrb[0].mxu0 %v10566
      %v10619 = vpop.f32.mrb[0].mxu0
      %v10620 = vadd.f32 %v10504, %v10619
      %v10621 = vpop.f32.mrb[0].mxu0
      %v10622 = vpop.f32.mrb[0].mxu0
      %v10623 = vadd.f32 %v10507, %v10622
      %v10624 = vpop.f32.mrb[0].mxu0
      %10625 = vmatprep.mubr.bf16.mxu0 0
      %10626 = vmatmul.mubr.bf16.gmra.mrb[0].mxu0 %v10568
      %v10627 = vpop.f32.mrb[0].mxu0
      %v10628 = vadd.f32 %v10512, %v10627
      %v10629 = vpop.f32.mrb[0].mxu0
      %v10630 = vpop.f32.mrb[0].mxu0
      %v10631 = vadd.f32 %v10515, %v10630
      %v10632 = vpop.f32.mrb[0].mxu0
      %10633 = vmatprep.mubr.bf16.mxu0 0
      %10634 = vmatmul.mubr.bf16.gmra.mrb[0].mxu0 %v10570
      %v10635 = vpop.f32.mrb[0].mxu0
      %v10636 = vadd.f32 %v10520, %v10635
      %v10637 = vpop.f32.mrb[0].mxu0
      %v10638 = vpop.f32.mrb[0].mxu0
      %v10639 = vadd.f32 %v10523, %v10638
      %v10640 = vpop.f32.mrb[0].mxu0
      %10641 = vmatprep.mubr.bf16.mxu0 0
      %10642 = vmatmul.mubr.bf16.gmra.mrb[0].mxu0 %v10572
      %v10643 = vpop.f32.mrb[0].mxu0
      %v10644 = vadd.f32 %v10528, %v10643
      %v10645 = vpop.f32.mrb[0].mxu0
      %v10646 = vpop.f32.mrb[0].mxu0
      %v10647 = vadd.f32 %v10531, %v10646
      %v10648 = vpop.f32.mrb[0].mxu0
      %10649 = vmatprep.mubr.bf16.mxu0 0
      %10650 = vmatmul.mubr.bf16.gmra.mrb[0].mxu0 %v10574
      %v10651 = vpop.f32.mrb[0].mxu0
      %v10652 = vadd.f32 %v10536, %v10651
      %v10653 = vpop.f32.mrb[0].mxu0
      %v10654 = vpop.f32.mrb[0].mxu0
      %v10655 = vadd.f32 %v10539, %v10654
      %v10656 = vpop.f32.mrb[0].mxu0
      %10657 = vmatprep.mubr.bf16.mxu0 0
      %10658 = vmatmul.mubr.bf16.gmra.mrb[0].mxu0 %v10576
      %v10659 = vpop.f32.mrb[0].mxu0
      %v10660 = vadd.f32 %v10544, %v10659
      %v10661 = vpop.f32.mrb[0].mxu0
      %v10662 = vpop.f32.mrb[0].mxu0
      %v10663 = vadd.f32 %v10547, %v10662
      %v10664 = vpop.f32.mrb[0].mxu0
      %10665 = vmatprep.mubr.bf16.mxu0 0
      %10666 = vmatmul.mubr.bf16.gmra.mrb[0].mxu0 %v10578
      %v10667 = vpop.f32.mrb[0].mxu0
      %v10668 = vadd.f32 %v10552, %v10667
      %v10669 = vpop.f32.mrb[0].mxu0
      %v10670 = vpop.f32.mrb[0].mxu0
      %v10671 = vadd.f32 %v10555, %v10670
      %v10672 = vpop.f32.mrb[0].mxu0
      %10673 = vmatprep.mubr.bf16.mxu0 0
      %10674 = vmatmul.mubr.bf16.gmra.mrb[0].mxu0 %v10580
      %v10675 = vpop.f32.mrb[0].mxu0
      %v10676 = vadd.f32 %v10560, %v10675
      %v10677 = vpop.f32.mrb[0].mxu0
      %v10678 = vpop.f32.mrb[0].mxu0
      %v10679 = vadd.f32 %v10563, %v10678
      %v10680 = vpop.f32.mrb[0].mxu0
      %10681 = vdwg.mxu0
      %s10682 = scalar_lea.vmem [#allocation3], 16
      %v10683 = vld [vmem:[%s10682] sm:$0xf]
      %v10684 = vld [vmem:[%s10682 + $0x8] sm:$0xf]
      %v10685 = vld [vmem:[%s10682 + $0x10] sm:$0xf]
      %v10686 = vld [vmem:[%s10682 + $0x18] sm:$0xf]
      %v10687 = vld [vmem:[%s10682 + $0x20] sm:$0xf]
      %v10688 = vld [vmem:[%s10682 + $0x28] sm:$0xf]
      %v10689 = vld [vmem:[%s10682 + $0x30] sm:$0xf]
      %v10690 = vld [vmem:[%s10682 + $0x38] sm:$0xf]
      %v10691 = vld [vmem:[%s10682 + $0x40] sm:$0xf]
      %v10692 = vld [vmem:[%s10682 + $0x48] sm:$0xf]
      %v10693 = vld [vmem:[%s10682 + $0x50] sm:$0xf]
      %v10694 = vld [vmem:[%s10682 + $0x58] sm:$0xf]
      %v10695 = vld [vmem:[%s10682 + $0x60] sm:$0xf]
      %v10696 = vld [vmem:[%s10682 + $0x68] sm:$0xf]
      %v10697 = vld [vmem:[%s10682 + $0x70] sm:$0xf]
      %v10698 = vld [vmem:[%s10682 + $0x78] sm:$0xf]
      %v10699 = vld [vmem:[%s10682 + $0x4] sm:$0x1]
      %v10700 = vld [vmem:[%s10682 + $0xc] sm:$0x1]
      %v10701 = vld [vmem:[%s10682 + $0x14] sm:$0x1]
      %v10702 = vld [vmem:[%s10682 + $0x1c] sm:$0x1]
      %v10703 = vld [vmem:[%s10682 + $0x24] sm:$0x1]
      %v10704 = vld [vmem:[%s10682 + $0x2c] sm:$0x1]
      %v10705 = vld [vmem:[%s10682 + $0x34] sm:$0x1]
      %v10706 = vld [vmem:[%s10682 + $0x3c] sm:$0x1]
      %v10707 = vld [vmem:[%s10682 + $0x44] sm:$0x1]
      %v10708 = vld [vmem:[%s10682 + $0x4c] sm:$0x1]
      %v10709 = vld [vmem:[%s10682 + $0x54] sm:$0x1]
      %v10710 = vld [vmem:[%s10682 + $0x5c] sm:$0x1]
      %v10711 = vld [vmem:[%s10682 + $0x64] sm:$0x1]
      %v10712 = vld [vmem:[%s10682 + $0x6c] sm:$0x1]
      %v10713 = vld [vmem:[%s10682 + $0x74] sm:$0x1]
      %v10714 = vld [vmem:[%s10682 + $0x7c] sm:$0x1]
      %v10716 = vshrl.u32 %v10683, 16
      %v10718 = vrot.slane %v10716, 4
      %v10719 = vshll.u32 %v10683, 16
      %v10721 = vrot.slane %v10719, 5
      %v10722 = vor.u32 %v10718, %v10721
      %v10723 = vrot.slane %v10722, 4
      %v10725 = vshll.u32 %v10699, 16
      %v10727 = vrot.slane %v10725, 5
      %v10728 = vsel %vm2685, %v10723, %v10727
      %v10730 = vshrl.u32 %v10684, 16
      %v10732 = vrot.slane %v10730, 4
      %v10733 = vshll.u32 %v10684, 16
      %v10735 = vrot.slane %v10733, 5
      %v10736 = vor.u32 %v10732, %v10735
      %v10737 = vrot.slane %v10736, 4
      %v10739 = vshll.u32 %v10700, 16
      %v10741 = vrot.slane %v10739, 5
      %v10742 = vsel %vm2685, %v10737, %v10741
      %v10744 = vshrl.u32 %v10685, 16
      %v10746 = vrot.slane %v10744, 4
      %v10747 = vshll.u32 %v10685, 16
      %v10749 = vrot.slane %v10747, 5
      %v10750 = vor.u32 %v10746, %v10749
      %v10751 = vrot.slane %v10750, 4
      %v10753 = vshll.u32 %v10701, 16
      %v10755 = vrot.slane %v10753, 5
      %v10756 = vsel %vm2685, %v10751, %v10755
      %v10758 = vshrl.u32 %v10686, 16
      %v10760 = vrot.slane %v10758, 4
      %v10761 = vshll.u32 %v10686, 16
      %v10763 = vrot.slane %v10761, 5
      %v10764 = vor.u32 %v10760, %v10763
      %v10765 = vrot.slane %v10764, 4
      %v10767 = vshll.u32 %v10702, 16
      %v10769 = vrot.slane %v10767, 5
      %v10770 = vsel %vm2685, %v10765, %v10769
      %v10772 = vshrl.u32 %v10687, 16
      %v10774 = vrot.slane %v10772, 4
      %v10775 = vshll.u32 %v10687, 16
      %v10777 = vrot.slane %v10775, 5
      %v10778 = vor.u32 %v10774, %v10777
      %v10779 = vrot.slane %v10778, 4
      %v10781 = vshll.u32 %v10703, 16
      %v10783 = vrot.slane %v10781, 5
      %v10784 = vsel %vm2685, %v10779, %v10783
      %v10786 = vshrl.u32 %v10688, 16
      %v10788 = vrot.slane %v10786, 4
      %v10789 = vshll.u32 %v10688, 16
      %v10791 = vrot.slane %v10789, 5
      %v10792 = vor.u32 %v10788, %v10791
      %v10793 = vrot.slane %v10792, 4
      %v10795 = vshll.u32 %v10704, 16
      %v10797 = vrot.slane %v10795, 5
      %v10798 = vsel %vm2685, %v10793, %v10797
      %v10800 = vshrl.u32 %v10689, 16
      %v10802 = vrot.slane %v10800, 4
      %v10803 = vshll.u32 %v10689, 16
      %v10805 = vrot.slane %v10803, 5
      %v10806 = vor.u32 %v10802, %v10805
      %v10807 = vrot.slane %v10806, 4
      %v10809 = vshll.u32 %v10705, 16
      %v10811 = vrot.slane %v10809, 5
      %v10812 = vsel %vm2685, %v10807, %v10811
      %v10814 = vshrl.u32 %v10690, 16
      %v10816 = vrot.slane %v10814, 4
      %v10817 = vshll.u32 %v10690, 16
      %v10819 = vrot.slane %v10817, 5
      %v10820 = vor.u32 %v10816, %v10819
      %v10821 = vrot.slane %v10820, 4
      %v10823 = vshll.u32 %v10706, 16
      %v10825 = vrot.slane %v10823, 5
      %v10826 = vsel %vm2685, %v10821, %v10825
      %v10828 = vshrl.u32 %v10691, 16
      %v10830 = vrot.slane %v10828, 4
      %v10831 = vshll.u32 %v10691, 16
      %v10833 = vrot.slane %v10831, 5
      %v10834 = vor.u32 %v10830, %v10833
      %v10835 = vrot.slane %v10834, 4
      %v10837 = vshll.u32 %v10707, 16
      %v10839 = vrot.slane %v10837, 5
      %v10840 = vsel %vm2685, %v10835, %v10839
      %v10842 = vshrl.u32 %v10692, 16
      %v10844 = vrot.slane %v10842, 4
      %v10845 = vshll.u32 %v10692, 16
      %v10847 = vrot.slane %v10845, 5
      %v10848 = vor.u32 %v10844, %v10847
      %v10849 = vrot.slane %v10848, 4
      %v10851 = vshll.u32 %v10708, 16
      %v10853 = vrot.slane %v10851, 5
      %v10854 = vsel %vm2685, %v10849, %v10853
      %v10856 = vshrl.u32 %v10693, 16
      %v10858 = vrot.slane %v10856, 4
      %v10859 = vshll.u32 %v10693, 16
      %v10861 = vrot.slane %v10859, 5
      %v10862 = vor.u32 %v10858, %v10861
      %v10863 = vrot.slane %v10862, 4
      %v10865 = vshll.u32 %v10709, 16
      %v10867 = vrot.slane %v10865, 5
      %v10868 = vsel %vm2685, %v10863, %v10867
      %v10870 = vshrl.u32 %v10694, 16
      %v10872 = vrot.slane %v10870, 4
      %v10873 = vshll.u32 %v10694, 16
      %v10875 = vrot.slane %v10873, 5
      %v10876 = vor.u32 %v10872, %v10875
      %v10877 = vrot.slane %v10876, 4
      %v10879 = vshll.u32 %v10710, 16
      %v10881 = vrot.slane %v10879, 5
      %v10882 = vsel %vm2685, %v10877, %v10881
      %v10884 = vshrl.u32 %v10695, 16
      %v10886 = vrot.slane %v10884, 4
      %v10887 = vshll.u32 %v10695, 16
      %v10889 = vrot.slane %v10887, 5
      %v10890 = vor.u32 %v10886, %v10889
      %v10891 = vrot.slane %v10890, 4
      %v10893 = vshll.u32 %v10711, 16
      %v10895 = vrot.slane %v10893, 5
      %v10896 = vsel %vm2685, %v10891, %v10895
      %v10898 = vshrl.u32 %v10696, 16
      %v10900 = vrot.slane %v10898, 4
      %v10901 = vshll.u32 %v10696, 16
      %v10903 = vrot.slane %v10901, 5
      %v10904 = vor.u32 %v10900, %v10903
      %v10905 = vrot.slane %v10904, 4
      %v10907 = vshll.u32 %v10712, 16
      %v10909 = vrot.slane %v10907, 5
      %v10910 = vsel %vm2685, %v10905, %v10909
      %v10912 = vshrl.u32 %v10697, 16
      %v10914 = vrot.slane %v10912, 4
      %v10915 = vshll.u32 %v10697, 16
      %v10917 = vrot.slane %v10915, 5
      %v10918 = vor.u32 %v10914, %v10917
      %v10919 = vrot.slane %v10918, 4
      %v10921 = vshll.u32 %v10713, 16
      %v10923 = vrot.slane %v10921, 5
      %v10924 = vsel %vm2685, %v10919, %v10923
      %v10926 = vshrl.u32 %v10698, 16
      %v10928 = vrot.slane %v10926, 4
      %v10929 = vshll.u32 %v10698, 16
      %v10931 = vrot.slane %v10929, 5
      %v10932 = vor.u32 %v10928, %v10931
      %v10933 = vrot.slane %v10932, 4
      %v10935 = vshll.u32 %v10714, 16
      %v10937 = vrot.slane %v10935, 5
      %v10938 = vsel %vm2685, %v10933, %v10937
      %v10939 = vld [vmem:[%s10682] sm:$0xe]
      %v10940 = vld [vmem:[%s10682 + $0x8] sm:$0xe]
      %v10941 = vld [vmem:[%s10682 + $0x10] sm:$0xe]
      %v10942 = vld [vmem:[%s10682 + $0x18] sm:$0xe]
      %v10943 = vld [vmem:[%s10682 + $0x20] sm:$0xe]
      %v10944 = vld [vmem:[%s10682 + $0x28] sm:$0xe]
      %v10945 = vld [vmem:[%s10682 + $0x30] sm:$0xe]
      %v10946 = vld [vmem:[%s10682 + $0x38] sm:$0xe]
      %v10947 = vld [vmem:[%s10682 + $0x40] sm:$0xe]
      %v10948 = vld [vmem:[%s10682 + $0x48] sm:$0xe]
      %v10949 = vld [vmem:[%s10682 + $0x50] sm:$0xe]
      %v10950 = vld [vmem:[%s10682 + $0x58] sm:$0xe]
      %v10951 = vld [vmem:[%s10682 + $0x60] sm:$0xe]
      %v10952 = vld [vmem:[%s10682 + $0x68] sm:$0xe]
      %v10953 = vld [vmem:[%s10682 + $0x70] sm:$0xe]
      %v10954 = vld [vmem:[%s10682 + $0x78] sm:$0xe]
      %v10987 = vrot.slane %v10939, 5
      %v10988 = vrot.slane %v10987, 4
      %v10989 = vrot.slane %v10699, 5
      %v10990 = vsel %vm3192, %v10988, %v10989
      %v10991 = vrot.slane %v10940, 5
      %v10992 = vrot.slane %v10991, 4
      %v10993 = vrot.slane %v10700, 5
      %v10994 = vsel %vm3192, %v10992, %v10993
      %v10995 = vrot.slane %v10941, 5
      %v10996 = vrot.slane %v10995, 4
      %v10997 = vrot.slane %v10701, 5
      %v10998 = vsel %vm3192, %v10996, %v10997
      %v10999 = vrot.slane %v10942, 5
      %v11000 = vrot.slane %v10999, 4
      %v11001 = vrot.slane %v10702, 5
      %v11002 = vsel %vm3192, %v11000, %v11001
      %v11003 = vrot.slane %v10943, 5
      %v11004 = vrot.slane %v11003, 4
      %v11005 = vrot.slane %v10703, 5
      %v11006 = vsel %vm3192, %v11004, %v11005
      %v11007 = vrot.slane %v10944, 5
      %v11008 = vrot.slane %v11007, 4
      %v11009 = vrot.slane %v10704, 5
      %v11010 = vsel %vm3192, %v11008, %v11009
      %v11011 = vrot.slane %v10945, 5
      %v11012 = vrot.slane %v11011, 4
      %v11013 = vrot.slane %v10705, 5
      %v11014 = vsel %vm3192, %v11012, %v11013
      %v11015 = vrot.slane %v10946, 5
      %v11016 = vrot.slane %v11015, 4
      %v11017 = vrot.slane %v10706, 5
      %v11018 = vsel %vm3192, %v11016, %v11017
      %v11019 = vrot.slane %v10947, 5
      %v11020 = vrot.slane %v11019, 4
      %v11021 = vrot.slane %v10707, 5
      %v11022 = vsel %vm3192, %v11020, %v11021
      %v11023 = vrot.slane %v10948, 5
      %v11024 = vrot.slane %v11023, 4
      %v11025 = vrot.slane %v10708, 5
      %v11026 = vsel %vm3192, %v11024, %v11025
      %v11027 = vrot.slane %v10949, 5
      %v11028 = vrot.slane %v11027, 4
      %v11029 = vrot.slane %v10709, 5
      %v11030 = vsel %vm3192, %v11028, %v11029
      %v11031 = vrot.slane %v10950, 5
      %v11032 = vrot.slane %v11031, 4
      %v11033 = vrot.slane %v10710, 5
      %v11034 = vsel %vm3192, %v11032, %v11033
      %v11035 = vrot.slane %v10951, 5
      %v11036 = vrot.slane %v11035, 4
      %v11037 = vrot.slane %v10711, 5
      %v11038 = vsel %vm3192, %v11036, %v11037
      %v11039 = vrot.slane %v10952, 5
      %v11040 = vrot.slane %v11039, 4
      %v11041 = vrot.slane %v10712, 5
      %v11042 = vsel %vm3192, %v11040, %v11041
      %v11043 = vrot.slane %v10953, 5
      %v11044 = vrot.slane %v11043, 4
      %v11045 = vrot.slane %v10713, 5
      %v11046 = vsel %vm3192, %v11044, %v11045
      %v11047 = vrot.slane %v10954, 5
      %v11048 = vrot.slane %v11047, 4
      %v11049 = vrot.slane %v10714, 5
      %v11050 = vsel %vm3192, %v11048, %v11049
      %v11067 = vunpack.c.l.b16 %v10683
      %v11068 = vunpack.c.l.b16 %v10684
      %v11069 = vunpack.c.l.b16 %v10685
      %v11070 = vunpack.c.l.b16 %v10686
      %v11071 = vunpack.c.l.b16 %v10687
      %v11072 = vunpack.c.l.b16 %v10688
      %v11073 = vunpack.c.l.b16 %v10689
      %v11074 = vunpack.c.l.b16 %v10690
      %v11075 = vunpack.c.l.b16 %v10691
      %v11076 = vunpack.c.l.b16 %v10692
      %v11077 = vunpack.c.l.b16 %v10693
      %v11078 = vunpack.c.l.b16 %v10694
      %v11079 = vunpack.c.l.b16 %v10695
      %v11080 = vunpack.c.l.b16 %v10696
      %v11081 = vunpack.c.l.b16 %v10697
      %v11082 = vunpack.c.l.b16 %v10698
      %v11083 = vpack.c.b16 %v11068, %v11067
      %v11084 = vpack.c.b16 %v11070, %v11069
      %v11085 = vpack.c.b16 %v11072, %v11071
      %v11086 = vpack.c.b16 %v11074, %v11073
      %v11087 = vpack.c.b16 %v11076, %v11075
      %v11088 = vpack.c.b16 %v11078, %v11077
      %v11089 = vpack.c.b16 %v11080, %v11079
      %v11090 = vpack.c.b16 %v11082, %v11081
      %v11091 = vunpack.c.l.b16 %v10728
      %v11092 = vunpack.c.l.b16 %v10742
      %v11093 = vunpack.c.l.b16 %v10756
      %v11094 = vunpack.c.l.b16 %v10770
      %v11095 = vunpack.c.l.b16 %v10784
      %v11096 = vunpack.c.l.b16 %v10798
      %v11097 = vunpack.c.l.b16 %v10812
      %v11098 = vunpack.c.l.b16 %v10826
      %v11099 = vunpack.c.l.b16 %v10840
      %v11100 = vunpack.c.l.b16 %v10854
      %v11101 = vunpack.c.l.b16 %v10868
      %v11102 = vunpack.c.l.b16 %v10882
      %v11103 = vunpack.c.l.b16 %v10896
      %v11104 = vunpack.c.l.b16 %v10910
      %v11105 = vunpack.c.l.b16 %v10924
      %v11106 = vunpack.c.l.b16 %v10938
      %v11107 = vpack.c.b16 %v11092, %v11091
      %v11108 = vpack.c.b16 %v11094, %v11093
      %v11109 = vpack.c.b16 %v11096, %v11095
      %v11110 = vpack.c.b16 %v11098, %v11097
      %v11111 = vpack.c.b16 %v11100, %v11099
      %v11112 = vpack.c.b16 %v11102, %v11101
      %v11113 = vpack.c.b16 %v11104, %v11103
      %v11114 = vpack.c.b16 %v11106, %v11105
      %11115 = vrot.lane.b32.xlu0 %v11107, 2
      %v11116 = vpop.permute.xlu0 %11115
      %11117 = vrot.lane.b32.xlu0 %v11108, 2
      %v11118 = vpop.permute.xlu0 %11117
      %11119 = vrot.lane.b32.xlu0 %v11109, 2
      %v11120 = vpop.permute.xlu0 %11119
      %11121 = vrot.lane.b32.xlu0 %v11110, 2
      %v11122 = vpop.permute.xlu0 %11121
      %11123 = vrot.lane.b32.xlu0 %v11111, 2
      %v11124 = vpop.permute.xlu0 %11123
      %11125 = vrot.lane.b32.xlu0 %v11112, 2
      %v11126 = vpop.permute.xlu0 %11125
      %11127 = vrot.lane.b32.xlu0 %v11113, 2
      %v11128 = vpop.permute.xlu0 %11127
      %11129 = vrot.lane.b32.xlu0 %v11114, 2
      %v11130 = vpop.permute.xlu0 %11129
      %v11131 = vunpack.c.l.b16 %v10990
      %v11132 = vunpack.c.l.b16 %v10994
      %v11133 = vunpack.c.l.b16 %v10998
      %v11134 = vunpack.c.l.b16 %v11002
      %v11135 = vunpack.c.l.b16 %v11006
      %v11136 = vunpack.c.l.b16 %v11010
      %v11137 = vunpack.c.l.b16 %v11014
      %v11138 = vunpack.c.l.b16 %v11018
      %v11139 = vunpack.c.l.b16 %v11022
      %v11140 = vunpack.c.l.b16 %v11026
      %v11141 = vunpack.c.l.b16 %v11030
      %v11142 = vunpack.c.l.b16 %v11034
      %v11143 = vunpack.c.l.b16 %v11038
      %v11144 = vunpack.c.l.b16 %v11042
      %v11145 = vunpack.c.l.b16 %v11046
      %v11146 = vunpack.c.l.b16 %v11050
      %v11147 = vpack.c.b16 %v11132, %v11131
      %v11148 = vpack.c.b16 %v11134, %v11133
      %v11149 = vpack.c.b16 %v11136, %v11135
      %v11150 = vpack.c.b16 %v11138, %v11137
      %v11151 = vpack.c.b16 %v11140, %v11139
      %v11152 = vpack.c.b16 %v11142, %v11141
      %v11153 = vpack.c.b16 %v11144, %v11143
      %v11154 = vpack.c.b16 %v11146, %v11145
      %11155 = vrot.lane.b32.xlu0 %v11147, 4
      %v11156 = vpop.permute.xlu0 %11155
      %11157 = vrot.lane.b32.xlu0 %v11148, 4
      %v11158 = vpop.permute.xlu0 %11157
      %11159 = vrot.lane.b32.xlu0 %v11149, 4
      %v11160 = vpop.permute.xlu0 %11159
      %11161 = vrot.lane.b32.xlu0 %v11150, 4
      %v11162 = vpop.permute.xlu0 %11161
      %11163 = vrot.lane.b32.xlu0 %v11151, 4
      %v11164 = vpop.permute.xlu0 %11163
      %11165 = vrot.lane.b32.xlu0 %v11152, 4
      %v11166 = vpop.permute.xlu0 %11165
      %11167 = vrot.lane.b32.xlu0 %v11153, 4
      %v11168 = vpop.permute.xlu0 %11167
      %11169 = vrot.lane.b32.xlu0 %v11154, 4
      %v11170 = vpop.permute.xlu0 %11169
      %v11173 = vsel %vm3571, %v11083, %v11116
      %v11176 = vsel %vm3571, %v11084, %v11118
      %v11179 = vsel %vm3571, %v11085, %v11120
      %v11182 = vsel %vm3571, %v11086, %v11122
      %v11185 = vsel %vm3571, %v11087, %v11124
      %v11188 = vsel %vm3571, %v11088, %v11126
      %v11191 = vsel %vm3571, %v11089, %v11128
      %v11194 = vsel %vm3571, %v11090, %v11130
      %v11196 = vsel %vm3626, %v11173, %v11156
      %v11198 = vsel %vm3626, %v11176, %v11158
      %v11200 = vsel %vm3626, %v11179, %v11160
      %v11202 = vsel %vm3626, %v11182, %v11162
      %v11204 = vsel %vm3626, %v11185, %v11164
      %v11206 = vsel %vm3626, %v11188, %v11166
      %v11208 = vsel %vm3626, %v11191, %v11168
      %v11210 = vsel %vm3626, %v11194, %v11170
      %s11211 = scalar_lea.vmem %s5, 8
      %v11212 = vld [vmem:[%s11211] sm:$0x7]
      %v11213 = vsel %vm4693, %v11196, 0
      %v11215 = vsel %vm4693, %v11198, 0
      %v11217 = vsel %vm4693, %v11200, 0
      %v11219 = vsel %vm4693, %v11202, 0
      %v11221 = vsel %vm4693, %v11204, 0
      %v11223 = vsel %vm4693, %v11206, 0
      %v11225 = vsel %vm4693, %v11208, 0
      %v11227 = vsel %vm4693, %v11210, 0
      %v11230 = vsel %vm4730, %v11212, 0
      %11232 = vmatprep.subr.bf16.mxu0 0
      %11233 = vmatpush1.bf16.msra.mxu0 %v11230
      %11234 = vmatprep.subr.bf16.mxu0 0
      %11235 = vmatpush1.bf16.msra.mxu0 0
      %11236 = vmatprep.subr.bf16.mxu0 0
      %11237 = vmatpush1.bf16.msra.mxu0 0
      %11238 = vmatprep.subr.bf16.mxu0 0
      %11239 = vmatpush1.bf16.msra.mxu0 0
      %11240 = vmatprep.subr.bf16.mxu0 0
      %11241 = vmatpush1.bf16.msra.mxu0 0
      %11242 = vmatprep.subr.bf16.mxu0 0
      %11243 = vmatpush1.bf16.msra.mxu0 0
      %11244 = vmatprep.subr.bf16.mxu0 0
      %11245 = vmatpush1.bf16.msra.mxu0 0
      %11246 = vmatprep.subr.bf16.mxu0 0
      %11247 = vmatpush1.bf16.msra.mxu0 0
      %11248 = vmatprep.subr.bf16.mxu0 0
      %11249 = vmatpush1.bf16.msra.mxu0 0
      %11250 = vmatprep.subr.bf16.mxu0 0
      %11251 = vmatpush1.bf16.msra.mxu0 0
      %11252 = vmatprep.subr.bf16.mxu0 0
      %11253 = vmatpush1.bf16.msra.mxu0 0
      %11254 = vmatprep.subr.bf16.mxu0 0
      %11255 = vmatpush1.bf16.msra.mxu0 0
      %11256 = vmatprep.subr.bf16.mxu0 0
      %11257 = vmatpush1.bf16.msra.mxu0 0
      %11258 = vmatprep.subr.bf16.mxu0 0
      %11259 = vmatpush1.bf16.msra.mxu0 0
      %11260 = vmatprep.subr.bf16.mxu0 0
      %11261 = vmatpush1.bf16.msra.mxu0 0
      %11262 = vmatprep.subr.bf16.mxu0 0
      %11263 = vmatpush1.bf16.msra.mxu0 0
      %11264 = vmatprep.mubr.bf16.mxu0 0
      %11265 = vmatmul.mubr.bf16.gmra.mrb[0].mxu0 %v11213
      %v11266 = vpop.f32.mrb[0].mxu0
      %v11267 = vadd.f32 0.0, %v11266
      %v11268 = vpop.f32.mrb[0].mxu0
      %v11269 = vpop.f32.mrb[0].mxu0
      %v11270 = vadd.f32 0.0, %v11269
      %v11271 = vpop.f32.mrb[0].mxu0
      %11272 = vmatprep.mubr.bf16.mxu0 0
      %11273 = vmatmul.mubr.bf16.gmra.mrb[0].mxu0 %v11215
      %v11274 = vpop.f32.mrb[0].mxu0
      %v11275 = vadd.f32 0.0, %v11274
      %v11276 = vpop.f32.mrb[0].mxu0
      %v11277 = vpop.f32.mrb[0].mxu0
      %v11278 = vadd.f32 0.0, %v11277
      %v11279 = vpop.f32.mrb[0].mxu0
      %11280 = vmatprep.mubr.bf16.mxu0 0
      %11281 = vmatmul.mubr.bf16.gmra.mrb[0].mxu0 %v11217
      %v11282 = vpop.f32.mrb[0].mxu0
      %v11283 = vadd.f32 0.0, %v11282
      %v11284 = vpop.f32.mrb[0].mxu0
      %v11285 = vpop.f32.mrb[0].mxu0
      %v11286 = vadd.f32 0.0, %v11285
      %v11287 = vpop.f32.mrb[0].mxu0
      %11288 = vmatprep.mubr.bf16.mxu0 0
      %11289 = vmatmul.mubr.bf16.gmra.mrb[0].mxu0 %v11219
      %v11290 = vpop.f32.mrb[0].mxu0
      %v11291 = vadd.f32 0.0, %v11290
      %v11292 = vpop.f32.mrb[0].mxu0
      %v11293 = vpop.f32.mrb[0].mxu0
      %v11294 = vadd.f32 0.0, %v11293
      %v11295 = vpop.f32.mrb[0].mxu0
      %11296 = vmatprep.mubr.bf16.mxu0 0
      %11297 = vmatmul.mubr.bf16.gmra.mrb[0].mxu0 %v11221
      %v11298 = vpop.f32.mrb[0].mxu0
      %v11299 = vadd.f32 0.0, %v11298
      %v11300 = vpop.f32.mrb[0].mxu0
      %v11301 = vpop.f32.mrb[0].mxu0
      %v11302 = vadd.f32 0.0, %v11301
      %v11303 = vpop.f32.mrb[0].mxu0
      %11304 = vmatprep.mubr.bf16.mxu0 0
      %11305 = vmatmul.mubr.bf16.gmra.mrb[0].mxu0 %v11223
      %v11306 = vpop.f32.mrb[0].mxu0
      %v11307 = vadd.f32 0.0, %v11306
      %v11308 = vpop.f32.mrb[0].mxu0
      %v11309 = vpop.f32.mrb[0].mxu0
      %v11310 = vadd.f32 0.0, %v11309
      %v11311 = vpop.f32.mrb[0].mxu0
      %11312 = vmatprep.mubr.bf16.mxu0 0
      %11313 = vmatmul.mubr.bf16.gmra.mrb[0].mxu0 %v11225
      %v11314 = vpop.f32.mrb[0].mxu0
      %v11315 = vadd.f32 0.0, %v11314
      %v11316 = vpop.f32.mrb[0].mxu0
      %v11317 = vpop.f32.mrb[0].mxu0
      %v11318 = vadd.f32 0.0, %v11317
      %v11319 = vpop.f32.mrb[0].mxu0
      %11320 = vmatprep.mubr.bf16.mxu0 0
      %11321 = vmatmul.mubr.bf16.gmra.mrb[0].mxu0 %v11227
      %v11322 = vpop.f32.mrb[0].mxu0
      %v11323 = vadd.f32 0.0, %v11322
      %v11324 = vpop.f32.mrb[0].mxu0
      %v11325 = vpop.f32.mrb[0].mxu0
      %v11326 = vadd.f32 0.0, %v11325
      %v11327 = vpop.f32.mrb[0].mxu0
      %11328 = vdwg.mxu0
      %v11329 = vadd.f32 %v10620, %v11267
      %v11330 = vadd.f32 %v10623, %v11270
      %v11331 = vadd.f32 %v10628, %v11275
      %v11332 = vadd.f32 %v10631, %v11278
      %v11333 = vadd.f32 %v10636, %v11283
      %v11334 = vadd.f32 %v10639, %v11286
      %v11335 = vadd.f32 %v10644, %v11291
      %v11336 = vadd.f32 %v10647, %v11294
      %v11337 = vadd.f32 %v10652, %v11299
      %v11338 = vadd.f32 %v10655, %v11302
      %v11339 = vadd.f32 %v10660, %v11307
      %v11340 = vadd.f32 %v10663, %v11310
      %v11341 = vadd.f32 %v10668, %v11315
      %v11342 = vadd.f32 %v10671, %v11318
      %v11343 = vadd.f32 %v10676, %v11323
      %v11344 = vadd.f32 %v10679, %v11326
      %v11345 = vld [vmem:[%s6] sm:$0x1]
      %v11347 = vlaneseq
      %v11348 = vshrl.u32 %v11347, 7
      %v11349 = vsub.s32 0, %v11348
      %v11350 = vrot.slane %v11345, %v11349
      %v11352 = vadd.f32 %v11329, %v11350
      %v11353 = vadd.f32 %v11330, %v11350
      %v11354 = vadd.f32 %v11331, %v11350
      %v11355 = vadd.f32 %v11332, %v11350
      %v11356 = vadd.f32 %v11333, %v11350
      %v11357 = vadd.f32 %v11334, %v11350
      %v11358 = vadd.f32 %v11335, %v11350
      %v11359 = vadd.f32 %v11336, %v11350
      %v11360 = vadd.f32 %v11337, %v11350
      %v11361 = vadd.f32 %v11338, %v11350
      %v11362 = vadd.f32 %v11339, %v11350
      %v11363 = vadd.f32 %v11340, %v11350
      %v11364 = vadd.f32 %v11341, %v11350
      %v11365 = vadd.f32 %v11342, %v11350
      %v11366 = vadd.f32 %v11343, %v11350
      %v11367 = vadd.f32 %v11344, %v11350
      %v11368 = vmax.f32 %v11352, 0.0
      %v11369 = vmax.f32 %v11353, 0.0
      %v11370 = vmax.f32 %v11354, 0.0
      %v11371 = vmax.f32 %v11355, 0.0
      %v11372 = vmax.f32 %v11356, 0.0
      %v11373 = vmax.f32 %v11357, 0.0
      %v11374 = vmax.f32 %v11358, 0.0
      %v11375 = vmax.f32 %v11359, 0.0
      %v11376 = vmax.f32 %v11360, 0.0
      %v11377 = vmax.f32 %v11361, 0.0
      %v11378 = vmax.f32 %v11362, 0.0
      %v11379 = vmax.f32 %v11363, 0.0
      %v11380 = vmax.f32 %v11364, 0.0
      %v11381 = vmax.f32 %v11365, 0.0
      %v11382 = vmax.f32 %v11366, 0.0
      %v11383 = vmax.f32 %v11367, 0.0
      %v11400 = vcombine.high %v11368, %v11368
      %v11402 = vunpack.c.l.s4 1983009808
      %v11403 = vunpack.c.0.s8 %v11402
      %v11404 = vlaneseq
      %v11405 = vshrl.u32 %v11404, 7
      %v11406 = vsub.s32 %v11403, %v11405
      %v11407 = vrot.slane %v11368, %v11406
      %v11409 = vunpack.c.l.s4 1983009808
      %v11410 = vunpack.c.0.s8 %v11409
      %v11411 = vlaneseq
      %v11412 = vshrl.u32 %v11411, 7
      %v11413 = vsub.s32 %v11410, %v11412
      %v11414 = vrot.slane %v11400, %v11413
      %v11415 = vcombine.high %v11407, %v11407
      %v11416 = vcombine.high %v11414, %v11414
      %v11417 = vcombine.high %v11369, %v11369
      %v11419 = vunpack.c.l.s4 1983009808
      %v11420 = vunpack.c.0.s8 %v11419
      %v11421 = vlaneseq
      %v11422 = vshrl.u32 %v11421, 7
      %v11423 = vsub.s32 %v11420, %v11422
      %v11424 = vrot.slane %v11369, %v11423
      %v11426 = vunpack.c.l.s4 1983009808
      %v11427 = vunpack.c.0.s8 %v11426
      %v11428 = vlaneseq
      %v11429 = vshrl.u32 %v11428, 7
      %v11430 = vsub.s32 %v11427, %v11429
      %v11431 = vrot.slane %v11417, %v11430
      %v11432 = vcombine.high %v11424, %v11424
      %v11433 = vcombine.high %v11431, %v11431
      %v11434 = vcombine.high %v11370, %v11370
      %v11436 = vunpack.c.l.s4 1983009808
      %v11437 = vunpack.c.0.s8 %v11436
      %v11438 = vlaneseq
      %v11439 = vshrl.u32 %v11438, 7
      %v11440 = vsub.s32 %v11437, %v11439
      %v11441 = vrot.slane %v11370, %v11440
      %v11443 = vunpack.c.l.s4 1983009808
      %v11444 = vunpack.c.0.s8 %v11443
      %v11445 = vlaneseq
      %v11446 = vshrl.u32 %v11445, 7
      %v11447 = vsub.s32 %v11444, %v11446
      %v11448 = vrot.slane %v11434, %v11447
      %v11449 = vcombine.high %v11441, %v11441
      %v11450 = vcombine.high %v11448, %v11448
      %v11451 = vcombine.high %v11371, %v11371
      %v11453 = vunpack.c.l.s4 1983009808
      %v11454 = vunpack.c.0.s8 %v11453
      %v11455 = vlaneseq
      %v11456 = vshrl.u32 %v11455, 7
      %v11457 = vsub.s32 %v11454, %v11456
      %v11458 = vrot.slane %v11371, %v11457
      %v11460 = vunpack.c.l.s4 1983009808
      %v11461 = vunpack.c.0.s8 %v11460
      %v11462 = vlaneseq
      %v11463 = vshrl.u32 %v11462, 7
      %v11464 = vsub.s32 %v11461, %v11463
      %v11465 = vrot.slane %v11451, %v11464
      %v11466 = vcombine.high %v11458, %v11458
      %v11467 = vcombine.high %v11465, %v11465
      %v11468 = vcombine.high %v11372, %v11372
      %v11470 = vunpack.c.l.s4 1983009808
      %v11471 = vunpack.c.0.s8 %v11470
      %v11472 = vlaneseq
      %v11473 = vshrl.u32 %v11472, 7
      %v11474 = vsub.s32 %v11471, %v11473
      %v11475 = vrot.slane %v11372, %v11474
      %v11477 = vunpack.c.l.s4 1983009808
      %v11478 = vunpack.c.0.s8 %v11477
      %v11479 = vlaneseq
      %v11480 = vshrl.u32 %v11479, 7
      %v11481 = vsub.s32 %v11478, %v11480
      %v11482 = vrot.slane %v11468, %v11481
      %v11483 = vcombine.high %v11475, %v11475
      %v11484 = vcombine.high %v11482, %v11482
      %v11485 = vcombine.high %v11373, %v11373
      %v11487 = vunpack.c.l.s4 1983009808
      %v11488 = vunpack.c.0.s8 %v11487
      %v11489 = vlaneseq
      %v11490 = vshrl.u32 %v11489, 7
      %v11491 = vsub.s32 %v11488, %v11490
      %v11492 = vrot.slane %v11373, %v11491
      %v11494 = vunpack.c.l.s4 1983009808
      %v11495 = vunpack.c.0.s8 %v11494
      %v11496 = vlaneseq
      %v11497 = vshrl.u32 %v11496, 7
      %v11498 = vsub.s32 %v11495, %v11497
      %v11499 = vrot.slane %v11485, %v11498
      %v11500 = vcombine.high %v11492, %v11492
      %v11501 = vcombine.high %v11499, %v11499
      %v11502 = vcombine.high %v11374, %v11374
      %v11504 = vunpack.c.l.s4 1983009808
      %v11505 = vunpack.c.0.s8 %v11504
      %v11506 = vlaneseq
      %v11507 = vshrl.u32 %v11506, 7
      %v11508 = vsub.s32 %v11505, %v11507
      %v11509 = vrot.slane %v11374, %v11508
      %v11511 = vunpack.c.l.s4 1983009808
      %v11512 = vunpack.c.0.s8 %v11511
      %v11513 = vlaneseq
      %v11514 = vshrl.u32 %v11513, 7
      %v11515 = vsub.s32 %v11512, %v11514
      %v11516 = vrot.slane %v11502, %v11515
      %v11517 = vcombine.high %v11509, %v11509
      %v11518 = vcombine.high %v11516, %v11516
      %v11519 = vcombine.high %v11375, %v11375
      %v11521 = vunpack.c.l.s4 1983009808
      %v11522 = vunpack.c.0.s8 %v11521
      %v11523 = vlaneseq
      %v11524 = vshrl.u32 %v11523, 7
      %v11525 = vsub.s32 %v11522, %v11524
      %v11526 = vrot.slane %v11375, %v11525
      %v11528 = vunpack.c.l.s4 1983009808
      %v11529 = vunpack.c.0.s8 %v11528
      %v11530 = vlaneseq
      %v11531 = vshrl.u32 %v11530, 7
      %v11532 = vsub.s32 %v11529, %v11531
      %v11533 = vrot.slane %v11519, %v11532
      %v11534 = vcombine.high %v11526, %v11526
      %v11535 = vcombine.high %v11533, %v11533
      %v11536 = vcombine.high %v11376, %v11376
      %v11538 = vunpack.c.l.s4 1983009808
      %v11539 = vunpack.c.0.s8 %v11538
      %v11540 = vlaneseq
      %v11541 = vshrl.u32 %v11540, 7
      %v11542 = vsub.s32 %v11539, %v11541
      %v11543 = vrot.slane %v11376, %v11542
      %v11545 = vunpack.c.l.s4 1983009808
      %v11546 = vunpack.c.0.s8 %v11545
      %v11547 = vlaneseq
      %v11548 = vshrl.u32 %v11547, 7
      %v11549 = vsub.s32 %v11546, %v11548
      %v11550 = vrot.slane %v11536, %v11549
      %v11551 = vcombine.high %v11543, %v11543
      %v11552 = vcombine.high %v11550, %v11550
      %v11553 = vcombine.high %v11377, %v11377
      %v11555 = vunpack.c.l.s4 1983009808
      %v11556 = vunpack.c.0.s8 %v11555
      %v11557 = vlaneseq
      %v11558 = vshrl.u32 %v11557, 7
      %v11559 = vsub.s32 %v11556, %v11558
      %v11560 = vrot.slane %v11377, %v11559
      %v11562 = vunpack.c.l.s4 1983009808
      %v11563 = vunpack.c.0.s8 %v11562
      %v11564 = vlaneseq
      %v11565 = vshrl.u32 %v11564, 7
      %v11566 = vsub.s32 %v11563, %v11565
      %v11567 = vrot.slane %v11553, %v11566
      %v11568 = vcombine.high %v11560, %v11560
      %v11569 = vcombine.high %v11567, %v11567
      %v11570 = vcombine.high %v11378, %v11378
      %v11572 = vunpack.c.l.s4 1983009808
      %v11573 = vunpack.c.0.s8 %v11572
      %v11574 = vlaneseq
      %v11575 = vshrl.u32 %v11574, 7
      %v11576 = vsub.s32 %v11573, %v11575
      %v11577 = vrot.slane %v11378, %v11576
      %v11579 = vunpack.c.l.s4 1983009808
      %v11580 = vunpack.c.0.s8 %v11579
      %v11581 = vlaneseq
      %v11582 = vshrl.u32 %v11581, 7
      %v11583 = vsub.s32 %v11580, %v11582
      %v11584 = vrot.slane %v11570, %v11583
      %v11585 = vcombine.high %v11577, %v11577
      %v11586 = vcombine.high %v11584, %v11584
      %v11587 = vcombine.high %v11379, %v11379
      %v11589 = vunpack.c.l.s4 1983009808
      %v11590 = vunpack.c.0.s8 %v11589
      %v11591 = vlaneseq
      %v11592 = vshrl.u32 %v11591, 7
      %v11593 = vsub.s32 %v11590, %v11592
      %v11594 = vrot.slane %v11379, %v11593
      %v11596 = vunpack.c.l.s4 1983009808
      %v11597 = vunpack.c.0.s8 %v11596
      %v11598 = vlaneseq
      %v11599 = vshrl.u32 %v11598, 7
      %v11600 = vsub.s32 %v11597, %v11599
      %v11601 = vrot.slane %v11587, %v11600
      %v11602 = vcombine.high %v11594, %v11594
      %v11603 = vcombine.high %v11601, %v11601
      %v11604 = vcombine.high %v11380, %v11380
      %v11606 = vunpack.c.l.s4 1983009808
      %v11607 = vunpack.c.0.s8 %v11606
      %v11608 = vlaneseq
      %v11609 = vshrl.u32 %v11608, 7
      %v11610 = vsub.s32 %v11607, %v11609
      %v11611 = vrot.slane %v11380, %v11610
      %v11613 = vunpack.c.l.s4 1983009808
      %v11614 = vunpack.c.0.s8 %v11613
      %v11615 = vlaneseq
      %v11616 = vshrl.u32 %v11615, 7
      %v11617 = vsub.s32 %v11614, %v11616
      %v11618 = vrot.slane %v11604, %v11617
      %v11619 = vcombine.high %v11611, %v11611
      %v11620 = vcombine.high %v11618, %v11618
      %v11621 = vcombine.high %v11381, %v11381
      %v11623 = vunpack.c.l.s4 1983009808
      %v11624 = vunpack.c.0.s8 %v11623
      %v11625 = vlaneseq
      %v11626 = vshrl.u32 %v11625, 7
      %v11627 = vsub.s32 %v11624, %v11626
      %v11628 = vrot.slane %v11381, %v11627
      %v11630 = vunpack.c.l.s4 1983009808
      %v11631 = vunpack.c.0.s8 %v11630
      %v11632 = vlaneseq
      %v11633 = vshrl.u32 %v11632, 7
      %v11634 = vsub.s32 %v11631, %v11633
      %v11635 = vrot.slane %v11621, %v11634
      %v11636 = vcombine.high %v11628, %v11628
      %v11637 = vcombine.high %v11635, %v11635
      %v11638 = vcombine.high %v11382, %v11382
      %v11640 = vunpack.c.l.s4 1983009808
      %v11641 = vunpack.c.0.s8 %v11640
      %v11642 = vlaneseq
      %v11643 = vshrl.u32 %v11642, 7
      %v11644 = vsub.s32 %v11641, %v11643
      %v11645 = vrot.slane %v11382, %v11644
      %v11647 = vunpack.c.l.s4 1983009808
      %v11648 = vunpack.c.0.s8 %v11647
      %v11649 = vlaneseq
      %v11650 = vshrl.u32 %v11649, 7
      %v11651 = vsub.s32 %v11648, %v11650
      %v11652 = vrot.slane %v11638, %v11651
      %v11653 = vcombine.high %v11645, %v11645
      %v11654 = vcombine.high %v11652, %v11652
      %v11655 = vcombine.high %v11383, %v11383
      %v11657 = vunpack.c.l.s4 1983009808
      %v11658 = vunpack.c.0.s8 %v11657
      %v11659 = vlaneseq
      %v11660 = vshrl.u32 %v11659, 7
      %v11661 = vsub.s32 %v11658, %v11660
      %v11662 = vrot.slane %v11383, %v11661
      %v11664 = vunpack.c.l.s4 1983009808
      %v11665 = vunpack.c.0.s8 %v11664
      %v11666 = vlaneseq
      %v11667 = vshrl.u32 %v11666, 7
      %v11668 = vsub.s32 %v11665, %v11667
      %v11669 = vrot.slane %v11655, %v11668
      %v11670 = vcombine.high %v11662, %v11662
      %v11671 = vcombine.high %v11669, %v11669
      %v11736 = vrot.slane %v11407, 7
      %v11737 = vrot.slane %v11736, 2
      %v11738 = vrot.slane %v11415, 7
      %v11739 = vrot.slane %v11738, 2
      %v11740 = vrot.slane %v11414, 7
      %v11741 = vrot.slane %v11740, 2
      %v11742 = vrot.slane %v11416, 7
      %v11743 = vrot.slane %v11742, 2
      %v11744 = vrot.slane %v11424, 7
      %v11745 = vrot.slane %v11744, 2
      %v11746 = vrot.slane %v11432, 7
      %v11747 = vrot.slane %v11746, 2
      %v11748 = vrot.slane %v11431, 7
      %v11749 = vrot.slane %v11748, 2
      %v11750 = vrot.slane %v11433, 7
      %v11751 = vrot.slane %v11750, 2
      %v11752 = vrot.slane %v11441, 7
      %v11753 = vrot.slane %v11752, 2
      %v11754 = vrot.slane %v11449, 7
      %v11755 = vrot.slane %v11754, 2
      %v11756 = vrot.slane %v11448, 7
      %v11757 = vrot.slane %v11756, 2
      %v11758 = vrot.slane %v11450, 7
      %v11759 = vrot.slane %v11758, 2
      %v11760 = vrot.slane %v11458, 7
      %v11761 = vrot.slane %v11760, 2
      %v11762 = vrot.slane %v11466, 7
      %v11763 = vrot.slane %v11762, 2
      %v11764 = vrot.slane %v11465, 7
      %v11765 = vrot.slane %v11764, 2
      %v11766 = vrot.slane %v11467, 7
      %v11767 = vrot.slane %v11766, 2
      %v11768 = vrot.slane %v11475, 7
      %v11769 = vrot.slane %v11768, 2
      %v11770 = vrot.slane %v11483, 7
      %v11771 = vrot.slane %v11770, 2
      %v11772 = vrot.slane %v11482, 7
      %v11773 = vrot.slane %v11772, 2
      %v11774 = vrot.slane %v11484, 7
      %v11775 = vrot.slane %v11774, 2
      %v11776 = vrot.slane %v11492, 7
      %v11777 = vrot.slane %v11776, 2
      %v11778 = vrot.slane %v11500, 7
      %v11779 = vrot.slane %v11778, 2
      %v11780 = vrot.slane %v11499, 7
      %v11781 = vrot.slane %v11780, 2
      %v11782 = vrot.slane %v11501, 7
      %v11783 = vrot.slane %v11782, 2
      %v11784 = vrot.slane %v11509, 7
      %v11785 = vrot.slane %v11784, 2
      %v11786 = vrot.slane %v11517, 7
      %v11787 = vrot.slane %v11786, 2
      %v11788 = vrot.slane %v11516, 7
      %v11789 = vrot.slane %v11788, 2
      %v11790 = vrot.slane %v11518, 7
      %v11791 = vrot.slane %v11790, 2
      %v11792 = vrot.slane %v11526, 7
      %v11793 = vrot.slane %v11792, 2
      %v11794 = vrot.slane %v11534, 7
      %v11795 = vrot.slane %v11794, 2
      %v11796 = vrot.slane %v11533, 7
      %v11797 = vrot.slane %v11796, 2
      %v11798 = vrot.slane %v11535, 7
      %v11799 = vrot.slane %v11798, 2
      %v11800 = vrot.slane %v11543, 7
      %v11801 = vrot.slane %v11800, 2
      %v11802 = vrot.slane %v11551, 7
      %v11803 = vrot.slane %v11802, 2
      %v11804 = vrot.slane %v11550, 7
      %v11805 = vrot.slane %v11804, 2
      %v11806 = vrot.slane %v11552, 7
      %v11807 = vrot.slane %v11806, 2
      %v11808 = vrot.slane %v11560, 7
      %v11809 = vrot.slane %v11808, 2
      %v11810 = vrot.slane %v11568, 7
      %v11811 = vrot.slane %v11810, 2
      %v11812 = vrot.slane %v11567, 7
      %v11813 = vrot.slane %v11812, 2
      %v11814 = vrot.slane %v11569, 7
      %v11815 = vrot.slane %v11814, 2
      %v11816 = vrot.slane %v11577, 7
      %v11817 = vrot.slane %v11816, 2
      %v11818 = vrot.slane %v11585, 7
      %v11819 = vrot.slane %v11818, 2
      %v11820 = vrot.slane %v11584, 7
      %v11821 = vrot.slane %v11820, 2
      %v11822 = vrot.slane %v11586, 7
      %v11823 = vrot.slane %v11822, 2
      %v11824 = vrot.slane %v11594, 7
      %v11825 = vrot.slane %v11824, 2
      %v11826 = vrot.slane %v11602, 7
      %v11827 = vrot.slane %v11826, 2
      %v11828 = vrot.slane %v11601, 7
      %v11829 = vrot.slane %v11828, 2
      %v11830 = vrot.slane %v11603, 7
      %v11831 = vrot.slane %v11830, 2
      %v11832 = vrot.slane %v11611, 7
      %v11833 = vrot.slane %v11832, 2
      %v11834 = vrot.slane %v11619, 7
      %v11835 = vrot.slane %v11834, 2
      %v11836 = vrot.slane %v11618, 7
      %v11837 = vrot.slane %v11836, 2
      %v11838 = vrot.slane %v11620, 7
      %v11839 = vrot.slane %v11838, 2
      %v11840 = vrot.slane %v11628, 7
      %v11841 = vrot.slane %v11840, 2
      %v11842 = vrot.slane %v11636, 7
      %v11843 = vrot.slane %v11842, 2
      %v11844 = vrot.slane %v11635, 7
      %v11845 = vrot.slane %v11844, 2
      %v11846 = vrot.slane %v11637, 7
      %v11847 = vrot.slane %v11846, 2
      %v11848 = vrot.slane %v11645, 7
      %v11849 = vrot.slane %v11848, 2
      %v11850 = vrot.slane %v11653, 7
      %v11851 = vrot.slane %v11850, 2
      %v11852 = vrot.slane %v11652, 7
      %v11853 = vrot.slane %v11852, 2
      %v11854 = vrot.slane %v11654, 7
      %v11855 = vrot.slane %v11854, 2
      %v11856 = vrot.slane %v11662, 7
      %v11857 = vrot.slane %v11856, 2
      %v11858 = vrot.slane %v11670, 7
      %v11859 = vrot.slane %v11858, 2
      %v11860 = vrot.slane %v11669, 7
      %v11861 = vrot.slane %v11860, 2
      %v11862 = vrot.slane %v11671, 7
      %v11863 = vrot.slane %v11862, 2
      %v11928 = vmax.f32 %v11407, %v11737
      %v11929 = vmax.f32 %v11415, %v11739
      %v11930 = vmax.f32 %v11414, %v11741
      %v11931 = vmax.f32 %v11416, %v11743
      %v11932 = vmax.f32 %v11424, %v11745
      %v11933 = vmax.f32 %v11432, %v11747
      %v11934 = vmax.f32 %v11431, %v11749
      %v11935 = vmax.f32 %v11433, %v11751
      %v11936 = vmax.f32 %v11441, %v11753
      %v11937 = vmax.f32 %v11449, %v11755
      %v11938 = vmax.f32 %v11448, %v11757
      %v11939 = vmax.f32 %v11450, %v11759
      %v11940 = vmax.f32 %v11458, %v11761
      %v11941 = vmax.f32 %v11466, %v11763
      %v11942 = vmax.f32 %v11465, %v11765
      %v11943 = vmax.f32 %v11467, %v11767
      %v11944 = vmax.f32 %v11475, %v11769
      %v11945 = vmax.f32 %v11483, %v11771
      %v11946 = vmax.f32 %v11482, %v11773
      %v11947 = vmax.f32 %v11484, %v11775
      %v11948 = vmax.f32 %v11492, %v11777
      %v11949 = vmax.f32 %v11500, %v11779
      %v11950 = vmax.f32 %v11499, %v11781
      %v11951 = vmax.f32 %v11501, %v11783
      %v11952 = vmax.f32 %v11509, %v11785
      %v11953 = vmax.f32 %v11517, %v11787
      %v11954 = vmax.f32 %v11516, %v11789
      %v11955 = vmax.f32 %v11518, %v11791
      %v11956 = vmax.f32 %v11526, %v11793
      %v11957 = vmax.f32 %v11534, %v11795
      %v11958 = vmax.f32 %v11533, %v11797
      %v11959 = vmax.f32 %v11535, %v11799
      %v11960 = vmax.f32 %v11543, %v11801
      %v11961 = vmax.f32 %v11551, %v11803
      %v11962 = vmax.f32 %v11550, %v11805
      %v11963 = vmax.f32 %v11552, %v11807
      %v11964 = vmax.f32 %v11560, %v11809
      %v11965 = vmax.f32 %v11568, %v11811
      %v11966 = vmax.f32 %v11567, %v11813
      %v11967 = vmax.f32 %v11569, %v11815
      %v11968 = vmax.f32 %v11577, %v11817
      %v11969 = vmax.f32 %v11585, %v11819
      %v11970 = vmax.f32 %v11584, %v11821
      %v11971 = vmax.f32 %v11586, %v11823
      %v11972 = vmax.f32 %v11594, %v11825
      %v11973 = vmax.f32 %v11602, %v11827
      %v11974 = vmax.f32 %v11601, %v11829
      %v11975 = vmax.f32 %v11603, %v11831
      %v11976 = vmax.f32 %v11611, %v11833
      %v11977 = vmax.f32 %v11619, %v11835
      %v11978 = vmax.f32 %v11618, %v11837
      %v11979 = vmax.f32 %v11620, %v11839
      %v11980 = vmax.f32 %v11628, %v11841
      %v11981 = vmax.f32 %v11636, %v11843
      %v11982 = vmax.f32 %v11635, %v11845
      %v11983 = vmax.f32 %v11637, %v11847
      %v11984 = vmax.f32 %v11645, %v11849
      %v11985 = vmax.f32 %v11653, %v11851
      %v11986 = vmax.f32 %v11652, %v11853
      %v11987 = vmax.f32 %v11654, %v11855
      %v11988 = vmax.f32 %v11662, %v11857
      %v11989 = vmax.f32 %v11670, %v11859
      %v11990 = vmax.f32 %v11669, %v11861
      %v11991 = vmax.f32 %v11671, %v11863
      %v12056 = vlaneseq
      %v12057 = vshrl.u32 %v12056, 7
      %v12058 = vsub.s32 0, %v12057
      %v12059 = vrot.slane %v11928, %v12058
      %v12060 = vlaneseq
      %v12061 = vshrl.u32 %v12060, 7
      %v12062 = vsub.s32 0, %v12061
      %v12063 = vrot.slane %v11929, %v12062
      %v12064 = vlaneseq
      %v12065 = vshrl.u32 %v12064, 7
      %v12066 = vsub.s32 0, %v12065
      %v12067 = vrot.slane %v11930, %v12066
      %v12068 = vlaneseq
      %v12069 = vshrl.u32 %v12068, 7
      %v12070 = vsub.s32 0, %v12069
      %v12071 = vrot.slane %v11931, %v12070
      %v12072 = vlaneseq
      %v12073 = vshrl.u32 %v12072, 7
      %v12074 = vsub.s32 0, %v12073
      %v12075 = vrot.slane %v11932, %v12074
      %v12076 = vlaneseq
      %v12077 = vshrl.u32 %v12076, 7
      %v12078 = vsub.s32 0, %v12077
      %v12079 = vrot.slane %v11933, %v12078
      %v12080 = vlaneseq
      %v12081 = vshrl.u32 %v12080, 7
      %v12082 = vsub.s32 0, %v12081
      %v12083 = vrot.slane %v11934, %v12082
      %v12084 = vlaneseq
      %v12085 = vshrl.u32 %v12084, 7
      %v12086 = vsub.s32 0, %v12085
      %v12087 = vrot.slane %v11935, %v12086
      %v12088 = vlaneseq
      %v12089 = vshrl.u32 %v12088, 7
      %v12090 = vsub.s32 0, %v12089
      %v12091 = vrot.slane %v11936, %v12090
      %v12092 = vlaneseq
      %v12093 = vshrl.u32 %v12092, 7
      %v12094 = vsub.s32 0, %v12093
      %v12095 = vrot.slane %v11937, %v12094
      %v12096 = vlaneseq
      %v12097 = vshrl.u32 %v12096, 7
      %v12098 = vsub.s32 0, %v12097
      %v12099 = vrot.slane %v11938, %v12098
      %v12100 = vlaneseq
      %v12101 = vshrl.u32 %v12100, 7
      %v12102 = vsub.s32 0, %v12101
      %v12103 = vrot.slane %v11939, %v12102
      %v12104 = vlaneseq
      %v12105 = vshrl.u32 %v12104, 7
      %v12106 = vsub.s32 0, %v12105
      %v12107 = vrot.slane %v11940, %v12106
      %v12108 = vlaneseq
      %v12109 = vshrl.u32 %v12108, 7
      %v12110 = vsub.s32 0, %v12109
      %v12111 = vrot.slane %v11941, %v12110
      %v12112 = vlaneseq
      %v12113 = vshrl.u32 %v12112, 7
      %v12114 = vsub.s32 0, %v12113
      %v12115 = vrot.slane %v11942, %v12114
      %v12116 = vlaneseq
      %v12117 = vshrl.u32 %v12116, 7
      %v12118 = vsub.s32 0, %v12117
      %v12119 = vrot.slane %v11943, %v12118
      %v12120 = vlaneseq
      %v12121 = vshrl.u32 %v12120, 7
      %v12122 = vsub.s32 0, %v12121
      %v12123 = vrot.slane %v11944, %v12122
      %v12124 = vlaneseq
      %v12125 = vshrl.u32 %v12124, 7
      %v12126 = vsub.s32 0, %v12125
      %v12127 = vrot.slane %v11945, %v12126
      %v12128 = vlaneseq
      %v12129 = vshrl.u32 %v12128, 7
      %v12130 = vsub.s32 0, %v12129
      %v12131 = vrot.slane %v11946, %v12130
      %v12132 = vlaneseq
      %v12133 = vshrl.u32 %v12132, 7
      %v12134 = vsub.s32 0, %v12133
      %v12135 = vrot.slane %v11947, %v12134
      %v12136 = vlaneseq
      %v12137 = vshrl.u32 %v12136, 7
      %v12138 = vsub.s32 0, %v12137
      %v12139 = vrot.slane %v11948, %v12138
      %v12140 = vlaneseq
      %v12141 = vshrl.u32 %v12140, 7
      %v12142 = vsub.s32 0, %v12141
      %v12143 = vrot.slane %v11949, %v12142
      %v12144 = vlaneseq
      %v12145 = vshrl.u32 %v12144, 7
      %v12146 = vsub.s32 0, %v12145
      %v12147 = vrot.slane %v11950, %v12146
      %v12148 = vlaneseq
      %v12149 = vshrl.u32 %v12148, 7
      %v12150 = vsub.s32 0, %v12149
      %v12151 = vrot.slane %v11951, %v12150
      %v12152 = vlaneseq
      %v12153 = vshrl.u32 %v12152, 7
      %v12154 = vsub.s32 0, %v12153
      %v12155 = vrot.slane %v11952, %v12154
      %v12156 = vlaneseq
      %v12157 = vshrl.u32 %v12156, 7
      %v12158 = vsub.s32 0, %v12157
      %v12159 = vrot.slane %v11953, %v12158
      %v12160 = vlaneseq
      %v12161 = vshrl.u32 %v12160, 7
      %v12162 = vsub.s32 0, %v12161
      %v12163 = vrot.slane %v11954, %v12162
      %v12164 = vlaneseq
      %v12165 = vshrl.u32 %v12164, 7
      %v12166 = vsub.s32 0, %v12165
      %v12167 = vrot.slane %v11955, %v12166
      %v12168 = vlaneseq
      %v12169 = vshrl.u32 %v12168, 7
      %v12170 = vsub.s32 0, %v12169
      %v12171 = vrot.slane %v11956, %v12170
      %v12172 = vlaneseq
      %v12173 = vshrl.u32 %v12172, 7
      %v12174 = vsub.s32 0, %v12173
      %v12175 = vrot.slane %v11957, %v12174
      %v12176 = vlaneseq
      %v12177 = vshrl.u32 %v12176, 7
      %v12178 = vsub.s32 0, %v12177
      %v12179 = vrot.slane %v11958, %v12178
      %v12180 = vlaneseq
      %v12181 = vshrl.u32 %v12180, 7
      %v12182 = vsub.s32 0, %v12181
      %v12183 = vrot.slane %v11959, %v12182
      %v12184 = vlaneseq
      %v12185 = vshrl.u32 %v12184, 7
      %v12186 = vsub.s32 0, %v12185
      %v12187 = vrot.slane %v11960, %v12186
      %v12188 = vlaneseq
      %v12189 = vshrl.u32 %v12188, 7
      %v12190 = vsub.s32 0, %v12189
      %v12191 = vrot.slane %v11961, %v12190
      %v12192 = vlaneseq
      %v12193 = vshrl.u32 %v12192, 7
      %v12194 = vsub.s32 0, %v12193
      %v12195 = vrot.slane %v11962, %v12194
      %v12196 = vlaneseq
      %v12197 = vshrl.u32 %v12196, 7
      %v12198 = vsub.s32 0, %v12197
      %v12199 = vrot.slane %v11963, %v12198
      %v12200 = vlaneseq
      %v12201 = vshrl.u32 %v12200, 7
      %v12202 = vsub.s32 0, %v12201
      %v12203 = vrot.slane %v11964, %v12202
      %v12204 = vlaneseq
      %v12205 = vshrl.u32 %v12204, 7
      %v12206 = vsub.s32 0, %v12205
      %v12207 = vrot.slane %v11965, %v12206
      %v12208 = vlaneseq
      %v12209 = vshrl.u32 %v12208, 7
      %v12210 = vsub.s32 0, %v12209
      %v12211 = vrot.slane %v11966, %v12210
      %v12212 = vlaneseq
      %v12213 = vshrl.u32 %v12212, 7
      %v12214 = vsub.s32 0, %v12213
      %v12215 = vrot.slane %v11967, %v12214
      %v12216 = vlaneseq
      %v12217 = vshrl.u32 %v12216, 7
      %v12218 = vsub.s32 0, %v12217
      %v12219 = vrot.slane %v11968, %v12218
      %v12220 = vlaneseq
      %v12221 = vshrl.u32 %v12220, 7
      %v12222 = vsub.s32 0, %v12221
      %v12223 = vrot.slane %v11969, %v12222
      %v12224 = vlaneseq
      %v12225 = vshrl.u32 %v12224, 7
      %v12226 = vsub.s32 0, %v12225
      %v12227 = vrot.slane %v11970, %v12226
      %v12228 = vlaneseq
      %v12229 = vshrl.u32 %v12228, 7
      %v12230 = vsub.s32 0, %v12229
      %v12231 = vrot.slane %v11971, %v12230
      %v12232 = vlaneseq
      %v12233 = vshrl.u32 %v12232, 7
      %v12234 = vsub.s32 0, %v12233
      %v12235 = vrot.slane %v11972, %v12234
      %v12236 = vlaneseq
      %v12237 = vshrl.u32 %v12236, 7
      %v12238 = vsub.s32 0, %v12237
      %v12239 = vrot.slane %v11973, %v12238
      %v12240 = vlaneseq
      %v12241 = vshrl.u32 %v12240, 7
      %v12242 = vsub.s32 0, %v12241
      %v12243 = vrot.slane %v11974, %v12242
      %v12244 = vlaneseq
      %v12245 = vshrl.u32 %v12244, 7
      %v12246 = vsub.s32 0, %v12245
      %v12247 = vrot.slane %v11975, %v12246
      %v12248 = vlaneseq
      %v12249 = vshrl.u32 %v12248, 7
      %v12250 = vsub.s32 0, %v12249
      %v12251 = vrot.slane %v11976, %v12250
      %v12252 = vlaneseq
      %v12253 = vshrl.u32 %v12252, 7
      %v12254 = vsub.s32 0, %v12253
      %v12255 = vrot.slane %v11977, %v12254
      %v12256 = vlaneseq
      %v12257 = vshrl.u32 %v12256, 7
      %v12258 = vsub.s32 0, %v12257
      %v12259 = vrot.slane %v11978, %v12258
      %v12260 = vlaneseq
      %v12261 = vshrl.u32 %v12260, 7
      %v12262 = vsub.s32 0, %v12261
      %v12263 = vrot.slane %v11979, %v12262
      %v12264 = vlaneseq
      %v12265 = vshrl.u32 %v12264, 7
      %v12266 = vsub.s32 0, %v12265
      %v12267 = vrot.slane %v11980, %v12266
      %v12268 = vlaneseq
      %v12269 = vshrl.u32 %v12268, 7
      %v12270 = vsub.s32 0, %v12269
      %v12271 = vrot.slane %v11981, %v12270
      %v12272 = vlaneseq
      %v12273 = vshrl.u32 %v12272, 7
      %v12274 = vsub.s32 0, %v12273
      %v12275 = vrot.slane %v11982, %v12274
      %v12276 = vlaneseq
      %v12277 = vshrl.u32 %v12276, 7
      %v12278 = vsub.s32 0, %v12277
      %v12279 = vrot.slane %v11983, %v12278
      %v12280 = vlaneseq
      %v12281 = vshrl.u32 %v12280, 7
      %v12282 = vsub.s32 0, %v12281
      %v12283 = vrot.slane %v11984, %v12282
      %v12284 = vlaneseq
      %v12285 = vshrl.u32 %v12284, 7
      %v12286 = vsub.s32 0, %v12285
      %v12287 = vrot.slane %v11985, %v12286
      %v12288 = vlaneseq
      %v12289 = vshrl.u32 %v12288, 7
      %v12290 = vsub.s32 0, %v12289
      %v12291 = vrot.slane %v11986, %v12290
      %v12292 = vlaneseq
      %v12293 = vshrl.u32 %v12292, 7
      %v12294 = vsub.s32 0, %v12293
      %v12295 = vrot.slane %v11987, %v12294
      %v12296 = vlaneseq
      %v12297 = vshrl.u32 %v12296, 7
      %v12298 = vsub.s32 0, %v12297
      %v12299 = vrot.slane %v11988, %v12298
      %v12300 = vlaneseq
      %v12301 = vshrl.u32 %v12300, 7
      %v12302 = vsub.s32 0, %v12301
      %v12303 = vrot.slane %v11989, %v12302
      %v12304 = vlaneseq
      %v12305 = vshrl.u32 %v12304, 7
      %v12306 = vsub.s32 0, %v12305
      %v12307 = vrot.slane %v11990, %v12306
      %v12308 = vlaneseq
      %v12309 = vshrl.u32 %v12308, 7
      %v12310 = vsub.s32 0, %v12309
      %v12311 = vrot.slane %v11991, %v12310
      %vm12312 = vcmask 1041409
      %v12313 = vsel %vm12312, %v12063, %v12059
      %v12314 = vsel %vm8972, %v12067, %v12313
      %v12315 = vsel %vm8975, %v12071, %v12314
      %v12316 = vsel %vm12312, %v12079, %v12075
      %v12317 = vsel %vm8972, %v12083, %v12316
      %v12318 = vsel %vm8975, %v12087, %v12317
      %v12319 = vsel %vm12312, %v12095, %v12091
      %v12320 = vsel %vm8972, %v12099, %v12319
      %v12321 = vsel %vm8975, %v12103, %v12320
      %v12322 = vsel %vm12312, %v12111, %v12107
      %v12323 = vsel %vm8972, %v12115, %v12322
      %v12324 = vsel %vm8975, %v12119, %v12323
      %v12325 = vsel %vm12312, %v12127, %v12123
      %v12326 = vsel %vm8972, %v12131, %v12325
      %v12327 = vsel %vm8975, %v12135, %v12326
      %v12328 = vsel %vm12312, %v12143, %v12139
      %v12329 = vsel %vm8972, %v12147, %v12328
      %v12330 = vsel %vm8975, %v12151, %v12329
      %v12331 = vsel %vm12312, %v12159, %v12155
      %v12332 = vsel %vm8972, %v12163, %v12331
      %v12333 = vsel %vm8975, %v12167, %v12332
      %v12334 = vsel %vm12312, %v12175, %v12171
      %v12335 = vsel %vm8972, %v12179, %v12334
      %v12336 = vsel %vm8975, %v12183, %v12335
      %v12337 = vsel %vm12312, %v12191, %v12187
      %v12338 = vsel %vm8972, %v12195, %v12337
      %v12339 = vsel %vm8975, %v12199, %v12338
      %v12340 = vsel %vm12312, %v12207, %v12203
      %v12341 = vsel %vm8972, %v12211, %v12340
      %v12342 = vsel %vm8975, %v12215, %v12341
      %v12343 = vsel %vm12312, %v12223, %v12219
      %v12344 = vsel %vm8972, %v12227, %v12343
      %v12345 = vsel %vm8975, %v12231, %v12344
      %v12346 = vsel %vm12312, %v12239, %v12235
      %v12347 = vsel %vm8972, %v12243, %v12346
      %v12348 = vsel %vm8975, %v12247, %v12347
      %v12349 = vsel %vm12312, %v12255, %v12251
      %v12350 = vsel %vm8972, %v12259, %v12349
      %v12351 = vsel %vm8975, %v12263, %v12350
      %v12352 = vsel %vm12312, %v12271, %v12267
      %v12353 = vsel %vm8972, %v12275, %v12352
      %v12354 = vsel %vm8975, %v12279, %v12353
      %v12355 = vsel %vm12312, %v12287, %v12283
      %v12356 = vsel %vm8972, %v12291, %v12355
      %v12357 = vsel %vm8975, %v12295, %v12356
      %v12358 = vsel %vm12312, %v12303, %v12299
      %v12359 = vsel %vm8972, %v12307, %v12358
      %v12360 = vsel %vm8975, %v12311, %v12359
      %12377 = vxpose.xlu0.b32.start [1/16] %v12315, 128
      %12378 = vxpose.xlu0.b32.cont [2/16] 0.0, 128
      %12379 = vxpose.xlu0.b32.cont [3/16] 0.0, 128
      %12380 = vxpose.xlu0.b32.cont [4/16] 0.0, 128
      %12381 = vxpose.xlu0.b32.cont [5/16] 0.0, 128
      %12382 = vxpose.xlu0.b32.cont [6/16] 0.0, 128
      %12383 = vxpose.xlu0.b32.cont [7/16] 0.0, 128
      %12384 = vxpose.xlu0.b32.cont [8/16] 0.0, 128
      %12385 = vxpose.xlu0.b32.cont [9/16] 0.0, 128
      %12386 = vxpose.xlu0.b32.cont [10/16] 0.0, 128
      %12387 = vxpose.xlu0.b32.cont [11/16] 0.0, 128
      %12388 = vxpose.xlu0.b32.cont [12/16] 0.0, 128
      %12389 = vxpose.xlu0.b32.cont [13/16] 0.0, 128
      %12390 = vxpose.xlu0.b32.cont [14/16] 0.0, 128
      %12391 = vxpose.xlu0.b32.cont [15/16] 0.0, 128
      %12392 = vxpose.xlu0.b32.end [16/16] 0.0, 128
      %v12393 = vpop.trf.xlu0
      %v12394 = vpop.trf.xlu0
      %v12395 = vpop.trf.xlu0
      %v12396 = vpop.trf.xlu0
      %v12397 = vpop.trf.xlu0
      %v12398 = vpop.trf.xlu0
      %v12399 = vpop.trf.xlu0
      %v12400 = vpop.trf.xlu0
      %v12401 = vpop.trf.xlu0
      %v12402 = vpop.trf.xlu0
      %v12403 = vpop.trf.xlu0
      %v12404 = vpop.trf.xlu0
      %v12405 = vpop.trf.xlu0
      %v12406 = vpop.trf.xlu0
      %v12407 = vpop.trf.xlu0
      %v12408 = vpop.trf.xlu0
      %12409 = vxpose.xlu0.b32.start [1/16] %v12318, 128
      %12410 = vxpose.xlu0.b32.cont [2/16] 0.0, 128
      %12411 = vxpose.xlu0.b32.cont [3/16] 0.0, 128
      %12412 = vxpose.xlu0.b32.cont [4/16] 0.0, 128
      %12413 = vxpose.xlu0.b32.cont [5/16] 0.0, 128
      %12414 = vxpose.xlu0.b32.cont [6/16] 0.0, 128
      %12415 = vxpose.xlu0.b32.cont [7/16] 0.0, 128
      %12416 = vxpose.xlu0.b32.cont [8/16] 0.0, 128
      %12417 = vxpose.xlu0.b32.cont [9/16] 0.0, 128
      %12418 = vxpose.xlu0.b32.cont [10/16] 0.0, 128
      %12419 = vxpose.xlu0.b32.cont [11/16] 0.0, 128
      %12420 = vxpose.xlu0.b32.cont [12/16] 0.0, 128
      %12421 = vxpose.xlu0.b32.cont [13/16] 0.0, 128
      %12422 = vxpose.xlu0.b32.cont [14/16] 0.0, 128
      %12423 = vxpose.xlu0.b32.cont [15/16] 0.0, 128
      %12424 = vxpose.xlu0.b32.end [16/16] 0.0, 128
      %v12425 = vpop.trf.xlu0
      %v12426 = vpop.trf.xlu0
      %v12427 = vpop.trf.xlu0
      %v12428 = vpop.trf.xlu0
      %v12429 = vpop.trf.xlu0
      %v12430 = vpop.trf.xlu0
      %v12431 = vpop.trf.xlu0
      %v12432 = vpop.trf.xlu0
      %v12433 = vpop.trf.xlu0
      %v12434 = vpop.trf.xlu0
      %v12435 = vpop.trf.xlu0
      %v12436 = vpop.trf.xlu0
      %v12437 = vpop.trf.xlu0
      %v12438 = vpop.trf.xlu0
      %v12439 = vpop.trf.xlu0
      %v12440 = vpop.trf.xlu0
      %12441 = vxpose.xlu0.b32.start [1/16] %v12321, 128
      %12442 = vxpose.xlu0.b32.cont [2/16] 0.0, 128
      %12443 = vxpose.xlu0.b32.cont [3/16] 0.0, 128
      %12444 = vxpose.xlu0.b32.cont [4/16] 0.0, 128
      %12445 = vxpose.xlu0.b32.cont [5/16] 0.0, 128
      %12446 = vxpose.xlu0.b32.cont [6/16] 0.0, 128
      %12447 = vxpose.xlu0.b32.cont [7/16] 0.0, 128
      %12448 = vxpose.xlu0.b32.cont [8/16] 0.0, 128
      %12449 = vxpose.xlu0.b32.cont [9/16] 0.0, 128
      %12450 = vxpose.xlu0.b32.cont [10/16] 0.0, 128
      %12451 = vxpose.xlu0.b32.cont [11/16] 0.0, 128
      %12452 = vxpose.xlu0.b32.cont [12/16] 0.0, 128
      %12453 = vxpose.xlu0.b32.cont [13/16] 0.0, 128
      %12454 = vxpose.xlu0.b32.cont [14/16] 0.0, 128
      %12455 = vxpose.xlu0.b32.cont [15/16] 0.0, 128
      %12456 = vxpose.xlu0.b32.end [16/16] 0.0, 128
      %v12457 = vpop.trf.xlu0
      %v12458 = vpop.trf.xlu0
      %v12459 = vpop.trf.xlu0
      %v12460 = vpop.trf.xlu0
      %v12461 = vpop.trf.xlu0
      %v12462 = vpop.trf.xlu0
      %v12463 = vpop.trf.xlu0
      %v12464 = vpop.trf.xlu0
      %v12465 = vpop.trf.xlu0
      %v12466 = vpop.trf.xlu0
      %v12467 = vpop.trf.xlu0
      %v12468 = vpop.trf.xlu0
      %v12469 = vpop.trf.xlu0
      %v12470 = vpop.trf.xlu0
      %v12471 = vpop.trf.xlu0
      %v12472 = vpop.trf.xlu0
      %12473 = vxpose.xlu0.b32.start [1/16] %v12324, 128
      %12474 = vxpose.xlu0.b32.cont [2/16] 0.0, 128
      %12475 = vxpose.xlu0.b32.cont [3/16] 0.0, 128
      %12476 = vxpose.xlu0.b32.cont [4/16] 0.0, 128
      %12477 = vxpose.xlu0.b32.cont [5/16] 0.0, 128
      %12478 = vxpose.xlu0.b32.cont [6/16] 0.0, 128
      %12479 = vxpose.xlu0.b32.cont [7/16] 0.0, 128
      %12480 = vxpose.xlu0.b32.cont [8/16] 0.0, 128
      %12481 = vxpose.xlu0.b32.cont [9/16] 0.0, 128
      %12482 = vxpose.xlu0.b32.cont [10/16] 0.0, 128
      %12483 = vxpose.xlu0.b32.cont [11/16] 0.0, 128
      %12484 = vxpose.xlu0.b32.cont [12/16] 0.0, 128
      %12485 = vxpose.xlu0.b32.cont [13/16] 0.0, 128
      %12486 = vxpose.xlu0.b32.cont [14/16] 0.0, 128
      %12487 = vxpose.xlu0.b32.cont [15/16] 0.0, 128
      %12488 = vxpose.xlu0.b32.end [16/16] 0.0, 128
      %v12489 = vpop.trf.xlu0
      %v12490 = vpop.trf.xlu0
      %v12491 = vpop.trf.xlu0
      %v12492 = vpop.trf.xlu0
      %v12493 = vpop.trf.xlu0
      %v12494 = vpop.trf.xlu0
      %v12495 = vpop.trf.xlu0
      %v12496 = vpop.trf.xlu0
      %v12497 = vpop.trf.xlu0
      %v12498 = vpop.trf.xlu0
      %v12499 = vpop.trf.xlu0
      %v12500 = vpop.trf.xlu0
      %v12501 = vpop.trf.xlu0
      %v12502 = vpop.trf.xlu0
      %v12503 = vpop.trf.xlu0
      %v12504 = vpop.trf.xlu0
      %12505 = vxpose.xlu0.b32.start [1/16] %v12327, 128
      %12506 = vxpose.xlu0.b32.cont [2/16] 0.0, 128
      %12507 = vxpose.xlu0.b32.cont [3/16] 0.0, 128
      %12508 = vxpose.xlu0.b32.cont [4/16] 0.0, 128
      %12509 = vxpose.xlu0.b32.cont [5/16] 0.0, 128
      %12510 = vxpose.xlu0.b32.cont [6/16] 0.0, 128
      %12511 = vxpose.xlu0.b32.cont [7/16] 0.0, 128
      %12512 = vxpose.xlu0.b32.cont [8/16] 0.0, 128
      %12513 = vxpose.xlu0.b32.cont [9/16] 0.0, 128
      %12514 = vxpose.xlu0.b32.cont [10/16] 0.0, 128
      %12515 = vxpose.xlu0.b32.cont [11/16] 0.0, 128
      %12516 = vxpose.xlu0.b32.cont [12/16] 0.0, 128
      %12517 = vxpose.xlu0.b32.cont [13/16] 0.0, 128
      %12518 = vxpose.xlu0.b32.cont [14/16] 0.0, 128
      %12519 = vxpose.xlu0.b32.cont [15/16] 0.0, 128
      %12520 = vxpose.xlu0.b32.end [16/16] 0.0, 128
      %v12521 = vpop.trf.xlu0
      %v12522 = vpop.trf.xlu0
      %v12523 = vpop.trf.xlu0
      %v12524 = vpop.trf.xlu0
      %v12525 = vpop.trf.xlu0
      %v12526 = vpop.trf.xlu0
      %v12527 = vpop.trf.xlu0
      %v12528 = vpop.trf.xlu0
      %v12529 = vpop.trf.xlu0
      %v12530 = vpop.trf.xlu0
      %v12531 = vpop.trf.xlu0
      %v12532 = vpop.trf.xlu0
      %v12533 = vpop.trf.xlu0
      %v12534 = vpop.trf.xlu0
      %v12535 = vpop.trf.xlu0
      %v12536 = vpop.trf.xlu0
      %12537 = vxpose.xlu0.b32.start [1/16] %v12330, 128
      %12538 = vxpose.xlu0.b32.cont [2/16] 0.0, 128
      %12539 = vxpose.xlu0.b32.cont [3/16] 0.0, 128
      %12540 = vxpose.xlu0.b32.cont [4/16] 0.0, 128
      %12541 = vxpose.xlu0.b32.cont [5/16] 0.0, 128
      %12542 = vxpose.xlu0.b32.cont [6/16] 0.0, 128
      %12543 = vxpose.xlu0.b32.cont [7/16] 0.0, 128
      %12544 = vxpose.xlu0.b32.cont [8/16] 0.0, 128
      %12545 = vxpose.xlu0.b32.cont [9/16] 0.0, 128
      %12546 = vxpose.xlu0.b32.cont [10/16] 0.0, 128
      %12547 = vxpose.xlu0.b32.cont [11/16] 0.0, 128
      %12548 = vxpose.xlu0.b32.cont [12/16] 0.0, 128
      %12549 = vxpose.xlu0.b32.cont [13/16] 0.0, 128
      %12550 = vxpose.xlu0.b32.cont [14/16] 0.0, 128
      %12551 = vxpose.xlu0.b32.cont [15/16] 0.0, 128
      %12552 = vxpose.xlu0.b32.end [16/16] 0.0, 128
      %v12553 = vpop.trf.xlu0
      %v12554 = vpop.trf.xlu0
      %v12555 = vpop.trf.xlu0
      %v12556 = vpop.trf.xlu0
      %v12557 = vpop.trf.xlu0
      %v12558 = vpop.trf.xlu0
      %v12559 = vpop.trf.xlu0
      %v12560 = vpop.trf.xlu0
      %v12561 = vpop.trf.xlu0
      %v12562 = vpop.trf.xlu0
      %v12563 = vpop.trf.xlu0
      %v12564 = vpop.trf.xlu0
      %v12565 = vpop.trf.xlu0
      %v12566 = vpop.trf.xlu0
      %v12567 = vpop.trf.xlu0
      %v12568 = vpop.trf.xlu0
      %12569 = vxpose.xlu0.b32.start [1/16] %v12333, 128
      %12570 = vxpose.xlu0.b32.cont [2/16] 0.0, 128
      %12571 = vxpose.xlu0.b32.cont [3/16] 0.0, 128
      %12572 = vxpose.xlu0.b32.cont [4/16] 0.0, 128
      %12573 = vxpose.xlu0.b32.cont [5/16] 0.0, 128
      %12574 = vxpose.xlu0.b32.cont [6/16] 0.0, 128
      %12575 = vxpose.xlu0.b32.cont [7/16] 0.0, 128
      %12576 = vxpose.xlu0.b32.cont [8/16] 0.0, 128
      %12577 = vxpose.xlu0.b32.cont [9/16] 0.0, 128
      %12578 = vxpose.xlu0.b32.cont [10/16] 0.0, 128
      %12579 = vxpose.xlu0.b32.cont [11/16] 0.0, 128
      %12580 = vxpose.xlu0.b32.cont [12/16] 0.0, 128
      %12581 = vxpose.xlu0.b32.cont [13/16] 0.0, 128
      %12582 = vxpose.xlu0.b32.cont [14/16] 0.0, 128
      %12583 = vxpose.xlu0.b32.cont [15/16] 0.0, 128
      %12584 = vxpose.xlu0.b32.end [16/16] 0.0, 128
      %v12585 = vpop.trf.xlu0
      %v12586 = vpop.trf.xlu0
      %v12587 = vpop.trf.xlu0
      %v12588 = vpop.trf.xlu0
      %v12589 = vpop.trf.xlu0
      %v12590 = vpop.trf.xlu0
      %v12591 = vpop.trf.xlu0
      %v12592 = vpop.trf.xlu0
      %v12593 = vpop.trf.xlu0
      %v12594 = vpop.trf.xlu0
      %v12595 = vpop.trf.xlu0
      %v12596 = vpop.trf.xlu0
      %v12597 = vpop.trf.xlu0
      %v12598 = vpop.trf.xlu0
      %v12599 = vpop.trf.xlu0
      %v12600 = vpop.trf.xlu0
      %12601 = vxpose.xlu0.b32.start [1/16] %v12336, 128
      %12602 = vxpose.xlu0.b32.cont [2/16] 0.0, 128
      %12603 = vxpose.xlu0.b32.cont [3/16] 0.0, 128
      %12604 = vxpose.xlu0.b32.cont [4/16] 0.0, 128
      %12605 = vxpose.xlu0.b32.cont [5/16] 0.0, 128
      %12606 = vxpose.xlu0.b32.cont [6/16] 0.0, 128
      %12607 = vxpose.xlu0.b32.cont [7/16] 0.0, 128
      %12608 = vxpose.xlu0.b32.cont [8/16] 0.0, 128
      %12609 = vxpose.xlu0.b32.cont [9/16] 0.0, 128
      %12610 = vxpose.xlu0.b32.cont [10/16] 0.0, 128
      %12611 = vxpose.xlu0.b32.cont [11/16] 0.0, 128
      %12612 = vxpose.xlu0.b32.cont [12/16] 0.0, 128
      %12613 = vxpose.xlu0.b32.cont [13/16] 0.0, 128
      %12614 = vxpose.xlu0.b32.cont [14/16] 0.0, 128
      %12615 = vxpose.xlu0.b32.cont [15/16] 0.0, 128
      %12616 = vxpose.xlu0.b32.end [16/16] 0.0, 128
      %v12617 = vpop.trf.xlu0
      %v12618 = vpop.trf.xlu0
      %v12619 = vpop.trf.xlu0
      %v12620 = vpop.trf.xlu0
      %v12621 = vpop.trf.xlu0
      %v12622 = vpop.trf.xlu0
      %v12623 = vpop.trf.xlu0
      %v12624 = vpop.trf.xlu0
      %v12625 = vpop.trf.xlu0
      %v12626 = vpop.trf.xlu0
      %v12627 = vpop.trf.xlu0
      %v12628 = vpop.trf.xlu0
      %v12629 = vpop.trf.xlu0
      %v12630 = vpop.trf.xlu0
      %v12631 = vpop.trf.xlu0
      %v12632 = vpop.trf.xlu0
      %12633 = vxpose.xlu0.b32.start [1/16] %v12339, 128
      %12634 = vxpose.xlu0.b32.cont [2/16] 0.0, 128
      %12635 = vxpose.xlu0.b32.cont [3/16] 0.0, 128
      %12636 = vxpose.xlu0.b32.cont [4/16] 0.0, 128
      %12637 = vxpose.xlu0.b32.cont [5/16] 0.0, 128
      %12638 = vxpose.xlu0.b32.cont [6/16] 0.0, 128
      %12639 = vxpose.xlu0.b32.cont [7/16] 0.0, 128
      %12640 = vxpose.xlu0.b32.cont [8/16] 0.0, 128
      %12641 = vxpose.xlu0.b32.cont [9/16] 0.0, 128
      %12642 = vxpose.xlu0.b32.cont [10/16] 0.0, 128
      %12643 = vxpose.xlu0.b32.cont [11/16] 0.0, 128
      %12644 = vxpose.xlu0.b32.cont [12/16] 0.0, 128
      %12645 = vxpose.xlu0.b32.cont [13/16] 0.0, 128
      %12646 = vxpose.xlu0.b32.cont [14/16] 0.0, 128
      %12647 = vxpose.xlu0.b32.cont [15/16] 0.0, 128
      %12648 = vxpose.xlu0.b32.end [16/16] 0.0, 128
      %v12649 = vpop.trf.xlu0
      %v12650 = vpop.trf.xlu0
      %v12651 = vpop.trf.xlu0
      %v12652 = vpop.trf.xlu0
      %v12653 = vpop.trf.xlu0
      %v12654 = vpop.trf.xlu0
      %v12655 = vpop.trf.xlu0
      %v12656 = vpop.trf.xlu0
      %v12657 = vpop.trf.xlu0
      %v12658 = vpop.trf.xlu0
      %v12659 = vpop.trf.xlu0
      %v12660 = vpop.trf.xlu0
      %v12661 = vpop.trf.xlu0
      %v12662 = vpop.trf.xlu0
      %v12663 = vpop.trf.xlu0
      %v12664 = vpop.trf.xlu0
      %12665 = vxpose.xlu0.b32.start [1/16] %v12342, 128
      %12666 = vxpose.xlu0.b32.cont [2/16] 0.0, 128
      %12667 = vxpose.xlu0.b32.cont [3/16] 0.0, 128
      %12668 = vxpose.xlu0.b32.cont [4/16] 0.0, 128
      %12669 = vxpose.xlu0.b32.cont [5/16] 0.0, 128
      %12670 = vxpose.xlu0.b32.cont [6/16] 0.0, 128
      %12671 = vxpose.xlu0.b32.cont [7/16] 0.0, 128
      %12672 = vxpose.xlu0.b32.cont [8/16] 0.0, 128
      %12673 = vxpose.xlu0.b32.cont [9/16] 0.0, 128
      %12674 = vxpose.xlu0.b32.cont [10/16] 0.0, 128
      %12675 = vxpose.xlu0.b32.cont [11/16] 0.0, 128
      %12676 = vxpose.xlu0.b32.cont [12/16] 0.0, 128
      %12677 = vxpose.xlu0.b32.cont [13/16] 0.0, 128
      %12678 = vxpose.xlu0.b32.cont [14/16] 0.0, 128
      %12679 = vxpose.xlu0.b32.cont [15/16] 0.0, 128
      %12680 = vxpose.xlu0.b32.end [16/16] 0.0, 128
      %v12681 = vpop.trf.xlu0
      %v12682 = vpop.trf.xlu0
      %v12683 = vpop.trf.xlu0
      %v12684 = vpop.trf.xlu0
      %v12685 = vpop.trf.xlu0
      %v12686 = vpop.trf.xlu0
      %v12687 = vpop.trf.xlu0
      %v12688 = vpop.trf.xlu0
      %v12689 = vpop.trf.xlu0
      %v12690 = vpop.trf.xlu0
      %v12691 = vpop.trf.xlu0
      %v12692 = vpop.trf.xlu0
      %v12693 = vpop.trf.xlu0
      %v12694 = vpop.trf.xlu0
      %v12695 = vpop.trf.xlu0
      %v12696 = vpop.trf.xlu0
      %12697 = vxpose.xlu0.b32.start [1/16] %v12345, 128
      %12698 = vxpose.xlu0.b32.cont [2/16] 0.0, 128
      %12699 = vxpose.xlu0.b32.cont [3/16] 0.0, 128
      %12700 = vxpose.xlu0.b32.cont [4/16] 0.0, 128
      %12701 = vxpose.xlu0.b32.cont [5/16] 0.0, 128
      %12702 = vxpose.xlu0.b32.cont [6/16] 0.0, 128
      %12703 = vxpose.xlu0.b32.cont [7/16] 0.0, 128
      %12704 = vxpose.xlu0.b32.cont [8/16] 0.0, 128
      %12705 = vxpose.xlu0.b32.cont [9/16] 0.0, 128
      %12706 = vxpose.xlu0.b32.cont [10/16] 0.0, 128
      %12707 = vxpose.xlu0.b32.cont [11/16] 0.0, 128
      %12708 = vxpose.xlu0.b32.cont [12/16] 0.0, 128
      %12709 = vxpose.xlu0.b32.cont [13/16] 0.0, 128
      %12710 = vxpose.xlu0.b32.cont [14/16] 0.0, 128
      %12711 = vxpose.xlu0.b32.cont [15/16] 0.0, 128
      %12712 = vxpose.xlu0.b32.end [16/16] 0.0, 128
      %v12713 = vpop.trf.xlu0
      %v12714 = vpop.trf.xlu0
      %v12715 = vpop.trf.xlu0
      %v12716 = vpop.trf.xlu0
      %v12717 = vpop.trf.xlu0
      %v12718 = vpop.trf.xlu0
      %v12719 = vpop.trf.xlu0
      %v12720 = vpop.trf.xlu0
      %v12721 = vpop.trf.xlu0
      %v12722 = vpop.trf.xlu0
      %v12723 = vpop.trf.xlu0
      %v12724 = vpop.trf.xlu0
      %v12725 = vpop.trf.xlu0
      %v12726 = vpop.trf.xlu0
      %v12727 = vpop.trf.xlu0
      %v12728 = vpop.trf.xlu0
      %12729 = vxpose.xlu0.b32.start [1/16] %v12348, 128
      %12730 = vxpose.xlu0.b32.cont [2/16] 0.0, 128
      %12731 = vxpose.xlu0.b32.cont [3/16] 0.0, 128
      %12732 = vxpose.xlu0.b32.cont [4/16] 0.0, 128
      %12733 = vxpose.xlu0.b32.cont [5/16] 0.0, 128
      %12734 = vxpose.xlu0.b32.cont [6/16] 0.0, 128
      %12735 = vxpose.xlu0.b32.cont [7/16] 0.0, 128
      %12736 = vxpose.xlu0.b32.cont [8/16] 0.0, 128
      %12737 = vxpose.xlu0.b32.cont [9/16] 0.0, 128
      %12738 = vxpose.xlu0.b32.cont [10/16] 0.0, 128
      %12739 = vxpose.xlu0.b32.cont [11/16] 0.0, 128
      %12740 = vxpose.xlu0.b32.cont [12/16] 0.0, 128
      %12741 = vxpose.xlu0.b32.cont [13/16] 0.0, 128
      %12742 = vxpose.xlu0.b32.cont [14/16] 0.0, 128
      %12743 = vxpose.xlu0.b32.cont [15/16] 0.0, 128
      %12744 = vxpose.xlu0.b32.end [16/16] 0.0, 128
      %v12745 = vpop.trf.xlu0
      %v12746 = vpop.trf.xlu0
      %v12747 = vpop.trf.xlu0
      %v12748 = vpop.trf.xlu0
      %v12749 = vpop.trf.xlu0
      %v12750 = vpop.trf.xlu0
      %v12751 = vpop.trf.xlu0
      %v12752 = vpop.trf.xlu0
      %v12753 = vpop.trf.xlu0
      %v12754 = vpop.trf.xlu0
      %v12755 = vpop.trf.xlu0
      %v12756 = vpop.trf.xlu0
      %v12757 = vpop.trf.xlu0
      %v12758 = vpop.trf.xlu0
      %v12759 = vpop.trf.xlu0
      %v12760 = vpop.trf.xlu0
      %12761 = vxpose.xlu0.b32.start [1/16] %v12351, 128
      %12762 = vxpose.xlu0.b32.cont [2/16] 0.0, 128
      %12763 = vxpose.xlu0.b32.cont [3/16] 0.0, 128
      %12764 = vxpose.xlu0.b32.cont [4/16] 0.0, 128
      %12765 = vxpose.xlu0.b32.cont [5/16] 0.0, 128
      %12766 = vxpose.xlu0.b32.cont [6/16] 0.0, 128
      %12767 = vxpose.xlu0.b32.cont [7/16] 0.0, 128
      %12768 = vxpose.xlu0.b32.cont [8/16] 0.0, 128
      %12769 = vxpose.xlu0.b32.cont [9/16] 0.0, 128
      %12770 = vxpose.xlu0.b32.cont [10/16] 0.0, 128
      %12771 = vxpose.xlu0.b32.cont [11/16] 0.0, 128
      %12772 = vxpose.xlu0.b32.cont [12/16] 0.0, 128
      %12773 = vxpose.xlu0.b32.cont [13/16] 0.0, 128
      %12774 = vxpose.xlu0.b32.cont [14/16] 0.0, 128
      %12775 = vxpose.xlu0.b32.cont [15/16] 0.0, 128
      %12776 = vxpose.xlu0.b32.end [16/16] 0.0, 128
      %v12777 = vpop.trf.xlu0
      %v12778 = vpop.trf.xlu0
      %v12779 = vpop.trf.xlu0
      %v12780 = vpop.trf.xlu0
      %v12781 = vpop.trf.xlu0
      %v12782 = vpop.trf.xlu0
      %v12783 = vpop.trf.xlu0
      %v12784 = vpop.trf.xlu0
      %v12785 = vpop.trf.xlu0
      %v12786 = vpop.trf.xlu0
      %v12787 = vpop.trf.xlu0
      %v12788 = vpop.trf.xlu0
      %v12789 = vpop.trf.xlu0
      %v12790 = vpop.trf.xlu0
      %v12791 = vpop.trf.xlu0
      %v12792 = vpop.trf.xlu0
      %12793 = vxpose.xlu0.b32.start [1/16] %v12354, 128
      %12794 = vxpose.xlu0.b32.cont [2/16] 0.0, 128
      %12795 = vxpose.xlu0.b32.cont [3/16] 0.0, 128
      %12796 = vxpose.xlu0.b32.cont [4/16] 0.0, 128
      %12797 = vxpose.xlu0.b32.cont [5/16] 0.0, 128
      %12798 = vxpose.xlu0.b32.cont [6/16] 0.0, 128
      %12799 = vxpose.xlu0.b32.cont [7/16] 0.0, 128
      %12800 = vxpose.xlu0.b32.cont [8/16] 0.0, 128
      %12801 = vxpose.xlu0.b32.cont [9/16] 0.0, 128
      %12802 = vxpose.xlu0.b32.cont [10/16] 0.0, 128
      %12803 = vxpose.xlu0.b32.cont [11/16] 0.0, 128
      %12804 = vxpose.xlu0.b32.cont [12/16] 0.0, 128
      %12805 = vxpose.xlu0.b32.cont [13/16] 0.0, 128
      %12806 = vxpose.xlu0.b32.cont [14/16] 0.0, 128
      %12807 = vxpose.xlu0.b32.cont [15/16] 0.0, 128
      %12808 = vxpose.xlu0.b32.end [16/16] 0.0, 128
      %v12809 = vpop.trf.xlu0
      %v12810 = vpop.trf.xlu0
      %v12811 = vpop.trf.xlu0
      %v12812 = vpop.trf.xlu0
      %v12813 = vpop.trf.xlu0
      %v12814 = vpop.trf.xlu0
      %v12815 = vpop.trf.xlu0
      %v12816 = vpop.trf.xlu0
      %v12817 = vpop.trf.xlu0
      %v12818 = vpop.trf.xlu0
      %v12819 = vpop.trf.xlu0
      %v12820 = vpop.trf.xlu0
      %v12821 = vpop.trf.xlu0
      %v12822 = vpop.trf.xlu0
      %v12823 = vpop.trf.xlu0
      %v12824 = vpop.trf.xlu0
      %12825 = vxpose.xlu0.b32.start [1/16] %v12357, 128
      %12826 = vxpose.xlu0.b32.cont [2/16] 0.0, 128
      %12827 = vxpose.xlu0.b32.cont [3/16] 0.0, 128
      %12828 = vxpose.xlu0.b32.cont [4/16] 0.0, 128
      %12829 = vxpose.xlu0.b32.cont [5/16] 0.0, 128
      %12830 = vxpose.xlu0.b32.cont [6/16] 0.0, 128
      %12831 = vxpose.xlu0.b32.cont [7/16] 0.0, 128
      %12832 = vxpose.xlu0.b32.cont [8/16] 0.0, 128
      %12833 = vxpose.xlu0.b32.cont [9/16] 0.0, 128
      %12834 = vxpose.xlu0.b32.cont [10/16] 0.0, 128
      %12835 = vxpose.xlu0.b32.cont [11/16] 0.0, 128
      %12836 = vxpose.xlu0.b32.cont [12/16] 0.0, 128
      %12837 = vxpose.xlu0.b32.cont [13/16] 0.0, 128
      %12838 = vxpose.xlu0.b32.cont [14/16] 0.0, 128
      %12839 = vxpose.xlu0.b32.cont [15/16] 0.0, 128
      %12840 = vxpose.xlu0.b32.end [16/16] 0.0, 128
      %v12841 = vpop.trf.xlu0
      %v12842 = vpop.trf.xlu0
      %v12843 = vpop.trf.xlu0
      %v12844 = vpop.trf.xlu0
      %v12845 = vpop.trf.xlu0
      %v12846 = vpop.trf.xlu0
      %v12847 = vpop.trf.xlu0
      %v12848 = vpop.trf.xlu0
      %v12849 = vpop.trf.xlu0
      %v12850 = vpop.trf.xlu0
      %v12851 = vpop.trf.xlu0
      %v12852 = vpop.trf.xlu0
      %v12853 = vpop.trf.xlu0
      %v12854 = vpop.trf.xlu0
      %v12855 = vpop.trf.xlu0
      %v12856 = vpop.trf.xlu0
      %12857 = vxpose.xlu0.b32.start [1/16] %v12360, 128
      %12858 = vxpose.xlu0.b32.cont [2/16] 0.0, 128
      %12859 = vxpose.xlu0.b32.cont [3/16] 0.0, 128
      %12860 = vxpose.xlu0.b32.cont [4/16] 0.0, 128
      %12861 = vxpose.xlu0.b32.cont [5/16] 0.0, 128
      %12862 = vxpose.xlu0.b32.cont [6/16] 0.0, 128
      %12863 = vxpose.xlu0.b32.cont [7/16] 0.0, 128
      %12864 = vxpose.xlu0.b32.cont [8/16] 0.0, 128
      %12865 = vxpose.xlu0.b32.cont [9/16] 0.0, 128
      %12866 = vxpose.xlu0.b32.cont [10/16] 0.0, 128
      %12867 = vxpose.xlu0.b32.cont [11/16] 0.0, 128
      %12868 = vxpose.xlu0.b32.cont [12/16] 0.0, 128
      %12869 = vxpose.xlu0.b32.cont [13/16] 0.0, 128
      %12870 = vxpose.xlu0.b32.cont [14/16] 0.0, 128
      %12871 = vxpose.xlu0.b32.cont [15/16] 0.0, 128
      %12872 = vxpose.xlu0.b32.end [16/16] 0.0, 128
      %v12873 = vpop.trf.xlu0
      %v12874 = vpop.trf.xlu0
      %v12875 = vpop.trf.xlu0
      %v12876 = vpop.trf.xlu0
      %v12877 = vpop.trf.xlu0
      %v12878 = vpop.trf.xlu0
      %v12879 = vpop.trf.xlu0
      %v12880 = vpop.trf.xlu0
      %v12881 = vpop.trf.xlu0
      %v12882 = vpop.trf.xlu0
      %v12883 = vpop.trf.xlu0
      %v12884 = vpop.trf.xlu0
      %v12885 = vpop.trf.xlu0
      %v12886 = vpop.trf.xlu0
      %v12887 = vpop.trf.xlu0
      %v12888 = vpop.trf.xlu0
      %v12889 = vcombine.low %v12393, %v12457
      %v12891 = vunpack.c.l.s4 1983009808
      %v12892 = vunpack.c.0.s8 %v12891
      %v12893 = vlaneseq
      %v12894 = vshrl.u32 %v12893, 7
      %v12895 = vsub.s32 %v12892, %v12894
      %v12896 = vrot.slane %v12889, %v12895
      %v12897 = vcombine.low %v12425, %v12489
      %v12899 = vunpack.c.l.s4 1983009808
      %v12900 = vunpack.c.0.s8 %v12899
      %v12901 = vlaneseq
      %v12902 = vshrl.u32 %v12901, 7
      %v12903 = vsub.s32 %v12900, %v12902
      %v12904 = vrot.slane %v12897, %v12903
      %v12905 = vcombine.low %v12521, %v12585
      %v12907 = vunpack.c.l.s4 1983009808
      %v12908 = vunpack.c.0.s8 %v12907
      %v12909 = vlaneseq
      %v12910 = vshrl.u32 %v12909, 7
      %v12911 = vsub.s32 %v12908, %v12910
      %v12912 = vrot.slane %v12905, %v12911
      %v12913 = vcombine.low %v12553, %v12617
      %v12915 = vunpack.c.l.s4 1983009808
      %v12916 = vunpack.c.0.s8 %v12915
      %v12917 = vlaneseq
      %v12918 = vshrl.u32 %v12917, 7
      %v12919 = vsub.s32 %v12916, %v12918
      %v12920 = vrot.slane %v12913, %v12919
      %v12921 = vcombine.low %v12896, %v12904
      %v12922 = vcombine.high %v12896, %v12904
      %v12924 = vunpack.c.l.s4 1934713408
      %v12925 = vunpack.c.0.s8 %v12924
      %v12926 = vlaneseq
      %v12927 = vshrl.u32 %v12926, 7
      %v12928 = vsub.s32 %v12925, %v12927
      %v12929 = vrot.slane %v12921, %v12928
      %v12931 = vunpack.c.l.s4 1934713408
      %v12932 = vunpack.c.0.s8 %v12931
      %v12933 = vlaneseq
      %v12934 = vshrl.u32 %v12933, 7
      %v12935 = vsub.s32 %v12932, %v12934
      %v12936 = vrot.slane %v12922, %v12935
      %v12937 = vcombine.low %v12912, %v12920
      %v12938 = vcombine.high %v12912, %v12920
      %v12940 = vunpack.c.l.s4 1934713408
      %v12941 = vunpack.c.0.s8 %v12940
      %v12942 = vlaneseq
      %v12943 = vshrl.u32 %v12942, 7
      %v12944 = vsub.s32 %v12941, %v12943
      %v12945 = vrot.slane %v12937, %v12944
      %v12947 = vunpack.c.l.s4 1934713408
      %v12948 = vunpack.c.0.s8 %v12947
      %v12949 = vlaneseq
      %v12950 = vshrl.u32 %v12949, 7
      %v12951 = vsub.s32 %v12948, %v12950
      %v12952 = vrot.slane %v12938, %v12951
      %v12953 = vcombine.low %v12929, %v12945
      %v12954 = vcombine.high %v12929, %v12945
      %v12955 = vcombine.low %v12936, %v12952
      %v12956 = vcombine.high %v12936, %v12952
      %v12957 = vcombine.low %v12649, %v12713
      %v12959 = vunpack.c.l.s4 1983009808
      %v12960 = vunpack.c.0.s8 %v12959
      %v12961 = vlaneseq
      %v12962 = vshrl.u32 %v12961, 7
      %v12963 = vsub.s32 %v12960, %v12962
      %v12964 = vrot.slane %v12957, %v12963
      %v12965 = vcombine.low %v12681, %v12745
      %v12967 = vunpack.c.l.s4 1983009808
      %v12968 = vunpack.c.0.s8 %v12967
      %v12969 = vlaneseq
      %v12970 = vshrl.u32 %v12969, 7
      %v12971 = vsub.s32 %v12968, %v12970
      %v12972 = vrot.slane %v12965, %v12971
      %v12973 = vcombine.low %v12777, %v12841
      %v12975 = vunpack.c.l.s4 1983009808
      %v12976 = vunpack.c.0.s8 %v12975
      %v12977 = vlaneseq
      %v12978 = vshrl.u32 %v12977, 7
      %v12979 = vsub.s32 %v12976, %v12978
      %v12980 = vrot.slane %v12973, %v12979
      %v12981 = vcombine.low %v12809, %v12873
      %v12983 = vunpack.c.l.s4 1983009808
      %v12984 = vunpack.c.0.s8 %v12983
      %v12985 = vlaneseq
      %v12986 = vshrl.u32 %v12985, 7
      %v12987 = vsub.s32 %v12984, %v12986
      %v12988 = vrot.slane %v12981, %v12987
      %v12989 = vcombine.low %v12964, %v12972
      %v12990 = vcombine.high %v12964, %v12972
      %v12992 = vunpack.c.l.s4 1934713408
      %v12993 = vunpack.c.0.s8 %v12992
      %v12994 = vlaneseq
      %v12995 = vshrl.u32 %v12994, 7
      %v12996 = vsub.s32 %v12993, %v12995
      %v12997 = vrot.slane %v12989, %v12996
      %v12999 = vunpack.c.l.s4 1934713408
      %v13000 = vunpack.c.0.s8 %v12999
      %v13001 = vlaneseq
      %v13002 = vshrl.u32 %v13001, 7
      %v13003 = vsub.s32 %v13000, %v13002
      %v13004 = vrot.slane %v12990, %v13003
      %v13005 = vcombine.low %v12980, %v12988
      %v13006 = vcombine.high %v12980, %v12988
      %v13008 = vunpack.c.l.s4 1934713408
      %v13009 = vunpack.c.0.s8 %v13008
      %v13010 = vlaneseq
      %v13011 = vshrl.u32 %v13010, 7
      %v13012 = vsub.s32 %v13009, %v13011
      %v13013 = vrot.slane %v13005, %v13012
      %v13015 = vunpack.c.l.s4 1934713408
      %v13016 = vunpack.c.0.s8 %v13015
      %v13017 = vlaneseq
      %v13018 = vshrl.u32 %v13017, 7
      %v13019 = vsub.s32 %v13016, %v13018
      %v13020 = vrot.slane %v13006, %v13019
      %v13021 = vcombine.low %v12997, %v13013
      %v13022 = vcombine.high %v12997, %v13013
      %v13023 = vcombine.low %v13004, %v13020
      %v13024 = vcombine.high %v13004, %v13020
      %13027 = vrot.lane.b32.xlu0 %v12954, 4
      %v13028 = vpop.permute.xlu0 %13027
      %13029 = vrot.lane.b32.xlu0 %v13022, 4
      %v13030 = vpop.permute.xlu0 %13029
      %13035 = vrot.lane.b32.xlu0 %v12955, 8
      %v13036 = vpop.permute.xlu0 %13035
      %13037 = vrot.lane.b32.xlu0 %v13023, 8
      %v13038 = vpop.permute.xlu0 %13037
      %13043 = vrot.lane.b32.xlu0 %v12956, 12
      %v13044 = vpop.permute.xlu0 %13043
      %13045 = vrot.lane.b32.xlu0 %v13024, 12
      %v13046 = vpop.permute.xlu0 %13045
      %v13049 = vsel %vm3626, %v12953, %v13028
      %v13050 = vsel %vm3626, %v13021, %v13030
      %vm13051 = vcmask 64512
      %v13052 = vsel %vm13051, %v13049, %v13036
      %v13053 = vsel %vm13051, %v13050, %v13038
      %vm13054 = vcmask 97280
      %v13055 = vsel %vm13054, %v13052, %v13044
      %v13056 = vsel %vm13054, %v13053, %v13046
      %v13057 = vpack.c.bf16 %v13056, %v13055
      %v13059 = vunpack.c.l.b16 %v13057
      %v13060 = vunpack.c.h.b16 %v13057
      %v13061 = vpack.c.b16 %v13059, %v13059
      %v13062 = vpack.c.b16 %v13060, %v13060
      %vm13065 = vcmask 125952
      %13066 = vst.msk [vmem:[%s300] sm:$0xf] %vm13065, %v13061
      %13067 = vst.msk [vmem:[%s300 + $0x4] sm:$0xf] %vm13065, %v13062
      %s13068 = smul.u32 2, %s23
      %p13069 = scmp.lt.s32.totalorder %s22, 1
      %s13070 = scalar_select %p13069, %s22, 1
      %p13071 = scmp.lt.s32.totalorder %s13068, 5
      %s13072 = scalar_select %p13071, %s13068, 5
      %s13073 = smul.addr %s13070, 6
      %s13074 = sadd.s32 %s13072, %s13073
      %s13075 = smul.addr %s13074, 4
      %s13076 = scalar_lea.vmem %s7, %s13075
      // Predicated region
      $region49: #{kelz_cnn_forward.2} parent=47 // pred_check
        %p13077 = pneg %p202
      $region50: #{kelz_cnn_forward.2} parent=47 // pred_check_branch
        %13079 = sbr.rel (%p13077) target = $region52
      $region51: #{kelz_cnn_forward.2} parent=47 // pred_region
        %s13080 = smul.u32 2, %s23
      $region52: #{kelz_cnn_forward.2} parent=47 // pred_fallthru
        _
    $region48: #{kelz_cnn_forward.2} parent=5 // pred_fallthru
      _
    %p13081 = scmp.le.s32.totalorder 2, %s13
    // Predicated region
    $region53: #{kelz_cnn_forward.2} parent=5 // pred_check
      %p13082 = pneg %p13081
    $region54: #{kelz_cnn_forward.2} parent=5 // pred_check_branch
      %13084 = sbr.rel (%p13082) target = $region56
    $region55: #{kelz_cnn_forward.2} parent=5 // pred_region
      %s13085 = ssub.s32 %s13, 2
      // Predicated region
      $region57: #{kelz_cnn_forward.2} parent=55 // pred_check
        %p13086 = pneg %p208
      $region58: #{kelz_cnn_forward.2} parent=55 // pred_check_branch
        %13088 = sbr.rel (%p13086) target = $region60
      $region59: #{kelz_cnn_forward.2} parent=55 // pred_region
        %s13089 = smul.u32 2, %s25
        %p13090 = scmp.lt.s32.totalorder %s24, 1
        %s13091 = scalar_select %p13090, %s24, 1
        %p13092 = scmp.lt.s32.totalorder %s13089, 5
        %s13093 = scalar_select %p13092, %s13089, 5
        %s13094 = smul.addr %s13091, 6
        %s13095 = sadd.s32 %s13093, %s13094
        %s13096 = smul.addr %s13095, 4
        %s13097 = scalar_lea.vmem %s7, %s13096
      $region60: #{kelz_cnn_forward.2} parent=55 // pred_fallthru
        _
    $region56: #{kelz_cnn_forward.2} parent=5 // pred_fallthru
      _
  $region6: #{kelz_cnn_forward.2} parent=0 // loop_footer
    %s17 = sadd.s32 1, %s13
  $region7: #{kelz_cnn_forward.2} parent=0 // loop_footer_branch
    %12 = sbr.rel target = $region3
  $region8: #{kelz_cnn_forward.2} parent=0 // loop_exit
    _

</llo_original>
